<compile_context>
chip_gen: v6e
topology: v6e:2x2x1
jax: 0.10.0
libtpu: 0.0.40
codegen_flags: <defaults>
</compile_context>

<pallas_src>
import functools
import math

import jax
import jax.numpy as jnp
from jax.experimental import pallas as pl
from jax.experimental.pallas import tpu as pltpu

SOS_TOKEN = 1  # as in the chatbot tutorial

_VMEM = pl.BlockSpec(memory_space=pltpu.MemorySpace.VMEM)
_SMEM = pl.BlockSpec(memory_space=pltpu.MemorySpace.SMEM)


def _round_up(x, m):
    return (x + m - 1) // m * m


# --------------------------- GRU from fused gates ---------------------------
def _gru_from_gates(gx, gh, h, HP):
    """gx/gh: (1, 3*HP) pre-activation gate blocks [r | z | n]; h: (1, HP)."""
    r = jax.nn.sigmoid(gx[:, 0:HP] + gh[:, 0:HP])
    z = jax.nn.sigmoid(gx[:, HP:2 * HP] + gh[:, HP:2 * HP])
    n = jnp.tanh(gx[:, 2 * HP:3 * HP] + r * gh[:, 2 * HP:3 * HP])
    return (1.0 - z) * n + z * h


# ------------------------------ fused kernel --------------------------------
def _fused_kernel(len_ref, tok_ref,
                  enc_emb_ref, enc_wx_ref, enc_wh_ref, enc_bi_ref, enc_bh_ref,
                  dec_emb_ref, dec_wx_ref, dec_wh_ref, dec_bi_ref, dec_bh_ref,
                  wcat_h_ref, wcat_c_ref, bcat_ref, wout_ref, bout_ref,
                  tokens_ref, scores_ref,
                  xbuf_ref, xg_ref, enc_ref, encT_ref,
                  *, vocab):
    S, HP = enc_ref.shape
    VP = wout_ref.shape[1]
    ML = tokens_ref.shape[1]
    L = len_ref[0]  # effective input length (packed-sequence semantics)

    # ------------------------------ encoder ---------------------------------
    # Gather all S embedding rows once (dynamic emb row reads, static stores).
    def gather(t, _):
        xbuf_ref[pl.ds(t, 1), :] = enc_emb_ref[pl.ds(tok_ref[t], 1), :]
        return 0

    jax.lax.fori_loop(0, S, gather, 0, unroll=True)

    # Batched input-side gate transform: one (S,HP)@(HP,3HP) bf16 matmul
    # replaces 3 per-step M=1 matmuls inside the recurrence.
    xg_ref[...] = (jnp.dot(xbuf_ref[...].astype(jnp.bfloat16), enc_wx_ref[...],
                           preferred_element_type=jnp.float32)
                   + enc_bi_ref[...])

    enc_bh = enc_bh_ref[...]

    def enc_body(t, h):
        gx = xg_ref[pl.ds(t, 1), :]                                 # (1, 3HP)
        gh = (jnp.dot(h.astype(jnp.bfloat16), enc_wh_ref[...],
                      preferred_element_type=jnp.float32) + enc_bh)
        h_upd = _gru_from_gates(gx, gh, h, HP)
        valid = t < L
        # padded positions -> zero encoder outputs (pad_packed_sequence behavior)
        enc_ref[pl.ds(t, 1), :] = jnp.where(valid, h_upd, jnp.zeros_like(h_upd))
        return jnp.where(valid, h_upd, h)

    # TODO(synk): cap the unroll (e.g. unroll=8) once S grows beyond ~64.
    h_enc = jax.lax.fori_loop(0, S, enc_body, jnp.zeros((1, HP), jnp.float32),
                              unroll=True)

    # Hoist the encoder-output transpose out of the decode loop (one XLU pass).
    encT_ref[...] = jnp.transpose(enc_ref[...])                      # (HP, S)

    # ------------------------------ decoder ---------------------------------
    dec_bi, dec_bh = dec_bi_ref[...], dec_bh_ref[...]
    bcat, bout = bcat_ref[...], bout_ref[...]
    col_v = jax.lax.broadcasted_iota(jnp.int32, (1, VP), 1)
    col_s = jax.lax.broadcasted_iota(jnp.int32, (1, S), 1)
    col_m = jax.lax.broadcasted_iota(jnp.int32, (1, ML), 1)
    attn_valid = col_s < L           # mask padded encoder positions
    vocab_valid = col_v < vocab      # mask padded vocab lanes

    def dec_body(t, carry):
        h, tok, toks, scs = carry

        # Embedding lookup of the previously emitted token (dynamic row read).
        x = dec_emb_ref[pl.ds(tok, 1), :]                            # (1, HP)

        # GRU cell: two fused-gate MXU pushes per step.
        gx = (jnp.dot(x.astype(jnp.bfloat16), dec_wx_ref[...],
                      preferred_element_type=jnp.float32) + dec_bi)
        gh = (jnp.dot(h.astype(jnp.bfloat16), dec_wh_ref[...],
                      preferred_element_type=jnp.float32) + dec_bh)
        h_new = _gru_from_gates(gx, gh, h, HP)

        # Luong "dot" attention, lane-major softmax, encT hoisted.
        energies = jnp.dot(h_new, encT_ref[...],
                           preferred_element_type=jnp.float32)       # (1, S)
        energies = jnp.where(attn_valid, energies, jnp.float32(-1e30))
        e = jnp.exp(energies - jnp.max(energies, axis=-1, keepdims=True))
        attn = e * pl.reciprocal(jnp.sum(e, axis=-1, keepdims=True), approx=True)
        context = jnp.dot(attn, enc_ref[...],
                          preferred_element_type=jnp.float32)        # (1, HP)

        # concat -> tanh -> out (W_cat split per operand: no lane concat needed)
        cat = jnp.tanh(
            jnp.dot(h_new.astype(jnp.bfloat16), wcat_h_ref[...],
                    preferred_element_type=jnp.float32)
            + jnp.dot(context.astype(jnp.bfloat16), wcat_c_ref[...],
                      preferred_element_type=jnp.float32)
            + bcat)
        logits = (jnp.dot(cat.astype(jnp.bfloat16), wout_ref[...],
                          preferred_element_type=jnp.float32) + bout)  # (1, VP)
        logits = jnp.where(vocab_valid, logits, jnp.float32(-1e30))

        # Greedy step on logits: argmax(softmax) == argmax(logits);
        # max softmax value == 1 / sum(exp(logits - max)).
        m = jnp.max(logits, axis=-1, keepdims=True)                  # (1, 1)
        denom = jnp.sum(jnp.exp(logits - m), axis=-1, keepdims=True)
        score = pl.reciprocal(denom)                                 # exact, <= 1
        tok_new = jnp.min(jnp.where(logits == m, col_v, VP))         # first argmax

        # Lane-dense accumulation of outputs (stored once after the loop).
        toks = jnp.where(col_m == t, tok_new, toks)
        scs = jnp.where(col_m == t, score, scs)
        return h_new, tok_new, toks, scs

    carry0 = (h_enc,                                                 # decoder_hidden = enc_hidden
              jnp.array(SOS_TOKEN, dtype=jnp.int32),
              jnp.zeros((1, ML), jnp.int32),
              jnp.zeros((1, ML), jnp.float32))
    _, _, toks, scs = jax.lax.fori_loop(0, ML, dec_body, carry0, unroll=True)
    tokens_ref[...] = toks
    scores_ref[...] = scs


# -------------------------------- wrapper ------------------------------------
def greedy_search_decoder(params, input_seq, input_length, max_length):
    """Mirrors GreedySearchDecoder.forward -> (all_tokens[max_length], all_scores[max_length])."""
    S = int(input_seq.shape[0])
    HP = int(params["enc_wh"].shape[0])          # padded hidden (multiple of 128)
    vocab = int(params["vocab_size"])

    kernel = functools.partial(_fused_kernel, vocab=vocab)
    tokens, scores = pl.pallas_call(
        kernel,
        out_shape=(jax.ShapeDtypeStruct((1, max_length), jnp.int32),
                   jax.ShapeDtypeStruct((1, max_length), jnp.float32)),
        in_specs=[_SMEM, _SMEM] + [_VMEM] * 15,
        out_specs=(_VMEM, _VMEM),
        scratch_shapes=[
            pltpu.VMEM((S, HP), jnp.float32),        # gathered encoder embeddings
            pltpu.VMEM((S, 3 * HP), jnp.float32),    # batched input-side gates Xg
            pltpu.VMEM((S, HP), jnp.float32),        # encoder outputs
            pltpu.VMEM((HP, S), jnp.float32),        # encoder outputs, transposed
        ],
        compiler_params=pltpu.CompilerParams(vmem_limit_bytes=32 * 1024 * 1024),
    )(jnp.asarray([input_length], jnp.int32),
      input_seq.astype(jnp.int32),
      params["enc_emb"], params["enc_wx"], params["enc_wh"],
      params["enc_bi"], params["enc_bh"],
      params["dec_emb"], params["dec_wx"], params["dec_wh"],
      params["dec_bi"], params["dec_bh"],
      params["wcat_h"], params["wcat_c"], params["bcat"],
      params["wout"], params["bout"])
    return tokens[0], scores[0]


# --------------------------- deterministic init ------------------------------
def init_params(key, vocab, hidden):
    """Weights stored pre-transposed [in,out], gate-fused, zero-padded to 128 lanes, bf16."""
    HP = _round_up(hidden, 128)
    VP = _round_up(vocab, 128)
    ks = iter(jax.random.split(key, 40))
    s = 1.0 / math.sqrt(hidden)

    def u(shape):
        return jax.random.uniform(next(ks), shape, jnp.float32, -s, s)

    def pad2(a, rows, cols):
        return jnp.pad(a, ((0, rows - a.shape[0]), (0, cols - a.shape[1])))

    def fuse_gates(mats, rows, cols):   # [r | z | n] along the lane axis, each padded
        return jnp.concatenate([pad2(m, rows, cols) for m in mats], axis=1)

    p = {"vocab_size": vocab, "hidden_size": hidden}
    p["enc_emb"] = pad2(jax.random.normal(next(ks), (vocab, hidden), jnp.float32) * 0.1, VP, HP)
    p["dec_emb"] = pad2(jax.random.normal(next(ks), (vocab, hidden), jnp.float32) * 0.1, VP, HP)
    for pre in ("enc", "dec"):
        wi = [u((hidden, hidden)) for _ in range(3)]   # input-side  r, z, n
        wh = [u((hidden, hidden)) for _ in range(3)]   # hidden-side r, z, n
        bi = [u((1, hidden)) for _ in range(3)]
        bh = [u((1, hidden)) for _ in range(3)]
        p[f"{pre}_wx"] = fuse_gates(wi, HP, HP).astype(jnp.bfloat16)
        p[f"{pre}_wh"] = fuse_gates(wh, HP, HP).astype(jnp.bfloat16)
        p[f"{pre}_bi"] = fuse_gates(bi, 1, HP)
        p[f"{pre}_bh"] = fuse_gates(bh, 1, HP)
    p["wcat_h"] = pad2(u((hidden, hidden)), HP, HP).astype(jnp.bfloat16)
    p["wcat_c"] = pad2(u((hidden, hidden)), HP, HP).astype(jnp.bfloat16)
    p["bcat"] = pad2(u((1, hidden)), 1, HP)
    p["wout"] = pad2(u((hidden, vocab)), HP, VP).astype(jnp.bfloat16)
    p["bout"] = pad2(u((1, vocab)), 1, VP)
    return p


if __name__ == "__main__":
    VOCAB, HIDDEN, SEQ_LEN, MAX_LENGTH = 32, 32, 8, 8
    key = jax.random.PRNGKey(0)
    pkey, dkey = jax.random.split(key)
    params = init_params(pkey, VOCAB, HIDDEN)

    input_seq = jax.random.randint(dkey, (SEQ_LEN,), 0, VOCAB, dtype=jnp.int32)
    input_length = SEQ_LEN  # single (unpadded) sequence, as in the tutorial's evaluate()

    all_tokens, all_scores = greedy_search_decoder(params, input_seq, input_length, MAX_LENGTH)
    jax.block_until_ready((all_tokens, all_scores))

    assert all_tokens.shape == (MAX_LENGTH,) and all_tokens.dtype == jnp.int32
    assert all_scores.shape == (MAX_LENGTH,) and all_scores.dtype == jnp.float32
    assert bool(jnp.all((all_tokens >= 0) & (all_tokens < VOCAB)))
    assert bool(jnp.all((all_scores > 0.0) & (all_scores <= 1.0)))
    print("KERNEL_OK")
</pallas_src>

<mosaic_0001>
module attributes {stable_mosaic.version = 11 : i64} {
  func.func @_fused_kernel(%arg0: memref<1xi32, #tpu.memory_space<smem>>, %arg1: memref<8xi32, #tpu.memory_space<smem>>, %arg2: memref<128x128xf32, #tpu.memory_space<vmem>>, %arg3: memref<128x384xbf16, #tpu.memory_space<vmem>>, %arg4: memref<128x384xbf16, #tpu.memory_space<vmem>>, %arg5: memref<1x384xf32, #tpu.memory_space<vmem>>, %arg6: memref<1x384xf32, #tpu.memory_space<vmem>>, %arg7: memref<128x128xf32, #tpu.memory_space<vmem>>, %arg8: memref<128x384xbf16, #tpu.memory_space<vmem>>, %arg9: memref<128x384xbf16, #tpu.memory_space<vmem>>, %arg10: memref<1x384xf32, #tpu.memory_space<vmem>>, %arg11: memref<1x384xf32, #tpu.memory_space<vmem>>, %arg12: memref<128x128xbf16, #tpu.memory_space<vmem>>, %arg13: memref<128x128xbf16, #tpu.memory_space<vmem>>, %arg14: memref<1x128xf32, #tpu.memory_space<vmem>>, %arg15: memref<128x128xbf16, #tpu.memory_space<vmem>>, %arg16: memref<1x128xf32, #tpu.memory_space<vmem>>, %arg17: memref<1x8xi32, #tpu.memory_space<vmem>>, %arg18: memref<1x8xf32, #tpu.memory_space<vmem>>, %arg19: memref<8x128xf32, #tpu.memory_space<vmem>>, %arg20: memref<8x384xf32, #tpu.memory_space<vmem>>, %arg21: memref<8x128xf32, #tpu.memory_space<vmem>>, %arg22: memref<128x8xf32, #tpu.memory_space<vmem>>) attributes {dimension_semantics = [], scalar_prefetch = 0 : i64, scratch_operands = 4 : i64, tpu.core_type = #tpu.core_type<tc>} {
    %c0 = arith.constant 0 : index
    %0 = memref.load %arg0[%c0] : memref<1xi32, #tpu.memory_space<smem>>
    %c0_i32 = arith.constant 0 : i32
    %1 = arith.index_cast %c0_i32 : i32 to index
    %2 = memref.load %arg1[%1] : memref<8xi32, #tpu.memory_space<smem>>
    %3 = arith.index_cast %2 : i32 to index
    %c0_0 = arith.constant 0 : index
    %4 = vector.load %arg2[%3, %c0_0] : memref<128x128xf32, #tpu.memory_space<vmem>>, vector<1x128xf32>
    %5 = arith.index_cast %c0_i32 : i32 to index
    %c0_1 = arith.constant 0 : index
    %6 = vector.load %arg19[%5, %c0_1] : memref<8x128xf32, #tpu.memory_space<vmem>>, vector<1x128xf32>
    tpu.vector_store %arg19[%5, %c0_1], %4 {strides = array<i32>} : memref<8x128xf32, #tpu.memory_space<vmem>>, vector<1x128xf32>,
    %c1_i32 = arith.constant 1 : i32
    %7 = arith.index_cast %c1_i32 : i32 to index
    %8 = memref.load %arg1[%7] : memref<8xi32, #tpu.memory_space<smem>>
    %9 = arith.index_cast %8 : i32 to index
    %c0_2 = arith.constant 0 : index
    %10 = vector.load %arg2[%9, %c0_2] : memref<128x128xf32, #tpu.memory_space<vmem>>, vector<1x128xf32>
    %11 = arith.index_cast %c1_i32 : i32 to index
    %c0_3 = arith.constant 0 : index
    %12 = vector.load %arg19[%11, %c0_3] : memref<8x128xf32, #tpu.memory_space<vmem>>, vector<1x128xf32>
    tpu.vector_store %arg19[%11, %c0_3], %10 {strides = array<i32>} : memref<8x128xf32, #tpu.memory_space<vmem>>, vector<1x128xf32>,
    %c2_i32 = arith.constant 2 : i32
    %13 = arith.index_cast %c2_i32 : i32 to index
    %14 = memref.load %arg1[%13] : memref<8xi32, #tpu.memory_space<smem>>
    %15 = arith.index_cast %14 : i32 to index
    %c0_4 = arith.constant 0 : index
    %16 = vector.load %arg2[%15, %c0_4] : memref<128x128xf32, #tpu.memory_space<vmem>>, vector<1x128xf32>
    %17 = arith.index_cast %c2_i32 : i32 to index
    %c0_5 = arith.constant 0 : index
    %18 = vector.load %arg19[%17, %c0_5] : memref<8x128xf32, #tpu.memory_space<vmem>>, vector<1x128xf32>
    tpu.vector_store %arg19[%17, %c0_5], %16 {strides = array<i32>} : memref<8x128xf32, #tpu.memory_space<vmem>>, vector<1x128xf32>,
    %c3_i32 = arith.constant 3 : i32
    %19 = arith.index_cast %c3_i32 : i32 to index
    %20 = memref.load %arg1[%19] : memref<8xi32, #tpu.memory_space<smem>>
    %21 = arith.index_cast %20 : i32 to index
    %c0_6 = arith.constant 0 : index
    %22 = vector.load %arg2[%21, %c0_6] : memref<128x128xf32, #tpu.memory_space<vmem>>, vector<1x128xf32>
    %23 = arith.index_cast %c3_i32 : i32 to index
    %c0_7 = arith.constant 0 : index
    %24 = vector.load %arg19[%23, %c0_7] : memref<8x128xf32, #tpu.memory_space<vmem>>, vector<1x128xf32>
    tpu.vector_store %arg19[%23, %c0_7], %22 {strides = array<i32>} : memref<8x128xf32, #tpu.memory_space<vmem>>, vector<1x128xf32>,
    %c4_i32 = arith.constant 4 : i32
    %25 = arith.index_cast %c4_i32 : i32 to index
    %26 = memref.load %arg1[%25] : memref<8xi32, #tpu.memory_space<smem>>
    %27 = arith.index_cast %26 : i32 to index
    %c0_8 = arith.constant 0 : index
    %28 = vector.load %arg2[%27, %c0_8] : memref<128x128xf32, #tpu.memory_space<vmem>>, vector<1x128xf32>
    %29 = arith.index_cast %c4_i32 : i32 to index
    %c0_9 = arith.constant 0 : index
    %30 = vector.load %arg19[%29, %c0_9] : memref<8x128xf32, #tpu.memory_space<vmem>>, vector<1x128xf32>
    tpu.vector_store %arg19[%29, %c0_9], %28 {strides = array<i32>} : memref<8x128xf32, #tpu.memory_space<vmem>>, vector<1x128xf32>,
    %c5_i32 = arith.constant 5 : i32
    %31 = arith.index_cast %c5_i32 : i32 to index
    %32 = memref.load %arg1[%31] : memref<8xi32, #tpu.memory_space<smem>>
    %33 = arith.index_cast %32 : i32 to index
    %c0_10 = arith.constant 0 : index
    %34 = vector.load %arg2[%33, %c0_10] : memref<128x128xf32, #tpu.memory_space<vmem>>, vector<1x128xf32>
    %35 = arith.index_cast %c5_i32 : i32 to index
    %c0_11 = arith.constant 0 : index
    %36 = vector.load %arg19[%35, %c0_11] : memref<8x128xf32, #tpu.memory_space<vmem>>, vector<1x128xf32>
    tpu.vector_store %arg19[%35, %c0_11], %34 {strides = array<i32>} : memref<8x128xf32, #tpu.memory_space<vmem>>, vector<1x128xf32>,
    %c6_i32 = arith.constant 6 : i32
    %37 = arith.index_cast %c6_i32 : i32 to index
    %38 = memref.load %arg1[%37] : memref<8xi32, #tpu.memory_space<smem>>
    %39 = arith.index_cast %38 : i32 to index
    %c0_12 = arith.constant 0 : index
    %40 = vector.load %arg2[%39, %c0_12] : memref<128x128xf32, #tpu.memory_space<vmem>>, vector<1x128xf32>
    %41 = arith.index_cast %c6_i32 : i32 to index
    %c0_13 = arith.constant 0 : index
    %42 = vector.load %arg19[%41, %c0_13] : memref<8x128xf32, #tpu.memory_space<vmem>>, vector<1x128xf32>
    tpu.vector_store %arg19[%41, %c0_13], %40 {strides = array<i32>} : memref<8x128xf32, #tpu.memory_space<vmem>>, vector<1x128xf32>,
    %c7_i32 = arith.constant 7 : i32
    %43 = arith.index_cast %c7_i32 : i32 to index
    %44 = memref.load %arg1[%43] : memref<8xi32, #tpu.memory_space<smem>>
    %45 = arith.index_cast %44 : i32 to index
    %c0_14 = arith.constant 0 : index
    %46 = vector.load %arg2[%45, %c0_14] : memref<128x128xf32, #tpu.memory_space<vmem>>, vector<1x128xf32>
    %47 = arith.index_cast %c7_i32 : i32 to index
    %c0_15 = arith.constant 0 : index
    %48 = vector.load %arg19[%47, %c0_15] : memref<8x128xf32, #tpu.memory_space<vmem>>, vector<1x128xf32>
    tpu.vector_store %arg19[%47, %c0_15], %46 {strides = array<i32>} : memref<8x128xf32, #tpu.memory_space<vmem>>, vector<1x128xf32>,
    %c8_i32 = arith.constant 8 : i32
    %c0_16 = arith.constant 0 : index
    %c0_17 = arith.constant 0 : index
    %49 = vector.load %arg19[%c0_16, %c0_17] : memref<8x128xf32, #tpu.memory_space<vmem>>, vector<8x128xf32>
    %50 = arith.truncf %49 : vector<8x128xf32> to vector<8x128xbf16>
    %c0_18 = arith.constant 0 : index
    %c0_19 = arith.constant 0 : index
    %51 = vector.load %arg3[%c0_18, %c0_19] : memref<128x384xbf16, #tpu.memory_space<vmem>>, vector<128x384xbf16>
    %cst = arith.constant dense<0.000000e+00> : vector<8x384xf32>
    %52 = tpu.matmul %50, %51, %cst {dimension_numbers = #tpu.dot_dimension_numbers<[1], [0], [0], [1], [0, 0, 1, 1], [], []>} : vector<8x128xbf16>, vector<128x384xbf16>, vector<8x384xf32> -> vector<8x384xf32>
    %c0_20 = arith.constant 0 : index
    %c0_21 = arith.constant 0 : index
    %53 = vector.load %arg5[%c0_20, %c0_21] : memref<1x384xf32, #tpu.memory_space<vmem>>, vector<1x384xf32>
    %54 = vector.broadcast %53 : vector<1x384xf32> to vector<8x384xf32>
    %55 = arith.addf %52, %54 : vector<8x384xf32>
    %c0_22 = arith.constant 0 : index
    %c0_23 = arith.constant 0 : index
    %56 = vector.load %arg20[%c0_22, %c0_23] : memref<8x384xf32, #tpu.memory_space<vmem>>, vector<8x384xf32>
    tpu.vector_store %arg20[%c0_22, %c0_23], %55 {strides = array<i32>} : memref<8x384xf32, #tpu.memory_space<vmem>>, vector<8x384xf32>,
    %c0_24 = arith.constant 0 : index
    %c0_25 = arith.constant 0 : index
    %57 = vector.load %arg6[%c0_24, %c0_25] : memref<1x384xf32, #tpu.memory_space<vmem>>, vector<1x384xf32>
    %cst_26 = arith.constant 0.000000e+00 : f32
    %58 = vector.broadcast %cst_26 : f32 to vector<1x128xf32>
    %c0_i32_27 = arith.constant 0 : i32
    %59 = arith.index_cast %c0_i32_27 : i32 to index
    %c0_28 = arith.constant 0 : index
    %60 = vector.load %arg20[%59, %c0_28] : memref<8x384xf32, #tpu.memory_space<vmem>>, vector<1x384xf32>
    %61 = arith.truncf %58 : vector<1x128xf32> to vector<1x128xbf16>
    %c0_29 = arith.constant 0 : index
    %c0_30 = arith.constant 0 : index
    %62 = vector.load %arg4[%c0_29, %c0_30] : memref<128x384xbf16, #tpu.memory_space<vmem>>, vector<128x384xbf16>
    %cst_31 = arith.constant dense<0.000000e+00> : vector<1x384xf32>
    %63 = tpu.matmul %61, %62, %cst_31 {dimension_numbers = #tpu.dot_dimension_numbers<[1], [0], [0], [1], [0, 0, 1, 1], [], []>} : vector<1x128xbf16>, vector<128x384xbf16>, vector<1x384xf32> -> vector<1x384xf32>
    %64 = arith.addf %63, %57 : vector<1x384xf32>
    %65 = vector.extract_strided_slice %60 {offsets = [0, 0], sizes = [1, 128], strides = [1, 1]} : vector<1x384xf32> to vector<1x128xf32>
    %66 = vector.extract_strided_slice %64 {offsets = [0, 0], sizes = [1, 128], strides = [1, 1]} : vector<1x384xf32> to vector<1x128xf32>
    %67 = arith.addf %65, %66 : vector<1x128xf32>
    %68 = arith.negf %67 : vector<1x128xf32>
    %69 = math.exp %68 : vector<1x128xf32>
    %cst_32 = arith.constant 1.000000e+00 : f32
    %70 = vector.broadcast %cst_32 : f32 to vector<1x128xf32>
    %71 = arith.addf %70, %69 : vector<1x128xf32>
    %72 = arith.divf %70, %71 : vector<1x128xf32>
    %73 = vector.extract_strided_slice %60 {offsets = [0, 128], sizes = [1, 128], strides = [1, 1]} : vector<1x384xf32> to vector<1x128xf32>
    %74 = vector.extract_strided_slice %64 {offsets = [0, 128], sizes = [1, 128], strides = [1, 1]} : vector<1x384xf32> to vector<1x128xf32>
    %75 = arith.addf %73, %74 : vector<1x128xf32>
    %76 = arith.negf %75 : vector<1x128xf32>
    %77 = math.exp %76 : vector<1x128xf32>
    %cst_33 = arith.constant 1.000000e+00 : f32
    %78 = vector.broadcast %cst_33 : f32 to vector<1x128xf32>
    %79 = arith.addf %78, %77 : vector<1x128xf32>
    %80 = arith.divf %78, %79 : vector<1x128xf32>
    %81 = vector.extract_strided_slice %60 {offsets = [0, 256], sizes = [1, 128], strides = [1, 1]} : vector<1x384xf32> to vector<1x128xf32>
    %82 = vector.extract_strided_slice %64 {offsets = [0, 256], sizes = [1, 128], strides = [1, 1]} : vector<1x384xf32> to vector<1x128xf32>
    %83 = arith.mulf %72, %82 : vector<1x128xf32>
    %84 = arith.addf %81, %83 : vector<1x128xf32>
    %85 = math.tanh %84 : vector<1x128xf32>
    %cst_34 = arith.constant 1.000000e+00 : f32
    %86 = vector.broadcast %cst_34 : f32 to vector<1x128xf32>
    %87 = arith.subf %86, %80 : vector<1x128xf32>
    %88 = arith.mulf %87, %85 : vector<1x128xf32>
    %89 = arith.mulf %80, %58 : vector<1x128xf32>
    %90 = arith.addf %88, %89 : vector<1x128xf32>
    %91 = arith.cmpi slt, %c0_i32_27, %0 : i32
    %cst_35 = arith.constant 0.000000e+00 : f32
    %92 = vector.broadcast %cst_35 : f32 to vector<1x128xf32>
    %93 = arith.select %91, %90, %92 : vector<1x128xf32>
    %94 = arith.index_cast %c0_i32_27 : i32 to index
    %c0_36 = arith.constant 0 : index
    %95 = vector.load %arg21[%94, %c0_36] : memref<8x128xf32, #tpu.memory_space<vmem>>, vector<1x128xf32>
    tpu.vector_store %arg21[%94, %c0_36], %93 {strides = array<i32>} : memref<8x128xf32, #tpu.memory_space<vmem>>, vector<1x128xf32>,
    %96 = arith.select %91, %90, %58 : vector<1x128xf32>
    %c1_i32_37 = arith.constant 1 : i32
    %97 = arith.index_cast %c1_i32_37 : i32 to index
    %c0_38 = arith.constant 0 : index
    %98 = vector.load %arg20[%97, %c0_38] : memref<8x384xf32, #tpu.memory_space<vmem>>, vector<1x384xf32>
    %99 = arith.truncf %96 : vector<1x128xf32> to vector<1x128xbf16>
    %c0_39 = arith.constant 0 : index
    %c0_40 = arith.constant 0 : index
    %100 = vector.load %arg4[%c0_39, %c0_40] : memref<128x384xbf16, #tpu.memory_space<vmem>>, vector<128x384xbf16>
    %cst_41 = arith.constant dense<0.000000e+00> : vector<1x384xf32>
    %101 = tpu.matmul %99, %100, %cst_41 {dimension_numbers = #tpu.dot_dimension_numbers<[1], [0], [0], [1], [0, 0, 1, 1], [], []>} : vector<1x128xbf16>, vector<128x384xbf16>, vector<1x384xf32> -> vector<1x384xf32>
    %102 = arith.addf %101, %57 : vector<1x384xf32>
    %103 = vector.extract_strided_slice %98 {offsets = [0, 0], sizes = [1, 128], strides = [1, 1]} : vector<1x384xf32> to vector<1x128xf32>
    %104 = vector.extract_strided_slice %102 {offsets = [0, 0], sizes = [1, 128], strides = [1, 1]} : vector<1x384xf32> to vector<1x128xf32>
    %105 = arith.addf %103, %104 : vector<1x128xf32>
    %106 = arith.negf %105 : vector<1x128xf32>
    %107 = math.exp %106 : vector<1x128xf32>
    %cst_42 = arith.constant 1.000000e+00 : f32
    %108 = vector.broadcast %cst_42 : f32 to vector<1x128xf32>
    %109 = arith.addf %108, %107 : vector<1x128xf32>
    %110 = arith.divf %108, %109 : vector<1x128xf32>
    %111 = vector.extract_strided_slice %98 {offsets = [0, 128], sizes = [1, 128], strides = [1, 1]} : vector<1x384xf32> to vector<1x128xf32>
    %112 = vector.extract_strided_slice %102 {offsets = [0, 128], sizes = [1, 128], strides = [1, 1]} : vector<1x384xf32> to vector<1x128xf32>
    %113 = arith.addf %111, %112 : vector<1x128xf32>
    %114 = arith.negf %113 : vector<1x128xf32>
    %115 = math.exp %114 : vector<1x128xf32>
    %cst_43 = arith.constant 1.000000e+00 : f32
    %116 = vector.broadcast %cst_43 : f32 to vector<1x128xf32>
    %117 = arith.addf %116, %115 : vector<1x128xf32>
    %118 = arith.divf %116, %117 : vector<1x128xf32>
    %119 = vector.extract_strided_slice %98 {offsets = [0, 256], sizes = [1, 128], strides = [1, 1]} : vector<1x384xf32> to vector<1x128xf32>
    %120 = vector.extract_strided_slice %102 {offsets = [0, 256], sizes = [1, 128], strides = [1, 1]} : vector<1x384xf32> to vector<1x128xf32>
    %121 = arith.mulf %110, %120 : vector<1x128xf32>
    %122 = arith.addf %119, %121 : vector<1x128xf32>
    %123 = math.tanh %122 : vector<1x128xf32>
    %cst_44 = arith.constant 1.000000e+00 : f32
    %124 = vector.broadcast %cst_44 : f32 to vector<1x128xf32>
    %125 = arith.subf %124, %118 : vector<1x128xf32>
    %126 = arith.mulf %125, %123 : vector<1x128xf32>
    %127 = arith.mulf %118, %96 : vector<1x128xf32>
    %128 = arith.addf %126, %127 : vector<1x128xf32>
    %129 = arith.cmpi slt, %c1_i32_37, %0 : i32
    %cst_45 = arith.constant 0.000000e+00 : f32
    %130 = vector.broadcast %cst_45 : f32 to vector<1x128xf32>
    %131 = arith.select %129, %128, %130 : vector<1x128xf32>
    %132 = arith.index_cast %c1_i32_37 : i32 to index
    %c0_46 = arith.constant 0 : index
    %133 = vector.load %arg21[%132, %c0_46] : memref<8x128xf32, #tpu.memory_space<vmem>>, vector<1x128xf32>
    tpu.vector_store %arg21[%132, %c0_46], %131 {strides = array<i32>} : memref<8x128xf32, #tpu.memory_space<vmem>>, vector<1x128xf32>,
    %134 = arith.select %129, %128, %96 : vector<1x128xf32>
    %c2_i32_47 = arith.constant 2 : i32
    %135 = arith.index_cast %c2_i32_47 : i32 to index
    %c0_48 = arith.constant 0 : index
    %136 = vector.load %arg20[%135, %c0_48] : memref<8x384xf32, #tpu.memory_space<vmem>>, vector<1x384xf32>
    %137 = arith.truncf %134 : vector<1x128xf32> to vector<1x128xbf16>
    %c0_49 = arith.constant 0 : index
    %c0_50 = arith.constant 0 : index
    %138 = vector.load %arg4[%c0_49, %c0_50] : memref<128x384xbf16, #tpu.memory_space<vmem>>, vector<128x384xbf16>
    %cst_51 = arith.constant dense<0.000000e+00> : vector<1x384xf32>
    %139 = tpu.matmul %137, %138, %cst_51 {dimension_numbers = #tpu.dot_dimension_numbers<[1], [0], [0], [1], [0, 0, 1, 1], [], []>} : vector<1x128xbf16>, vector<128x384xbf16>, vector<1x384xf32> -> vector<1x384xf32>
    %140 = arith.addf %139, %57 : vector<1x384xf32>
    %141 = vector.extract_strided_slice %136 {offsets = [0, 0], sizes = [1, 128], strides = [1, 1]} : vector<1x384xf32> to vector<1x128xf32>
    %142 = vector.extract_strided_slice %140 {offsets = [0, 0], sizes = [1, 128], strides = [1, 1]} : vector<1x384xf32> to vector<1x128xf32>
    %143 = arith.addf %141, %142 : vector<1x128xf32>
    %144 = arith.negf %143 : vector<1x128xf32>
    %145 = math.exp %144 : vector<1x128xf32>
    %cst_52 = arith.constant 1.000000e+00 : f32
    %146 = vector.broadcast %cst_52 : f32 to vector<1x128xf32>
    %147 = arith.addf %146, %145 : vector<1x128xf32>
    %148 = arith.divf %146, %147 : vector<1x128xf32>
    %149 = vector.extract_strided_slice %136 {offsets = [0, 128], sizes = [1, 128], strides = [1, 1]} : vector<1x384xf32> to vector<1x128xf32>
    %150 = vector.extract_strided_slice %140 {offsets = [0, 128], sizes = [1, 128], strides = [1, 1]} : vector<1x384xf32> to vector<1x128xf32>
    %151 = arith.addf %149, %150 : vector<1x128xf32>
    %152 = arith.negf %151 : vector<1x128xf32>
    %153 = math.exp %152 : vector<1x128xf32>
    %cst_53 = arith.constant 1.000000e+00 : f32
    %154 = vector.broadcast %cst_53 : f32 to vector<1x128xf32>
    %155 = arith.addf %154, %153 : vector<1x128xf32>
    %156 = arith.divf %154, %155 : vector<1x128xf32>
    %157 = vector.extract_strided_slice %136 {offsets = [0, 256], sizes = [1, 128], strides = [1, 1]} : vector<1x384xf32> to vector<1x128xf32>
    %158 = vector.extract_strided_slice %140 {offsets = [0, 256], sizes = [1, 128], strides = [1, 1]} : vector<1x384xf32> to vector<1x128xf32>
    %159 = arith.mulf %148, %158 : vector<1x128xf32>
    %160 = arith.addf %157, %159 : vector<1x128xf32>
    %161 = math.tanh %160 : vector<1x128xf32>
    %cst_54 = arith.constant 1.000000e+00 : f32
    %162 = vector.broadcast %cst_54 : f32 to vector<1x128xf32>
    %163 = arith.subf %162, %156 : vector<1x128xf32>
    %164 = arith.mulf %163, %161 : vector<1x128xf32>
    %165 = arith.mulf %156, %134 : vector<1x128xf32>
    %166 = arith.addf %164, %165 : vector<1x128xf32>
    %167 = arith.cmpi slt, %c2_i32_47, %0 : i32
    %cst_55 = arith.constant 0.000000e+00 : f32
    %168 = vector.broadcast %cst_55 : f32 to vector<1x128xf32>
    %169 = arith.select %167, %166, %168 : vector<1x128xf32>
    %170 = arith.index_cast %c2_i32_47 : i32 to index
    %c0_56 = arith.constant 0 : index
    %171 = vector.load %arg21[%170, %c0_56] : memref<8x128xf32, #tpu.memory_space<vmem>>, vector<1x128xf32>
    tpu.vector_store %arg21[%170, %c0_56], %169 {strides = array<i32>} : memref<8x128xf32, #tpu.memory_space<vmem>>, vector<1x128xf32>,
    %172 = arith.select %167, %166, %134 : vector<1x128xf32>
    %c3_i32_57 = arith.constant 3 : i32
    %173 = arith.index_cast %c3_i32_57 : i32 to index
    %c0_58 = arith.constant 0 : index
    %174 = vector.load %arg20[%173, %c0_58] : memref<8x384xf32, #tpu.memory_space<vmem>>, vector<1x384xf32>
    %175 = arith.truncf %172 : vector<1x128xf32> to vector<1x128xbf16>
    %c0_59 = arith.constant 0 : index
    %c0_60 = arith.constant 0 : index
    %176 = vector.load %arg4[%c0_59, %c0_60] : memref<128x384xbf16, #tpu.memory_space<vmem>>, vector<128x384xbf16>
    %cst_61 = arith.constant dense<0.000000e+00> : vector<1x384xf32>
    %177 = tpu.matmul %175, %176, %cst_61 {dimension_numbers = #tpu.dot_dimension_numbers<[1], [0], [0], [1], [0, 0, 1, 1], [], []>} : vector<1x128xbf16>, vector<128x384xbf16>, vector<1x384xf32> -> vector<1x384xf32>
    %178 = arith.addf %177, %57 : vector<1x384xf32>
    %179 = vector.extract_strided_slice %174 {offsets = [0, 0], sizes = [1, 128], strides = [1, 1]} : vector<1x384xf32> to vector<1x128xf32>
    %180 = vector.extract_strided_slice %178 {offsets = [0, 0], sizes = [1, 128], strides = [1, 1]} : vector<1x384xf32> to vector<1x128xf32>
    %181 = arith.addf %179, %180 : vector<1x128xf32>
    %182 = arith.negf %181 : vector<1x128xf32>
    %183 = math.exp %182 : vector<1x128xf32>
    %cst_62 = arith.constant 1.000000e+00 : f32
    %184 = vector.broadcast %cst_62 : f32 to vector<1x128xf32>
    %185 = arith.addf %184, %183 : vector<1x128xf32>
    %186 = arith.divf %184, %185 : vector<1x128xf32>
    %187 = vector.extract_strided_slice %174 {offsets = [0, 128], sizes = [1, 128], strides = [1, 1]} : vector<1x384xf32> to vector<1x128xf32>
    %188 = vector.extract_strided_slice %178 {offsets = [0, 128], sizes = [1, 128], strides = [1, 1]} : vector<1x384xf32> to vector<1x128xf32>
    %189 = arith.addf %187, %188 : vector<1x128xf32>
    %190 = arith.negf %189 : vector<1x128xf32>
    %191 = math.exp %190 : vector<1x128xf32>
    %cst_63 = arith.constant 1.000000e+00 : f32
    %192 = vector.broadcast %cst_63 : f32 to vector<1x128xf32>
    %193 = arith.addf %192, %191 : vector<1x128xf32>
    %194 = arith.divf %192, %193 : vector<1x128xf32>
    %195 = vector.extract_strided_slice %174 {offsets = [0, 256], sizes = [1, 128], strides = [1, 1]} : vector<1x384xf32> to vector<1x128xf32>
    %196 = vector.extract_strided_slice %178 {offsets = [0, 256], sizes = [1, 128], strides = [1, 1]} : vector<1x384xf32> to vector<1x128xf32>
    %197 = arith.mulf %186, %196 : vector<1x128xf32>
    %198 = arith.addf %195, %197 : vector<1x128xf32>
    %199 = math.tanh %198 : vector<1x128xf32>
    %cst_64 = arith.constant 1.000000e+00 : f32
    %200 = vector.broadcast %cst_64 : f32 to vector<1x128xf32>
    %201 = arith.subf %200, %194 : vector<1x128xf32>
    %202 = arith.mulf %201, %199 : vector<1x128xf32>
    %203 = arith.mulf %194, %172 : vector<1x128xf32>
    %204 = arith.addf %202, %203 : vector<1x128xf32>
    %205 = arith.cmpi slt, %c3_i32_57, %0 : i32
    %cst_65 = arith.constant 0.000000e+00 : f32
    %206 = vector.broadcast %cst_65 : f32 to vector<1x128xf32>
    %207 = arith.select %205, %204, %206 : vector<1x128xf32>
    %208 = arith.index_cast %c3_i32_57 : i32 to index
    %c0_66 = arith.constant 0 : index
    %209 = vector.load %arg21[%208, %c0_66] : memref<8x128xf32, #tpu.memory_space<vmem>>, vector<1x128xf32>
    tpu.vector_store %arg21[%208, %c0_66], %207 {strides = array<i32>} : memref<8x128xf32, #tpu.memory_space<vmem>>, vector<1x128xf32>,
    %210 = arith.select %205, %204, %172 : vector<1x128xf32>
    %c4_i32_67 = arith.constant 4 : i32
    %211 = arith.index_cast %c4_i32_67 : i32 to index
    %c0_68 = arith.constant 0 : index
    %212 = vector.load %arg20[%211, %c0_68] : memref<8x384xf32, #tpu.memory_space<vmem>>, vector<1x384xf32>
    %213 = arith.truncf %210 : vector<1x128xf32> to vector<1x128xbf16>
    %c0_69 = arith.constant 0 : index
    %c0_70 = arith.constant 0 : index
    %214 = vector.load %arg4[%c0_69, %c0_70] : memref<128x384xbf16, #tpu.memory_space<vmem>>, vector<128x384xbf16>
    %cst_71 = arith.constant dense<0.000000e+00> : vector<1x384xf32>
    %215 = tpu.matmul %213, %214, %cst_71 {dimension_numbers = #tpu.dot_dimension_numbers<[1], [0], [0], [1], [0, 0, 1, 1], [], []>} : vector<1x128xbf16>, vector<128x384xbf16>, vector<1x384xf32> -> vector<1x384xf32>
    %216 = arith.addf %215, %57 : vector<1x384xf32>
    %217 = vector.extract_strided_slice %212 {offsets = [0, 0], sizes = [1, 128], strides = [1, 1]} : vector<1x384xf32> to vector<1x128xf32>
    %218 = vector.extract_strided_slice %216 {offsets = [0, 0], sizes = [1, 128], strides = [1, 1]} : vector<1x384xf32> to vector<1x128xf32>
    %219 = arith.addf %217, %218 : vector<1x128xf32>
    %220 = arith.negf %219 : vector<1x128xf32>
    %221 = math.exp %220 : vector<1x128xf32>
    %cst_72 = arith.constant 1.000000e+00 : f32
    %222 = vector.broadcast %cst_72 : f32 to vector<1x128xf32>
    %223 = arith.addf %222, %221 : vector<1x128xf32>
    %224 = arith.divf %222, %223 : vector<1x128xf32>
    %225 = vector.extract_strided_slice %212 {offsets = [0, 128], sizes = [1, 128], strides = [1, 1]} : vector<1x384xf32> to vector<1x128xf32>
    %226 = vector.extract_strided_slice %216 {offsets = [0, 128], sizes = [1, 128], strides = [1, 1]} : vector<1x384xf32> to vector<1x128xf32>
    %227 = arith.addf %225, %226 : vector<1x128xf32>
    %228 = arith.negf %227 : vector<1x128xf32>
    %229 = math.exp %228 : vector<1x128xf32>
    %cst_73 = arith.constant 1.000000e+00 : f32
    %230 = vector.broadcast %cst_73 : f32 to vector<1x128xf32>
    %231 = arith.addf %230, %229 : vector<1x128xf32>
    %232 = arith.divf %230, %231 : vector<1x128xf32>
    %233 = vector.extract_strided_slice %212 {offsets = [0, 256], sizes = [1, 128], strides = [1, 1]} : vector<1x384xf32> to vector<1x128xf32>
    %234 = vector.extract_strided_slice %216 {offsets = [0, 256], sizes = [1, 128], strides = [1, 1]} : vector<1x384xf32> to vector<1x128xf32>
    %235 = arith.mulf %224, %234 : vector<1x128xf32>
    %236 = arith.addf %233, %235 : vector<1x128xf32>
    %237 = math.tanh %236 : vector<1x128xf32>
    %cst_74 = arith.constant 1.000000e+00 : f32
    %238 = vector.broadcast %cst_74 : f32 to vector<1x128xf32>
    %239 = arith.subf %238, %232 : vector<1x128xf32>
    %240 = arith.mulf %239, %237 : vector<1x128xf32>
    %241 = arith.mulf %232, %210 : vector<1x128xf32>
    %242 = arith.addf %240, %241 : vector<1x128xf32>
    %243 = arith.cmpi slt, %c4_i32_67, %0 : i32
    %cst_75 = arith.constant 0.000000e+00 : f32
    %244 = vector.broadcast %cst_75 : f32 to vector<1x128xf32>
    %245 = arith.select %243, %242, %244 : vector<1x128xf32>
    %246 = arith.index_cast %c4_i32_67 : i32 to index
    %c0_76 = arith.constant 0 : index
    %247 = vector.load %arg21[%246, %c0_76] : memref<8x128xf32, #tpu.memory_space<vmem>>, vector<1x128xf32>
    tpu.vector_store %arg21[%246, %c0_76], %245 {strides = array<i32>} : memref<8x128xf32, #tpu.memory_space<vmem>>, vector<1x128xf32>,
    %248 = arith.select %243, %242, %210 : vector<1x128xf32>
    %c5_i32_77 = arith.constant 5 : i32
    %249 = arith.index_cast %c5_i32_77 : i32 to index
    %c0_78 = arith.constant 0 : index
    %250 = vector.load %arg20[%249, %c0_78] : memref<8x384xf32, #tpu.memory_space<vmem>>, vector<1x384xf32>
    %251 = arith.truncf %248 : vector<1x128xf32> to vector<1x128xbf16>
    %c0_79 = arith.constant 0 : index
    %c0_80 = arith.constant 0 : index
    %252 = vector.load %arg4[%c0_79, %c0_80] : memref<128x384xbf16, #tpu.memory_space<vmem>>, vector<128x384xbf16>
    %cst_81 = arith.constant dense<0.000000e+00> : vector<1x384xf32>
    %253 = tpu.matmul %251, %252, %cst_81 {dimension_numbers = #tpu.dot_dimension_numbers<[1], [0], [0], [1], [0, 0, 1, 1], [], []>} : vector<1x128xbf16>, vector<128x384xbf16>, vector<1x384xf32> -> vector<1x384xf32>
    %254 = arith.addf %253, %57 : vector<1x384xf32>
    %255 = vector.extract_strided_slice %250 {offsets = [0, 0], sizes = [1, 128], strides = [1, 1]} : vector<1x384xf32> to vector<1x128xf32>
    %256 = vector.extract_strided_slice %254 {offsets = [0, 0], sizes = [1, 128], strides = [1, 1]} : vector<1x384xf32> to vector<1x128xf32>
    %257 = arith.addf %255, %256 : vector<1x128xf32>
    %258 = arith.negf %257 : vector<1x128xf32>
    %259 = math.exp %258 : vector<1x128xf32>
    %cst_82 = arith.constant 1.000000e+00 : f32
    %260 = vector.broadcast %cst_82 : f32 to vector<1x128xf32>
    %261 = arith.addf %260, %259 : vector<1x128xf32>
    %262 = arith.divf %260, %261 : vector<1x128xf32>
    %263 = vector.extract_strided_slice %250 {offsets = [0, 128], sizes = [1, 128], strides = [1, 1]} : vector<1x384xf32> to vector<1x128xf32>
    %264 = vector.extract_strided_slice %254 {offsets = [0, 128], sizes = [1, 128], strides = [1, 1]} : vector<1x384xf32> to vector<1x128xf32>
    %265 = arith.addf %263, %264 : vector<1x128xf32>
    %266 = arith.negf %265 : vector<1x128xf32>
    %267 = math.exp %266 : vector<1x128xf32>
    %cst_83 = arith.constant 1.000000e+00 : f32
    %268 = vector.broadcast %cst_83 : f32 to vector<1x128xf32>
    %269 = arith.addf %268, %267 : vector<1x128xf32>
    %270 = arith.divf %268, %269 : vector<1x128xf32>
    %271 = vector.extract_strided_slice %250 {offsets = [0, 256], sizes = [1, 128], strides = [1, 1]} : vector<1x384xf32> to vector<1x128xf32>
    %272 = vector.extract_strided_slice %254 {offsets = [0, 256], sizes = [1, 128], strides = [1, 1]} : vector<1x384xf32> to vector<1x128xf32>
    %273 = arith.mulf %262, %272 : vector<1x128xf32>
    %274 = arith.addf %271, %273 : vector<1x128xf32>
    %275 = math.tanh %274 : vector<1x128xf32>
    %cst_84 = arith.constant 1.000000e+00 : f32
    %276 = vector.broadcast %cst_84 : f32 to vector<1x128xf32>
    %277 = arith.subf %276, %270 : vector<1x128xf32>
    %278 = arith.mulf %277, %275 : vector<1x128xf32>
    %279 = arith.mulf %270, %248 : vector<1x128xf32>
    %280 = arith.addf %278, %279 : vector<1x128xf32>
    %281 = arith.cmpi slt, %c5_i32_77, %0 : i32
    %cst_85 = arith.constant 0.000000e+00 : f32
    %282 = vector.broadcast %cst_85 : f32 to vector<1x128xf32>
    %283 = arith.select %281, %280, %282 : vector<1x128xf32>
    %284 = arith.index_cast %c5_i32_77 : i32 to index
    %c0_86 = arith.constant 0 : index
    %285 = vector.load %arg21[%284, %c0_86] : memref<8x128xf32, #tpu.memory_space<vmem>>, vector<1x128xf32>
    tpu.vector_store %arg21[%284, %c0_86], %283 {strides = array<i32>} : memref<8x128xf32, #tpu.memory_space<vmem>>, vector<1x128xf32>,
    %286 = arith.select %281, %280, %248 : vector<1x128xf32>
    %c6_i32_87 = arith.constant 6 : i32
    %287 = arith.index_cast %c6_i32_87 : i32 to index
    %c0_88 = arith.constant 0 : index
    %288 = vector.load %arg20[%287, %c0_88] : memref<8x384xf32, #tpu.memory_space<vmem>>, vector<1x384xf32>
    %289 = arith.truncf %286 : vector<1x128xf32> to vector<1x128xbf16>
    %c0_89 = arith.constant 0 : index
    %c0_90 = arith.constant 0 : index
    %290 = vector.load %arg4[%c0_89, %c0_90] : memref<128x384xbf16, #tpu.memory_space<vmem>>, vector<128x384xbf16>
    %cst_91 = arith.constant dense<0.000000e+00> : vector<1x384xf32>
    %291 = tpu.matmul %289, %290, %cst_91 {dimension_numbers = #tpu.dot_dimension_numbers<[1], [0], [0], [1], [0, 0, 1, 1], [], []>} : vector<1x128xbf16>, vector<128x384xbf16>, vector<1x384xf32> -> vector<1x384xf32>
    %292 = arith.addf %291, %57 : vector<1x384xf32>
    %293 = vector.extract_strided_slice %288 {offsets = [0, 0], sizes = [1, 128], strides = [1, 1]} : vector<1x384xf32> to vector<1x128xf32>
    %294 = vector.extract_strided_slice %292 {offsets = [0, 0], sizes = [1, 128], strides = [1, 1]} : vector<1x384xf32> to vector<1x128xf32>
    %295 = arith.addf %293, %294 : vector<1x128xf32>
    %296 = arith.negf %295 : vector<1x128xf32>
    %297 = math.exp %296 : vector<1x128xf32>
    %cst_92 = arith.constant 1.000000e+00 : f32
    %298 = vector.broadcast %cst_92 : f32 to vector<1x128xf32>
    %299 = arith.addf %298, %297 : vector<1x128xf32>
    %300 = arith.divf %298, %299 : vector<1x128xf32>
    %301 = vector.extract_strided_slice %288 {offsets = [0, 128], sizes = [1, 128], strides = [1, 1]} : vector<1x384xf32> to vector<1x128xf32>
    %302 = vector.extract_strided_slice %292 {offsets = [0, 128], sizes = [1, 128], strides = [1, 1]} : vector<1x384xf32> to vector<1x128xf32>
    %303 = arith.addf %301, %302 : vector<1x128xf32>
    %304 = arith.negf %303 : vector<1x128xf32>
    %305 = math.exp %304 : vector<1x128xf32>
    %cst_93 = arith.constant 1.000000e+00 : f32
    %306 = vector.broadcast %cst_93 : f32 to vector<1x128xf32>
    %307 = arith.addf %306, %305 : vector<1x128xf32>
    %308 = arith.divf %306, %307 : vector<1x128xf32>
    %309 = vector.extract_strided_slice %288 {offsets = [0, 256], sizes = [1, 128], strides = [1, 1]} : vector<1x384xf32> to vector<1x128xf32>
    %310 = vector.extract_strided_slice %292 {offsets = [0, 256], sizes = [1, 128], strides = [1, 1]} : vector<1x384xf32> to vector<1x128xf32>
    %311 = arith.mulf %300, %310 : vector<1x128xf32>
    %312 = arith.addf %309, %311 : vector<1x128xf32>
    %313 = math.tanh %312 : vector<1x128xf32>
    %cst_94 = arith.constant 1.000000e+00 : f32
    %314 = vector.broadcast %cst_94 : f32 to vector<1x128xf32>
    %315 = arith.subf %314, %308 : vector<1x128xf32>
    %316 = arith.mulf %315, %313 : vector<1x128xf32>
    %317 = arith.mulf %308, %286 : vector<1x128xf32>
    %318 = arith.addf %316, %317 : vector<1x128xf32>
    %319 = arith.cmpi slt, %c6_i32_87, %0 : i32
    %cst_95 = arith.constant 0.000000e+00 : f32
    %320 = vector.broadcast %cst_95 : f32 to vector<1x128xf32>
    %321 = arith.select %319, %318, %320 : vector<1x128xf32>
    %322 = arith.index_cast %c6_i32_87 : i32 to index
    %c0_96 = arith.constant 0 : index
    %323 = vector.load %arg21[%322, %c0_96] : memref<8x128xf32, #tpu.memory_space<vmem>>, vector<1x128xf32>
    tpu.vector_store %arg21[%322, %c0_96], %321 {strides = array<i32>} : memref<8x128xf32, #tpu.memory_space<vmem>>, vector<1x128xf32>,
    %324 = arith.select %319, %318, %286 : vector<1x128xf32>
    %c7_i32_97 = arith.constant 7 : i32
    %325 = arith.index_cast %c7_i32_97 : i32 to index
    %c0_98 = arith.constant 0 : index
    %326 = vector.load %arg20[%325, %c0_98] : memref<8x384xf32, #tpu.memory_space<vmem>>, vector<1x384xf32>
    %327 = arith.truncf %324 : vector<1x128xf32> to vector<1x128xbf16>
    %c0_99 = arith.constant 0 : index
    %c0_100 = arith.constant 0 : index
    %328 = vector.load %arg4[%c0_99, %c0_100] : memref<128x384xbf16, #tpu.memory_space<vmem>>, vector<128x384xbf16>
    %cst_101 = arith.constant dense<0.000000e+00> : vector<1x384xf32>
    %329 = tpu.matmul %327, %328, %cst_101 {dimension_numbers = #tpu.dot_dimension_numbers<[1], [0], [0], [1], [0, 0, 1, 1], [], []>} : vector<1x128xbf16>, vector<128x384xbf16>, vector<1x384xf32> -> vector<1x384xf32>
    %330 = arith.addf %329, %57 : vector<1x384xf32>
    %331 = vector.extract_strided_slice %326 {offsets = [0, 0], sizes = [1, 128], strides = [1, 1]} : vector<1x384xf32> to vector<1x128xf32>
    %332 = vector.extract_strided_slice %330 {offsets = [0, 0], sizes = [1, 128], strides = [1, 1]} : vector<1x384xf32> to vector<1x128xf32>
    %333 = arith.addf %331, %332 : vector<1x128xf32>
    %334 = arith.negf %333 : vector<1x128xf32>
    %335 = math.exp %334 : vector<1x128xf32>
    %cst_102 = arith.constant 1.000000e+00 : f32
    %336 = vector.broadcast %cst_102 : f32 to vector<1x128xf32>
    %337 = arith.addf %336, %335 : vector<1x128xf32>
    %338 = arith.divf %336, %337 : vector<1x128xf32>
    %339 = vector.extract_strided_slice %326 {offsets = [0, 128], sizes = [1, 128], strides = [1, 1]} : vector<1x384xf32> to vector<1x128xf32>
    %340 = vector.extract_strided_slice %330 {offsets = [0, 128], sizes = [1, 128], strides = [1, 1]} : vector<1x384xf32> to vector<1x128xf32>
    %341 = arith.addf %339, %340 : vector<1x128xf32>
    %342 = arith.negf %341 : vector<1x128xf32>
    %343 = math.exp %342 : vector<1x128xf32>
    %cst_103 = arith.constant 1.000000e+00 : f32
    %344 = vector.broadcast %cst_103 : f32 to vector<1x128xf32>
    %345 = arith.addf %344, %343 : vector<1x128xf32>
    %346 = arith.divf %344, %345 : vector<1x128xf32>
    %347 = vector.extract_strided_slice %326 {offsets = [0, 256], sizes = [1, 128], strides = [1, 1]} : vector<1x384xf32> to vector<1x128xf32>
    %348 = vector.extract_strided_slice %330 {offsets = [0, 256], sizes = [1, 128], strides = [1, 1]} : vector<1x384xf32> to vector<1x128xf32>
    %349 = arith.mulf %338, %348 : vector<1x128xf32>
    %350 = arith.addf %347, %349 : vector<1x128xf32>
    %351 = math.tanh %350 : vector<1x128xf32>
    %cst_104 = arith.constant 1.000000e+00 : f32
    %352 = vector.broadcast %cst_104 : f32 to vector<1x128xf32>
    %353 = arith.subf %352, %346 : vector<1x128xf32>
    %354 = arith.mulf %353, %351 : vector<1x128xf32>
    %355 = arith.mulf %346, %324 : vector<1x128xf32>
    %356 = arith.addf %354, %355 : vector<1x128xf32>
    %357 = arith.cmpi slt, %c7_i32_97, %0 : i32
    %cst_105 = arith.constant 0.000000e+00 : f32
    %358 = vector.broadcast %cst_105 : f32 to vector<1x128xf32>
    %359 = arith.select %357, %356, %358 : vector<1x128xf32>
    %360 = arith.index_cast %c7_i32_97 : i32 to index
    %c0_106 = arith.constant 0 : index
    %361 = vector.load %arg21[%360, %c0_106] : memref<8x128xf32, #tpu.memory_space<vmem>>, vector<1x128xf32>
    tpu.vector_store %arg21[%360, %c0_106], %359 {strides = array<i32>} : memref<8x128xf32, #tpu.memory_space<vmem>>, vector<1x128xf32>,
    %362 = arith.select %357, %356, %324 : vector<1x128xf32>
    %c8_i32_107 = arith.constant 8 : i32
    %c0_108 = arith.constant 0 : index
    %c0_109 = arith.constant 0 : index
    %363 = vector.load %arg21[%c0_108, %c0_109] : memref<8x128xf32, #tpu.memory_space<vmem>>, vector<8x128xf32>
    %364 = tpu.transpose %363, [1, 0] : vector<8x128xf32> -> vector<128x8xf32>
    %c0_110 = arith.constant 0 : index
    %c0_111 = arith.constant 0 : index
    %365 = vector.load %arg22[%c0_110, %c0_111] : memref<128x8xf32, #tpu.memory_space<vmem>>, vector<128x8xf32>
    tpu.vector_store %arg22[%c0_110, %c0_111], %364 {strides = array<i32>} : memref<128x8xf32, #tpu.memory_space<vmem>>, vector<128x8xf32>,
    %c0_112 = arith.constant 0 : index
    %c0_113 = arith.constant 0 : index
    %366 = vector.load %arg10[%c0_112, %c0_113] : memref<1x384xf32, #tpu.memory_space<vmem>>, vector<1x384xf32>
    %c0_114 = arith.constant 0 : index
    %c0_115 = arith.constant 0 : index
    %367 = vector.load %arg11[%c0_114, %c0_115] : memref<1x384xf32, #tpu.memory_space<vmem>>, vector<1x384xf32>
    %c0_116 = arith.constant 0 : index
    %c0_117 = arith.constant 0 : index
    %368 = vector.load %arg14[%c0_116, %c0_117] : memref<1x128xf32, #tpu.memory_space<vmem>>, vector<1x128xf32>
    %c0_118 = arith.constant 0 : index
    %c0_119 = arith.constant 0 : index
    %369 = vector.load %arg16[%c0_118, %c0_119] : memref<1x128xf32, #tpu.memory_space<vmem>>, vector<1x128xf32>
    %370 = tpu.iota {dimensions = array<i32: 1>} : vector<1x128xi32>
    %371 = tpu.iota {dimensions = array<i32: 1>} : vector<1x8xi32>
    %372 = tpu.iota {dimensions = array<i32: 1>} : vector<1x8xi32>
    %373 = vector.broadcast %0 : i32 to vector<1x8xi32>
    %374 = arith.cmpi slt, %371, %373 : vector<1x8xi32>
    %c32_i32 = arith.constant 32 : i32
    %375 = vector.broadcast %c32_i32 : i32 to vector<1x128xi32>
    %376 = arith.cmpi slt, %370, %375 : vector<1x128xi32>
    %c0_i32_120 = arith.constant 0 : i32
    %377 = vector.broadcast %c0_i32_120 : i32 to vector<1x8xi32>
    %cst_121 = arith.constant 0.000000e+00 : f32
    %378 = vector.broadcast %cst_121 : f32 to vector<1x8xf32>
    %c1_i32_122 = arith.constant 1 : i32
    %c0_i32_123 = arith.constant 0 : i32
    %379 = arith.index_cast %c1_i32_122 : i32 to index
    %c0_124 = arith.constant 0 : index
    %380 = vector.load %arg7[%379, %c0_124] : memref<128x128xf32, #tpu.memory_space<vmem>>, vector<1x128xf32>
    %381 = arith.truncf %380 : vector<1x128xf32> to vector<1x128xbf16>
    %c0_125 = arith.constant 0 : index
    %c0_126 = arith.constant 0 : index
    %382 = vector.load %arg8[%c0_125, %c0_126] : memref<128x384xbf16, #tpu.memory_space<vmem>>, vector<128x384xbf16>
    %cst_127 = arith.constant dense<0.000000e+00> : vector<1x384xf32>
    %383 = tpu.matmul %381, %382, %cst_127 {dimension_numbers = #tpu.dot_dimension_numbers<[1], [0], [0], [1], [0, 0, 1, 1], [], []>} : vector<1x128xbf16>, vector<128x384xbf16>, vector<1x384xf32> -> vector<1x384xf32>
    %384 = arith.addf %383, %366 : vector<1x384xf32>
    %385 = arith.truncf %362 : vector<1x128xf32> to vector<1x128xbf16>
    %c0_128 = arith.constant 0 : index
    %c0_129 = arith.constant 0 : index
    %386 = vector.load %arg9[%c0_128, %c0_129] : memref<128x384xbf16, #tpu.memory_space<vmem>>, vector<128x384xbf16>
    %cst_130 = arith.constant dense<0.000000e+00> : vector<1x384xf32>
    %387 = tpu.matmul %385, %386, %cst_130 {dimension_numbers = #tpu.dot_dimension_numbers<[1], [0], [0], [1], [0, 0, 1, 1], [], []>} : vector<1x128xbf16>, vector<128x384xbf16>, vector<1x384xf32> -> vector<1x384xf32>
    %388 = arith.addf %387, %367 : vector<1x384xf32>
    %389 = vector.extract_strided_slice %384 {offsets = [0, 0], sizes = [1, 128], strides = [1, 1]} : vector<1x384xf32> to vector<1x128xf32>
    %390 = vector.extract_strided_slice %388 {offsets = [0, 0], sizes = [1, 128], strides = [1, 1]} : vector<1x384xf32> to vector<1x128xf32>
    %391 = arith.addf %389, %390 : vector<1x128xf32>
    %392 = arith.negf %391 : vector<1x128xf32>
    %393 = math.exp %392 : vector<1x128xf32>
    %cst_131 = arith.constant 1.000000e+00 : f32
    %394 = vector.broadcast %cst_131 : f32 to vector<1x128xf32>
    %395 = arith.addf %394, %393 : vector<1x128xf32>
    %396 = arith.divf %394, %395 : vector<1x128xf32>
    %397 = vector.extract_strided_slice %384 {offsets = [0, 128], sizes = [1, 128], strides = [1, 1]} : vector<1x384xf32> to vector<1x128xf32>
    %398 = vector.extract_strided_slice %388 {offsets = [0, 128], sizes = [1, 128], strides = [1, 1]} : vector<1x384xf32> to vector<1x128xf32>
    %399 = arith.addf %397, %398 : vector<1x128xf32>
    %400 = arith.negf %399 : vector<1x128xf32>
    %401 = math.exp %400 : vector<1x128xf32>
    %cst_132 = arith.constant 1.000000e+00 : f32
    %402 = vector.broadcast %cst_132 : f32 to vector<1x128xf32>
    %403 = arith.addf %402, %401 : vector<1x128xf32>
    %404 = arith.divf %402, %403 : vector<1x128xf32>
    %405 = vector.extract_strided_slice %384 {offsets = [0, 256], sizes = [1, 128], strides = [1, 1]} : vector<1x384xf32> to vector<1x128xf32>
    %406 = vector.extract_strided_slice %388 {offsets = [0, 256], sizes = [1, 128], strides = [1, 1]} : vector<1x384xf32> to vector<1x128xf32>
    %407 = arith.mulf %396, %406 : vector<1x128xf32>
    %408 = arith.addf %405, %407 : vector<1x128xf32>
    %409 = math.tanh %408 : vector<1x128xf32>
    %cst_133 = arith.constant 1.000000e+00 : f32
    %410 = vector.broadcast %cst_133 : f32 to vector<1x128xf32>
    %411 = arith.subf %410, %404 : vector<1x128xf32>
    %412 = arith.mulf %411, %409 : vector<1x128xf32>
    %413 = arith.mulf %404, %362 : vector<1x128xf32>
    %414 = arith.addf %412, %413 : vector<1x128xf32>
    %c0_134 = arith.constant 0 : index
    %c0_135 = arith.constant 0 : index
    %415 = vector.load %arg22[%c0_134, %c0_135] : memref<128x8xf32, #tpu.memory_space<vmem>>, vector<128x8xf32>
    %cst_136 = arith.constant dense<0.000000e+00> : vector<1x8xf32>
    %416 = tpu.matmul %414, %415, %cst_136 {dimension_numbers = #tpu.dot_dimension_numbers<[1], [0], [0], [1], [0, 0, 1, 1], [], []>} : vector<1x128xf32>, vector<128x8xf32>, vector<1x8xf32> -> vector<1x8xf32>
    %cst_137 = arith.constant -1.000000e+30 : f32
    %417 = vector.broadcast %cst_137 : f32 to vector<1x8xf32>
    %418 = arith.select %374, %416, %417 : vector<1x8xi1>, vector<1x8xf32>
    %cst_138 = arith.constant dense<0xFF800000> : vector<1xf32>
    %419 = vector.multi_reduction <maximumf>, %418, %cst_138 [1] : vector<1x8xf32> to vector<1xf32>
    %420 = vector.shape_cast %419 : vector<1xf32> to vector<1x1xf32>
    %421 = vector.broadcast %420 : vector<1x1xf32> to vector<1x8xf32>
    %422 = arith.subf %418, %421 : vector<1x8xf32>
    %423 = math.exp %422 : vector<1x8xf32>
    %cst_139 = arith.constant dense<0.000000e+00> : vector<1xf32>
    %424 = vector.multi_reduction <add>, %423, %cst_139 [1] : vector<1x8xf32> to vector<1xf32>
    %425 = vector.shape_cast %424 : vector<1xf32> to vector<1x1xf32>
    %426 = tpu.reciprocal %425 {approx = true} : vector<1x1xf32> -> vector<1x1xf32>
    %427 = vector.broadcast %426 : vector<1x1xf32> to vector<1x8xf32>
    %428 = arith.mulf %423, %427 : vector<1x8xf32>
    %c0_140 = arith.constant 0 : index
    %c0_141 = arith.constant 0 : index
    %429 = vector.load %arg21[%c0_140, %c0_141] : memref<8x128xf32, #tpu.memory_space<vmem>>, vector<8x128xf32>
    %cst_142 = arith.constant dense<0.000000e+00> : vector<1x128xf32>
    %430 = tpu.matmul %428, %429, %cst_142 {dimension_numbers = #tpu.dot_dimension_numbers<[1], [0], [0], [1], [0, 0, 1, 1], [], []>} : vector<1x8xf32>, vector<8x128xf32>, vector<1x128xf32> -> vector<1x128xf32>
    %431 = arith.truncf %414 : vector<1x128xf32> to vector<1x128xbf16>
    %c0_143 = arith.constant 0 : index
    %c0_144 = arith.constant 0 : index
    %432 = vector.load %arg12[%c0_143, %c0_144] : memref<128x128xbf16, #tpu.memory_space<vmem>>, vector<128x128xbf16>
    %cst_145 = arith.constant dense<0.000000e+00> : vector<1x128xf32>
    %433 = tpu.matmul %431, %432, %cst_145 {dimension_numbers = #tpu.dot_dimension_numbers<[1], [0], [0], [1], [0, 0, 1, 1], [], []>} : vector<1x128xbf16>, vector<128x128xbf16>, vector<1x128xf32> -> vector<1x128xf32>
    %434 = arith.truncf %430 : vector<1x128xf32> to vector<1x128xbf16>
    %c0_146 = arith.constant 0 : index
    %c0_147 = arith.constant 0 : index
    %435 = vector.load %arg13[%c0_146, %c0_147] : memref<128x128xbf16, #tpu.memory_space<vmem>>, vector<128x128xbf16>
    %cst_148 = arith.constant dense<0.000000e+00> : vector<1x128xf32>
    %436 = tpu.matmul %434, %435, %cst_148 {dimension_numbers = #tpu.dot_dimension_numbers<[1], [0], [0], [1], [0, 0, 1, 1], [], []>} : vector<1x128xbf16>, vector<128x128xbf16>, vector<1x128xf32> -> vector<1x128xf32>
    %437 = arith.addf %433, %436 : vector<1x128xf32>
    %438 = arith.addf %437, %368 : vector<1x128xf32>
    %439 = math.tanh %438 : vector<1x128xf32>
    %440 = arith.truncf %439 : vector<1x128xf32> to vector<1x128xbf16>
    %c0_149 = arith.constant 0 : index
    %c0_150 = arith.constant 0 : index
    %441 = vector.load %arg15[%c0_149, %c0_150] : memref<128x128xbf16, #tpu.memory_space<vmem>>, vector<128x128xbf16>
    %cst_151 = arith.constant dense<0.000000e+00> : vector<1x128xf32>
    %442 = tpu.matmul %440, %441, %cst_151 {dimension_numbers = #tpu.dot_dimension_numbers<[1], [0], [0], [1], [0, 0, 1, 1], [], []>} : vector<1x128xbf16>, vector<128x128xbf16>, vector<1x128xf32> -> vector<1x128xf32>
    %443 = arith.addf %442, %369 : vector<1x128xf32>
    %cst_152 = arith.constant -1.000000e+30 : f32
    %444 = vector.broadcast %cst_152 : f32 to vector<1x128xf32>
    %445 = arith.select %376, %443, %444 : vector<1x128xi1>, vector<1x128xf32>
    %cst_153 = arith.constant dense<0xFF800000> : vector<1xf32>
    %446 = vector.multi_reduction <maximumf>, %445, %cst_153 [1] : vector<1x128xf32> to vector<1xf32>
    %447 = vector.shape_cast %446 : vector<1xf32> to vector<1x1xf32>
    %448 = vector.broadcast %447 : vector<1x1xf32> to vector<1x128xf32>
    %449 = arith.subf %445, %448 : vector<1x128xf32>
    %450 = math.exp %449 : vector<1x128xf32>
    %cst_154 = arith.constant dense<0.000000e+00> : vector<1xf32>
    %451 = vector.multi_reduction <add>, %450, %cst_154 [1] : vector<1x128xf32> to vector<1xf32>
    %452 = vector.shape_cast %451 : vector<1xf32> to vector<1x1xf32>
    %453 = tpu.reciprocal %452 : vector<1x1xf32> -> vector<1x1xf32>
    %454 = vector.broadcast %447 : vector<1x1xf32> to vector<1x128xf32>
    %455 = arith.cmpf oeq, %445, %454 : vector<1x128xf32>
    %c128_i32 = arith.constant 128 : i32
    %456 = vector.broadcast %c128_i32 : i32 to vector<1x128xi32>
    %457 = arith.select %455, %370, %456 : vector<1x128xi1>, vector<1x128xi32>
    %458 = vector.shape_cast %457 : vector<1x128xi32> to vector<1x1x128xi32>
    %cst_155 = arith.constant dense<2147483647> : vector<1xi32>
    %459 = vector.multi_reduction <minsi>, %458, %cst_155 [1, 2] : vector<1x1x128xi32> to vector<1xi32>
    %460 = vector.shape_cast %459 : vector<1xi32> to vector<1x1x1xi32>
    %461 = vector.extract %460[0, 0, 0] : i32 from vector<1x1x1xi32>
    %462 = vector.broadcast %c0_i32_123 : i32 to vector<1x8xi32>
    %463 = arith.cmpi eq, %372, %462 : vector<1x8xi32>
    %464 = vector.broadcast %461 : i32 to vector<1x8xi32>
    %465 = arith.select %463, %464, %377 : vector<1x8xi1>, vector<1x8xi32>
    %466 = vector.broadcast %c0_i32_123 : i32 to vector<1x8xi32>
    %467 = arith.cmpi eq, %372, %466 : vector<1x8xi32>
    %468 = vector.shape_cast %453 : vector<1x1xf32> to vector<1x1xf32>
    %469 = vector.broadcast %468 : vector<1x1xf32> to vector<1x8xf32>
    %470 = arith.select %467, %469, %378 : vector<1x8xi1>, vector<1x8xf32>
    %c1_i32_156 = arith.constant 1 : i32
    %471 = arith.index_cast %461 : i32 to index
    %c0_157 = arith.constant 0 : index
    %472 = vector.load %arg7[%471, %c0_157] : memref<128x128xf32, #tpu.memory_space<vmem>>, vector<1x128xf32>
    %473 = arith.truncf %472 : vector<1x128xf32> to vector<1x128xbf16>
    %c0_158 = arith.constant 0 : index
    %c0_159 = arith.constant 0 : index
    %474 = vector.load %arg8[%c0_158, %c0_159] : memref<128x384xbf16, #tpu.memory_space<vmem>>, vector<128x384xbf16>
    %cst_160 = arith.constant dense<0.000000e+00> : vector<1x384xf32>
    %475 = tpu.matmul %473, %474, %cst_160 {dimension_numbers = #tpu.dot_dimension_numbers<[1], [0], [0], [1], [0, 0, 1, 1], [], []>} : vector<1x128xbf16>, vector<128x384xbf16>, vector<1x384xf32> -> vector<1x384xf32>
    %476 = arith.addf %475, %366 : vector<1x384xf32>
    %477 = arith.truncf %414 : vector<1x128xf32> to vector<1x128xbf16>
    %c0_161 = arith.constant 0 : index
    %c0_162 = arith.constant 0 : index
    %478 = vector.load %arg9[%c0_161, %c0_162] : memref<128x384xbf16, #tpu.memory_space<vmem>>, vector<128x384xbf16>
    %cst_163 = arith.constant dense<0.000000e+00> : vector<1x384xf32>
    %479 = tpu.matmul %477, %478, %cst_163 {dimension_numbers = #tpu.dot_dimension_numbers<[1], [0], [0], [1], [0, 0, 1, 1], [], []>} : vector<1x128xbf16>, vector<128x384xbf16>, vector<1x384xf32> -> vector<1x384xf32>
    %480 = arith.addf %479, %367 : vector<1x384xf32>
    %481 = vector.extract_strided_slice %476 {offsets = [0, 0], sizes = [1, 128], strides = [1, 1]} : vector<1x384xf32> to vector<1x128xf32>
    %482 = vector.extract_strided_slice %480 {offsets = [0, 0], sizes = [1, 128], strides = [1, 1]} : vector<1x384xf32> to vector<1x128xf32>
    %483 = arith.addf %481, %482 : vector<1x128xf32>
    %484 = arith.negf %483 : vector<1x128xf32>
    %485 = math.exp %484 : vector<1x128xf32>
    %cst_164 = arith.constant 1.000000e+00 : f32
    %486 = vector.broadcast %cst_164 : f32 to vector<1x128xf32>
    %487 = arith.addf %486, %485 : vector<1x128xf32>
    %488 = arith.divf %486, %487 : vector<1x128xf32>
    %489 = vector.extract_strided_slice %476 {offsets = [0, 128], sizes = [1, 128], strides = [1, 1]} : vector<1x384xf32> to vector<1x128xf32>
    %490 = vector.extract_strided_slice %480 {offsets = [0, 128], sizes = [1, 128], strides = [1, 1]} : vector<1x384xf32> to vector<1x128xf32>
    %491 = arith.addf %489, %490 : vector<1x128xf32>
    %492 = arith.negf %491 : vector<1x128xf32>
    %493 = math.exp %492 : vector<1x128xf32>
    %cst_165 = arith.constant 1.000000e+00 : f32
    %494 = vector.broadcast %cst_165 : f32 to vector<1x128xf32>
    %495 = arith.addf %494, %493 : vector<1x128xf32>
    %496 = arith.divf %494, %495 : vector<1x128xf32>
    %497 = vector.extract_strided_slice %476 {offsets = [0, 256], sizes = [1, 128], strides = [1, 1]} : vector<1x384xf32> to vector<1x128xf32>
    %498 = vector.extract_strided_slice %480 {offsets = [0, 256], sizes = [1, 128], strides = [1, 1]} : vector<1x384xf32> to vector<1x128xf32>
    %499 = arith.mulf %488, %498 : vector<1x128xf32>
    %500 = arith.addf %497, %499 : vector<1x128xf32>
    %501 = math.tanh %500 : vector<1x128xf32>
    %cst_166 = arith.constant 1.000000e+00 : f32
    %502 = vector.broadcast %cst_166 : f32 to vector<1x128xf32>
    %503 = arith.subf %502, %496 : vector<1x128xf32>
    %504 = arith.mulf %503, %501 : vector<1x128xf32>
    %505 = arith.mulf %496, %414 : vector<1x128xf32>
    %506 = arith.addf %504, %505 : vector<1x128xf32>
    %c0_167 = arith.constant 0 : index
    %c0_168 = arith.constant 0 : index
    %507 = vector.load %arg22[%c0_167, %c0_168] : memref<128x8xf32, #tpu.memory_space<vmem>>, vector<128x8xf32>
    %cst_169 = arith.constant dense<0.000000e+00> : vector<1x8xf32>
    %508 = tpu.matmul %506, %507, %cst_169 {dimension_numbers = #tpu.dot_dimension_numbers<[1], [0], [0], [1], [0, 0, 1, 1], [], []>} : vector<1x128xf32>, vector<128x8xf32>, vector<1x8xf32> -> vector<1x8xf32>
    %cst_170 = arith.constant -1.000000e+30 : f32
    %509 = vector.broadcast %cst_170 : f32 to vector<1x8xf32>
    %510 = arith.select %374, %508, %509 : vector<1x8xi1>, vector<1x8xf32>
    %cst_171 = arith.constant dense<0xFF800000> : vector<1xf32>
    %511 = vector.multi_reduction <maximumf>, %510, %cst_171 [1] : vector<1x8xf32> to vector<1xf32>
    %512 = vector.shape_cast %511 : vector<1xf32> to vector<1x1xf32>
    %513 = vector.broadcast %512 : vector<1x1xf32> to vector<1x8xf32>
    %514 = arith.subf %510, %513 : vector<1x8xf32>
    %515 = math.exp %514 : vector<1x8xf32>
    %cst_172 = arith.constant dense<0.000000e+00> : vector<1xf32>
    %516 = vector.multi_reduction <add>, %515, %cst_172 [1] : vector<1x8xf32> to vector<1xf32>
    %517 = vector.shape_cast %516 : vector<1xf32> to vector<1x1xf32>
    %518 = tpu.reciprocal %517 {approx = true} : vector<1x1xf32> -> vector<1x1xf32>
    %519 = vector.broadcast %518 : vector<1x1xf32> to vector<1x8xf32>
    %520 = arith.mulf %515, %519 : vector<1x8xf32>
    %c0_173 = arith.constant 0 : index
    %c0_174 = arith.constant 0 : index
    %521 = vector.load %arg21[%c0_173, %c0_174] : memref<8x128xf32, #tpu.memory_space<vmem>>, vector<8x128xf32>
    %cst_175 = arith.constant dense<0.000000e+00> : vector<1x128xf32>
    %522 = tpu.matmul %520, %521, %cst_175 {dimension_numbers = #tpu.dot_dimension_numbers<[1], [0], [0], [1], [0, 0, 1, 1], [], []>} : vector<1x8xf32>, vector<8x128xf32>, vector<1x128xf32> -> vector<1x128xf32>
    %523 = arith.truncf %506 : vector<1x128xf32> to vector<1x128xbf16>
    %c0_176 = arith.constant 0 : index
    %c0_177 = arith.constant 0 : index
    %524 = vector.load %arg12[%c0_176, %c0_177] : memref<128x128xbf16, #tpu.memory_space<vmem>>, vector<128x128xbf16>
    %cst_178 = arith.constant dense<0.000000e+00> : vector<1x128xf32>
    %525 = tpu.matmul %523, %524, %cst_178 {dimension_numbers = #tpu.dot_dimension_numbers<[1], [0], [0], [1], [0, 0, 1, 1], [], []>} : vector<1x128xbf16>, vector<128x128xbf16>, vector<1x128xf32> -> vector<1x128xf32>
    %526 = arith.truncf %522 : vector<1x128xf32> to vector<1x128xbf16>
    %c0_179 = arith.constant 0 : index
    %c0_180 = arith.constant 0 : index
    %527 = vector.load %arg13[%c0_179, %c0_180] : memref<128x128xbf16, #tpu.memory_space<vmem>>, vector<128x128xbf16>
    %cst_181 = arith.constant dense<0.000000e+00> : vector<1x128xf32>
    %528 = tpu.matmul %526, %527, %cst_181 {dimension_numbers = #tpu.dot_dimension_numbers<[1], [0], [0], [1], [0, 0, 1, 1], [], []>} : vector<1x128xbf16>, vector<128x128xbf16>, vector<1x128xf32> -> vector<1x128xf32>
    %529 = arith.addf %525, %528 : vector<1x128xf32>
    %530 = arith.addf %529, %368 : vector<1x128xf32>
    %531 = math.tanh %530 : vector<1x128xf32>
    %532 = arith.truncf %531 : vector<1x128xf32> to vector<1x128xbf16>
    %c0_182 = arith.constant 0 : index
    %c0_183 = arith.constant 0 : index
    %533 = vector.load %arg15[%c0_182, %c0_183] : memref<128x128xbf16, #tpu.memory_space<vmem>>, vector<128x128xbf16>
    %cst_184 = arith.constant dense<0.000000e+00> : vector<1x128xf32>
    %534 = tpu.matmul %532, %533, %cst_184 {dimension_numbers = #tpu.dot_dimension_numbers<[1], [0], [0], [1], [0, 0, 1, 1], [], []>} : vector<1x128xbf16>, vector<128x128xbf16>, vector<1x128xf32> -> vector<1x128xf32>
    %535 = arith.addf %534, %369 : vector<1x128xf32>
    %cst_185 = arith.constant -1.000000e+30 : f32
    %536 = vector.broadcast %cst_185 : f32 to vector<1x128xf32>
    %537 = arith.select %376, %535, %536 : vector<1x128xi1>, vector<1x128xf32>
    %cst_186 = arith.constant dense<0xFF800000> : vector<1xf32>
    %538 = vector.multi_reduction <maximumf>, %537, %cst_186 [1] : vector<1x128xf32> to vector<1xf32>
    %539 = vector.shape_cast %538 : vector<1xf32> to vector<1x1xf32>
    %540 = vector.broadcast %539 : vector<1x1xf32> to vector<1x128xf32>
    %541 = arith.subf %537, %540 : vector<1x128xf32>
    %542 = math.exp %541 : vector<1x128xf32>
    %cst_187 = arith.constant dense<0.000000e+00> : vector<1xf32>
    %543 = vector.multi_reduction <add>, %542, %cst_187 [1] : vector<1x128xf32> to vector<1xf32>
    %544 = vector.shape_cast %543 : vector<1xf32> to vector<1x1xf32>
    %545 = tpu.reciprocal %544 : vector<1x1xf32> -> vector<1x1xf32>
    %546 = vector.broadcast %539 : vector<1x1xf32> to vector<1x128xf32>
    %547 = arith.cmpf oeq, %537, %546 : vector<1x128xf32>
    %c128_i32_188 = arith.constant 128 : i32
    %548 = vector.broadcast %c128_i32_188 : i32 to vector<1x128xi32>
    %549 = arith.select %547, %370, %548 : vector<1x128xi1>, vector<1x128xi32>
    %550 = vector.shape_cast %549 : vector<1x128xi32> to vector<1x1x128xi32>
    %cst_189 = arith.constant dense<2147483647> : vector<1xi32>
    %551 = vector.multi_reduction <minsi>, %550, %cst_189 [1, 2] : vector<1x1x128xi32> to vector<1xi32>
    %552 = vector.shape_cast %551 : vector<1xi32> to vector<1x1x1xi32>
    %553 = vector.extract %552[0, 0, 0] : i32 from vector<1x1x1xi32>
    %554 = vector.broadcast %c1_i32_156 : i32 to vector<1x8xi32>
    %555 = arith.cmpi eq, %372, %554 : vector<1x8xi32>
    %556 = vector.broadcast %553 : i32 to vector<1x8xi32>
    %557 = arith.select %555, %556, %465 : vector<1x8xi1>, vector<1x8xi32>
    %558 = vector.broadcast %c1_i32_156 : i32 to vector<1x8xi32>
    %559 = arith.cmpi eq, %372, %558 : vector<1x8xi32>
    %560 = vector.shape_cast %545 : vector<1x1xf32> to vector<1x1xf32>
    %561 = vector.broadcast %560 : vector<1x1xf32> to vector<1x8xf32>
    %562 = arith.select %559, %561, %470 : vector<1x8xi1>, vector<1x8xf32>
    %c2_i32_190 = arith.constant 2 : i32
    %563 = arith.index_cast %553 : i32 to index
    %c0_191 = arith.constant 0 : index
    %564 = vector.load %arg7[%563, %c0_191] : memref<128x128xf32, #tpu.memory_space<vmem>>, vector<1x128xf32>
    %565 = arith.truncf %564 : vector<1x128xf32> to vector<1x128xbf16>
    %c0_192 = arith.constant 0 : index
    %c0_193 = arith.constant 0 : index
    %566 = vector.load %arg8[%c0_192, %c0_193] : memref<128x384xbf16, #tpu.memory_space<vmem>>, vector<128x384xbf16>
    %cst_194 = arith.constant dense<0.000000e+00> : vector<1x384xf32>
    %567 = tpu.matmul %565, %566, %cst_194 {dimension_numbers = #tpu.dot_dimension_numbers<[1], [0], [0], [1], [0, 0, 1, 1], [], []>} : vector<1x128xbf16>, vector<128x384xbf16>, vector<1x384xf32> -> vector<1x384xf32>
    %568 = arith.addf %567, %366 : vector<1x384xf32>
    %569 = arith.truncf %506 : vector<1x128xf32> to vector<1x128xbf16>
    %c0_195 = arith.constant 0 : index
    %c0_196 = arith.constant 0 : index
    %570 = vector.load %arg9[%c0_195, %c0_196] : memref<128x384xbf16, #tpu.memory_space<vmem>>, vector<128x384xbf16>
    %cst_197 = arith.constant dense<0.000000e+00> : vector<1x384xf32>
    %571 = tpu.matmul %569, %570, %cst_197 {dimension_numbers = #tpu.dot_dimension_numbers<[1], [0], [0], [1], [0, 0, 1, 1], [], []>} : vector<1x128xbf16>, vector<128x384xbf16>, vector<1x384xf32> -> vector<1x384xf32>
    %572 = arith.addf %571, %367 : vector<1x384xf32>
    %573 = vector.extract_strided_slice %568 {offsets = [0, 0], sizes = [1, 128], strides = [1, 1]} : vector<1x384xf32> to vector<1x128xf32>
    %574 = vector.extract_strided_slice %572 {offsets = [0, 0], sizes = [1, 128], strides = [1, 1]} : vector<1x384xf32> to vector<1x128xf32>
    %575 = arith.addf %573, %574 : vector<1x128xf32>
    %576 = arith.negf %575 : vector<1x128xf32>
    %577 = math.exp %576 : vector<1x128xf32>
    %cst_198 = arith.constant 1.000000e+00 : f32
    %578 = vector.broadcast %cst_198 : f32 to vector<1x128xf32>
    %579 = arith.addf %578, %577 : vector<1x128xf32>
    %580 = arith.divf %578, %579 : vector<1x128xf32>
    %581 = vector.extract_strided_slice %568 {offsets = [0, 128], sizes = [1, 128], strides = [1, 1]} : vector<1x384xf32> to vector<1x128xf32>
    %582 = vector.extract_strided_slice %572 {offsets = [0, 128], sizes = [1, 128], strides = [1, 1]} : vector<1x384xf32> to vector<1x128xf32>
    %583 = arith.addf %581, %582 : vector<1x128xf32>
    %584 = arith.negf %583 : vector<1x128xf32>
    %585 = math.exp %584 : vector<1x128xf32>
    %cst_199 = arith.constant 1.000000e+00 : f32
    %586 = vector.broadcast %cst_199 : f32 to vector<1x128xf32>
    %587 = arith.addf %586, %585 : vector<1x128xf32>
    %588 = arith.divf %586, %587 : vector<1x128xf32>
    %589 = vector.extract_strided_slice %568 {offsets = [0, 256], sizes = [1, 128], strides = [1, 1]} : vector<1x384xf32> to vector<1x128xf32>
    %590 = vector.extract_strided_slice %572 {offsets = [0, 256], sizes = [1, 128], strides = [1, 1]} : vector<1x384xf32> to vector<1x128xf32>
    %591 = arith.mulf %580, %590 : vector<1x128xf32>
    %592 = arith.addf %589, %591 : vector<1x128xf32>
    %593 = math.tanh %592 : vector<1x128xf32>
    %cst_200 = arith.constant 1.000000e+00 : f32
    %594 = vector.broadcast %cst_200 : f32 to vector<1x128xf32>
    %595 = arith.subf %594, %588 : vector<1x128xf32>
    %596 = arith.mulf %595, %593 : vector<1x128xf32>
    %597 = arith.mulf %588, %506 : vector<1x128xf32>
    %598 = arith.addf %596, %597 : vector<1x128xf32>
    %c0_201 = arith.constant 0 : index
    %c0_202 = arith.constant 0 : index
    %599 = vector.load %arg22[%c0_201, %c0_202] : memref<128x8xf32, #tpu.memory_space<vmem>>, vector<128x8xf32>
    %cst_203 = arith.constant dense<0.000000e+00> : vector<1x8xf32>
    %600 = tpu.matmul %598, %599, %cst_203 {dimension_numbers = #tpu.dot_dimension_numbers<[1], [0], [0], [1], [0, 0, 1, 1], [], []>} : vector<1x128xf32>, vector<128x8xf32>, vector<1x8xf32> -> vector<1x8xf32>
    %cst_204 = arith.constant -1.000000e+30 : f32
    %601 = vector.broadcast %cst_204 : f32 to vector<1x8xf32>
    %602 = arith.select %374, %600, %601 : vector<1x8xi1>, vector<1x8xf32>
    %cst_205 = arith.constant dense<0xFF800000> : vector<1xf32>
    %603 = vector.multi_reduction <maximumf>, %602, %cst_205 [1] : vector<1x8xf32> to vector<1xf32>
    %604 = vector.shape_cast %603 : vector<1xf32> to vector<1x1xf32>
    %605 = vector.broadcast %604 : vector<1x1xf32> to vector<1x8xf32>
    %606 = arith.subf %602, %605 : vector<1x8xf32>
    %607 = math.exp %606 : vector<1x8xf32>
    %cst_206 = arith.constant dense<0.000000e+00> : vector<1xf32>
    %608 = vector.multi_reduction <add>, %607, %cst_206 [1] : vector<1x8xf32> to vector<1xf32>
    %609 = vector.shape_cast %608 : vector<1xf32> to vector<1x1xf32>
    %610 = tpu.reciprocal %609 {approx = true} : vector<1x1xf32> -> vector<1x1xf32>
    %611 = vector.broadcast %610 : vector<1x1xf32> to vector<1x8xf32>
    %612 = arith.mulf %607, %611 : vector<1x8xf32>
    %c0_207 = arith.constant 0 : index
    %c0_208 = arith.constant 0 : index
    %613 = vector.load %arg21[%c0_207, %c0_208] : memref<8x128xf32, #tpu.memory_space<vmem>>, vector<8x128xf32>
    %cst_209 = arith.constant dense<0.000000e+00> : vector<1x128xf32>
    %614 = tpu.matmul %612, %613, %cst_209 {dimension_numbers = #tpu.dot_dimension_numbers<[1], [0], [0], [1], [0, 0, 1, 1], [], []>} : vector<1x8xf32>, vector<8x128xf32>, vector<1x128xf32> -> vector<1x128xf32>
    %615 = arith.truncf %598 : vector<1x128xf32> to vector<1x128xbf16>
    %c0_210 = arith.constant 0 : index
    %c0_211 = arith.constant 0 : index
    %616 = vector.load %arg12[%c0_210, %c0_211] : memref<128x128xbf16, #tpu.memory_space<vmem>>, vector<128x128xbf16>
    %cst_212 = arith.constant dense<0.000000e+00> : vector<1x128xf32>
    %617 = tpu.matmul %615, %616, %cst_212 {dimension_numbers = #tpu.dot_dimension_numbers<[1], [0], [0], [1], [0, 0, 1, 1], [], []>} : vector<1x128xbf16>, vector<128x128xbf16>, vector<1x128xf32> -> vector<1x128xf32>
    %618 = arith.truncf %614 : vector<1x128xf32> to vector<1x128xbf16>
    %c0_213 = arith.constant 0 : index
    %c0_214 = arith.constant 0 : index
    %619 = vector.load %arg13[%c0_213, %c0_214] : memref<128x128xbf16, #tpu.memory_space<vmem>>, vector<128x128xbf16>
    %cst_215 = arith.constant dense<0.000000e+00> : vector<1x128xf32>
    %620 = tpu.matmul %618, %619, %cst_215 {dimension_numbers = #tpu.dot_dimension_numbers<[1], [0], [0], [1], [0, 0, 1, 1], [], []>} : vector<1x128xbf16>, vector<128x128xbf16>, vector<1x128xf32> -> vector<1x128xf32>
    %621 = arith.addf %617, %620 : vector<1x128xf32>
    %622 = arith.addf %621, %368 : vector<1x128xf32>
    %623 = math.tanh %622 : vector<1x128xf32>
    %624 = arith.truncf %623 : vector<1x128xf32> to vector<1x128xbf16>
    %c0_216 = arith.constant 0 : index
    %c0_217 = arith.constant 0 : index
    %625 = vector.load %arg15[%c0_216, %c0_217] : memref<128x128xbf16, #tpu.memory_space<vmem>>, vector<128x128xbf16>
    %cst_218 = arith.constant dense<0.000000e+00> : vector<1x128xf32>
    %626 = tpu.matmul %624, %625, %cst_218 {dimension_numbers = #tpu.dot_dimension_numbers<[1], [0], [0], [1], [0, 0, 1, 1], [], []>} : vector<1x128xbf16>, vector<128x128xbf16>, vector<1x128xf32> -> vector<1x128xf32>
    %627 = arith.addf %626, %369 : vector<1x128xf32>
    %cst_219 = arith.constant -1.000000e+30 : f32
    %628 = vector.broadcast %cst_219 : f32 to vector<1x128xf32>
    %629 = arith.select %376, %627, %628 : vector<1x128xi1>, vector<1x128xf32>
    %cst_220 = arith.constant dense<0xFF800000> : vector<1xf32>
    %630 = vector.multi_reduction <maximumf>, %629, %cst_220 [1] : vector<1x128xf32> to vector<1xf32>
    %631 = vector.shape_cast %630 : vector<1xf32> to vector<1x1xf32>
    %632 = vector.broadcast %631 : vector<1x1xf32> to vector<1x128xf32>
    %633 = arith.subf %629, %632 : vector<1x128xf32>
    %634 = math.exp %633 : vector<1x128xf32>
    %cst_221 = arith.constant dense<0.000000e+00> : vector<1xf32>
    %635 = vector.multi_reduction <add>, %634, %cst_221 [1] : vector<1x128xf32> to vector<1xf32>
    %636 = vector.shape_cast %635 : vector<1xf32> to vector<1x1xf32>
    %637 = tpu.reciprocal %636 : vector<1x1xf32> -> vector<1x1xf32>
    %638 = vector.broadcast %631 : vector<1x1xf32> to vector<1x128xf32>
    %639 = arith.cmpf oeq, %629, %638 : vector<1x128xf32>
    %c128_i32_222 = arith.constant 128 : i32
    %640 = vector.broadcast %c128_i32_222 : i32 to vector<1x128xi32>
    %641 = arith.select %639, %370, %640 : vector<1x128xi1>, vector<1x128xi32>
    %642 = vector.shape_cast %641 : vector<1x128xi32> to vector<1x1x128xi32>
    %cst_223 = arith.constant dense<2147483647> : vector<1xi32>
    %643 = vector.multi_reduction <minsi>, %642, %cst_223 [1, 2] : vector<1x1x128xi32> to vector<1xi32>
    %644 = vector.shape_cast %643 : vector<1xi32> to vector<1x1x1xi32>
    %645 = vector.extract %644[0, 0, 0] : i32 from vector<1x1x1xi32>
    %646 = vector.broadcast %c2_i32_190 : i32 to vector<1x8xi32>
    %647 = arith.cmpi eq, %372, %646 : vector<1x8xi32>
    %648 = vector.broadcast %645 : i32 to vector<1x8xi32>
    %649 = arith.select %647, %648, %557 : vector<1x8xi1>, vector<1x8xi32>
    %650 = vector.broadcast %c2_i32_190 : i32 to vector<1x8xi32>
    %651 = arith.cmpi eq, %372, %650 : vector<1x8xi32>
    %652 = vector.shape_cast %637 : vector<1x1xf32> to vector<1x1xf32>
    %653 = vector.broadcast %652 : vector<1x1xf32> to vector<1x8xf32>
    %654 = arith.select %651, %653, %562 : vector<1x8xi1>, vector<1x8xf32>
    %c3_i32_224 = arith.constant 3 : i32
    %655 = arith.index_cast %645 : i32 to index
    %c0_225 = arith.constant 0 : index
    %656 = vector.load %arg7[%655, %c0_225] : memref<128x128xf32, #tpu.memory_space<vmem>>, vector<1x128xf32>
    %657 = arith.truncf %656 : vector<1x128xf32> to vector<1x128xbf16>
    %c0_226 = arith.constant 0 : index
    %c0_227 = arith.constant 0 : index
    %658 = vector.load %arg8[%c0_226, %c0_227] : memref<128x384xbf16, #tpu.memory_space<vmem>>, vector<128x384xbf16>
    %cst_228 = arith.constant dense<0.000000e+00> : vector<1x384xf32>
    %659 = tpu.matmul %657, %658, %cst_228 {dimension_numbers = #tpu.dot_dimension_numbers<[1], [0], [0], [1], [0, 0, 1, 1], [], []>} : vector<1x128xbf16>, vector<128x384xbf16>, vector<1x384xf32> -> vector<1x384xf32>
    %660 = arith.addf %659, %366 : vector<1x384xf32>
    %661 = arith.truncf %598 : vector<1x128xf32> to vector<1x128xbf16>
    %c0_229 = arith.constant 0 : index
    %c0_230 = arith.constant 0 : index
    %662 = vector.load %arg9[%c0_229, %c0_230] : memref<128x384xbf16, #tpu.memory_space<vmem>>, vector<128x384xbf16>
    %cst_231 = arith.constant dense<0.000000e+00> : vector<1x384xf32>
    %663 = tpu.matmul %661, %662, %cst_231 {dimension_numbers = #tpu.dot_dimension_numbers<[1], [0], [0], [1], [0, 0, 1, 1], [], []>} : vector<1x128xbf16>, vector<128x384xbf16>, vector<1x384xf32> -> vector<1x384xf32>
    %664 = arith.addf %663, %367 : vector<1x384xf32>
    %665 = vector.extract_strided_slice %660 {offsets = [0, 0], sizes = [1, 128], strides = [1, 1]} : vector<1x384xf32> to vector<1x128xf32>
    %666 = vector.extract_strided_slice %664 {offsets = [0, 0], sizes = [1, 128], strides = [1, 1]} : vector<1x384xf32> to vector<1x128xf32>
    %667 = arith.addf %665, %666 : vector<1x128xf32>
    %668 = arith.negf %667 : vector<1x128xf32>
    %669 = math.exp %668 : vector<1x128xf32>
    %cst_232 = arith.constant 1.000000e+00 : f32
    %670 = vector.broadcast %cst_232 : f32 to vector<1x128xf32>
    %671 = arith.addf %670, %669 : vector<1x128xf32>
    %672 = arith.divf %670, %671 : vector<1x128xf32>
    %673 = vector.extract_strided_slice %660 {offsets = [0, 128], sizes = [1, 128], strides = [1, 1]} : vector<1x384xf32> to vector<1x128xf32>
    %674 = vector.extract_strided_slice %664 {offsets = [0, 128], sizes = [1, 128], strides = [1, 1]} : vector<1x384xf32> to vector<1x128xf32>
    %675 = arith.addf %673, %674 : vector<1x128xf32>
    %676 = arith.negf %675 : vector<1x128xf32>
    %677 = math.exp %676 : vector<1x128xf32>
    %cst_233 = arith.constant 1.000000e+00 : f32
    %678 = vector.broadcast %cst_233 : f32 to vector<1x128xf32>
    %679 = arith.addf %678, %677 : vector<1x128xf32>
    %680 = arith.divf %678, %679 : vector<1x128xf32>
    %681 = vector.extract_strided_slice %660 {offsets = [0, 256], sizes = [1, 128], strides = [1, 1]} : vector<1x384xf32> to vector<1x128xf32>
    %682 = vector.extract_strided_slice %664 {offsets = [0, 256], sizes = [1, 128], strides = [1, 1]} : vector<1x384xf32> to vector<1x128xf32>
    %683 = arith.mulf %672, %682 : vector<1x128xf32>
    %684 = arith.addf %681, %683 : vector<1x128xf32>
    %685 = math.tanh %684 : vector<1x128xf32>
    %cst_234 = arith.constant 1.000000e+00 : f32
    %686 = vector.broadcast %cst_234 : f32 to vector<1x128xf32>
    %687 = arith.subf %686, %680 : vector<1x128xf32>
    %688 = arith.mulf %687, %685 : vector<1x128xf32>
    %689 = arith.mulf %680, %598 : vector<1x128xf32>
    %690 = arith.addf %688, %689 : vector<1x128xf32>
    %c0_235 = arith.constant 0 : index
    %c0_236 = arith.constant 0 : index
    %691 = vector.load %arg22[%c0_235, %c0_236] : memref<128x8xf32, #tpu.memory_space<vmem>>, vector<128x8xf32>
    %cst_237 = arith.constant dense<0.000000e+00> : vector<1x8xf32>
    %692 = tpu.matmul %690, %691, %cst_237 {dimension_numbers = #tpu.dot_dimension_numbers<[1], [0], [0], [1], [0, 0, 1, 1], [], []>} : vector<1x128xf32>, vector<128x8xf32>, vector<1x8xf32> -> vector<1x8xf32>
    %cst_238 = arith.constant -1.000000e+30 : f32
    %693 = vector.broadcast %cst_238 : f32 to vector<1x8xf32>
    %694 = arith.select %374, %692, %693 : vector<1x8xi1>, vector<1x8xf32>
    %cst_239 = arith.constant dense<0xFF800000> : vector<1xf32>
    %695 = vector.multi_reduction <maximumf>, %694, %cst_239 [1] : vector<1x8xf32> to vector<1xf32>
    %696 = vector.shape_cast %695 : vector<1xf32> to vector<1x1xf32>
    %697 = vector.broadcast %696 : vector<1x1xf32> to vector<1x8xf32>
    %698 = arith.subf %694, %697 : vector<1x8xf32>
    %699 = math.exp %698 : vector<1x8xf32>
    %cst_240 = arith.constant dense<0.000000e+00> : vector<1xf32>
    %700 = vector.multi_reduction <add>, %699, %cst_240 [1] : vector<1x8xf32> to vector<1xf32>
    %701 = vector.shape_cast %700 : vector<1xf32> to vector<1x1xf32>
    %702 = tpu.reciprocal %701 {approx = true} : vector<1x1xf32> -> vector<1x1xf32>
    %703 = vector.broadcast %702 : vector<1x1xf32> to vector<1x8xf32>
    %704 = arith.mulf %699, %703 : vector<1x8xf32>
    %c0_241 = arith.constant 0 : index
    %c0_242 = arith.constant 0 : index
    %705 = vector.load %arg21[%c0_241, %c0_242] : memref<8x128xf32, #tpu.memory_space<vmem>>, vector<8x128xf32>
    %cst_243 = arith.constant dense<0.000000e+00> : vector<1x128xf32>
    %706 = tpu.matmul %704, %705, %cst_243 {dimension_numbers = #tpu.dot_dimension_numbers<[1], [0], [0], [1], [0, 0, 1, 1], [], []>} : vector<1x8xf32>, vector<8x128xf32>, vector<1x128xf32> -> vector<1x128xf32>
    %707 = arith.truncf %690 : vector<1x128xf32> to vector<1x128xbf16>
    %c0_244 = arith.constant 0 : index
    %c0_245 = arith.constant 0 : index
    %708 = vector.load %arg12[%c0_244, %c0_245] : memref<128x128xbf16, #tpu.memory_space<vmem>>, vector<128x128xbf16>
    %cst_246 = arith.constant dense<0.000000e+00> : vector<1x128xf32>
    %709 = tpu.matmul %707, %708, %cst_246 {dimension_numbers = #tpu.dot_dimension_numbers<[1], [0], [0], [1], [0, 0, 1, 1], [], []>} : vector<1x128xbf16>, vector<128x128xbf16>, vector<1x128xf32> -> vector<1x128xf32>
    %710 = arith.truncf %706 : vector<1x128xf32> to vector<1x128xbf16>
    %c0_247 = arith.constant 0 : index
    %c0_248 = arith.constant 0 : index
    %711 = vector.load %arg13[%c0_247, %c0_248] : memref<128x128xbf16, #tpu.memory_space<vmem>>, vector<128x128xbf16>
    %cst_249 = arith.constant dense<0.000000e+00> : vector<1x128xf32>
    %712 = tpu.matmul %710, %711, %cst_249 {dimension_numbers = #tpu.dot_dimension_numbers<[1], [0], [0], [1], [0, 0, 1, 1], [], []>} : vector<1x128xbf16>, vector<128x128xbf16>, vector<1x128xf32> -> vector<1x128xf32>
    %713 = arith.addf %709, %712 : vector<1x128xf32>
    %714 = arith.addf %713, %368 : vector<1x128xf32>
    %715 = math.tanh %714 : vector<1x128xf32>
    %716 = arith.truncf %715 : vector<1x128xf32> to vector<1x128xbf16>
    %c0_250 = arith.constant 0 : index
    %c0_251 = arith.constant 0 : index
    %717 = vector.load %arg15[%c0_250, %c0_251] : memref<128x128xbf16, #tpu.memory_space<vmem>>, vector<128x128xbf16>
    %cst_252 = arith.constant dense<0.000000e+00> : vector<1x128xf32>
    %718 = tpu.matmul %716, %717, %cst_252 {dimension_numbers = #tpu.dot_dimension_numbers<[1], [0], [0], [1], [0, 0, 1, 1], [], []>} : vector<1x128xbf16>, vector<128x128xbf16>, vector<1x128xf32> -> vector<1x128xf32>
    %719 = arith.addf %718, %369 : vector<1x128xf32>
    %cst_253 = arith.constant -1.000000e+30 : f32
    %720 = vector.broadcast %cst_253 : f32 to vector<1x128xf32>
    %721 = arith.select %376, %719, %720 : vector<1x128xi1>, vector<1x128xf32>
    %cst_254 = arith.constant dense<0xFF800000> : vector<1xf32>
    %722 = vector.multi_reduction <maximumf>, %721, %cst_254 [1] : vector<1x128xf32> to vector<1xf32>
    %723 = vector.shape_cast %722 : vector<1xf32> to vector<1x1xf32>
    %724 = vector.broadcast %723 : vector<1x1xf32> to vector<1x128xf32>
    %725 = arith.subf %721, %724 : vector<1x128xf32>
    %726 = math.exp %725 : vector<1x128xf32>
    %cst_255 = arith.constant dense<0.000000e+00> : vector<1xf32>
    %727 = vector.multi_reduction <add>, %726, %cst_255 [1] : vector<1x128xf32> to vector<1xf32>
    %728 = vector.shape_cast %727 : vector<1xf32> to vector<1x1xf32>
    %729 = tpu.reciprocal %728 : vector<1x1xf32> -> vector<1x1xf32>
    %730 = vector.broadcast %723 : vector<1x1xf32> to vector<1x128xf32>
    %731 = arith.cmpf oeq, %721, %730 : vector<1x128xf32>
    %c128_i32_256 = arith.constant 128 : i32
    %732 = vector.broadcast %c128_i32_256 : i32 to vector<1x128xi32>
    %733 = arith.select %731, %370, %732 : vector<1x128xi1>, vector<1x128xi32>
    %734 = vector.shape_cast %733 : vector<1x128xi32> to vector<1x1x128xi32>
    %cst_257 = arith.constant dense<2147483647> : vector<1xi32>
    %735 = vector.multi_reduction <minsi>, %734, %cst_257 [1, 2] : vector<1x1x128xi32> to vector<1xi32>
    %736 = vector.shape_cast %735 : vector<1xi32> to vector<1x1x1xi32>
    %737 = vector.extract %736[0, 0, 0] : i32 from vector<1x1x1xi32>
    %738 = vector.broadcast %c3_i32_224 : i32 to vector<1x8xi32>
    %739 = arith.cmpi eq, %372, %738 : vector<1x8xi32>
    %740 = vector.broadcast %737 : i32 to vector<1x8xi32>
    %741 = arith.select %739, %740, %649 : vector<1x8xi1>, vector<1x8xi32>
    %742 = vector.broadcast %c3_i32_224 : i32 to vector<1x8xi32>
    %743 = arith.cmpi eq, %372, %742 : vector<1x8xi32>
    %744 = vector.shape_cast %729 : vector<1x1xf32> to vector<1x1xf32>
    %745 = vector.broadcast %744 : vector<1x1xf32> to vector<1x8xf32>
    %746 = arith.select %743, %745, %654 : vector<1x8xi1>, vector<1x8xf32>
    %c4_i32_258 = arith.constant 4 : i32
    %747 = arith.index_cast %737 : i32 to index
    %c0_259 = arith.constant 0 : index
    %748 = vector.load %arg7[%747, %c0_259] : memref<128x128xf32, #tpu.memory_space<vmem>>, vector<1x128xf32>
    %749 = arith.truncf %748 : vector<1x128xf32> to vector<1x128xbf16>
    %c0_260 = arith.constant 0 : index
    %c0_261 = arith.constant 0 : index
    %750 = vector.load %arg8[%c0_260, %c0_261] : memref<128x384xbf16, #tpu.memory_space<vmem>>, vector<128x384xbf16>
    %cst_262 = arith.constant dense<0.000000e+00> : vector<1x384xf32>
    %751 = tpu.matmul %749, %750, %cst_262 {dimension_numbers = #tpu.dot_dimension_numbers<[1], [0], [0], [1], [0, 0, 1, 1], [], []>} : vector<1x128xbf16>, vector<128x384xbf16>, vector<1x384xf32> -> vector<1x384xf32>
    %752 = arith.addf %751, %366 : vector<1x384xf32>
    %753 = arith.truncf %690 : vector<1x128xf32> to vector<1x128xbf16>
    %c0_263 = arith.constant 0 : index
    %c0_264 = arith.constant 0 : index
    %754 = vector.load %arg9[%c0_263, %c0_264] : memref<128x384xbf16, #tpu.memory_space<vmem>>, vector<128x384xbf16>
    %cst_265 = arith.constant dense<0.000000e+00> : vector<1x384xf32>
    %755 = tpu.matmul %753, %754, %cst_265 {dimension_numbers = #tpu.dot_dimension_numbers<[1], [0], [0], [1], [0, 0, 1, 1], [], []>} : vector<1x128xbf16>, vector<128x384xbf16>, vector<1x384xf32> -> vector<1x384xf32>
    %756 = arith.addf %755, %367 : vector<1x384xf32>
    %757 = vector.extract_strided_slice %752 {offsets = [0, 0], sizes = [1, 128], strides = [1, 1]} : vector<1x384xf32> to vector<1x128xf32>
    %758 = vector.extract_strided_slice %756 {offsets = [0, 0], sizes = [1, 128], strides = [1, 1]} : vector<1x384xf32> to vector<1x128xf32>
    %759 = arith.addf %757, %758 : vector<1x128xf32>
    %760 = arith.negf %759 : vector<1x128xf32>
    %761 = math.exp %760 : vector<1x128xf32>
    %cst_266 = arith.constant 1.000000e+00 : f32
    %762 = vector.broadcast %cst_266 : f32 to vector<1x128xf32>
    %763 = arith.addf %762, %761 : vector<1x128xf32>
    %764 = arith.divf %762, %763 : vector<1x128xf32>
    %765 = vector.extract_strided_slice %752 {offsets = [0, 128], sizes = [1, 128], strides = [1, 1]} : vector<1x384xf32> to vector<1x128xf32>
    %766 = vector.extract_strided_slice %756 {offsets = [0, 128], sizes = [1, 128], strides = [1, 1]} : vector<1x384xf32> to vector<1x128xf32>
    %767 = arith.addf %765, %766 : vector<1x128xf32>
    %768 = arith.negf %767 : vector<1x128xf32>
    %769 = math.exp %768 : vector<1x128xf32>
    %cst_267 = arith.constant 1.000000e+00 : f32
    %770 = vector.broadcast %cst_267 : f32 to vector<1x128xf32>
    %771 = arith.addf %770, %769 : vector<1x128xf32>
    %772 = arith.divf %770, %771 : vector<1x128xf32>
    %773 = vector.extract_strided_slice %752 {offsets = [0, 256], sizes = [1, 128], strides = [1, 1]} : vector<1x384xf32> to vector<1x128xf32>
    %774 = vector.extract_strided_slice %756 {offsets = [0, 256], sizes = [1, 128], strides = [1, 1]} : vector<1x384xf32> to vector<1x128xf32>
    %775 = arith.mulf %764, %774 : vector<1x128xf32>
    %776 = arith.addf %773, %775 : vector<1x128xf32>
    %777 = math.tanh %776 : vector<1x128xf32>
    %cst_268 = arith.constant 1.000000e+00 : f32
    %778 = vector.broadcast %cst_268 : f32 to vector<1x128xf32>
    %779 = arith.subf %778, %772 : vector<1x128xf32>
    %780 = arith.mulf %779, %777 : vector<1x128xf32>
    %781 = arith.mulf %772, %690 : vector<1x128xf32>
    %782 = arith.addf %780, %781 : vector<1x128xf32>
    %c0_269 = arith.constant 0 : index
    %c0_270 = arith.constant 0 : index
    %783 = vector.load %arg22[%c0_269, %c0_270] : memref<128x8xf32, #tpu.memory_space<vmem>>, vector<128x8xf32>
    %cst_271 = arith.constant dense<0.000000e+00> : vector<1x8xf32>
    %784 = tpu.matmul %782, %783, %cst_271 {dimension_numbers = #tpu.dot_dimension_numbers<[1], [0], [0], [1], [0, 0, 1, 1], [], []>} : vector<1x128xf32>, vector<128x8xf32>, vector<1x8xf32> -> vector<1x8xf32>
    %cst_272 = arith.constant -1.000000e+30 : f32
    %785 = vector.broadcast %cst_272 : f32 to vector<1x8xf32>
    %786 = arith.select %374, %784, %785 : vector<1x8xi1>, vector<1x8xf32>
    %cst_273 = arith.constant dense<0xFF800000> : vector<1xf32>
    %787 = vector.multi_reduction <maximumf>, %786, %cst_273 [1] : vector<1x8xf32> to vector<1xf32>
    %788 = vector.shape_cast %787 : vector<1xf32> to vector<1x1xf32>
    %789 = vector.broadcast %788 : vector<1x1xf32> to vector<1x8xf32>
    %790 = arith.subf %786, %789 : vector<1x8xf32>
    %791 = math.exp %790 : vector<1x8xf32>
    %cst_274 = arith.constant dense<0.000000e+00> : vector<1xf32>
    %792 = vector.multi_reduction <add>, %791, %cst_274 [1] : vector<1x8xf32> to vector<1xf32>
    %793 = vector.shape_cast %792 : vector<1xf32> to vector<1x1xf32>
    %794 = tpu.reciprocal %793 {approx = true} : vector<1x1xf32> -> vector<1x1xf32>
    %795 = vector.broadcast %794 : vector<1x1xf32> to vector<1x8xf32>
    %796 = arith.mulf %791, %795 : vector<1x8xf32>
    %c0_275 = arith.constant 0 : index
    %c0_276 = arith.constant 0 : index
    %797 = vector.load %arg21[%c0_275, %c0_276] : memref<8x128xf32, #tpu.memory_space<vmem>>, vector<8x128xf32>
    %cst_277 = arith.constant dense<0.000000e+00> : vector<1x128xf32>
    %798 = tpu.matmul %796, %797, %cst_277 {dimension_numbers = #tpu.dot_dimension_numbers<[1], [0], [0], [1], [0, 0, 1, 1], [], []>} : vector<1x8xf32>, vector<8x128xf32>, vector<1x128xf32> -> vector<1x128xf32>
    %799 = arith.truncf %782 : vector<1x128xf32> to vector<1x128xbf16>
    %c0_278 = arith.constant 0 : index
    %c0_279 = arith.constant 0 : index
    %800 = vector.load %arg12[%c0_278, %c0_279] : memref<128x128xbf16, #tpu.memory_space<vmem>>, vector<128x128xbf16>
    %cst_280 = arith.constant dense<0.000000e+00> : vector<1x128xf32>
    %801 = tpu.matmul %799, %800, %cst_280 {dimension_numbers = #tpu.dot_dimension_numbers<[1], [0], [0], [1], [0, 0, 1, 1], [], []>} : vector<1x128xbf16>, vector<128x128xbf16>, vector<1x128xf32> -> vector<1x128xf32>
    %802 = arith.truncf %798 : vector<1x128xf32> to vector<1x128xbf16>
    %c0_281 = arith.constant 0 : index
    %c0_282 = arith.constant 0 : index
    %803 = vector.load %arg13[%c0_281, %c0_282] : memref<128x128xbf16, #tpu.memory_space<vmem>>, vector<128x128xbf16>
    %cst_283 = arith.constant dense<0.000000e+00> : vector<1x128xf32>
    %804 = tpu.matmul %802, %803, %cst_283 {dimension_numbers = #tpu.dot_dimension_numbers<[1], [0], [0], [1], [0, 0, 1, 1], [], []>} : vector<1x128xbf16>, vector<128x128xbf16>, vector<1x128xf32> -> vector<1x128xf32>
    %805 = arith.addf %801, %804 : vector<1x128xf32>
    %806 = arith.addf %805, %368 : vector<1x128xf32>
    %807 = math.tanh %806 : vector<1x128xf32>
    %808 = arith.truncf %807 : vector<1x128xf32> to vector<1x128xbf16>
    %c0_284 = arith.constant 0 : index
    %c0_285 = arith.constant 0 : index
    %809 = vector.load %arg15[%c0_284, %c0_285] : memref<128x128xbf16, #tpu.memory_space<vmem>>, vector<128x128xbf16>
    %cst_286 = arith.constant dense<0.000000e+00> : vector<1x128xf32>
    %810 = tpu.matmul %808, %809, %cst_286 {dimension_numbers = #tpu.dot_dimension_numbers<[1], [0], [0], [1], [0, 0, 1, 1], [], []>} : vector<1x128xbf16>, vector<128x128xbf16>, vector<1x128xf32> -> vector<1x128xf32>
    %811 = arith.addf %810, %369 : vector<1x128xf32>
    %cst_287 = arith.constant -1.000000e+30 : f32
    %812 = vector.broadcast %cst_287 : f32 to vector<1x128xf32>
    %813 = arith.select %376, %811, %812 : vector<1x128xi1>, vector<1x128xf32>
    %cst_288 = arith.constant dense<0xFF800000> : vector<1xf32>
    %814 = vector.multi_reduction <maximumf>, %813, %cst_288 [1] : vector<1x128xf32> to vector<1xf32>
    %815 = vector.shape_cast %814 : vector<1xf32> to vector<1x1xf32>
    %816 = vector.broadcast %815 : vector<1x1xf32> to vector<1x128xf32>
    %817 = arith.subf %813, %816 : vector<1x128xf32>
    %818 = math.exp %817 : vector<1x128xf32>
    %cst_289 = arith.constant dense<0.000000e+00> : vector<1xf32>
    %819 = vector.multi_reduction <add>, %818, %cst_289 [1] : vector<1x128xf32> to vector<1xf32>
    %820 = vector.shape_cast %819 : vector<1xf32> to vector<1x1xf32>
    %821 = tpu.reciprocal %820 : vector<1x1xf32> -> vector<1x1xf32>
    %822 = vector.broadcast %815 : vector<1x1xf32> to vector<1x128xf32>
    %823 = arith.cmpf oeq, %813, %822 : vector<1x128xf32>
    %c128_i32_290 = arith.constant 128 : i32
    %824 = vector.broadcast %c128_i32_290 : i32 to vector<1x128xi32>
    %825 = arith.select %823, %370, %824 : vector<1x128xi1>, vector<1x128xi32>
    %826 = vector.shape_cast %825 : vector<1x128xi32> to vector<1x1x128xi32>
    %cst_291 = arith.constant dense<2147483647> : vector<1xi32>
    %827 = vector.multi_reduction <minsi>, %826, %cst_291 [1, 2] : vector<1x1x128xi32> to vector<1xi32>
    %828 = vector.shape_cast %827 : vector<1xi32> to vector<1x1x1xi32>
    %829 = vector.extract %828[0, 0, 0] : i32 from vector<1x1x1xi32>
    %830 = vector.broadcast %c4_i32_258 : i32 to vector<1x8xi32>
    %831 = arith.cmpi eq, %372, %830 : vector<1x8xi32>
    %832 = vector.broadcast %829 : i32 to vector<1x8xi32>
    %833 = arith.select %831, %832, %741 : vector<1x8xi1>, vector<1x8xi32>
    %834 = vector.broadcast %c4_i32_258 : i32 to vector<1x8xi32>
    %835 = arith.cmpi eq, %372, %834 : vector<1x8xi32>
    %836 = vector.shape_cast %821 : vector<1x1xf32> to vector<1x1xf32>
    %837 = vector.broadcast %836 : vector<1x1xf32> to vector<1x8xf32>
    %838 = arith.select %835, %837, %746 : vector<1x8xi1>, vector<1x8xf32>
    %c5_i32_292 = arith.constant 5 : i32
    %839 = arith.index_cast %829 : i32 to index
    %c0_293 = arith.constant 0 : index
    %840 = vector.load %arg7[%839, %c0_293] : memref<128x128xf32, #tpu.memory_space<vmem>>, vector<1x128xf32>
    %841 = arith.truncf %840 : vector<1x128xf32> to vector<1x128xbf16>
    %c0_294 = arith.constant 0 : index
    %c0_295 = arith.constant 0 : index
    %842 = vector.load %arg8[%c0_294, %c0_295] : memref<128x384xbf16, #tpu.memory_space<vmem>>, vector<128x384xbf16>
    %cst_296 = arith.constant dense<0.000000e+00> : vector<1x384xf32>
    %843 = tpu.matmul %841, %842, %cst_296 {dimension_numbers = #tpu.dot_dimension_numbers<[1], [0], [0], [1], [0, 0, 1, 1], [], []>} : vector<1x128xbf16>, vector<128x384xbf16>, vector<1x384xf32> -> vector<1x384xf32>
    %844 = arith.addf %843, %366 : vector<1x384xf32>
    %845 = arith.truncf %782 : vector<1x128xf32> to vector<1x128xbf16>
    %c0_297 = arith.constant 0 : index
    %c0_298 = arith.constant 0 : index
    %846 = vector.load %arg9[%c0_297, %c0_298] : memref<128x384xbf16, #tpu.memory_space<vmem>>, vector<128x384xbf16>
    %cst_299 = arith.constant dense<0.000000e+00> : vector<1x384xf32>
    %847 = tpu.matmul %845, %846, %cst_299 {dimension_numbers = #tpu.dot_dimension_numbers<[1], [0], [0], [1], [0, 0, 1, 1], [], []>} : vector<1x128xbf16>, vector<128x384xbf16>, vector<1x384xf32> -> vector<1x384xf32>
    %848 = arith.addf %847, %367 : vector<1x384xf32>
    %849 = vector.extract_strided_slice %844 {offsets = [0, 0], sizes = [1, 128], strides = [1, 1]} : vector<1x384xf32> to vector<1x128xf32>
    %850 = vector.extract_strided_slice %848 {offsets = [0, 0], sizes = [1, 128], strides = [1, 1]} : vector<1x384xf32> to vector<1x128xf32>
    %851 = arith.addf %849, %850 : vector<1x128xf32>
    %852 = arith.negf %851 : vector<1x128xf32>
    %853 = math.exp %852 : vector<1x128xf32>
    %cst_300 = arith.constant 1.000000e+00 : f32
    %854 = vector.broadcast %cst_300 : f32 to vector<1x128xf32>
    %855 = arith.addf %854, %853 : vector<1x128xf32>
    %856 = arith.divf %854, %855 : vector<1x128xf32>
    %857 = vector.extract_strided_slice %844 {offsets = [0, 128], sizes = [1, 128], strides = [1, 1]} : vector<1x384xf32> to vector<1x128xf32>
    %858 = vector.extract_strided_slice %848 {offsets = [0, 128], sizes = [1, 128], strides = [1, 1]} : vector<1x384xf32> to vector<1x128xf32>
    %859 = arith.addf %857, %858 : vector<1x128xf32>
    %860 = arith.negf %859 : vector<1x128xf32>
    %861 = math.exp %860 : vector<1x128xf32>
    %cst_301 = arith.constant 1.000000e+00 : f32
    %862 = vector.broadcast %cst_301 : f32 to vector<1x128xf32>
    %863 = arith.addf %862, %861 : vector<1x128xf32>
    %864 = arith.divf %862, %863 : vector<1x128xf32>
    %865 = vector.extract_strided_slice %844 {offsets = [0, 256], sizes = [1, 128], strides = [1, 1]} : vector<1x384xf32> to vector<1x128xf32>
    %866 = vector.extract_strided_slice %848 {offsets = [0, 256], sizes = [1, 128], strides = [1, 1]} : vector<1x384xf32> to vector<1x128xf32>
    %867 = arith.mulf %856, %866 : vector<1x128xf32>
    %868 = arith.addf %865, %867 : vector<1x128xf32>
    %869 = math.tanh %868 : vector<1x128xf32>
    %cst_302 = arith.constant 1.000000e+00 : f32
    %870 = vector.broadcast %cst_302 : f32 to vector<1x128xf32>
    %871 = arith.subf %870, %864 : vector<1x128xf32>
    %872 = arith.mulf %871, %869 : vector<1x128xf32>
    %873 = arith.mulf %864, %782 : vector<1x128xf32>
    %874 = arith.addf %872, %873 : vector<1x128xf32>
    %c0_303 = arith.constant 0 : index
    %c0_304 = arith.constant 0 : index
    %875 = vector.load %arg22[%c0_303, %c0_304] : memref<128x8xf32, #tpu.memory_space<vmem>>, vector<128x8xf32>
    %cst_305 = arith.constant dense<0.000000e+00> : vector<1x8xf32>
    %876 = tpu.matmul %874, %875, %cst_305 {dimension_numbers = #tpu.dot_dimension_numbers<[1], [0], [0], [1], [0, 0, 1, 1], [], []>} : vector<1x128xf32>, vector<128x8xf32>, vector<1x8xf32> -> vector<1x8xf32>
    %cst_306 = arith.constant -1.000000e+30 : f32
    %877 = vector.broadcast %cst_306 : f32 to vector<1x8xf32>
    %878 = arith.select %374, %876, %877 : vector<1x8xi1>, vector<1x8xf32>
    %cst_307 = arith.constant dense<0xFF800000> : vector<1xf32>
    %879 = vector.multi_reduction <maximumf>, %878, %cst_307 [1] : vector<1x8xf32> to vector<1xf32>
    %880 = vector.shape_cast %879 : vector<1xf32> to vector<1x1xf32>
    %881 = vector.broadcast %880 : vector<1x1xf32> to vector<1x8xf32>
    %882 = arith.subf %878, %881 : vector<1x8xf32>
    %883 = math.exp %882 : vector<1x8xf32>
    %cst_308 = arith.constant dense<0.000000e+00> : vector<1xf32>
    %884 = vector.multi_reduction <add>, %883, %cst_308 [1] : vector<1x8xf32> to vector<1xf32>
    %885 = vector.shape_cast %884 : vector<1xf32> to vector<1x1xf32>
    %886 = tpu.reciprocal %885 {approx = true} : vector<1x1xf32> -> vector<1x1xf32>
    %887 = vector.broadcast %886 : vector<1x1xf32> to vector<1x8xf32>
    %888 = arith.mulf %883, %887 : vector<1x8xf32>
    %c0_309 = arith.constant 0 : index
    %c0_310 = arith.constant 0 : index
    %889 = vector.load %arg21[%c0_309, %c0_310] : memref<8x128xf32, #tpu.memory_space<vmem>>, vector<8x128xf32>
    %cst_311 = arith.constant dense<0.000000e+00> : vector<1x128xf32>
    %890 = tpu.matmul %888, %889, %cst_311 {dimension_numbers = #tpu.dot_dimension_numbers<[1], [0], [0], [1], [0, 0, 1, 1], [], []>} : vector<1x8xf32>, vector<8x128xf32>, vector<1x128xf32> -> vector<1x128xf32>
    %891 = arith.truncf %874 : vector<1x128xf32> to vector<1x128xbf16>
    %c0_312 = arith.constant 0 : index
    %c0_313 = arith.constant 0 : index
    %892 = vector.load %arg12[%c0_312, %c0_313] : memref<128x128xbf16, #tpu.memory_space<vmem>>, vector<128x128xbf16>
    %cst_314 = arith.constant dense<0.000000e+00> : vector<1x128xf32>
    %893 = tpu.matmul %891, %892, %cst_314 {dimension_numbers = #tpu.dot_dimension_numbers<[1], [0], [0], [1], [0, 0, 1, 1], [], []>} : vector<1x128xbf16>, vector<128x128xbf16>, vector<1x128xf32> -> vector<1x128xf32>
    %894 = arith.truncf %890 : vector<1x128xf32> to vector<1x128xbf16>
    %c0_315 = arith.constant 0 : index
    %c0_316 = arith.constant 0 : index
    %895 = vector.load %arg13[%c0_315, %c0_316] : memref<128x128xbf16, #tpu.memory_space<vmem>>, vector<128x128xbf16>
    %cst_317 = arith.constant dense<0.000000e+00> : vector<1x128xf32>
    %896 = tpu.matmul %894, %895, %cst_317 {dimension_numbers = #tpu.dot_dimension_numbers<[1], [0], [0], [1], [0, 0, 1, 1], [], []>} : vector<1x128xbf16>, vector<128x128xbf16>, vector<1x128xf32> -> vector<1x128xf32>
    %897 = arith.addf %893, %896 : vector<1x128xf32>
    %898 = arith.addf %897, %368 : vector<1x128xf32>
    %899 = math.tanh %898 : vector<1x128xf32>
    %900 = arith.truncf %899 : vector<1x128xf32> to vector<1x128xbf16>
    %c0_318 = arith.constant 0 : index
    %c0_319 = arith.constant 0 : index
    %901 = vector.load %arg15[%c0_318, %c0_319] : memref<128x128xbf16, #tpu.memory_space<vmem>>, vector<128x128xbf16>
    %cst_320 = arith.constant dense<0.000000e+00> : vector<1x128xf32>
    %902 = tpu.matmul %900, %901, %cst_320 {dimension_numbers = #tpu.dot_dimension_numbers<[1], [0], [0], [1], [0, 0, 1, 1], [], []>} : vector<1x128xbf16>, vector<128x128xbf16>, vector<1x128xf32> -> vector<1x128xf32>
    %903 = arith.addf %902, %369 : vector<1x128xf32>
    %cst_321 = arith.constant -1.000000e+30 : f32
    %904 = vector.broadcast %cst_321 : f32 to vector<1x128xf32>
    %905 = arith.select %376, %903, %904 : vector<1x128xi1>, vector<1x128xf32>
    %cst_322 = arith.constant dense<0xFF800000> : vector<1xf32>
    %906 = vector.multi_reduction <maximumf>, %905, %cst_322 [1] : vector<1x128xf32> to vector<1xf32>
    %907 = vector.shape_cast %906 : vector<1xf32> to vector<1x1xf32>
    %908 = vector.broadcast %907 : vector<1x1xf32> to vector<1x128xf32>
    %909 = arith.subf %905, %908 : vector<1x128xf32>
    %910 = math.exp %909 : vector<1x128xf32>
    %cst_323 = arith.constant dense<0.000000e+00> : vector<1xf32>
    %911 = vector.multi_reduction <add>, %910, %cst_323 [1] : vector<1x128xf32> to vector<1xf32>
    %912 = vector.shape_cast %911 : vector<1xf32> to vector<1x1xf32>
    %913 = tpu.reciprocal %912 : vector<1x1xf32> -> vector<1x1xf32>
    %914 = vector.broadcast %907 : vector<1x1xf32> to vector<1x128xf32>
    %915 = arith.cmpf oeq, %905, %914 : vector<1x128xf32>
    %c128_i32_324 = arith.constant 128 : i32
    %916 = vector.broadcast %c128_i32_324 : i32 to vector<1x128xi32>
    %917 = arith.select %915, %370, %916 : vector<1x128xi1>, vector<1x128xi32>
    %918 = vector.shape_cast %917 : vector<1x128xi32> to vector<1x1x128xi32>
    %cst_325 = arith.constant dense<2147483647> : vector<1xi32>
    %919 = vector.multi_reduction <minsi>, %918, %cst_325 [1, 2] : vector<1x1x128xi32> to vector<1xi32>
    %920 = vector.shape_cast %919 : vector<1xi32> to vector<1x1x1xi32>
    %921 = vector.extract %920[0, 0, 0] : i32 from vector<1x1x1xi32>
    %922 = vector.broadcast %c5_i32_292 : i32 to vector<1x8xi32>
    %923 = arith.cmpi eq, %372, %922 : vector<1x8xi32>
    %924 = vector.broadcast %921 : i32 to vector<1x8xi32>
    %925 = arith.select %923, %924, %833 : vector<1x8xi1>, vector<1x8xi32>
    %926 = vector.broadcast %c5_i32_292 : i32 to vector<1x8xi32>
    %927 = arith.cmpi eq, %372, %926 : vector<1x8xi32>
    %928 = vector.shape_cast %913 : vector<1x1xf32> to vector<1x1xf32>
    %929 = vector.broadcast %928 : vector<1x1xf32> to vector<1x8xf32>
    %930 = arith.select %927, %929, %838 : vector<1x8xi1>, vector<1x8xf32>
    %c6_i32_326 = arith.constant 6 : i32
    %931 = arith.index_cast %921 : i32 to index
    %c0_327 = arith.constant 0 : index
    %932 = vector.load %arg7[%931, %c0_327] : memref<128x128xf32, #tpu.memory_space<vmem>>, vector<1x128xf32>
    %933 = arith.truncf %932 : vector<1x128xf32> to vector<1x128xbf16>
    %c0_328 = arith.constant 0 : index
    %c0_329 = arith.constant 0 : index
    %934 = vector.load %arg8[%c0_328, %c0_329] : memref<128x384xbf16, #tpu.memory_space<vmem>>, vector<128x384xbf16>
    %cst_330 = arith.constant dense<0.000000e+00> : vector<1x384xf32>
    %935 = tpu.matmul %933, %934, %cst_330 {dimension_numbers = #tpu.dot_dimension_numbers<[1], [0], [0], [1], [0, 0, 1, 1], [], []>} : vector<1x128xbf16>, vector<128x384xbf16>, vector<1x384xf32> -> vector<1x384xf32>
    %936 = arith.addf %935, %366 : vector<1x384xf32>
    %937 = arith.truncf %874 : vector<1x128xf32> to vector<1x128xbf16>
    %c0_331 = arith.constant 0 : index
    %c0_332 = arith.constant 0 : index
    %938 = vector.load %arg9[%c0_331, %c0_332] : memref<128x384xbf16, #tpu.memory_space<vmem>>, vector<128x384xbf16>
    %cst_333 = arith.constant dense<0.000000e+00> : vector<1x384xf32>
    %939 = tpu.matmul %937, %938, %cst_333 {dimension_numbers = #tpu.dot_dimension_numbers<[1], [0], [0], [1], [0, 0, 1, 1], [], []>} : vector<1x128xbf16>, vector<128x384xbf16>, vector<1x384xf32> -> vector<1x384xf32>
    %940 = arith.addf %939, %367 : vector<1x384xf32>
    %941 = vector.extract_strided_slice %936 {offsets = [0, 0], sizes = [1, 128], strides = [1, 1]} : vector<1x384xf32> to vector<1x128xf32>
    %942 = vector.extract_strided_slice %940 {offsets = [0, 0], sizes = [1, 128], strides = [1, 1]} : vector<1x384xf32> to vector<1x128xf32>
    %943 = arith.addf %941, %942 : vector<1x128xf32>
    %944 = arith.negf %943 : vector<1x128xf32>
    %945 = math.exp %944 : vector<1x128xf32>
    %cst_334 = arith.constant 1.000000e+00 : f32
    %946 = vector.broadcast %cst_334 : f32 to vector<1x128xf32>
    %947 = arith.addf %946, %945 : vector<1x128xf32>
    %948 = arith.divf %946, %947 : vector<1x128xf32>
    %949 = vector.extract_strided_slice %936 {offsets = [0, 128], sizes = [1, 128], strides = [1, 1]} : vector<1x384xf32> to vector<1x128xf32>
    %950 = vector.extract_strided_slice %940 {offsets = [0, 128], sizes = [1, 128], strides = [1, 1]} : vector<1x384xf32> to vector<1x128xf32>
    %951 = arith.addf %949, %950 : vector<1x128xf32>
    %952 = arith.negf %951 : vector<1x128xf32>
    %953 = math.exp %952 : vector<1x128xf32>
    %cst_335 = arith.constant 1.000000e+00 : f32
    %954 = vector.broadcast %cst_335 : f32 to vector<1x128xf32>
    %955 = arith.addf %954, %953 : vector<1x128xf32>
    %956 = arith.divf %954, %955 : vector<1x128xf32>
    %957 = vector.extract_strided_slice %936 {offsets = [0, 256], sizes = [1, 128], strides = [1, 1]} : vector<1x384xf32> to vector<1x128xf32>
    %958 = vector.extract_strided_slice %940 {offsets = [0, 256], sizes = [1, 128], strides = [1, 1]} : vector<1x384xf32> to vector<1x128xf32>
    %959 = arith.mulf %948, %958 : vector<1x128xf32>
    %960 = arith.addf %957, %959 : vector<1x128xf32>
    %961 = math.tanh %960 : vector<1x128xf32>
    %cst_336 = arith.constant 1.000000e+00 : f32
    %962 = vector.broadcast %cst_336 : f32 to vector<1x128xf32>
    %963 = arith.subf %962, %956 : vector<1x128xf32>
    %964 = arith.mulf %963, %961 : vector<1x128xf32>
    %965 = arith.mulf %956, %874 : vector<1x128xf32>
    %966 = arith.addf %964, %965 : vector<1x128xf32>
    %c0_337 = arith.constant 0 : index
    %c0_338 = arith.constant 0 : index
    %967 = vector.load %arg22[%c0_337, %c0_338] : memref<128x8xf32, #tpu.memory_space<vmem>>, vector<128x8xf32>
    %cst_339 = arith.constant dense<0.000000e+00> : vector<1x8xf32>
    %968 = tpu.matmul %966, %967, %cst_339 {dimension_numbers = #tpu.dot_dimension_numbers<[1], [0], [0], [1], [0, 0, 1, 1], [], []>} : vector<1x128xf32>, vector<128x8xf32>, vector<1x8xf32> -> vector<1x8xf32>
    %cst_340 = arith.constant -1.000000e+30 : f32
    %969 = vector.broadcast %cst_340 : f32 to vector<1x8xf32>
    %970 = arith.select %374, %968, %969 : vector<1x8xi1>, vector<1x8xf32>
    %cst_341 = arith.constant dense<0xFF800000> : vector<1xf32>
    %971 = vector.multi_reduction <maximumf>, %970, %cst_341 [1] : vector<1x8xf32> to vector<1xf32>
    %972 = vector.shape_cast %971 : vector<1xf32> to vector<1x1xf32>
    %973 = vector.broadcast %972 : vector<1x1xf32> to vector<1x8xf32>
    %974 = arith.subf %970, %973 : vector<1x8xf32>
    %975 = math.exp %974 : vector<1x8xf32>
    %cst_342 = arith.constant dense<0.000000e+00> : vector<1xf32>
    %976 = vector.multi_reduction <add>, %975, %cst_342 [1] : vector<1x8xf32> to vector<1xf32>
    %977 = vector.shape_cast %976 : vector<1xf32> to vector<1x1xf32>
    %978 = tpu.reciprocal %977 {approx = true} : vector<1x1xf32> -> vector<1x1xf32>
    %979 = vector.broadcast %978 : vector<1x1xf32> to vector<1x8xf32>
    %980 = arith.mulf %975, %979 : vector<1x8xf32>
    %c0_343 = arith.constant 0 : index
    %c0_344 = arith.constant 0 : index
    %981 = vector.load %arg21[%c0_343, %c0_344] : memref<8x128xf32, #tpu.memory_space<vmem>>, vector<8x128xf32>
    %cst_345 = arith.constant dense<0.000000e+00> : vector<1x128xf32>
    %982 = tpu.matmul %980, %981, %cst_345 {dimension_numbers = #tpu.dot_dimension_numbers<[1], [0], [0], [1], [0, 0, 1, 1], [], []>} : vector<1x8xf32>, vector<8x128xf32>, vector<1x128xf32> -> vector<1x128xf32>
    %983 = arith.truncf %966 : vector<1x128xf32> to vector<1x128xbf16>
    %c0_346 = arith.constant 0 : index
    %c0_347 = arith.constant 0 : index
    %984 = vector.load %arg12[%c0_346, %c0_347] : memref<128x128xbf16, #tpu.memory_space<vmem>>, vector<128x128xbf16>
    %cst_348 = arith.constant dense<0.000000e+00> : vector<1x128xf32>
    %985 = tpu.matmul %983, %984, %cst_348 {dimension_numbers = #tpu.dot_dimension_numbers<[1], [0], [0], [1], [0, 0, 1, 1], [], []>} : vector<1x128xbf16>, vector<128x128xbf16>, vector<1x128xf32> -> vector<1x128xf32>
    %986 = arith.truncf %982 : vector<1x128xf32> to vector<1x128xbf16>
    %c0_349 = arith.constant 0 : index
    %c0_350 = arith.constant 0 : index
    %987 = vector.load %arg13[%c0_349, %c0_350] : memref<128x128xbf16, #tpu.memory_space<vmem>>, vector<128x128xbf16>
    %cst_351 = arith.constant dense<0.000000e+00> : vector<1x128xf32>
    %988 = tpu.matmul %986, %987, %cst_351 {dimension_numbers = #tpu.dot_dimension_numbers<[1], [0], [0], [1], [0, 0, 1, 1], [], []>} : vector<1x128xbf16>, vector<128x128xbf16>, vector<1x128xf32> -> vector<1x128xf32>
    %989 = arith.addf %985, %988 : vector<1x128xf32>
    %990 = arith.addf %989, %368 : vector<1x128xf32>
    %991 = math.tanh %990 : vector<1x128xf32>
    %992 = arith.truncf %991 : vector<1x128xf32> to vector<1x128xbf16>
    %c0_352 = arith.constant 0 : index
    %c0_353 = arith.constant 0 : index
    %993 = vector.load %arg15[%c0_352, %c0_353] : memref<128x128xbf16, #tpu.memory_space<vmem>>, vector<128x128xbf16>
    %cst_354 = arith.constant dense<0.000000e+00> : vector<1x128xf32>
    %994 = tpu.matmul %992, %993, %cst_354 {dimension_numbers = #tpu.dot_dimension_numbers<[1], [0], [0], [1], [0, 0, 1, 1], [], []>} : vector<1x128xbf16>, vector<128x128xbf16>, vector<1x128xf32> -> vector<1x128xf32>
    %995 = arith.addf %994, %369 : vector<1x128xf32>
    %cst_355 = arith.constant -1.000000e+30 : f32
    %996 = vector.broadcast %cst_355 : f32 to vector<1x128xf32>
    %997 = arith.select %376, %995, %996 : vector<1x128xi1>, vector<1x128xf32>
    %cst_356 = arith.constant dense<0xFF800000> : vector<1xf32>
    %998 = vector.multi_reduction <maximumf>, %997, %cst_356 [1] : vector<1x128xf32> to vector<1xf32>
    %999 = vector.shape_cast %998 : vector<1xf32> to vector<1x1xf32>
    %1000 = vector.broadcast %999 : vector<1x1xf32> to vector<1x128xf32>
    %1001 = arith.subf %997, %1000 : vector<1x128xf32>
    %1002 = math.exp %1001 : vector<1x128xf32>
    %cst_357 = arith.constant dense<0.000000e+00> : vector<1xf32>
    %1003 = vector.multi_reduction <add>, %1002, %cst_357 [1] : vector<1x128xf32> to vector<1xf32>
    %1004 = vector.shape_cast %1003 : vector<1xf32> to vector<1x1xf32>
    %1005 = tpu.reciprocal %1004 : vector<1x1xf32> -> vector<1x1xf32>
    %1006 = vector.broadcast %999 : vector<1x1xf32> to vector<1x128xf32>
    %1007 = arith.cmpf oeq, %997, %1006 : vector<1x128xf32>
    %c128_i32_358 = arith.constant 128 : i32
    %1008 = vector.broadcast %c128_i32_358 : i32 to vector<1x128xi32>
    %1009 = arith.select %1007, %370, %1008 : vector<1x128xi1>, vector<1x128xi32>
    %1010 = vector.shape_cast %1009 : vector<1x128xi32> to vector<1x1x128xi32>
    %cst_359 = arith.constant dense<2147483647> : vector<1xi32>
    %1011 = vector.multi_reduction <minsi>, %1010, %cst_359 [1, 2] : vector<1x1x128xi32> to vector<1xi32>
    %1012 = vector.shape_cast %1011 : vector<1xi32> to vector<1x1x1xi32>
    %1013 = vector.extract %1012[0, 0, 0] : i32 from vector<1x1x1xi32>
    %1014 = vector.broadcast %c6_i32_326 : i32 to vector<1x8xi32>
    %1015 = arith.cmpi eq, %372, %1014 : vector<1x8xi32>
    %1016 = vector.broadcast %1013 : i32 to vector<1x8xi32>
    %1017 = arith.select %1015, %1016, %925 : vector<1x8xi1>, vector<1x8xi32>
    %1018 = vector.broadcast %c6_i32_326 : i32 to vector<1x8xi32>
    %1019 = arith.cmpi eq, %372, %1018 : vector<1x8xi32>
    %1020 = vector.shape_cast %1005 : vector<1x1xf32> to vector<1x1xf32>
    %1021 = vector.broadcast %1020 : vector<1x1xf32> to vector<1x8xf32>
    %1022 = arith.select %1019, %1021, %930 : vector<1x8xi1>, vector<1x8xf32>
    %c7_i32_360 = arith.constant 7 : i32
    %1023 = arith.index_cast %1013 : i32 to index
    %c0_361 = arith.constant 0 : index
    %1024 = vector.load %arg7[%1023, %c0_361] : memref<128x128xf32, #tpu.memory_space<vmem>>, vector<1x128xf32>
    %1025 = arith.truncf %1024 : vector<1x128xf32> to vector<1x128xbf16>
    %c0_362 = arith.constant 0 : index
    %c0_363 = arith.constant 0 : index
    %1026 = vector.load %arg8[%c0_362, %c0_363] : memref<128x384xbf16, #tpu.memory_space<vmem>>, vector<128x384xbf16>
    %cst_364 = arith.constant dense<0.000000e+00> : vector<1x384xf32>
    %1027 = tpu.matmul %1025, %1026, %cst_364 {dimension_numbers = #tpu.dot_dimension_numbers<[1], [0], [0], [1], [0, 0, 1, 1], [], []>} : vector<1x128xbf16>, vector<128x384xbf16>, vector<1x384xf32> -> vector<1x384xf32>
    %1028 = arith.addf %1027, %366 : vector<1x384xf32>
    %1029 = arith.truncf %966 : vector<1x128xf32> to vector<1x128xbf16>
    %c0_365 = arith.constant 0 : index
    %c0_366 = arith.constant 0 : index
    %1030 = vector.load %arg9[%c0_365, %c0_366] : memref<128x384xbf16, #tpu.memory_space<vmem>>, vector<128x384xbf16>
    %cst_367 = arith.constant dense<0.000000e+00> : vector<1x384xf32>
    %1031 = tpu.matmul %1029, %1030, %cst_367 {dimension_numbers = #tpu.dot_dimension_numbers<[1], [0], [0], [1], [0, 0, 1, 1], [], []>} : vector<1x128xbf16>, vector<128x384xbf16>, vector<1x384xf32> -> vector<1x384xf32>
    %1032 = arith.addf %1031, %367 : vector<1x384xf32>
    %1033 = vector.extract_strided_slice %1028 {offsets = [0, 0], sizes = [1, 128], strides = [1, 1]} : vector<1x384xf32> to vector<1x128xf32>
    %1034 = vector.extract_strided_slice %1032 {offsets = [0, 0], sizes = [1, 128], strides = [1, 1]} : vector<1x384xf32> to vector<1x128xf32>
    %1035 = arith.addf %1033, %1034 : vector<1x128xf32>
    %1036 = arith.negf %1035 : vector<1x128xf32>
    %1037 = math.exp %1036 : vector<1x128xf32>
    %cst_368 = arith.constant 1.000000e+00 : f32
    %1038 = vector.broadcast %cst_368 : f32 to vector<1x128xf32>
    %1039 = arith.addf %1038, %1037 : vector<1x128xf32>
    %1040 = arith.divf %1038, %1039 : vector<1x128xf32>
    %1041 = vector.extract_strided_slice %1028 {offsets = [0, 128], sizes = [1, 128], strides = [1, 1]} : vector<1x384xf32> to vector<1x128xf32>
    %1042 = vector.extract_strided_slice %1032 {offsets = [0, 128], sizes = [1, 128], strides = [1, 1]} : vector<1x384xf32> to vector<1x128xf32>
    %1043 = arith.addf %1041, %1042 : vector<1x128xf32>
    %1044 = arith.negf %1043 : vector<1x128xf32>
    %1045 = math.exp %1044 : vector<1x128xf32>
    %cst_369 = arith.constant 1.000000e+00 : f32
    %1046 = vector.broadcast %cst_369 : f32 to vector<1x128xf32>
    %1047 = arith.addf %1046, %1045 : vector<1x128xf32>
    %1048 = arith.divf %1046, %1047 : vector<1x128xf32>
    %1049 = vector.extract_strided_slice %1028 {offsets = [0, 256], sizes = [1, 128], strides = [1, 1]} : vector<1x384xf32> to vector<1x128xf32>
    %1050 = vector.extract_strided_slice %1032 {offsets = [0, 256], sizes = [1, 128], strides = [1, 1]} : vector<1x384xf32> to vector<1x128xf32>
    %1051 = arith.mulf %1040, %1050 : vector<1x128xf32>
    %1052 = arith.addf %1049, %1051 : vector<1x128xf32>
    %1053 = math.tanh %1052 : vector<1x128xf32>
    %cst_370 = arith.constant 1.000000e+00 : f32
    %1054 = vector.broadcast %cst_370 : f32 to vector<1x128xf32>
    %1055 = arith.subf %1054, %1048 : vector<1x128xf32>
    %1056 = arith.mulf %1055, %1053 : vector<1x128xf32>
    %1057 = arith.mulf %1048, %966 : vector<1x128xf32>
    %1058 = arith.addf %1056, %1057 : vector<1x128xf32>
    %c0_371 = arith.constant 0 : index
    %c0_372 = arith.constant 0 : index
    %1059 = vector.load %arg22[%c0_371, %c0_372] : memref<128x8xf32, #tpu.memory_space<vmem>>, vector<128x8xf32>
    %cst_373 = arith.constant dense<0.000000e+00> : vector<1x8xf32>
    %1060 = tpu.matmul %1058, %1059, %cst_373 {dimension_numbers = #tpu.dot_dimension_numbers<[1], [0], [0], [1], [0, 0, 1, 1], [], []>} : vector<1x128xf32>, vector<128x8xf32>, vector<1x8xf32> -> vector<1x8xf32>
    %cst_374 = arith.constant -1.000000e+30 : f32
    %1061 = vector.broadcast %cst_374 : f32 to vector<1x8xf32>
    %1062 = arith.select %374, %1060, %1061 : vector<1x8xi1>, vector<1x8xf32>
    %cst_375 = arith.constant dense<0xFF800000> : vector<1xf32>
    %1063 = vector.multi_reduction <maximumf>, %1062, %cst_375 [1] : vector<1x8xf32> to vector<1xf32>
    %1064 = vector.shape_cast %1063 : vector<1xf32> to vector<1x1xf32>
    %1065 = vector.broadcast %1064 : vector<1x1xf32> to vector<1x8xf32>
    %1066 = arith.subf %1062, %1065 : vector<1x8xf32>
    %1067 = math.exp %1066 : vector<1x8xf32>
    %cst_376 = arith.constant dense<0.000000e+00> : vector<1xf32>
    %1068 = vector.multi_reduction <add>, %1067, %cst_376 [1] : vector<1x8xf32> to vector<1xf32>
    %1069 = vector.shape_cast %1068 : vector<1xf32> to vector<1x1xf32>
    %1070 = tpu.reciprocal %1069 {approx = true} : vector<1x1xf32> -> vector<1x1xf32>
    %1071 = vector.broadcast %1070 : vector<1x1xf32> to vector<1x8xf32>
    %1072 = arith.mulf %1067, %1071 : vector<1x8xf32>
    %c0_377 = arith.constant 0 : index
    %c0_378 = arith.constant 0 : index
    %1073 = vector.load %arg21[%c0_377, %c0_378] : memref<8x128xf32, #tpu.memory_space<vmem>>, vector<8x128xf32>
    %cst_379 = arith.constant dense<0.000000e+00> : vector<1x128xf32>
    %1074 = tpu.matmul %1072, %1073, %cst_379 {dimension_numbers = #tpu.dot_dimension_numbers<[1], [0], [0], [1], [0, 0, 1, 1], [], []>} : vector<1x8xf32>, vector<8x128xf32>, vector<1x128xf32> -> vector<1x128xf32>
    %1075 = arith.truncf %1058 : vector<1x128xf32> to vector<1x128xbf16>
    %c0_380 = arith.constant 0 : index
    %c0_381 = arith.constant 0 : index
    %1076 = vector.load %arg12[%c0_380, %c0_381] : memref<128x128xbf16, #tpu.memory_space<vmem>>, vector<128x128xbf16>
    %cst_382 = arith.constant dense<0.000000e+00> : vector<1x128xf32>
    %1077 = tpu.matmul %1075, %1076, %cst_382 {dimension_numbers = #tpu.dot_dimension_numbers<[1], [0], [0], [1], [0, 0, 1, 1], [], []>} : vector<1x128xbf16>, vector<128x128xbf16>, vector<1x128xf32> -> vector<1x128xf32>
    %1078 = arith.truncf %1074 : vector<1x128xf32> to vector<1x128xbf16>
    %c0_383 = arith.constant 0 : index
    %c0_384 = arith.constant 0 : index
    %1079 = vector.load %arg13[%c0_383, %c0_384] : memref<128x128xbf16, #tpu.memory_space<vmem>>, vector<128x128xbf16>
    %cst_385 = arith.constant dense<0.000000e+00> : vector<1x128xf32>
    %1080 = tpu.matmul %1078, %1079, %cst_385 {dimension_numbers = #tpu.dot_dimension_numbers<[1], [0], [0], [1], [0, 0, 1, 1], [], []>} : vector<1x128xbf16>, vector<128x128xbf16>, vector<1x128xf32> -> vector<1x128xf32>
    %1081 = arith.addf %1077, %1080 : vector<1x128xf32>
    %1082 = arith.addf %1081, %368 : vector<1x128xf32>
    %1083 = math.tanh %1082 : vector<1x128xf32>
    %1084 = arith.truncf %1083 : vector<1x128xf32> to vector<1x128xbf16>
    %c0_386 = arith.constant 0 : index
    %c0_387 = arith.constant 0 : index
    %1085 = vector.load %arg15[%c0_386, %c0_387] : memref<128x128xbf16, #tpu.memory_space<vmem>>, vector<128x128xbf16>
    %cst_388 = arith.constant dense<0.000000e+00> : vector<1x128xf32>
    %1086 = tpu.matmul %1084, %1085, %cst_388 {dimension_numbers = #tpu.dot_dimension_numbers<[1], [0], [0], [1], [0, 0, 1, 1], [], []>} : vector<1x128xbf16>, vector<128x128xbf16>, vector<1x128xf32> -> vector<1x128xf32>
    %1087 = arith.addf %1086, %369 : vector<1x128xf32>
    %cst_389 = arith.constant -1.000000e+30 : f32
    %1088 = vector.broadcast %cst_389 : f32 to vector<1x128xf32>
    %1089 = arith.select %376, %1087, %1088 : vector<1x128xi1>, vector<1x128xf32>
    %cst_390 = arith.constant dense<0xFF800000> : vector<1xf32>
    %1090 = vector.multi_reduction <maximumf>, %1089, %cst_390 [1] : vector<1x128xf32> to vector<1xf32>
    %1091 = vector.shape_cast %1090 : vector<1xf32> to vector<1x1xf32>
    %1092 = vector.broadcast %1091 : vector<1x1xf32> to vector<1x128xf32>
    %1093 = arith.subf %1089, %1092 : vector<1x128xf32>
    %1094 = math.exp %1093 : vector<1x128xf32>
    %cst_391 = arith.constant dense<0.000000e+00> : vector<1xf32>
    %1095 = vector.multi_reduction <add>, %1094, %cst_391 [1] : vector<1x128xf32> to vector<1xf32>
    %1096 = vector.shape_cast %1095 : vector<1xf32> to vector<1x1xf32>
    %1097 = tpu.reciprocal %1096 : vector<1x1xf32> -> vector<1x1xf32>
    %1098 = vector.broadcast %1091 : vector<1x1xf32> to vector<1x128xf32>
    %1099 = arith.cmpf oeq, %1089, %1098 : vector<1x128xf32>
    %c128_i32_392 = arith.constant 128 : i32
    %1100 = vector.broadcast %c128_i32_392 : i32 to vector<1x128xi32>
    %1101 = arith.select %1099, %370, %1100 : vector<1x128xi1>, vector<1x128xi32>
    %1102 = vector.shape_cast %1101 : vector<1x128xi32> to vector<1x1x128xi32>
    %cst_393 = arith.constant dense<2147483647> : vector<1xi32>
    %1103 = vector.multi_reduction <minsi>, %1102, %cst_393 [1, 2] : vector<1x1x128xi32> to vector<1xi32>
    %1104 = vector.shape_cast %1103 : vector<1xi32> to vector<1x1x1xi32>
    %1105 = vector.extract %1104[0, 0, 0] : i32 from vector<1x1x1xi32>
    %1106 = vector.broadcast %c7_i32_360 : i32 to vector<1x8xi32>
    %1107 = arith.cmpi eq, %372, %1106 : vector<1x8xi32>
    %1108 = vector.broadcast %1105 : i32 to vector<1x8xi32>
    %1109 = arith.select %1107, %1108, %1017 : vector<1x8xi1>, vector<1x8xi32>
    %1110 = vector.broadcast %c7_i32_360 : i32 to vector<1x8xi32>
    %1111 = arith.cmpi eq, %372, %1110 : vector<1x8xi32>
    %1112 = vector.shape_cast %1097 : vector<1x1xf32> to vector<1x1xf32>
    %1113 = vector.broadcast %1112 : vector<1x1xf32> to vector<1x8xf32>
    %1114 = arith.select %1111, %1113, %1022 : vector<1x8xi1>, vector<1x8xf32>
    %c8_i32_394 = arith.constant 8 : i32
    %c0_395 = arith.constant 0 : index
    %c0_396 = arith.constant 0 : index
    %1115 = vector.load %arg17[%c0_395, %c0_396] : memref<1x8xi32, #tpu.memory_space<vmem>>, vector<1x8xi32>
    tpu.vector_store %arg17[%c0_395, %c0_396], %1109 {strides = array<i32>} : memref<1x8xi32, #tpu.memory_space<vmem>>, vector<1x8xi32>,
    %c0_397 = arith.constant 0 : index
    %c0_398 = arith.constant 0 : index
    %1116 = vector.load %arg18[%c0_397, %c0_398] : memref<1x8xf32, #tpu.memory_space<vmem>>, vector<1x8xf32>
    tpu.vector_store %arg18[%c0_397, %c0_398], %1114 {strides = array<i32>} : memref<1x8xf32, #tpu.memory_space<vmem>>, vector<1x8xf32>,
    return
  }
}

</mosaic_0001>

<llo_original>
// kernel: tpu_custom_call.1
$region0: #{tpu_custom_call.1}
  #allocation0 [shape = 'u32[]', space=smem, size = 0x4, offset = 0x4, fixed_abs, tag = 'smem constant byte address 0x4 - core index']
  #allocation1 [shape = 'u32[144,128]{1,0:T(1,128)}', space=vmem, size = 0x12000, scoped, tag = 'internal scratch']
  #allocation2 [shape = 'f32[8,128]{1,0:T(8,128)}', space=vmem, size = 0x1000, scoped, tag = 'scratch operand']
  #allocation3 [shape = 'f32[8,384]{1,0:T(8,128)}', space=vmem, size = 0x3000, scoped, tag = 'scratch operand']
  #allocation4 [shape = 'f32[8,128]{1,0:T(8,128)}', space=vmem, size = 0x1000, scoped, tag = 'scratch operand']
  #allocation5 [shape = 'f32[128,8]{1,0:T(8,128)}', space=vmem, size = 0x10000, scoped, tag = 'scratch operand']
  #allocation6 [shape = 's32[1]{0:T(128)S(6)}', space=smem, size = 0x200, scoped, tag = 'scoped memory for tpu_custom_call.1']
  %s0 = inlined_call_operand.<no memory space> [shape: s32[1], index: 0, kind: input, shape index: {}]
  %s1 = inlined_call_operand.hbm [shape: s32[8], index: 1, kind: input, shape index: {}]
  %s2 = inlined_call_operand.hbm [shape: f32[128,128], index: 2, kind: input, shape index: {}]
  %s3 = inlined_call_operand.hbm [shape: bf16[128,384], index: 3, kind: input, shape index: {}]
  %s4 = inlined_call_operand.hbm [shape: bf16[128,384], index: 4, kind: input, shape index: {}]
  %s5 = inlined_call_operand.vmem [shape: f32[1,384], index: 5, kind: input, shape index: {}]
  %s6 = inlined_call_operand.vmem [shape: f32[1,384], index: 6, kind: input, shape index: {}]
  %s7 = inlined_call_operand.hbm [shape: f32[128,128], index: 7, kind: input, shape index: {}]
  %s8 = inlined_call_operand.hbm [shape: bf16[128,384], index: 8, kind: input, shape index: {}]
  %s9 = inlined_call_operand.hbm [shape: bf16[128,384], index: 9, kind: input, shape index: {}]
  %s10 = inlined_call_operand.vmem [shape: f32[1,384], index: 10, kind: input, shape index: {}]
  %s11 = inlined_call_operand.vmem [shape: f32[1,384], index: 11, kind: input, shape index: {}]
  %s12 = inlined_call_operand.hbm [shape: bf16[128,128], index: 12, kind: input, shape index: {}]
  %s13 = inlined_call_operand.hbm [shape: bf16[128,128], index: 13, kind: input, shape index: {}]
  %s14 = inlined_call_operand.vmem [shape: f32[1,128], index: 14, kind: input, shape index: {}]
  %s15 = inlined_call_operand.hbm [shape: bf16[128,128], index: 15, kind: input, shape index: {}]
  %s16 = inlined_call_operand.vmem [shape: f32[1,128], index: 16, kind: input, shape index: {}]
  %s17 = inlined_call_operand.hbm [shape: s32[1,8], index: 17, kind: output, shape index: {0}]
  %s18 = inlined_call_operand.hbm [shape: f32[1,8], index: 18, kind: output, shape index: {1}]
  %19 = xla_tuple %s17, %s18
  %s20 = sld [smem:[#allocation0]]
  $region126: #{tpu_custom_call.1} parent=0
    _
  %s22 = ssub.s32 1, %s20
  %s23 = scalar_select 0, %s22, %s20
  %24 = sst [smem:[#allocation6]] %s0
  $region1: #{tpu_custom_call.1} parent=0
    #allocation7 [shape = 'u8[512]{0}', space=smem, size = 0x200, scoped, tag = 'input window, operand 1, single buffered']
    #allocation8 [shape = 's32[1]{0}', space=sflag, size = 0x4, scoped, tag = 'scoped memory for tpu_custom_call.1']
    #allocation9 [shape = 's32[1]{0}', space=sflag, size = 0x4, scoped, tag = 'scoped memory for tpu_custom_call.1']
    #allocation10 [shape = 's32[1]{0}', space=sflag, size = 0x4, scoped, tag = 'scoped memory for tpu_custom_call.1']
    #allocation11 [shape = 'u8[65536]{0}', space=vmem, size = 0x10000, scoped, tag = 'input window, operand 2, single buffered']
    #allocation12 [shape = 'u8[98304]{0}', space=vmem, size = 0x18000, scoped, tag = 'input window, operand 3, single buffered']
    #allocation13 [shape = 's32[1]{0}', space=sflag, size = 0x4, scoped, tag = 'scoped memory for tpu_custom_call.1']
    #allocation14 [shape = 'u8[98304]{0}', space=vmem, size = 0x18000, scoped, tag = 'input window, operand 4, single buffered']
    #allocation15 [shape = 'u8[65536]{0}', space=vmem, size = 0x10000, scoped, tag = 'input window, operand 7, single buffered']
    #allocation16 [shape = 's32[1]{0}', space=sflag, size = 0x4, scoped, tag = 'scoped memory for tpu_custom_call.1']
    #allocation17 [shape = 'u8[98304]{0}', space=vmem, size = 0x18000, scoped, tag = 'input window, operand 8, single buffered']
    #allocation18 [shape = 'u8[98304]{0}', space=vmem, size = 0x18000, scoped, tag = 'input window, operand 9, single buffered']
    #allocation19 [shape = 's32[1]{0}', space=sflag, size = 0x4, scoped, tag = 'scoped memory for tpu_custom_call.1']
    #allocation20 [shape = 'u8[32768]{0}', space=vmem, size = 0x8000, scoped, tag = 'input window, operand 12, single buffered']
    #allocation21 [shape = 'u8[32768]{0}', space=vmem, size = 0x8000, scoped, tag = 'input window, operand 13, single buffered']
    #allocation22 [shape = 's32[1]{0}', space=sflag, size = 0x4, scoped, tag = 'scoped memory for tpu_custom_call.1']
    #allocation23 [shape = 'u8[32768]{0}', space=vmem, size = 0x8000, scoped, tag = 'input window, operand 15, single buffered']
    #allocation24 [shape = 'u8[512]{0}', space=vmem, size = 0x400, scoped, tag = 'output window, operand 0, single buffered']
    #allocation25 [shape = 'u8[512]{0}', space=vmem, size = 0x400, scoped, tag = 'output window, operand 1, single buffered']
    #allocation26 [shape = 's32[1]{0}', space=sflag, size = 0x4, scoped, tag = 'scoped memory for tpu_custom_call.1']
    %25 = vsyncpa [#allocation10], 0
    %26 = vsyncpa [#allocation8], 0
    %27 = vsyncpa [#allocation13], 0
    %28 = vsyncpa [#allocation16], 0
    %29 = vsyncpa [#allocation19], 0
    %30 = vsyncpa [#allocation22], 0
    %31 = vsyncpa [#allocation9], 0
    %32 = vsyncpa [#allocation26], 0
    // Predicated region
    $region2: #{tpu_custom_call.1} parent=1 // pred_check
      _
    $region3: #{tpu_custom_call.1} parent=1 // pred_check_branch
      %34 = sbr.rel (0) target = $region5
    $region4: #{tpu_custom_call.1} parent=1 // pred_region
      _
    $region5: #{tpu_custom_call.1} parent=1 // pred_fallthru
      _
    // Predicated region
    $region6: #{tpu_custom_call.1} parent=1 // pred_check
      _
    $region7: #{tpu_custom_call.1} parent=1 // pred_check_branch
      %36 = sbr.rel (0) target = $region9
    $region8: #{tpu_custom_call.1} parent=1 // pred_region
      %s38 = ssub.s32 16, 16
      %39 = vsyncadd [#allocation10], %s38
      %42 = dma.hbm_to_smem %s1, 16, [#allocation7], [#allocation10]
    $region9: #{tpu_custom_call.1} parent=1 // pred_fallthru
      _
    // Predicated region
    $region10: #{tpu_custom_call.1} parent=1 // pred_check
      _
    $region11: #{tpu_custom_call.1} parent=1 // pred_check_branch
      %44 = sbr.rel (0) target = $region13
    $region12: #{tpu_custom_call.1} parent=1 // pred_region
      %s46 = ssub.s32 2048, 2048
      %47 = vsyncadd [#allocation8], %s46
      %s48 = sshll.u32 [#allocation11], 4
      %s49 = int_to_ptr.vmem [resolvable:$true] %s48
      %54 = dma.hbm_to_vmem [thread:$0]  %s2, 2048, %s49, [#allocation8], 128, 128, 8
    $region13: #{tpu_custom_call.1} parent=1 // pred_fallthru
      _
    // Predicated region
    $region14: #{tpu_custom_call.1} parent=1 // pred_check
      _
    $region15: #{tpu_custom_call.1} parent=1 // pred_check_branch
      %56 = sbr.rel (0) target = $region17
    $region16: #{tpu_custom_call.1} parent=1 // pred_region
      %s58 = ssub.s32 3072, 3072
      %59 = vsyncadd [#allocation13], %s58
      %s60 = sshll.u32 [#allocation12], 4
      %s61 = int_to_ptr.vmem [resolvable:$true] %s60
      %66 = dma.hbm_to_vmem [thread:$0]  %s3, 3072, %s61, [#allocation13], 192, 192, 12
    $region17: #{tpu_custom_call.1} parent=1 // pred_fallthru
      _
    // Predicated region
    $region18: #{tpu_custom_call.1} parent=1 // pred_check
      _
    $region19: #{tpu_custom_call.1} parent=1 // pred_check_branch
      %68 = sbr.rel (0) target = $region21
    $region20: #{tpu_custom_call.1} parent=1 // pred_region
      %s70 = ssub.s32 3072, 3072
      %71 = vsyncadd [#allocation13], %s70
      %s72 = sshll.u32 [#allocation14], 4
      %s73 = int_to_ptr.vmem [resolvable:$true] %s72
      %78 = dma.hbm_to_vmem [thread:$0]  %s4, 3072, %s73, [#allocation13], 192, 192, 12
    $region21: #{tpu_custom_call.1} parent=1 // pred_fallthru
      _
    // Predicated region
    $region22: #{tpu_custom_call.1} parent=1 // pred_check
      _
    $region23: #{tpu_custom_call.1} parent=1 // pred_check_branch
      %80 = sbr.rel (0) target = $region25
    $region24: #{tpu_custom_call.1} parent=1 // pred_region
      _
    $region25: #{tpu_custom_call.1} parent=1 // pred_fallthru
      _
    // Predicated region
    $region26: #{tpu_custom_call.1} parent=1 // pred_check
      _
    $region27: #{tpu_custom_call.1} parent=1 // pred_check_branch
      %82 = sbr.rel (0) target = $region29
    $region28: #{tpu_custom_call.1} parent=1 // pred_region
      _
    $region29: #{tpu_custom_call.1} parent=1 // pred_fallthru
      _
    // Predicated region
    $region30: #{tpu_custom_call.1} parent=1 // pred_check
      _
    $region31: #{tpu_custom_call.1} parent=1 // pred_check_branch
      %84 = sbr.rel (0) target = $region33
    $region32: #{tpu_custom_call.1} parent=1 // pred_region
      %s86 = ssub.s32 2048, 2048
      %87 = vsyncadd [#allocation16], %s86
      %s88 = sshll.u32 [#allocation15], 4
      %s89 = int_to_ptr.vmem [resolvable:$true] %s88
      %94 = dma.hbm_to_vmem [thread:$0]  %s7, 2048, %s89, [#allocation16], 128, 128, 8
    $region33: #{tpu_custom_call.1} parent=1 // pred_fallthru
      _
    // Predicated region
    $region34: #{tpu_custom_call.1} parent=1 // pred_check
      _
    $region35: #{tpu_custom_call.1} parent=1 // pred_check_branch
      %96 = sbr.rel (0) target = $region37
    $region36: #{tpu_custom_call.1} parent=1 // pred_region
      %s98 = ssub.s32 3072, 3072
      %99 = vsyncadd [#allocation16], %s98
      %s100 = sshll.u32 [#allocation17], 4
      %s101 = int_to_ptr.vmem [resolvable:$true] %s100
      %106 = dma.hbm_to_vmem [thread:$0]  %s8, 3072, %s101, [#allocation16], 192, 192, 12
    $region37: #{tpu_custom_call.1} parent=1 // pred_fallthru
      _
    // Predicated region
    $region38: #{tpu_custom_call.1} parent=1 // pred_check
      _
    $region39: #{tpu_custom_call.1} parent=1 // pred_check_branch
      %108 = sbr.rel (0) target = $region41
    $region40: #{tpu_custom_call.1} parent=1 // pred_region
      %s110 = ssub.s32 3072, 3072
      %111 = vsyncadd [#allocation19], %s110
      %s112 = sshll.u32 [#allocation18], 4
      %s113 = int_to_ptr.vmem [resolvable:$true] %s112
      %118 = dma.hbm_to_vmem [thread:$0]  %s9, 3072, %s113, [#allocation19], 192, 192, 12
    $region41: #{tpu_custom_call.1} parent=1 // pred_fallthru
      _
    // Predicated region
    $region42: #{tpu_custom_call.1} parent=1 // pred_check
      _
    $region43: #{tpu_custom_call.1} parent=1 // pred_check_branch
      %120 = sbr.rel (0) target = $region45
    $region44: #{tpu_custom_call.1} parent=1 // pred_region
      _
    $region45: #{tpu_custom_call.1} parent=1 // pred_fallthru
      _
    // Predicated region
    $region46: #{tpu_custom_call.1} parent=1 // pred_check
      _
    $region47: #{tpu_custom_call.1} parent=1 // pred_check_branch
      %122 = sbr.rel (0) target = $region49
    $region48: #{tpu_custom_call.1} parent=1 // pred_region
      _
    $region49: #{tpu_custom_call.1} parent=1 // pred_fallthru
      _
    // Predicated region
    $region50: #{tpu_custom_call.1} parent=1 // pred_check
      _
    $region51: #{tpu_custom_call.1} parent=1 // pred_check_branch
      %124 = sbr.rel (0) target = $region53
    $region52: #{tpu_custom_call.1} parent=1 // pred_region
      %s126 = ssub.s32 1024, 1024
      %127 = vsyncadd [#allocation19], %s126
      %s128 = sshll.u32 [#allocation20], 4
      %s129 = int_to_ptr.vmem [resolvable:$true] %s128
      %134 = dma.hbm_to_vmem [thread:$0]  %s12, 1024, %s129, [#allocation19], 64, 64, 4
    $region53: #{tpu_custom_call.1} parent=1 // pred_fallthru
      _
    // Predicated region
    $region54: #{tpu_custom_call.1} parent=1 // pred_check
      _
    $region55: #{tpu_custom_call.1} parent=1 // pred_check_branch
      %136 = sbr.rel (0) target = $region57
    $region56: #{tpu_custom_call.1} parent=1 // pred_region
      %s138 = ssub.s32 1024, 1024
      %139 = vsyncadd [#allocation22], %s138
      %s140 = sshll.u32 [#allocation21], 4
      %s141 = int_to_ptr.vmem [resolvable:$true] %s140
      %146 = dma.hbm_to_vmem [thread:$0]  %s13, 1024, %s141, [#allocation22], 64, 64, 4
    $region57: #{tpu_custom_call.1} parent=1 // pred_fallthru
      _
    // Predicated region
    $region58: #{tpu_custom_call.1} parent=1 // pred_check
      _
    $region59: #{tpu_custom_call.1} parent=1 // pred_check_branch
      %148 = sbr.rel (0) target = $region61
    $region60: #{tpu_custom_call.1} parent=1 // pred_region
      _
    $region61: #{tpu_custom_call.1} parent=1 // pred_fallthru
      _
    // Predicated region
    $region62: #{tpu_custom_call.1} parent=1 // pred_check
      _
    $region63: #{tpu_custom_call.1} parent=1 // pred_check_branch
      %150 = sbr.rel (0) target = $region65
    $region64: #{tpu_custom_call.1} parent=1 // pred_region
      %s152 = ssub.s32 1024, 1024
      %153 = vsyncadd [#allocation22], %s152
      %s154 = sshll.u32 [#allocation23], 4
      %s155 = int_to_ptr.vmem [resolvable:$true] %s154
      %160 = dma.hbm_to_vmem [thread:$0]  %s15, 1024, %s155, [#allocation22], 64, 64, 4
    $region65: #{tpu_custom_call.1} parent=1 // pred_fallthru
      _
    // Predicated region
    $region66: #{tpu_custom_call.1} parent=1 // pred_check
      _
    $region67: #{tpu_custom_call.1} parent=1 // pred_check_branch
      %162 = sbr.rel (0) target = $region69
    $region68: #{tpu_custom_call.1} parent=1 // pred_region
      _
    $region69: #{tpu_custom_call.1} parent=1 // pred_fallthru
      _
    // Predicated region
    $region70: #{tpu_custom_call.1} parent=1 // pred_check
      _
    $region71: #{tpu_custom_call.1} parent=1 // pred_check_branch
      %164 = sbr.rel (0) target = $region73
    $region72: #{tpu_custom_call.1} parent=1 // pred_region
      %165 = dma.done [#allocation10], 16
    $region73: #{tpu_custom_call.1} parent=1 // pred_fallthru
      _
    // Predicated region
    $region74: #{tpu_custom_call.1} parent=1 // pred_check
      _
    $region75: #{tpu_custom_call.1} parent=1 // pred_check_branch
      %167 = sbr.rel (0) target = $region77
    $region76: #{tpu_custom_call.1} parent=1 // pred_region
      %168 = dma.done [#allocation8], 2048
    $region77: #{tpu_custom_call.1} parent=1 // pred_fallthru
      _
    // Predicated region
    $region78: #{tpu_custom_call.1} parent=1 // pred_check
      _
    $region79: #{tpu_custom_call.1} parent=1 // pred_check_branch
      %170 = sbr.rel (0) target = $region81
    $region80: #{tpu_custom_call.1} parent=1 // pred_region
      %171 = dma.done [#allocation13], 3072
    $region81: #{tpu_custom_call.1} parent=1 // pred_fallthru
      _
    // Predicated region
    $region82: #{tpu_custom_call.1} parent=1 // pred_check
      _
    $region83: #{tpu_custom_call.1} parent=1 // pred_check_branch
      %173 = sbr.rel (0) target = $region85
    $region84: #{tpu_custom_call.1} parent=1 // pred_region
      %174 = dma.done [#allocation13], 3072
    $region85: #{tpu_custom_call.1} parent=1 // pred_fallthru
      _
    // Predicated region
    $region86: #{tpu_custom_call.1} parent=1 // pred_check
      _
    $region87: #{tpu_custom_call.1} parent=1 // pred_check_branch
      %176 = sbr.rel (0) target = $region89
    $region88: #{tpu_custom_call.1} parent=1 // pred_region
      %177 = dma.done [#allocation16], 2048
    $region89: #{tpu_custom_call.1} parent=1 // pred_fallthru
      _
    // Predicated region
    $region90: #{tpu_custom_call.1} parent=1 // pred_check
      _
    $region91: #{tpu_custom_call.1} parent=1 // pred_check_branch
      %179 = sbr.rel (0) target = $region93
    $region92: #{tpu_custom_call.1} parent=1 // pred_region
      %180 = dma.done [#allocation16], 3072
    $region93: #{tpu_custom_call.1} parent=1 // pred_fallthru
      _
    // Predicated region
    $region94: #{tpu_custom_call.1} parent=1 // pred_check
      _
    $region95: #{tpu_custom_call.1} parent=1 // pred_check_branch
      %182 = sbr.rel (0) target = $region97
    $region96: #{tpu_custom_call.1} parent=1 // pred_region
      %183 = dma.done [#allocation19], 3072
    $region97: #{tpu_custom_call.1} parent=1 // pred_fallthru
      _
    // Predicated region
    $region98: #{tpu_custom_call.1} parent=1 // pred_check
      _
    $region99: #{tpu_custom_call.1} parent=1 // pred_check_branch
      %185 = sbr.rel (0) target = $region101
    $region100: #{tpu_custom_call.1} parent=1 // pred_region
      %186 = dma.done [#allocation19], 1024
    $region101: #{tpu_custom_call.1} parent=1 // pred_fallthru
      _
    // Predicated region
    $region102: #{tpu_custom_call.1} parent=1 // pred_check
      _
    $region103: #{tpu_custom_call.1} parent=1 // pred_check_branch
      %188 = sbr.rel (0) target = $region105
    $region104: #{tpu_custom_call.1} parent=1 // pred_region
      %189 = dma.done [#allocation22], 1024
    $region105: #{tpu_custom_call.1} parent=1 // pred_fallthru
      _
    // Predicated region
    $region106: #{tpu_custom_call.1} parent=1 // pred_check
      _
    $region107: #{tpu_custom_call.1} parent=1 // pred_check_branch
      %191 = sbr.rel (0) target = $region109
    $region108: #{tpu_custom_call.1} parent=1 // pred_region
      %192 = dma.done [#allocation22], 1024
    $region109: #{tpu_custom_call.1} parent=1 // pred_fallthru
      _
    %193 = sfence
    %s195 = sld [smem:[#allocation6]]
    %s196 = sld [smem:[#allocation7]]
    %s197 = scalar_lea.vmem [#allocation11], %s196
    %v198 = vld [vmem:[%s197] sm:$0x1]
    %199 = vst [vmem:[#allocation2] sm:$0x1] %v198
    %s200 = sld [smem:[#allocation7 + $0x1]]
    %s201 = scalar_lea.vmem [#allocation11], %s200
    %v202 = vld [vmem:[%s201] sm:$0x1]
    %203 = vst [vmem:[#allocation2 + $0x1] sm:$0x1] %v202
    %s204 = sld [smem:[#allocation7 + $0x2]]
    %s205 = scalar_lea.vmem [#allocation11], %s204
    %v206 = vld [vmem:[%s205] sm:$0x1]
    %207 = vst [vmem:[#allocation2 + $0x2] sm:$0x1] %v206
    %s208 = sld [smem:[#allocation7 + $0x3]]
    %s209 = scalar_lea.vmem [#allocation11], %s208
    %v210 = vld [vmem:[%s209] sm:$0x1]
    %211 = vst [vmem:[#allocation2 + $0x3] sm:$0x1] %v210
    %s212 = sld [smem:[#allocation7 + $0x4]]
    %s213 = scalar_lea.vmem [#allocation11], %s212
    %v214 = vld [vmem:[%s213] sm:$0x1]
    %215 = vst [vmem:[#allocation2 + $0x4] sm:$0x1] %v214
    %s216 = sld [smem:[#allocation7 + $0x5]]
    %s217 = scalar_lea.vmem [#allocation11], %s216
    %v218 = vld [vmem:[%s217] sm:$0x1]
    %219 = vst [vmem:[#allocation2 + $0x5] sm:$0x1] %v218
    %s220 = sld [smem:[#allocation7 + $0x6]]
    %s221 = scalar_lea.vmem [#allocation11], %s220
    %v222 = vld [vmem:[%s221] sm:$0x1]
    %223 = vst [vmem:[#allocation2 + $0x6] sm:$0x1] %v222
    %s224 = sld [smem:[#allocation7 + $0x7]]
    %s225 = scalar_lea.vmem [#allocation11], %s224
    %v226 = vld [vmem:[%s225] sm:$0x1]
    %227 = vst [vmem:[#allocation2 + $0x7] sm:$0x1] %v226
    %v228 = vld [vmem:[#allocation2] sm:$0xff]
    %v229 = vpack.c.bf16 %v228, %v228
    %v230 = vld [vmem:[#allocation12] sm:$0xff]
    %v231 = vld [vmem:[#allocation12 + $0x8] sm:$0xf]
    %v232 = vld [vmem:[#allocation12 + $0xc] sm:$0xff]
    %v233 = vld [vmem:[#allocation12 + $0x14] sm:$0xf]
    %v234 = vld [vmem:[#allocation12 + $0x18] sm:$0xff]
    %v235 = vld [vmem:[#allocation12 + $0x20] sm:$0xf]
    %v236 = vld [vmem:[#allocation12 + $0x24] sm:$0xff]
    %v237 = vld [vmem:[#allocation12 + $0x2c] sm:$0xf]
    %v238 = vld [vmem:[#allocation12 + $0x30] sm:$0xff]
    %v239 = vld [vmem:[#allocation12 + $0x38] sm:$0xf]
    %v240 = vld [vmem:[#allocation12 + $0x3c] sm:$0xff]
    %v241 = vld [vmem:[#allocation12 + $0x44] sm:$0xf]
    %v242 = vld [vmem:[#allocation12 + $0x48] sm:$0xff]
    %v243 = vld [vmem:[#allocation12 + $0x50] sm:$0xf]
    %v244 = vld [vmem:[#allocation12 + $0x54] sm:$0xff]
    %v245 = vld [vmem:[#allocation12 + $0x5c] sm:$0xf]
    %v246 = vld [vmem:[#allocation12 + $0x60] sm:$0xff]
    %v247 = vld [vmem:[#allocation12 + $0x68] sm:$0xf]
    %v248 = vld [vmem:[#allocation12 + $0x6c] sm:$0xff]
    %v249 = vld [vmem:[#allocation12 + $0x74] sm:$0xf]
    %v250 = vld [vmem:[#allocation12 + $0x78] sm:$0xff]
    %v251 = vld [vmem:[#allocation12 + $0x80] sm:$0xf]
    %v252 = vld [vmem:[#allocation12 + $0x84] sm:$0xff]
    %v253 = vld [vmem:[#allocation12 + $0x8c] sm:$0xf]
    %v254 = vld [vmem:[#allocation12 + $0x90] sm:$0xff]
    %v255 = vld [vmem:[#allocation12 + $0x98] sm:$0xf]
    %v256 = vld [vmem:[#allocation12 + $0x9c] sm:$0xff]
    %v257 = vld [vmem:[#allocation12 + $0xa4] sm:$0xf]
    %v258 = vld [vmem:[#allocation12 + $0xa8] sm:$0xff]
    %v259 = vld [vmem:[#allocation12 + $0xb0] sm:$0xf]
    %v260 = vld [vmem:[#allocation12 + $0xb4] sm:$0xff]
    %v261 = vld [vmem:[#allocation12 + $0xbc] sm:$0xf]
    %v262 = vld [vmem:[%s5] sm:$0x7]
    %v264 = vlaneseq
    %v265 = vshrl.u32 %v264, 7
    %v266 = vsub.s32 0, %v265
    %v267 = vrot.slane %v262, %v266
    %v268 = vlaneseq
    %v269 = vshrl.u32 %v268, 7
    %v270 = vsub.s32 1, %v269
    %v271 = vrot.slane %v262, %v270
    %v272 = vlaneseq
    %v273 = vshrl.u32 %v272, 7
    %v274 = vsub.s32 2, %v273
    %v275 = vrot.slane %v262, %v274
    %v311 = vunpack.c.l.b16 %v230
    %v312 = vunpack.c.h.b16 %v230
    %v313 = vunpack.c.l.b16 %v231
    %v314 = vunpack.c.l.b16 %v232
    %v315 = vunpack.c.h.b16 %v232
    %v316 = vunpack.c.l.b16 %v233
    %v317 = vunpack.c.l.b16 %v234
    %v318 = vunpack.c.h.b16 %v234
    %v319 = vunpack.c.l.b16 %v235
    %v320 = vunpack.c.l.b16 %v236
    %v321 = vunpack.c.h.b16 %v236
    %v322 = vunpack.c.l.b16 %v237
    %v323 = vunpack.c.l.b16 %v238
    %v324 = vunpack.c.h.b16 %v238
    %v325 = vunpack.c.l.b16 %v239
    %v326 = vunpack.c.l.b16 %v240
    %v327 = vunpack.c.h.b16 %v240
    %v328 = vunpack.c.l.b16 %v241
    %v329 = vunpack.c.l.b16 %v242
    %v330 = vunpack.c.h.b16 %v242
    %v331 = vunpack.c.l.b16 %v243
    %v332 = vunpack.c.l.b16 %v244
    %v333 = vunpack.c.h.b16 %v244
    %v334 = vunpack.c.l.b16 %v245
    %v335 = vunpack.c.l.b16 %v246
    %v336 = vunpack.c.h.b16 %v246
    %v337 = vunpack.c.l.b16 %v247
    %v338 = vunpack.c.l.b16 %v248
    %v339 = vunpack.c.h.b16 %v248
    %v340 = vunpack.c.l.b16 %v249
    %v341 = vunpack.c.l.b16 %v250
    %v342 = vunpack.c.h.b16 %v250
    %v343 = vunpack.c.l.b16 %v251
    %v344 = vunpack.c.l.b16 %v252
    %v345 = vunpack.c.h.b16 %v252
    %v346 = vunpack.c.l.b16 %v253
    %v347 = vunpack.c.l.b16 %v254
    %v348 = vunpack.c.h.b16 %v254
    %v349 = vunpack.c.l.b16 %v255
    %v350 = vunpack.c.l.b16 %v256
    %v351 = vunpack.c.h.b16 %v256
    %v352 = vunpack.c.l.b16 %v257
    %v353 = vunpack.c.l.b16 %v258
    %v354 = vunpack.c.h.b16 %v258
    %v355 = vunpack.c.l.b16 %v259
    %v356 = vunpack.c.l.b16 %v260
    %v357 = vunpack.c.h.b16 %v260
    %v358 = vunpack.c.l.b16 %v261
    %v359 = vpack.c.b16 %v314, %v311
    %v360 = vpack.c.b16 %v315, %v312
    %v361 = vpack.c.b16 %v316, %v313
    %v362 = vpack.c.b16 %v320, %v317
    %v363 = vpack.c.b16 %v321, %v318
    %v364 = vpack.c.b16 %v322, %v319
    %v365 = vpack.c.b16 %v326, %v323
    %v366 = vpack.c.b16 %v327, %v324
    %v367 = vpack.c.b16 %v328, %v325
    %v368 = vpack.c.b16 %v332, %v329
    %v369 = vpack.c.b16 %v333, %v330
    %v370 = vpack.c.b16 %v334, %v331
    %v371 = vpack.c.b16 %v338, %v335
    %v372 = vpack.c.b16 %v339, %v336
    %v373 = vpack.c.b16 %v340, %v337
    %v374 = vpack.c.b16 %v344, %v341
    %v375 = vpack.c.b16 %v345, %v342
    %v376 = vpack.c.b16 %v346, %v343
    %v377 = vpack.c.b16 %v350, %v347
    %v378 = vpack.c.b16 %v351, %v348
    %v379 = vpack.c.b16 %v352, %v349
    %v380 = vpack.c.b16 %v356, %v353
    %v381 = vpack.c.b16 %v357, %v354
    %v382 = vpack.c.b16 %v358, %v355
    %407 = vmatprep.subr.bf16.mxu0 %v381
    %408 = vmatpush1.bf16.msra.mxu0 %v380
    %409 = vmatprep.subr.bf16.mxu0 %v378
    %410 = vmatpush1.bf16.msra.mxu0 %v377
    %411 = vmatprep.subr.bf16.mxu0 %v375
    %412 = vmatpush1.bf16.msra.mxu0 %v374
    %413 = vmatprep.subr.bf16.mxu0 %v372
    %414 = vmatpush1.bf16.msra.mxu0 %v371
    %415 = vmatprep.subr.bf16.mxu0 %v369
    %416 = vmatpush1.bf16.msra.mxu0 %v368
    %417 = vmatprep.subr.bf16.mxu0 %v366
    %418 = vmatpush1.bf16.msra.mxu0 %v365
    %419 = vmatprep.subr.bf16.mxu0 %v363
    %420 = vmatpush1.bf16.msra.mxu0 %v362
    %421 = vmatprep.subr.bf16.mxu0 %v360
    %422 = vmatpush1.bf16.msra.mxu0 %v359
    %423 = vmatprep.subr.bf16.mxu0 0
    %424 = vmatpush2.bf16.msra.mxu0 0
    %425 = vmatprep.subr.bf16.mxu0 0
    %426 = vmatpush2.bf16.msra.mxu0 0
    %427 = vmatprep.subr.bf16.mxu0 0
    %428 = vmatpush2.bf16.msra.mxu0 0
    %429 = vmatprep.subr.bf16.mxu0 0
    %430 = vmatpush2.bf16.msra.mxu0 0
    %431 = vmatprep.subr.bf16.mxu0 0
    %432 = vmatpush2.bf16.msra.mxu0 0
    %433 = vmatprep.subr.bf16.mxu0 0
    %434 = vmatpush2.bf16.msra.mxu0 0
    %435 = vmatprep.subr.bf16.mxu0 0
    %436 = vmatpush2.bf16.msra.mxu0 0
    %437 = vmatprep.subr.bf16.mxu0 0
    %438 = vmatpush2.bf16.msra.mxu0 0
    %439 = vmatprep.mubr.bf16.mxu0 0
    %440 = vmatmul.mubr.bf16.gmra.mxu0 %v229
    %v441 = vpop.f32.mrf.mxu0
    %v442 = vadd.f32 %v267, %v441
    %v443 = vpop.f32.mrf.mxu0
    %v444 = vadd.f32 %v271, %v443
    %v445 = vpop.f32.mrf.mxu0
    %v446 = vpop.f32.mrf.mxu0
    %447 = vdwg.mxu0
    %448 = vmatprep.subr.bf16.mxu0 0
    %449 = vmatpush1.bf16.msra.mxu0 %v382
    %450 = vmatprep.subr.bf16.mxu0 0
    %451 = vmatpush1.bf16.msra.mxu0 %v379
    %452 = vmatprep.subr.bf16.mxu0 0
    %453 = vmatpush1.bf16.msra.mxu0 %v376
    %454 = vmatprep.subr.bf16.mxu0 0
    %455 = vmatpush1.bf16.msra.mxu0 %v373
    %456 = vmatprep.subr.bf16.mxu0 0
    %457 = vmatpush1.bf16.msra.mxu0 %v370
    %458 = vmatprep.subr.bf16.mxu0 0
    %459 = vmatpush1.bf16.msra.mxu0 %v367
    %460 = vmatprep.subr.bf16.mxu0 0
    %461 = vmatpush1.bf16.msra.mxu0 %v364
    %462 = vmatprep.subr.bf16.mxu0 0
    %463 = vmatpush1.bf16.msra.mxu0 %v361
    %464 = vmatprep.subr.bf16.mxu0 0
    %465 = vmatpush2.bf16.msra.mxu0 0
    %466 = vmatprep.subr.bf16.mxu0 0
    %467 = vmatpush2.bf16.msra.mxu0 0
    %468 = vmatprep.subr.bf16.mxu0 0
    %469 = vmatpush2.bf16.msra.mxu0 0
    %470 = vmatprep.subr.bf16.mxu0 0
    %471 = vmatpush2.bf16.msra.mxu0 0
    %472 = vmatprep.subr.bf16.mxu0 0
    %473 = vmatpush2.bf16.msra.mxu0 0
    %474 = vmatprep.subr.bf16.mxu0 0
    %475 = vmatpush2.bf16.msra.mxu0 0
    %476 = vmatprep.subr.bf16.mxu0 0
    %477 = vmatpush2.bf16.msra.mxu0 0
    %478 = vmatprep.subr.bf16.mxu0 0
    %479 = vmatpush2.bf16.msra.mxu0 0
    %480 = vmatprep.mubr.bf16.mxu0 0
    %481 = vmatmul.mubr.bf16.gmra.mxu0 %v229
    %v482 = vpop.f32.mrf.mxu0
    %v483 = vadd.f32 %v275, %v482
    %v484 = vpop.f32.mrf.mxu0
    %v485 = vpop.f32.mrf.mxu0
    %v486 = vpop.f32.mrf.mxu0
    %487 = vdwg.mxu0
    %488 = vst [vmem:[#allocation3] sm:$0xff] %v442
    %489 = vst [vmem:[#allocation3 + $0x8] sm:$0xff] %v444
    %490 = vst [vmem:[#allocation3 + $0x10] sm:$0xff] %v483
    %v491 = vld [vmem:[%s6] sm:$0x7]
    %v492 = vld [vmem:[#allocation3] ss:$8 sm:$0x7]
    %v493 = vld [vmem:[#allocation14] sm:$0xff]
    %v494 = vld [vmem:[#allocation14 + $0x8] sm:$0xf]
    %v495 = vld [vmem:[#allocation14 + $0xc] sm:$0xff]
    %v496 = vld [vmem:[#allocation14 + $0x14] sm:$0xf]
    %v497 = vld [vmem:[#allocation14 + $0x18] sm:$0xff]
    %v498 = vld [vmem:[#allocation14 + $0x20] sm:$0xf]
    %v499 = vld [vmem:[#allocation14 + $0x24] sm:$0xff]
    %v500 = vld [vmem:[#allocation14 + $0x2c] sm:$0xf]
    %v501 = vld [vmem:[#allocation14 + $0x30] sm:$0xff]
    %v502 = vld [vmem:[#allocation14 + $0x38] sm:$0xf]
    %v503 = vld [vmem:[#allocation14 + $0x3c] sm:$0xff]
    %v504 = vld [vmem:[#allocation14 + $0x44] sm:$0xf]
    %v505 = vld [vmem:[#allocation14 + $0x48] sm:$0xff]
    %v506 = vld [vmem:[#allocation14 + $0x50] sm:$0xf]
    %v507 = vld [vmem:[#allocation14 + $0x54] sm:$0xff]
    %v508 = vld [vmem:[#allocation14 + $0x5c] sm:$0xf]
    %v509 = vld [vmem:[#allocation14 + $0x60] sm:$0xff]
    %v510 = vld [vmem:[#allocation14 + $0x68] sm:$0xf]
    %v511 = vld [vmem:[#allocation14 + $0x6c] sm:$0xff]
    %v512 = vld [vmem:[#allocation14 + $0x74] sm:$0xf]
    %v513 = vld [vmem:[#allocation14 + $0x78] sm:$0xff]
    %v514 = vld [vmem:[#allocation14 + $0x80] sm:$0xf]
    %v515 = vld [vmem:[#allocation14 + $0x84] sm:$0xff]
    %v516 = vld [vmem:[#allocation14 + $0x8c] sm:$0xf]
    %v517 = vld [vmem:[#allocation14 + $0x90] sm:$0xff]
    %v518 = vld [vmem:[#allocation14 + $0x98] sm:$0xf]
    %v519 = vld [vmem:[#allocation14 + $0x9c] sm:$0xff]
    %v520 = vld [vmem:[#allocation14 + $0xa4] sm:$0xf]
    %v521 = vld [vmem:[#allocation14 + $0xa8] sm:$0xff]
    %v522 = vld [vmem:[#allocation14 + $0xb0] sm:$0xf]
    %v523 = vld [vmem:[#allocation14 + $0xb4] sm:$0xff]
    %v524 = vld [vmem:[#allocation14 + $0xbc] sm:$0xf]
    %v557 = vunpack.c.l.b16 %v493
    %v558 = vunpack.c.h.b16 %v493
    %v559 = vunpack.c.l.b16 %v494
    %v560 = vunpack.c.l.b16 %v495
    %v561 = vunpack.c.h.b16 %v495
    %v562 = vunpack.c.l.b16 %v496
    %v563 = vunpack.c.l.b16 %v497
    %v564 = vunpack.c.h.b16 %v497
    %v565 = vunpack.c.l.b16 %v498
    %v566 = vunpack.c.l.b16 %v499
    %v567 = vunpack.c.h.b16 %v499
    %v568 = vunpack.c.l.b16 %v500
    %v569 = vunpack.c.l.b16 %v501
    %v570 = vunpack.c.h.b16 %v501
    %v571 = vunpack.c.l.b16 %v502
    %v572 = vunpack.c.l.b16 %v503
    %v573 = vunpack.c.h.b16 %v503
    %v574 = vunpack.c.l.b16 %v504
    %v575 = vunpack.c.l.b16 %v505
    %v576 = vunpack.c.h.b16 %v505
    %v577 = vunpack.c.l.b16 %v506
    %v578 = vunpack.c.l.b16 %v507
    %v579 = vunpack.c.h.b16 %v507
    %v580 = vunpack.c.l.b16 %v508
    %v581 = vunpack.c.l.b16 %v509
    %v582 = vunpack.c.h.b16 %v509
    %v583 = vunpack.c.l.b16 %v510
    %v584 = vunpack.c.l.b16 %v511
    %v585 = vunpack.c.h.b16 %v511
    %v586 = vunpack.c.l.b16 %v512
    %v587 = vunpack.c.l.b16 %v513
    %v588 = vunpack.c.h.b16 %v513
    %v589 = vunpack.c.l.b16 %v514
    %v590 = vunpack.c.l.b16 %v515
    %v591 = vunpack.c.h.b16 %v515
    %v592 = vunpack.c.l.b16 %v516
    %v593 = vunpack.c.l.b16 %v517
    %v594 = vunpack.c.h.b16 %v517
    %v595 = vunpack.c.l.b16 %v518
    %v596 = vunpack.c.l.b16 %v519
    %v597 = vunpack.c.h.b16 %v519
    %v598 = vunpack.c.l.b16 %v520
    %v599 = vunpack.c.l.b16 %v521
    %v600 = vunpack.c.h.b16 %v521
    %v601 = vunpack.c.l.b16 %v522
    %v602 = vunpack.c.l.b16 %v523
    %v603 = vunpack.c.h.b16 %v523
    %v604 = vunpack.c.l.b16 %v524
    %v605 = vpack.c.b16 %v560, %v557
    %v606 = vpack.c.b16 %v561, %v558
    %v607 = vpack.c.b16 %v562, %v559
    %v608 = vpack.c.b16 %v566, %v563
    %v609 = vpack.c.b16 %v567, %v564
    %v610 = vpack.c.b16 %v568, %v565
    %v611 = vpack.c.b16 %v572, %v569
    %v612 = vpack.c.b16 %v573, %v570
    %v613 = vpack.c.b16 %v574, %v571
    %v614 = vpack.c.b16 %v578, %v575
    %v615 = vpack.c.b16 %v579, %v576
    %v616 = vpack.c.b16 %v580, %v577
    %v617 = vpack.c.b16 %v584, %v581
    %v618 = vpack.c.b16 %v585, %v582
    %v619 = vpack.c.b16 %v586, %v583
    %v620 = vpack.c.b16 %v590, %v587
    %v621 = vpack.c.b16 %v591, %v588
    %v622 = vpack.c.b16 %v592, %v589
    %v623 = vpack.c.b16 %v596, %v593
    %v624 = vpack.c.b16 %v597, %v594
    %v625 = vpack.c.b16 %v598, %v595
    %v626 = vpack.c.b16 %v602, %v599
    %v627 = vpack.c.b16 %v603, %v600
    %v628 = vpack.c.b16 %v604, %v601
    %v654 = vlaneseq
    %v655 = vshrl.u32 %v654, 7
    %v656 = vsub.s32 0, %v655
    %v657 = vrot.slane %v491, %v656
    %v658 = vlaneseq
    %v659 = vshrl.u32 %v658, 7
    %v660 = vsub.s32 1, %v659
    %v661 = vrot.slane %v491, %v660
    %v662 = vlaneseq
    %v663 = vshrl.u32 %v662, 7
    %v664 = vsub.s32 2, %v663
    %v665 = vrot.slane %v491, %v664
    %669 = vmatprep.subr.bf16.mxu0 %v627
    %670 = vmatpush1.bf16.msra.mxu0 %v626
    %671 = vmatprep.subr.bf16.mxu0 %v624
    %672 = vmatpush1.bf16.msra.mxu0 %v623
    %673 = vmatprep.subr.bf16.mxu0 %v621
    %674 = vmatpush1.bf16.msra.mxu0 %v620
    %675 = vmatprep.subr.bf16.mxu0 %v618
    %676 = vmatpush1.bf16.msra.mxu0 %v617
    %677 = vmatprep.subr.bf16.mxu0 %v615
    %678 = vmatpush1.bf16.msra.mxu0 %v614
    %679 = vmatprep.subr.bf16.mxu0 %v612
    %680 = vmatpush1.bf16.msra.mxu0 %v611
    %681 = vmatprep.subr.bf16.mxu0 %v609
    %682 = vmatpush1.bf16.msra.mxu0 %v608
    %683 = vmatprep.subr.bf16.mxu0 %v606
    %684 = vmatpush1.bf16.msra.mxu0 %v605
    %685 = vmatprep.subr.bf16.mxu0 0
    %686 = vmatpush2.bf16.msra.mxu0 0
    %687 = vmatprep.subr.bf16.mxu0 0
    %688 = vmatpush2.bf16.msra.mxu0 0
    %689 = vmatprep.subr.bf16.mxu0 0
    %690 = vmatpush2.bf16.msra.mxu0 0
    %691 = vmatprep.subr.bf16.mxu0 0
    %692 = vmatpush2.bf16.msra.mxu0 0
    %693 = vmatprep.subr.bf16.mxu0 0
    %694 = vmatpush2.bf16.msra.mxu0 0
    %695 = vmatprep.subr.bf16.mxu0 0
    %696 = vmatpush2.bf16.msra.mxu0 0
    %697 = vmatprep.subr.bf16.mxu0 0
    %698 = vmatpush2.bf16.msra.mxu0 0
    %699 = vmatprep.subr.bf16.mxu0 0
    %700 = vmatpush2.bf16.msra.mxu0 0
    %701 = vmatprep.mubr.bf16.mxu0 0
    %702 = vmatmul.mubr.bf16.gmra.mxu0 0
    %v703 = vpop.f32.mrf.mxu0
    %v704 = vadd.f32 %v657, %v703
    %v705 = vpop.f32.mrf.mxu0
    %v706 = vadd.f32 %v661, %v705
    %v707 = vpop.f32.mrf.mxu0
    %v708 = vpop.f32.mrf.mxu0
    %709 = vdwg.mxu0
    %710 = vmatprep.subr.bf16.mxu0 0
    %711 = vmatpush1.bf16.msra.mxu0 %v628
    %712 = vmatprep.subr.bf16.mxu0 0
    %713 = vmatpush1.bf16.msra.mxu0 %v625
    %714 = vmatprep.subr.bf16.mxu0 0
    %715 = vmatpush1.bf16.msra.mxu0 %v622
    %716 = vmatprep.subr.bf16.mxu0 0
    %717 = vmatpush1.bf16.msra.mxu0 %v619
    %718 = vmatprep.subr.bf16.mxu0 0
    %719 = vmatpush1.bf16.msra.mxu0 %v616
    %720 = vmatprep.subr.bf16.mxu0 0
    %721 = vmatpush1.bf16.msra.mxu0 %v613
    %722 = vmatprep.subr.bf16.mxu0 0
    %723 = vmatpush1.bf16.msra.mxu0 %v610
    %724 = vmatprep.subr.bf16.mxu0 0
    %725 = vmatpush1.bf16.msra.mxu0 %v607
    %726 = vmatprep.subr.bf16.mxu0 0
    %727 = vmatpush2.bf16.msra.mxu0 0
    %728 = vmatprep.subr.bf16.mxu0 0
    %729 = vmatpush2.bf16.msra.mxu0 0
    %730 = vmatprep.subr.bf16.mxu0 0
    %731 = vmatpush2.bf16.msra.mxu0 0
    %732 = vmatprep.subr.bf16.mxu0 0
    %733 = vmatpush2.bf16.msra.mxu0 0
    %734 = vmatprep.subr.bf16.mxu0 0
    %735 = vmatpush2.bf16.msra.mxu0 0
    %736 = vmatprep.subr.bf16.mxu0 0
    %737 = vmatpush2.bf16.msra.mxu0 0
    %738 = vmatprep.subr.bf16.mxu0 0
    %739 = vmatpush2.bf16.msra.mxu0 0
    %740 = vmatprep.subr.bf16.mxu0 0
    %741 = vmatpush2.bf16.msra.mxu0 0
    %742 = vmatprep.mubr.bf16.mxu0 0
    %743 = vmatmul.mubr.bf16.gmra.mxu0 0
    %v744 = vpop.f32.mrf.mxu0
    %v745 = vadd.f32 %v665, %v744
    %v746 = vpop.f32.mrf.mxu0
    %v747 = vpop.f32.mrf.mxu0
    %v748 = vpop.f32.mrf.mxu0
    %749 = vdwg.mxu0
    %v750 = vadd.f32 %v492, %v704
    %v751 = vxor.u32 %v750, 2147483648
    %v752 = vmul.f32 %v751, 1.442695
    %v753 = vpow.pop %v752
    %v754 = vadd.f32 %v753, 1.0
    %v755 = vrcp.pop %v754
    %v756 = vmul.f32 1.0, %v755
    %v758 = vrot.slane %v492, 1
    %v760 = vadd.f32 %v758, %v706
    %v761 = vxor.u32 %v760, 2147483648
    %v762 = vmul.f32 %v761, 1.442695
    %v763 = vpow.pop %v762
    %v764 = vadd.f32 %v763, 1.0
    %v765 = vrcp.pop %v764
    %v766 = vmul.f32 1.0, %v765
    %v767 = vmul.f32 %v756, %v745
    %v768 = vrot.slane %v492, 2
    %v770 = vadd.f32 %v768, %v767
    %v771 = vtanh.pop %v770
    %v772 = vsub.f32 1.0, %v766
    %v773 = vmul.f32 %v772, %v771
    %v774 = vmul.f32 %v766, 0.0
    %v775 = vadd.f32 %v773, %v774
    %p776 = scmp.gt.s32.totalorder %s195, 0
    %s777 = scalar_select %p776, 1, 0
    %v778 = vstv %s777
    %vm779 = vcmp.eq.s32.totalorder %v778, 1
    %v780 = vsel %vm779, %v775, 0.0
    %781 = vst [vmem:[#allocation4] sm:$0x1] %v780
    %s782 = scalar_lea.vmem [#allocation3], 1
    %v783 = vld [vmem:[%s782] ss:$8 sm:$0x7]
    %v784 = vpack.c.bf16 %v780, %v780
    %v785 = vld [vmem:[#allocation14] sm:$0xff]
    %v786 = vld [vmem:[#allocation14 + $0x8] sm:$0xf]
    %v787 = vld [vmem:[#allocation14 + $0xc] sm:$0xff]
    %v788 = vld [vmem:[#allocation14 + $0x14] sm:$0xf]
    %v789 = vld [vmem:[#allocation14 + $0x18] sm:$0xff]
    %v790 = vld [vmem:[#allocation14 + $0x20] sm:$0xf]
    %v791 = vld [vmem:[#allocation14 + $0x24] sm:$0xff]
    %v792 = vld [vmem:[#allocation14 + $0x2c] sm:$0xf]
    %v793 = vld [vmem:[#allocation14 + $0x30] sm:$0xff]
    %v794 = vld [vmem:[#allocation14 + $0x38] sm:$0xf]
    %v795 = vld [vmem:[#allocation14 + $0x3c] sm:$0xff]
    %v796 = vld [vmem:[#allocation14 + $0x44] sm:$0xf]
    %v797 = vld [vmem:[#allocation14 + $0x48] sm:$0xff]
    %v798 = vld [vmem:[#allocation14 + $0x50] sm:$0xf]
    %v799 = vld [vmem:[#allocation14 + $0x54] sm:$0xff]
    %v800 = vld [vmem:[#allocation14 + $0x5c] sm:$0xf]
    %v801 = vld [vmem:[#allocation14 + $0x60] sm:$0xff]
    %v802 = vld [vmem:[#allocation14 + $0x68] sm:$0xf]
    %v803 = vld [vmem:[#allocation14 + $0x6c] sm:$0xff]
    %v804 = vld [vmem:[#allocation14 + $0x74] sm:$0xf]
    %v805 = vld [vmem:[#allocation14 + $0x78] sm:$0xff]
    %v806 = vld [vmem:[#allocation14 + $0x80] sm:$0xf]
    %v807 = vld [vmem:[#allocation14 + $0x84] sm:$0xff]
    %v808 = vld [vmem:[#allocation14 + $0x8c] sm:$0xf]
    %v809 = vld [vmem:[#allocation14 + $0x90] sm:$0xff]
    %v810 = vld [vmem:[#allocation14 + $0x98] sm:$0xf]
    %v811 = vld [vmem:[#allocation14 + $0x9c] sm:$0xff]
    %v812 = vld [vmem:[#allocation14 + $0xa4] sm:$0xf]
    %v813 = vld [vmem:[#allocation14 + $0xa8] sm:$0xff]
    %v814 = vld [vmem:[#allocation14 + $0xb0] sm:$0xf]
    %v815 = vld [vmem:[#allocation14 + $0xb4] sm:$0xff]
    %v816 = vld [vmem:[#allocation14 + $0xbc] sm:$0xf]
    %v849 = vunpack.c.l.b16 %v785
    %v850 = vunpack.c.h.b16 %v785
    %v851 = vunpack.c.l.b16 %v786
    %v852 = vunpack.c.l.b16 %v787
    %v853 = vunpack.c.h.b16 %v787
    %v854 = vunpack.c.l.b16 %v788
    %v855 = vunpack.c.l.b16 %v789
    %v856 = vunpack.c.h.b16 %v789
    %v857 = vunpack.c.l.b16 %v790
    %v858 = vunpack.c.l.b16 %v791
    %v859 = vunpack.c.h.b16 %v791
    %v860 = vunpack.c.l.b16 %v792
    %v861 = vunpack.c.l.b16 %v793
    %v862 = vunpack.c.h.b16 %v793
    %v863 = vunpack.c.l.b16 %v794
    %v864 = vunpack.c.l.b16 %v795
    %v865 = vunpack.c.h.b16 %v795
    %v866 = vunpack.c.l.b16 %v796
    %v867 = vunpack.c.l.b16 %v797
    %v868 = vunpack.c.h.b16 %v797
    %v869 = vunpack.c.l.b16 %v798
    %v870 = vunpack.c.l.b16 %v799
    %v871 = vunpack.c.h.b16 %v799
    %v872 = vunpack.c.l.b16 %v800
    %v873 = vunpack.c.l.b16 %v801
    %v874 = vunpack.c.h.b16 %v801
    %v875 = vunpack.c.l.b16 %v802
    %v876 = vunpack.c.l.b16 %v803
    %v877 = vunpack.c.h.b16 %v803
    %v878 = vunpack.c.l.b16 %v804
    %v879 = vunpack.c.l.b16 %v805
    %v880 = vunpack.c.h.b16 %v805
    %v881 = vunpack.c.l.b16 %v806
    %v882 = vunpack.c.l.b16 %v807
    %v883 = vunpack.c.h.b16 %v807
    %v884 = vunpack.c.l.b16 %v808
    %v885 = vunpack.c.l.b16 %v809
    %v886 = vunpack.c.h.b16 %v809
    %v887 = vunpack.c.l.b16 %v810
    %v888 = vunpack.c.l.b16 %v811
    %v889 = vunpack.c.h.b16 %v811
    %v890 = vunpack.c.l.b16 %v812
    %v891 = vunpack.c.l.b16 %v813
    %v892 = vunpack.c.h.b16 %v813
    %v893 = vunpack.c.l.b16 %v814
    %v894 = vunpack.c.l.b16 %v815
    %v895 = vunpack.c.h.b16 %v815
    %v896 = vunpack.c.l.b16 %v816
    %v897 = vpack.c.b16 %v852, %v849
    %v898 = vpack.c.b16 %v853, %v850
    %v899 = vpack.c.b16 %v854, %v851
    %v900 = vpack.c.b16 %v858, %v855
    %v901 = vpack.c.b16 %v859, %v856
    %v902 = vpack.c.b16 %v860, %v857
    %v903 = vpack.c.b16 %v864, %v861
    %v904 = vpack.c.b16 %v865, %v862
    %v905 = vpack.c.b16 %v866, %v863
    %v906 = vpack.c.b16 %v870, %v867
    %v907 = vpack.c.b16 %v871, %v868
    %v908 = vpack.c.b16 %v872, %v869
    %v909 = vpack.c.b16 %v876, %v873
    %v910 = vpack.c.b16 %v877, %v874
    %v911 = vpack.c.b16 %v878, %v875
    %v912 = vpack.c.b16 %v882, %v879
    %v913 = vpack.c.b16 %v883, %v880
    %v914 = vpack.c.b16 %v884, %v881
    %v915 = vpack.c.b16 %v888, %v885
    %v916 = vpack.c.b16 %v889, %v886
    %v917 = vpack.c.b16 %v890, %v887
    %v918 = vpack.c.b16 %v894, %v891
    %v919 = vpack.c.b16 %v895, %v892
    %v920 = vpack.c.b16 %v896, %v893
    %945 = vmatprep.subr.bf16.mxu0 %v919
    %946 = vmatpush1.bf16.msra.mxu0 %v918
    %947 = vmatprep.subr.bf16.mxu0 %v916
    %948 = vmatpush1.bf16.msra.mxu0 %v915
    %949 = vmatprep.subr.bf16.mxu0 %v913
    %950 = vmatpush1.bf16.msra.mxu0 %v912
    %951 = vmatprep.subr.bf16.mxu0 %v910
    %952 = vmatpush1.bf16.msra.mxu0 %v909
    %953 = vmatprep.subr.bf16.mxu0 %v907
    %954 = vmatpush1.bf16.msra.mxu0 %v906
    %955 = vmatprep.subr.bf16.mxu0 %v904
    %956 = vmatpush1.bf16.msra.mxu0 %v903
    %957 = vmatprep.subr.bf16.mxu0 %v901
    %958 = vmatpush1.bf16.msra.mxu0 %v900
    %959 = vmatprep.subr.bf16.mxu0 %v898
    %960 = vmatpush1.bf16.msra.mxu0 %v897
    %961 = vmatprep.subr.bf16.mxu0 0
    %962 = vmatpush2.bf16.msra.mxu0 0
    %963 = vmatprep.subr.bf16.mxu0 0
    %964 = vmatpush2.bf16.msra.mxu0 0
    %965 = vmatprep.subr.bf16.mxu0 0
    %966 = vmatpush2.bf16.msra.mxu0 0
    %967 = vmatprep.subr.bf16.mxu0 0
    %968 = vmatpush2.bf16.msra.mxu0 0
    %969 = vmatprep.subr.bf16.mxu0 0
    %970 = vmatpush2.bf16.msra.mxu0 0
    %971 = vmatprep.subr.bf16.mxu0 0
    %972 = vmatpush2.bf16.msra.mxu0 0
    %973 = vmatprep.subr.bf16.mxu0 0
    %974 = vmatpush2.bf16.msra.mxu0 0
    %975 = vmatprep.subr.bf16.mxu0 0
    %976 = vmatpush2.bf16.msra.mxu0 0
    %977 = vmatprep.mubr.bf16.mxu0 0
    %978 = vmatmul.mubr.bf16.gmra.mxu0 %v784
    %v979 = vpop.f32.mrf.mxu0
    %v980 = vadd.f32 %v657, %v979
    %v981 = vpop.f32.mrf.mxu0
    %v982 = vadd.f32 %v661, %v981
    %v983 = vpop.f32.mrf.mxu0
    %v984 = vpop.f32.mrf.mxu0
    %985 = vdwg.mxu0
    %986 = vmatprep.subr.bf16.mxu0 0
    %987 = vmatpush1.bf16.msra.mxu0 %v920
    %988 = vmatprep.subr.bf16.mxu0 0
    %989 = vmatpush1.bf16.msra.mxu0 %v917
    %990 = vmatprep.subr.bf16.mxu0 0
    %991 = vmatpush1.bf16.msra.mxu0 %v914
    %992 = vmatprep.subr.bf16.mxu0 0
    %993 = vmatpush1.bf16.msra.mxu0 %v911
    %994 = vmatprep.subr.bf16.mxu0 0
    %995 = vmatpush1.bf16.msra.mxu0 %v908
    %996 = vmatprep.subr.bf16.mxu0 0
    %997 = vmatpush1.bf16.msra.mxu0 %v905
    %998 = vmatprep.subr.bf16.mxu0 0
    %999 = vmatpush1.bf16.msra.mxu0 %v902
    %1000 = vmatprep.subr.bf16.mxu0 0
    %1001 = vmatpush1.bf16.msra.mxu0 %v899
    %1002 = vmatprep.subr.bf16.mxu0 0
    %1003 = vmatpush2.bf16.msra.mxu0 0
    %1004 = vmatprep.subr.bf16.mxu0 0
    %1005 = vmatpush2.bf16.msra.mxu0 0
    %1006 = vmatprep.subr.bf16.mxu0 0
    %1007 = vmatpush2.bf16.msra.mxu0 0
    %1008 = vmatprep.subr.bf16.mxu0 0
    %1009 = vmatpush2.bf16.msra.mxu0 0
    %1010 = vmatprep.subr.bf16.mxu0 0
    %1011 = vmatpush2.bf16.msra.mxu0 0
    %1012 = vmatprep.subr.bf16.mxu0 0
    %1013 = vmatpush2.bf16.msra.mxu0 0
    %1014 = vmatprep.subr.bf16.mxu0 0
    %1015 = vmatpush2.bf16.msra.mxu0 0
    %1016 = vmatprep.subr.bf16.mxu0 0
    %1017 = vmatpush2.bf16.msra.mxu0 0
    %1018 = vmatprep.mubr.bf16.mxu0 0
    %1019 = vmatmul.mubr.bf16.gmra.mxu0 %v784
    %v1020 = vpop.f32.mrf.mxu0
    %v1021 = vadd.f32 %v665, %v1020
    %v1022 = vpop.f32.mrf.mxu0
    %v1023 = vpop.f32.mrf.mxu0
    %v1024 = vpop.f32.mrf.mxu0
    %1025 = vdwg.mxu0
    %v1026 = vadd.f32 %v783, %v980
    %v1027 = vxor.u32 %v1026, 2147483648
    %v1028 = vmul.f32 %v1027, 1.442695
    %v1029 = vpow.pop %v1028
    %v1030 = vadd.f32 %v1029, 1.0
    %v1031 = vrcp.pop %v1030
    %v1032 = vmul.f32 1.0, %v1031
    %v1034 = vrot.slane %v783, 1
    %v1036 = vadd.f32 %v1034, %v982
    %v1037 = vxor.u32 %v1036, 2147483648
    %v1038 = vmul.f32 %v1037, 1.442695
    %v1039 = vpow.pop %v1038
    %v1040 = vadd.f32 %v1039, 1.0
    %v1041 = vrcp.pop %v1040
    %v1042 = vmul.f32 1.0, %v1041
    %v1043 = vmul.f32 %v1032, %v1021
    %v1044 = vrot.slane %v783, 2
    %v1046 = vadd.f32 %v1044, %v1043
    %v1047 = vtanh.pop %v1046
    %v1048 = vsub.f32 1.0, %v1042
    %v1049 = vmul.f32 %v1048, %v1047
    %v1050 = vmul.f32 %v1042, %v780
    %v1051 = vadd.f32 %v1049, %v1050
    %p1052 = scmp.gt.s32.totalorder %s195, 1
    %s1053 = scalar_select %p1052, 1, 0
    %v1054 = vstv %s1053
    %vm1055 = vcmp.eq.s32.totalorder %v1054, 1
    %v1056 = vsel %vm1055, %v1051, 0.0
    %1057 = vst [vmem:[#allocation4 + $0x1] sm:$0x1] %v1056
    %v1058 = vsel %vm1055, %v1051, %v780
    %s1059 = scalar_lea.vmem [#allocation3], 2
    %v1060 = vld [vmem:[%s1059] ss:$8 sm:$0x7]
    %v1061 = vpack.c.bf16 %v1058, %v1058
    %v1062 = vld [vmem:[#allocation14] sm:$0xff]
    %v1063 = vld [vmem:[#allocation14 + $0x8] sm:$0xf]
    %v1064 = vld [vmem:[#allocation14 + $0xc] sm:$0xff]
    %v1065 = vld [vmem:[#allocation14 + $0x14] sm:$0xf]
    %v1066 = vld [vmem:[#allocation14 + $0x18] sm:$0xff]
    %v1067 = vld [vmem:[#allocation14 + $0x20] sm:$0xf]
    %v1068 = vld [vmem:[#allocation14 + $0x24] sm:$0xff]
    %v1069 = vld [vmem:[#allocation14 + $0x2c] sm:$0xf]
    %v1070 = vld [vmem:[#allocation14 + $0x30] sm:$0xff]
    %v1071 = vld [vmem:[#allocation14 + $0x38] sm:$0xf]
    %v1072 = vld [vmem:[#allocation14 + $0x3c] sm:$0xff]
    %v1073 = vld [vmem:[#allocation14 + $0x44] sm:$0xf]
    %v1074 = vld [vmem:[#allocation14 + $0x48] sm:$0xff]
    %v1075 = vld [vmem:[#allocation14 + $0x50] sm:$0xf]
    %v1076 = vld [vmem:[#allocation14 + $0x54] sm:$0xff]
    %v1077 = vld [vmem:[#allocation14 + $0x5c] sm:$0xf]
    %v1078 = vld [vmem:[#allocation14 + $0x60] sm:$0xff]
    %v1079 = vld [vmem:[#allocation14 + $0x68] sm:$0xf]
    %v1080 = vld [vmem:[#allocation14 + $0x6c] sm:$0xff]
    %v1081 = vld [vmem:[#allocation14 + $0x74] sm:$0xf]
    %v1082 = vld [vmem:[#allocation14 + $0x78] sm:$0xff]
    %v1083 = vld [vmem:[#allocation14 + $0x80] sm:$0xf]
    %v1084 = vld [vmem:[#allocation14 + $0x84] sm:$0xff]
    %v1085 = vld [vmem:[#allocation14 + $0x8c] sm:$0xf]
    %v1086 = vld [vmem:[#allocation14 + $0x90] sm:$0xff]
    %v1087 = vld [vmem:[#allocation14 + $0x98] sm:$0xf]
    %v1088 = vld [vmem:[#allocation14 + $0x9c] sm:$0xff]
    %v1089 = vld [vmem:[#allocation14 + $0xa4] sm:$0xf]
    %v1090 = vld [vmem:[#allocation14 + $0xa8] sm:$0xff]
    %v1091 = vld [vmem:[#allocation14 + $0xb0] sm:$0xf]
    %v1092 = vld [vmem:[#allocation14 + $0xb4] sm:$0xff]
    %v1093 = vld [vmem:[#allocation14 + $0xbc] sm:$0xf]
    %v1126 = vunpack.c.l.b16 %v1062
    %v1127 = vunpack.c.h.b16 %v1062
    %v1128 = vunpack.c.l.b16 %v1063
    %v1129 = vunpack.c.l.b16 %v1064
    %v1130 = vunpack.c.h.b16 %v1064
    %v1131 = vunpack.c.l.b16 %v1065
    %v1132 = vunpack.c.l.b16 %v1066
    %v1133 = vunpack.c.h.b16 %v1066
    %v1134 = vunpack.c.l.b16 %v1067
    %v1135 = vunpack.c.l.b16 %v1068
    %v1136 = vunpack.c.h.b16 %v1068
    %v1137 = vunpack.c.l.b16 %v1069
    %v1138 = vunpack.c.l.b16 %v1070
    %v1139 = vunpack.c.h.b16 %v1070
    %v1140 = vunpack.c.l.b16 %v1071
    %v1141 = vunpack.c.l.b16 %v1072
    %v1142 = vunpack.c.h.b16 %v1072
    %v1143 = vunpack.c.l.b16 %v1073
    %v1144 = vunpack.c.l.b16 %v1074
    %v1145 = vunpack.c.h.b16 %v1074
    %v1146 = vunpack.c.l.b16 %v1075
    %v1147 = vunpack.c.l.b16 %v1076
    %v1148 = vunpack.c.h.b16 %v1076
    %v1149 = vunpack.c.l.b16 %v1077
    %v1150 = vunpack.c.l.b16 %v1078
    %v1151 = vunpack.c.h.b16 %v1078
    %v1152 = vunpack.c.l.b16 %v1079
    %v1153 = vunpack.c.l.b16 %v1080
    %v1154 = vunpack.c.h.b16 %v1080
    %v1155 = vunpack.c.l.b16 %v1081
    %v1156 = vunpack.c.l.b16 %v1082
    %v1157 = vunpack.c.h.b16 %v1082
    %v1158 = vunpack.c.l.b16 %v1083
    %v1159 = vunpack.c.l.b16 %v1084
    %v1160 = vunpack.c.h.b16 %v1084
    %v1161 = vunpack.c.l.b16 %v1085
    %v1162 = vunpack.c.l.b16 %v1086
    %v1163 = vunpack.c.h.b16 %v1086
    %v1164 = vunpack.c.l.b16 %v1087
    %v1165 = vunpack.c.l.b16 %v1088
    %v1166 = vunpack.c.h.b16 %v1088
    %v1167 = vunpack.c.l.b16 %v1089
    %v1168 = vunpack.c.l.b16 %v1090
    %v1169 = vunpack.c.h.b16 %v1090
    %v1170 = vunpack.c.l.b16 %v1091
    %v1171 = vunpack.c.l.b16 %v1092
    %v1172 = vunpack.c.h.b16 %v1092
    %v1173 = vunpack.c.l.b16 %v1093
    %v1174 = vpack.c.b16 %v1129, %v1126
    %v1175 = vpack.c.b16 %v1130, %v1127
    %v1176 = vpack.c.b16 %v1131, %v1128
    %v1177 = vpack.c.b16 %v1135, %v1132
    %v1178 = vpack.c.b16 %v1136, %v1133
    %v1179 = vpack.c.b16 %v1137, %v1134
    %v1180 = vpack.c.b16 %v1141, %v1138
    %v1181 = vpack.c.b16 %v1142, %v1139
    %v1182 = vpack.c.b16 %v1143, %v1140
    %v1183 = vpack.c.b16 %v1147, %v1144
    %v1184 = vpack.c.b16 %v1148, %v1145
    %v1185 = vpack.c.b16 %v1149, %v1146
    %v1186 = vpack.c.b16 %v1153, %v1150
    %v1187 = vpack.c.b16 %v1154, %v1151
    %v1188 = vpack.c.b16 %v1155, %v1152
    %v1189 = vpack.c.b16 %v1159, %v1156
    %v1190 = vpack.c.b16 %v1160, %v1157
    %v1191 = vpack.c.b16 %v1161, %v1158
    %v1192 = vpack.c.b16 %v1165, %v1162
    %v1193 = vpack.c.b16 %v1166, %v1163
    %v1194 = vpack.c.b16 %v1167, %v1164
    %v1195 = vpack.c.b16 %v1171, %v1168
    %v1196 = vpack.c.b16 %v1172, %v1169
    %v1197 = vpack.c.b16 %v1173, %v1170
    %1222 = vmatprep.subr.bf16.mxu0 %v1196
    %1223 = vmatpush1.bf16.msra.mxu0 %v1195
    %1224 = vmatprep.subr.bf16.mxu0 %v1193
    %1225 = vmatpush1.bf16.msra.mxu0 %v1192
    %1226 = vmatprep.subr.bf16.mxu0 %v1190
    %1227 = vmatpush1.bf16.msra.mxu0 %v1189
    %1228 = vmatprep.subr.bf16.mxu0 %v1187
    %1229 = vmatpush1.bf16.msra.mxu0 %v1186
    %1230 = vmatprep.subr.bf16.mxu0 %v1184
    %1231 = vmatpush1.bf16.msra.mxu0 %v1183
    %1232 = vmatprep.subr.bf16.mxu0 %v1181
    %1233 = vmatpush1.bf16.msra.mxu0 %v1180
    %1234 = vmatprep.subr.bf16.mxu0 %v1178
    %1235 = vmatpush1.bf16.msra.mxu0 %v1177
    %1236 = vmatprep.subr.bf16.mxu0 %v1175
    %1237 = vmatpush1.bf16.msra.mxu0 %v1174
    %1238 = vmatprep.subr.bf16.mxu0 0
    %1239 = vmatpush2.bf16.msra.mxu0 0
    %1240 = vmatprep.subr.bf16.mxu0 0
    %1241 = vmatpush2.bf16.msra.mxu0 0
    %1242 = vmatprep.subr.bf16.mxu0 0
    %1243 = vmatpush2.bf16.msra.mxu0 0
    %1244 = vmatprep.subr.bf16.mxu0 0
    %1245 = vmatpush2.bf16.msra.mxu0 0
    %1246 = vmatprep.subr.bf16.mxu0 0
    %1247 = vmatpush2.bf16.msra.mxu0 0
    %1248 = vmatprep.subr.bf16.mxu0 0
    %1249 = vmatpush2.bf16.msra.mxu0 0
    %1250 = vmatprep.subr.bf16.mxu0 0
    %1251 = vmatpush2.bf16.msra.mxu0 0
    %1252 = vmatprep.subr.bf16.mxu0 0
    %1253 = vmatpush2.bf16.msra.mxu0 0
    %1254 = vmatprep.mubr.bf16.mxu0 0
    %1255 = vmatmul.mubr.bf16.gmra.mxu0 %v1061
    %v1256 = vpop.f32.mrf.mxu0
    %v1257 = vadd.f32 %v657, %v1256
    %v1258 = vpop.f32.mrf.mxu0
    %v1259 = vadd.f32 %v661, %v1258
    %v1260 = vpop.f32.mrf.mxu0
    %v1261 = vpop.f32.mrf.mxu0
    %1262 = vdwg.mxu0
    %1263 = vmatprep.subr.bf16.mxu0 0
    %1264 = vmatpush1.bf16.msra.mxu0 %v1197
    %1265 = vmatprep.subr.bf16.mxu0 0
    %1266 = vmatpush1.bf16.msra.mxu0 %v1194
    %1267 = vmatprep.subr.bf16.mxu0 0
    %1268 = vmatpush1.bf16.msra.mxu0 %v1191
    %1269 = vmatprep.subr.bf16.mxu0 0
    %1270 = vmatpush1.bf16.msra.mxu0 %v1188
    %1271 = vmatprep.subr.bf16.mxu0 0
    %1272 = vmatpush1.bf16.msra.mxu0 %v1185
    %1273 = vmatprep.subr.bf16.mxu0 0
    %1274 = vmatpush1.bf16.msra.mxu0 %v1182
    %1275 = vmatprep.subr.bf16.mxu0 0
    %1276 = vmatpush1.bf16.msra.mxu0 %v1179
    %1277 = vmatprep.subr.bf16.mxu0 0
    %1278 = vmatpush1.bf16.msra.mxu0 %v1176
    %1279 = vmatprep.subr.bf16.mxu0 0
    %1280 = vmatpush2.bf16.msra.mxu0 0
    %1281 = vmatprep.subr.bf16.mxu0 0
    %1282 = vmatpush2.bf16.msra.mxu0 0
    %1283 = vmatprep.subr.bf16.mxu0 0
    %1284 = vmatpush2.bf16.msra.mxu0 0
    %1285 = vmatprep.subr.bf16.mxu0 0
    %1286 = vmatpush2.bf16.msra.mxu0 0
    %1287 = vmatprep.subr.bf16.mxu0 0
    %1288 = vmatpush2.bf16.msra.mxu0 0
    %1289 = vmatprep.subr.bf16.mxu0 0
    %1290 = vmatpush2.bf16.msra.mxu0 0
    %1291 = vmatprep.subr.bf16.mxu0 0
    %1292 = vmatpush2.bf16.msra.mxu0 0
    %1293 = vmatprep.subr.bf16.mxu0 0
    %1294 = vmatpush2.bf16.msra.mxu0 0
    %1295 = vmatprep.mubr.bf16.mxu0 0
    %1296 = vmatmul.mubr.bf16.gmra.mxu0 %v1061
    %v1297 = vpop.f32.mrf.mxu0
    %v1298 = vadd.f32 %v665, %v1297
    %v1299 = vpop.f32.mrf.mxu0
    %v1300 = vpop.f32.mrf.mxu0
    %v1301 = vpop.f32.mrf.mxu0
    %1302 = vdwg.mxu0
    %v1303 = vadd.f32 %v1060, %v1257
    %v1304 = vxor.u32 %v1303, 2147483648
    %v1305 = vmul.f32 %v1304, 1.442695
    %v1306 = vpow.pop %v1305
    %v1307 = vadd.f32 %v1306, 1.0
    %v1308 = vrcp.pop %v1307
    %v1309 = vmul.f32 1.0, %v1308
    %v1311 = vrot.slane %v1060, 1
    %v1313 = vadd.f32 %v1311, %v1259
    %v1314 = vxor.u32 %v1313, 2147483648
    %v1315 = vmul.f32 %v1314, 1.442695
    %v1316 = vpow.pop %v1315
    %v1317 = vadd.f32 %v1316, 1.0
    %v1318 = vrcp.pop %v1317
    %v1319 = vmul.f32 1.0, %v1318
    %v1320 = vmul.f32 %v1309, %v1298
    %v1321 = vrot.slane %v1060, 2
    %v1323 = vadd.f32 %v1321, %v1320
    %v1324 = vtanh.pop %v1323
    %v1325 = vsub.f32 1.0, %v1319
    %v1326 = vmul.f32 %v1325, %v1324
    %v1327 = vmul.f32 %v1319, %v1058
    %v1328 = vadd.f32 %v1326, %v1327
    %p1329 = scmp.gt.s32.totalorder %s195, 2
    %s1330 = scalar_select %p1329, 1, 0
    %v1331 = vstv %s1330
    %vm1332 = vcmp.eq.s32.totalorder %v1331, 1
    %v1333 = vsel %vm1332, %v1328, 0.0
    %1334 = vst [vmem:[#allocation4 + $0x2] sm:$0x1] %v1333
    %v1335 = vsel %vm1332, %v1328, %v1058
    %s1336 = scalar_lea.vmem [#allocation3], 3
    %v1337 = vld [vmem:[%s1336] ss:$8 sm:$0x7]
    %v1338 = vpack.c.bf16 %v1335, %v1335
    %v1339 = vld [vmem:[#allocation14] sm:$0xff]
    %v1340 = vld [vmem:[#allocation14 + $0x8] sm:$0xf]
    %v1341 = vld [vmem:[#allocation14 + $0xc] sm:$0xff]
    %v1342 = vld [vmem:[#allocation14 + $0x14] sm:$0xf]
    %v1343 = vld [vmem:[#allocation14 + $0x18] sm:$0xff]
    %v1344 = vld [vmem:[#allocation14 + $0x20] sm:$0xf]
    %v1345 = vld [vmem:[#allocation14 + $0x24] sm:$0xff]
    %v1346 = vld [vmem:[#allocation14 + $0x2c] sm:$0xf]
    %v1347 = vld [vmem:[#allocation14 + $0x30] sm:$0xff]
    %v1348 = vld [vmem:[#allocation14 + $0x38] sm:$0xf]
    %v1349 = vld [vmem:[#allocation14 + $0x3c] sm:$0xff]
    %v1350 = vld [vmem:[#allocation14 + $0x44] sm:$0xf]
    %v1351 = vld [vmem:[#allocation14 + $0x48] sm:$0xff]
    %v1352 = vld [vmem:[#allocation14 + $0x50] sm:$0xf]
    %v1353 = vld [vmem:[#allocation14 + $0x54] sm:$0xff]
    %v1354 = vld [vmem:[#allocation14 + $0x5c] sm:$0xf]
    %v1355 = vld [vmem:[#allocation14 + $0x60] sm:$0xff]
    %v1356 = vld [vmem:[#allocation14 + $0x68] sm:$0xf]
    %v1357 = vld [vmem:[#allocation14 + $0x6c] sm:$0xff]
    %v1358 = vld [vmem:[#allocation14 + $0x74] sm:$0xf]
    %v1359 = vld [vmem:[#allocation14 + $0x78] sm:$0xff]
    %v1360 = vld [vmem:[#allocation14 + $0x80] sm:$0xf]
    %v1361 = vld [vmem:[#allocation14 + $0x84] sm:$0xff]
    %v1362 = vld [vmem:[#allocation14 + $0x8c] sm:$0xf]
    %v1363 = vld [vmem:[#allocation14 + $0x90] sm:$0xff]
    %v1364 = vld [vmem:[#allocation14 + $0x98] sm:$0xf]
    %v1365 = vld [vmem:[#allocation14 + $0x9c] sm:$0xff]
    %v1366 = vld [vmem:[#allocation14 + $0xa4] sm:$0xf]
    %v1367 = vld [vmem:[#allocation14 + $0xa8] sm:$0xff]
    %v1368 = vld [vmem:[#allocation14 + $0xb0] sm:$0xf]
    %v1369 = vld [vmem:[#allocation14 + $0xb4] sm:$0xff]
    %v1370 = vld [vmem:[#allocation14 + $0xbc] sm:$0xf]
    %v1403 = vunpack.c.l.b16 %v1339
    %v1404 = vunpack.c.h.b16 %v1339
    %v1405 = vunpack.c.l.b16 %v1340
    %v1406 = vunpack.c.l.b16 %v1341
    %v1407 = vunpack.c.h.b16 %v1341
    %v1408 = vunpack.c.l.b16 %v1342
    %v1409 = vunpack.c.l.b16 %v1343
    %v1410 = vunpack.c.h.b16 %v1343
    %v1411 = vunpack.c.l.b16 %v1344
    %v1412 = vunpack.c.l.b16 %v1345
    %v1413 = vunpack.c.h.b16 %v1345
    %v1414 = vunpack.c.l.b16 %v1346
    %v1415 = vunpack.c.l.b16 %v1347
    %v1416 = vunpack.c.h.b16 %v1347
    %v1417 = vunpack.c.l.b16 %v1348
    %v1418 = vunpack.c.l.b16 %v1349
    %v1419 = vunpack.c.h.b16 %v1349
    %v1420 = vunpack.c.l.b16 %v1350
    %v1421 = vunpack.c.l.b16 %v1351
    %v1422 = vunpack.c.h.b16 %v1351
    %v1423 = vunpack.c.l.b16 %v1352
    %v1424 = vunpack.c.l.b16 %v1353
    %v1425 = vunpack.c.h.b16 %v1353
    %v1426 = vunpack.c.l.b16 %v1354
    %v1427 = vunpack.c.l.b16 %v1355
    %v1428 = vunpack.c.h.b16 %v1355
    %v1429 = vunpack.c.l.b16 %v1356
    %v1430 = vunpack.c.l.b16 %v1357
    %v1431 = vunpack.c.h.b16 %v1357
    %v1432 = vunpack.c.l.b16 %v1358
    %v1433 = vunpack.c.l.b16 %v1359
    %v1434 = vunpack.c.h.b16 %v1359
    %v1435 = vunpack.c.l.b16 %v1360
    %v1436 = vunpack.c.l.b16 %v1361
    %v1437 = vunpack.c.h.b16 %v1361
    %v1438 = vunpack.c.l.b16 %v1362
    %v1439 = vunpack.c.l.b16 %v1363
    %v1440 = vunpack.c.h.b16 %v1363
    %v1441 = vunpack.c.l.b16 %v1364
    %v1442 = vunpack.c.l.b16 %v1365
    %v1443 = vunpack.c.h.b16 %v1365
    %v1444 = vunpack.c.l.b16 %v1366
    %v1445 = vunpack.c.l.b16 %v1367
    %v1446 = vunpack.c.h.b16 %v1367
    %v1447 = vunpack.c.l.b16 %v1368
    %v1448 = vunpack.c.l.b16 %v1369
    %v1449 = vunpack.c.h.b16 %v1369
    %v1450 = vunpack.c.l.b16 %v1370
    %v1451 = vpack.c.b16 %v1406, %v1403
    %v1452 = vpack.c.b16 %v1407, %v1404
    %v1453 = vpack.c.b16 %v1408, %v1405
    %v1454 = vpack.c.b16 %v1412, %v1409
    %v1455 = vpack.c.b16 %v1413, %v1410
    %v1456 = vpack.c.b16 %v1414, %v1411
    %v1457 = vpack.c.b16 %v1418, %v1415
    %v1458 = vpack.c.b16 %v1419, %v1416
    %v1459 = vpack.c.b16 %v1420, %v1417
    %v1460 = vpack.c.b16 %v1424, %v1421
    %v1461 = vpack.c.b16 %v1425, %v1422
    %v1462 = vpack.c.b16 %v1426, %v1423
    %v1463 = vpack.c.b16 %v1430, %v1427
    %v1464 = vpack.c.b16 %v1431, %v1428
    %v1465 = vpack.c.b16 %v1432, %v1429
    %v1466 = vpack.c.b16 %v1436, %v1433
    %v1467 = vpack.c.b16 %v1437, %v1434
    %v1468 = vpack.c.b16 %v1438, %v1435
    %v1469 = vpack.c.b16 %v1442, %v1439
    %v1470 = vpack.c.b16 %v1443, %v1440
    %v1471 = vpack.c.b16 %v1444, %v1441
    %v1472 = vpack.c.b16 %v1448, %v1445
    %v1473 = vpack.c.b16 %v1449, %v1446
    %v1474 = vpack.c.b16 %v1450, %v1447
    %1499 = vmatprep.subr.bf16.mxu0 %v1473
    %1500 = vmatpush1.bf16.msra.mxu0 %v1472
    %1501 = vmatprep.subr.bf16.mxu0 %v1470
    %1502 = vmatpush1.bf16.msra.mxu0 %v1469
    %1503 = vmatprep.subr.bf16.mxu0 %v1467
    %1504 = vmatpush1.bf16.msra.mxu0 %v1466
    %1505 = vmatprep.subr.bf16.mxu0 %v1464
    %1506 = vmatpush1.bf16.msra.mxu0 %v1463
    %1507 = vmatprep.subr.bf16.mxu0 %v1461
    %1508 = vmatpush1.bf16.msra.mxu0 %v1460
    %1509 = vmatprep.subr.bf16.mxu0 %v1458
    %1510 = vmatpush1.bf16.msra.mxu0 %v1457
    %1511 = vmatprep.subr.bf16.mxu0 %v1455
    %1512 = vmatpush1.bf16.msra.mxu0 %v1454
    %1513 = vmatprep.subr.bf16.mxu0 %v1452
    %1514 = vmatpush1.bf16.msra.mxu0 %v1451
    %1515 = vmatprep.subr.bf16.mxu0 0
    %1516 = vmatpush2.bf16.msra.mxu0 0
    %1517 = vmatprep.subr.bf16.mxu0 0
    %1518 = vmatpush2.bf16.msra.mxu0 0
    %1519 = vmatprep.subr.bf16.mxu0 0
    %1520 = vmatpush2.bf16.msra.mxu0 0
    %1521 = vmatprep.subr.bf16.mxu0 0
    %1522 = vmatpush2.bf16.msra.mxu0 0
    %1523 = vmatprep.subr.bf16.mxu0 0
    %1524 = vmatpush2.bf16.msra.mxu0 0
    %1525 = vmatprep.subr.bf16.mxu0 0
    %1526 = vmatpush2.bf16.msra.mxu0 0
    %1527 = vmatprep.subr.bf16.mxu0 0
    %1528 = vmatpush2.bf16.msra.mxu0 0
    %1529 = vmatprep.subr.bf16.mxu0 0
    %1530 = vmatpush2.bf16.msra.mxu0 0
    %1531 = vmatprep.mubr.bf16.mxu0 0
    %1532 = vmatmul.mubr.bf16.gmra.mxu0 %v1338
    %v1533 = vpop.f32.mrf.mxu0
    %v1534 = vadd.f32 %v657, %v1533
    %v1535 = vpop.f32.mrf.mxu0
    %v1536 = vadd.f32 %v661, %v1535
    %v1537 = vpop.f32.mrf.mxu0
    %v1538 = vpop.f32.mrf.mxu0
    %1539 = vdwg.mxu0
    %1540 = vmatprep.subr.bf16.mxu0 0
    %1541 = vmatpush1.bf16.msra.mxu0 %v1474
    %1542 = vmatprep.subr.bf16.mxu0 0
    %1543 = vmatpush1.bf16.msra.mxu0 %v1471
    %1544 = vmatprep.subr.bf16.mxu0 0
    %1545 = vmatpush1.bf16.msra.mxu0 %v1468
    %1546 = vmatprep.subr.bf16.mxu0 0
    %1547 = vmatpush1.bf16.msra.mxu0 %v1465
    %1548 = vmatprep.subr.bf16.mxu0 0
    %1549 = vmatpush1.bf16.msra.mxu0 %v1462
    %1550 = vmatprep.subr.bf16.mxu0 0
    %1551 = vmatpush1.bf16.msra.mxu0 %v1459
    %1552 = vmatprep.subr.bf16.mxu0 0
    %1553 = vmatpush1.bf16.msra.mxu0 %v1456
    %1554 = vmatprep.subr.bf16.mxu0 0
    %1555 = vmatpush1.bf16.msra.mxu0 %v1453
    %1556 = vmatprep.subr.bf16.mxu0 0
    %1557 = vmatpush2.bf16.msra.mxu0 0
    %1558 = vmatprep.subr.bf16.mxu0 0
    %1559 = vmatpush2.bf16.msra.mxu0 0
    %1560 = vmatprep.subr.bf16.mxu0 0
    %1561 = vmatpush2.bf16.msra.mxu0 0
    %1562 = vmatprep.subr.bf16.mxu0 0
    %1563 = vmatpush2.bf16.msra.mxu0 0
    %1564 = vmatprep.subr.bf16.mxu0 0
    %1565 = vmatpush2.bf16.msra.mxu0 0
    %1566 = vmatprep.subr.bf16.mxu0 0
    %1567 = vmatpush2.bf16.msra.mxu0 0
    %1568 = vmatprep.subr.bf16.mxu0 0
    %1569 = vmatpush2.bf16.msra.mxu0 0
    %1570 = vmatprep.subr.bf16.mxu0 0
    %1571 = vmatpush2.bf16.msra.mxu0 0
    %1572 = vmatprep.mubr.bf16.mxu0 0
    %1573 = vmatmul.mubr.bf16.gmra.mxu0 %v1338
    %v1574 = vpop.f32.mrf.mxu0
    %v1575 = vadd.f32 %v665, %v1574
    %v1576 = vpop.f32.mrf.mxu0
    %v1577 = vpop.f32.mrf.mxu0
    %v1578 = vpop.f32.mrf.mxu0
    %1579 = vdwg.mxu0
    %v1580 = vadd.f32 %v1337, %v1534
    %v1581 = vxor.u32 %v1580, 2147483648
    %v1582 = vmul.f32 %v1581, 1.442695
    %v1583 = vpow.pop %v1582
    %v1584 = vadd.f32 %v1583, 1.0
    %v1585 = vrcp.pop %v1584
    %v1586 = vmul.f32 1.0, %v1585
    %v1588 = vrot.slane %v1337, 1
    %v1590 = vadd.f32 %v1588, %v1536
    %v1591 = vxor.u32 %v1590, 2147483648
    %v1592 = vmul.f32 %v1591, 1.442695
    %v1593 = vpow.pop %v1592
    %v1594 = vadd.f32 %v1593, 1.0
    %v1595 = vrcp.pop %v1594
    %v1596 = vmul.f32 1.0, %v1595
    %v1597 = vmul.f32 %v1586, %v1575
    %v1598 = vrot.slane %v1337, 2
    %v1600 = vadd.f32 %v1598, %v1597
    %v1601 = vtanh.pop %v1600
    %v1602 = vsub.f32 1.0, %v1596
    %v1603 = vmul.f32 %v1602, %v1601
    %v1604 = vmul.f32 %v1596, %v1335
    %v1605 = vadd.f32 %v1603, %v1604
    %p1606 = scmp.gt.s32.totalorder %s195, 3
    %s1607 = scalar_select %p1606, 1, 0
    %v1608 = vstv %s1607
    %vm1609 = vcmp.eq.s32.totalorder %v1608, 1
    %v1610 = vsel %vm1609, %v1605, 0.0
    %1611 = vst [vmem:[#allocation4 + $0x3] sm:$0x1] %v1610
    %v1612 = vsel %vm1609, %v1605, %v1335
    %s1613 = scalar_lea.vmem [#allocation3], 4
    %v1614 = vld [vmem:[%s1613] ss:$8 sm:$0x7]
    %v1615 = vpack.c.bf16 %v1612, %v1612
    %v1616 = vld [vmem:[#allocation14] sm:$0xff]
    %v1617 = vld [vmem:[#allocation14 + $0x8] sm:$0xf]
    %v1618 = vld [vmem:[#allocation14 + $0xc] sm:$0xff]
    %v1619 = vld [vmem:[#allocation14 + $0x14] sm:$0xf]
    %v1620 = vld [vmem:[#allocation14 + $0x18] sm:$0xff]
    %v1621 = vld [vmem:[#allocation14 + $0x20] sm:$0xf]
    %v1622 = vld [vmem:[#allocation14 + $0x24] sm:$0xff]
    %v1623 = vld [vmem:[#allocation14 + $0x2c] sm:$0xf]
    %v1624 = vld [vmem:[#allocation14 + $0x30] sm:$0xff]
    %v1625 = vld [vmem:[#allocation14 + $0x38] sm:$0xf]
    %v1626 = vld [vmem:[#allocation14 + $0x3c] sm:$0xff]
    %v1627 = vld [vmem:[#allocation14 + $0x44] sm:$0xf]
    %v1628 = vld [vmem:[#allocation14 + $0x48] sm:$0xff]
    %v1629 = vld [vmem:[#allocation14 + $0x50] sm:$0xf]
    %v1630 = vld [vmem:[#allocation14 + $0x54] sm:$0xff]
    %v1631 = vld [vmem:[#allocation14 + $0x5c] sm:$0xf]
    %v1632 = vld [vmem:[#allocation14 + $0x60] sm:$0xff]
    %v1633 = vld [vmem:[#allocation14 + $0x68] sm:$0xf]
    %v1634 = vld [vmem:[#allocation14 + $0x6c] sm:$0xff]
    %v1635 = vld [vmem:[#allocation14 + $0x74] sm:$0xf]
    %v1636 = vld [vmem:[#allocation14 + $0x78] sm:$0xff]
    %v1637 = vld [vmem:[#allocation14 + $0x80] sm:$0xf]
    %v1638 = vld [vmem:[#allocation14 + $0x84] sm:$0xff]
    %v1639 = vld [vmem:[#allocation14 + $0x8c] sm:$0xf]
    %v1640 = vld [vmem:[#allocation14 + $0x90] sm:$0xff]
    %v1641 = vld [vmem:[#allocation14 + $0x98] sm:$0xf]
    %v1642 = vld [vmem:[#allocation14 + $0x9c] sm:$0xff]
    %v1643 = vld [vmem:[#allocation14 + $0xa4] sm:$0xf]
    %v1644 = vld [vmem:[#allocation14 + $0xa8] sm:$0xff]
    %v1645 = vld [vmem:[#allocation14 + $0xb0] sm:$0xf]
    %v1646 = vld [vmem:[#allocation14 + $0xb4] sm:$0xff]
    %v1647 = vld [vmem:[#allocation14 + $0xbc] sm:$0xf]
    %v1680 = vunpack.c.l.b16 %v1616
    %v1681 = vunpack.c.h.b16 %v1616
    %v1682 = vunpack.c.l.b16 %v1617
    %v1683 = vunpack.c.l.b16 %v1618
    %v1684 = vunpack.c.h.b16 %v1618
    %v1685 = vunpack.c.l.b16 %v1619
    %v1686 = vunpack.c.l.b16 %v1620
    %v1687 = vunpack.c.h.b16 %v1620
    %v1688 = vunpack.c.l.b16 %v1621
    %v1689 = vunpack.c.l.b16 %v1622
    %v1690 = vunpack.c.h.b16 %v1622
    %v1691 = vunpack.c.l.b16 %v1623
    %v1692 = vunpack.c.l.b16 %v1624
    %v1693 = vunpack.c.h.b16 %v1624
    %v1694 = vunpack.c.l.b16 %v1625
    %v1695 = vunpack.c.l.b16 %v1626
    %v1696 = vunpack.c.h.b16 %v1626
    %v1697 = vunpack.c.l.b16 %v1627
    %v1698 = vunpack.c.l.b16 %v1628
    %v1699 = vunpack.c.h.b16 %v1628
    %v1700 = vunpack.c.l.b16 %v1629
    %v1701 = vunpack.c.l.b16 %v1630
    %v1702 = vunpack.c.h.b16 %v1630
    %v1703 = vunpack.c.l.b16 %v1631
    %v1704 = vunpack.c.l.b16 %v1632
    %v1705 = vunpack.c.h.b16 %v1632
    %v1706 = vunpack.c.l.b16 %v1633
    %v1707 = vunpack.c.l.b16 %v1634
    %v1708 = vunpack.c.h.b16 %v1634
    %v1709 = vunpack.c.l.b16 %v1635
    %v1710 = vunpack.c.l.b16 %v1636
    %v1711 = vunpack.c.h.b16 %v1636
    %v1712 = vunpack.c.l.b16 %v1637
    %v1713 = vunpack.c.l.b16 %v1638
    %v1714 = vunpack.c.h.b16 %v1638
    %v1715 = vunpack.c.l.b16 %v1639
    %v1716 = vunpack.c.l.b16 %v1640
    %v1717 = vunpack.c.h.b16 %v1640
    %v1718 = vunpack.c.l.b16 %v1641
    %v1719 = vunpack.c.l.b16 %v1642
    %v1720 = vunpack.c.h.b16 %v1642
    %v1721 = vunpack.c.l.b16 %v1643
    %v1722 = vunpack.c.l.b16 %v1644
    %v1723 = vunpack.c.h.b16 %v1644
    %v1724 = vunpack.c.l.b16 %v1645
    %v1725 = vunpack.c.l.b16 %v1646
    %v1726 = vunpack.c.h.b16 %v1646
    %v1727 = vunpack.c.l.b16 %v1647
    %v1728 = vpack.c.b16 %v1683, %v1680
    %v1729 = vpack.c.b16 %v1684, %v1681
    %v1730 = vpack.c.b16 %v1685, %v1682
    %v1731 = vpack.c.b16 %v1689, %v1686
    %v1732 = vpack.c.b16 %v1690, %v1687
    %v1733 = vpack.c.b16 %v1691, %v1688
    %v1734 = vpack.c.b16 %v1695, %v1692
    %v1735 = vpack.c.b16 %v1696, %v1693
    %v1736 = vpack.c.b16 %v1697, %v1694
    %v1737 = vpack.c.b16 %v1701, %v1698
    %v1738 = vpack.c.b16 %v1702, %v1699
    %v1739 = vpack.c.b16 %v1703, %v1700
    %v1740 = vpack.c.b16 %v1707, %v1704
    %v1741 = vpack.c.b16 %v1708, %v1705
    %v1742 = vpack.c.b16 %v1709, %v1706
    %v1743 = vpack.c.b16 %v1713, %v1710
    %v1744 = vpack.c.b16 %v1714, %v1711
    %v1745 = vpack.c.b16 %v1715, %v1712
    %v1746 = vpack.c.b16 %v1719, %v1716
    %v1747 = vpack.c.b16 %v1720, %v1717
    %v1748 = vpack.c.b16 %v1721, %v1718
    %v1749 = vpack.c.b16 %v1725, %v1722
    %v1750 = vpack.c.b16 %v1726, %v1723
    %v1751 = vpack.c.b16 %v1727, %v1724
    %1776 = vmatprep.subr.bf16.mxu0 %v1750
    %1777 = vmatpush1.bf16.msra.mxu0 %v1749
    %1778 = vmatprep.subr.bf16.mxu0 %v1747
    %1779 = vmatpush1.bf16.msra.mxu0 %v1746
    %1780 = vmatprep.subr.bf16.mxu0 %v1744
    %1781 = vmatpush1.bf16.msra.mxu0 %v1743
    %1782 = vmatprep.subr.bf16.mxu0 %v1741
    %1783 = vmatpush1.bf16.msra.mxu0 %v1740
    %1784 = vmatprep.subr.bf16.mxu0 %v1738
    %1785 = vmatpush1.bf16.msra.mxu0 %v1737
    %1786 = vmatprep.subr.bf16.mxu0 %v1735
    %1787 = vmatpush1.bf16.msra.mxu0 %v1734
    %1788 = vmatprep.subr.bf16.mxu0 %v1732
    %1789 = vmatpush1.bf16.msra.mxu0 %v1731
    %1790 = vmatprep.subr.bf16.mxu0 %v1729
    %1791 = vmatpush1.bf16.msra.mxu0 %v1728
    %1792 = vmatprep.subr.bf16.mxu0 0
    %1793 = vmatpush2.bf16.msra.mxu0 0
    %1794 = vmatprep.subr.bf16.mxu0 0
    %1795 = vmatpush2.bf16.msra.mxu0 0
    %1796 = vmatprep.subr.bf16.mxu0 0
    %1797 = vmatpush2.bf16.msra.mxu0 0
    %1798 = vmatprep.subr.bf16.mxu0 0
    %1799 = vmatpush2.bf16.msra.mxu0 0
    %1800 = vmatprep.subr.bf16.mxu0 0
    %1801 = vmatpush2.bf16.msra.mxu0 0
    %1802 = vmatprep.subr.bf16.mxu0 0
    %1803 = vmatpush2.bf16.msra.mxu0 0
    %1804 = vmatprep.subr.bf16.mxu0 0
    %1805 = vmatpush2.bf16.msra.mxu0 0
    %1806 = vmatprep.subr.bf16.mxu0 0
    %1807 = vmatpush2.bf16.msra.mxu0 0
    %1808 = vmatprep.mubr.bf16.mxu0 0
    %1809 = vmatmul.mubr.bf16.gmra.mxu0 %v1615
    %v1810 = vpop.f32.mrf.mxu0
    %v1811 = vadd.f32 %v657, %v1810
    %v1812 = vpop.f32.mrf.mxu0
    %v1813 = vadd.f32 %v661, %v1812
    %v1814 = vpop.f32.mrf.mxu0
    %v1815 = vpop.f32.mrf.mxu0
    %1816 = vdwg.mxu0
    %1817 = vmatprep.subr.bf16.mxu0 0
    %1818 = vmatpush1.bf16.msra.mxu0 %v1751
    %1819 = vmatprep.subr.bf16.mxu0 0
    %1820 = vmatpush1.bf16.msra.mxu0 %v1748
    %1821 = vmatprep.subr.bf16.mxu0 0
    %1822 = vmatpush1.bf16.msra.mxu0 %v1745
    %1823 = vmatprep.subr.bf16.mxu0 0
    %1824 = vmatpush1.bf16.msra.mxu0 %v1742
    %1825 = vmatprep.subr.bf16.mxu0 0
    %1826 = vmatpush1.bf16.msra.mxu0 %v1739
    %1827 = vmatprep.subr.bf16.mxu0 0
    %1828 = vmatpush1.bf16.msra.mxu0 %v1736
    %1829 = vmatprep.subr.bf16.mxu0 0
    %1830 = vmatpush1.bf16.msra.mxu0 %v1733
    %1831 = vmatprep.subr.bf16.mxu0 0
    %1832 = vmatpush1.bf16.msra.mxu0 %v1730
    %1833 = vmatprep.subr.bf16.mxu0 0
    %1834 = vmatpush2.bf16.msra.mxu0 0
    %1835 = vmatprep.subr.bf16.mxu0 0
    %1836 = vmatpush2.bf16.msra.mxu0 0
    %1837 = vmatprep.subr.bf16.mxu0 0
    %1838 = vmatpush2.bf16.msra.mxu0 0
    %1839 = vmatprep.subr.bf16.mxu0 0
    %1840 = vmatpush2.bf16.msra.mxu0 0
    %1841 = vmatprep.subr.bf16.mxu0 0
    %1842 = vmatpush2.bf16.msra.mxu0 0
    %1843 = vmatprep.subr.bf16.mxu0 0
    %1844 = vmatpush2.bf16.msra.mxu0 0
    %1845 = vmatprep.subr.bf16.mxu0 0
    %1846 = vmatpush2.bf16.msra.mxu0 0
    %1847 = vmatprep.subr.bf16.mxu0 0
    %1848 = vmatpush2.bf16.msra.mxu0 0
    %1849 = vmatprep.mubr.bf16.mxu0 0
    %1850 = vmatmul.mubr.bf16.gmra.mxu0 %v1615
    %v1851 = vpop.f32.mrf.mxu0
    %v1852 = vadd.f32 %v665, %v1851
    %v1853 = vpop.f32.mrf.mxu0
    %v1854 = vpop.f32.mrf.mxu0
    %v1855 = vpop.f32.mrf.mxu0
    %1856 = vdwg.mxu0
    %v1857 = vadd.f32 %v1614, %v1811
    %v1858 = vxor.u32 %v1857, 2147483648
    %v1859 = vmul.f32 %v1858, 1.442695
    %v1860 = vpow.pop %v1859
    %v1861 = vadd.f32 %v1860, 1.0
    %v1862 = vrcp.pop %v1861
    %v1863 = vmul.f32 1.0, %v1862
    %v1865 = vrot.slane %v1614, 1
    %v1867 = vadd.f32 %v1865, %v1813
    %v1868 = vxor.u32 %v1867, 2147483648
    %v1869 = vmul.f32 %v1868, 1.442695
    %v1870 = vpow.pop %v1869
    %v1871 = vadd.f32 %v1870, 1.0
    %v1872 = vrcp.pop %v1871
    %v1873 = vmul.f32 1.0, %v1872
    %v1874 = vmul.f32 %v1863, %v1852
    %v1875 = vrot.slane %v1614, 2
    %v1877 = vadd.f32 %v1875, %v1874
    %v1878 = vtanh.pop %v1877
    %v1879 = vsub.f32 1.0, %v1873
    %v1880 = vmul.f32 %v1879, %v1878
    %v1881 = vmul.f32 %v1873, %v1612
    %v1882 = vadd.f32 %v1880, %v1881
    %p1883 = scmp.gt.s32.totalorder %s195, 4
    %s1884 = scalar_select %p1883, 1, 0
    %v1885 = vstv %s1884
    %vm1886 = vcmp.eq.s32.totalorder %v1885, 1
    %v1887 = vsel %vm1886, %v1882, 0.0
    %1888 = vst [vmem:[#allocation4 + $0x4] sm:$0x1] %v1887
    %v1889 = vsel %vm1886, %v1882, %v1612
    %s1890 = scalar_lea.vmem [#allocation3], 5
    %v1891 = vld [vmem:[%s1890] ss:$8 sm:$0x7]
    %v1892 = vpack.c.bf16 %v1889, %v1889
    %v1893 = vld [vmem:[#allocation14] sm:$0xff]
    %v1894 = vld [vmem:[#allocation14 + $0x8] sm:$0xf]
    %v1895 = vld [vmem:[#allocation14 + $0xc] sm:$0xff]
    %v1896 = vld [vmem:[#allocation14 + $0x14] sm:$0xf]
    %v1897 = vld [vmem:[#allocation14 + $0x18] sm:$0xff]
    %v1898 = vld [vmem:[#allocation14 + $0x20] sm:$0xf]
    %v1899 = vld [vmem:[#allocation14 + $0x24] sm:$0xff]
    %v1900 = vld [vmem:[#allocation14 + $0x2c] sm:$0xf]
    %v1901 = vld [vmem:[#allocation14 + $0x30] sm:$0xff]
    %v1902 = vld [vmem:[#allocation14 + $0x38] sm:$0xf]
    %v1903 = vld [vmem:[#allocation14 + $0x3c] sm:$0xff]
    %v1904 = vld [vmem:[#allocation14 + $0x44] sm:$0xf]
    %v1905 = vld [vmem:[#allocation14 + $0x48] sm:$0xff]
    %v1906 = vld [vmem:[#allocation14 + $0x50] sm:$0xf]
    %v1907 = vld [vmem:[#allocation14 + $0x54] sm:$0xff]
    %v1908 = vld [vmem:[#allocation14 + $0x5c] sm:$0xf]
    %v1909 = vld [vmem:[#allocation14 + $0x60] sm:$0xff]
    %v1910 = vld [vmem:[#allocation14 + $0x68] sm:$0xf]
    %v1911 = vld [vmem:[#allocation14 + $0x6c] sm:$0xff]
    %v1912 = vld [vmem:[#allocation14 + $0x74] sm:$0xf]
    %v1913 = vld [vmem:[#allocation14 + $0x78] sm:$0xff]
    %v1914 = vld [vmem:[#allocation14 + $0x80] sm:$0xf]
    %v1915 = vld [vmem:[#allocation14 + $0x84] sm:$0xff]
    %v1916 = vld [vmem:[#allocation14 + $0x8c] sm:$0xf]
    %v1917 = vld [vmem:[#allocation14 + $0x90] sm:$0xff]
    %v1918 = vld [vmem:[#allocation14 + $0x98] sm:$0xf]
    %v1919 = vld [vmem:[#allocation14 + $0x9c] sm:$0xff]
    %v1920 = vld [vmem:[#allocation14 + $0xa4] sm:$0xf]
    %v1921 = vld [vmem:[#allocation14 + $0xa8] sm:$0xff]
    %v1922 = vld [vmem:[#allocation14 + $0xb0] sm:$0xf]
    %v1923 = vld [vmem:[#allocation14 + $0xb4] sm:$0xff]
    %v1924 = vld [vmem:[#allocation14 + $0xbc] sm:$0xf]
    %v1957 = vunpack.c.l.b16 %v1893
    %v1958 = vunpack.c.h.b16 %v1893
    %v1959 = vunpack.c.l.b16 %v1894
    %v1960 = vunpack.c.l.b16 %v1895
    %v1961 = vunpack.c.h.b16 %v1895
    %v1962 = vunpack.c.l.b16 %v1896
    %v1963 = vunpack.c.l.b16 %v1897
    %v1964 = vunpack.c.h.b16 %v1897
    %v1965 = vunpack.c.l.b16 %v1898
    %v1966 = vunpack.c.l.b16 %v1899
    %v1967 = vunpack.c.h.b16 %v1899
    %v1968 = vunpack.c.l.b16 %v1900
    %v1969 = vunpack.c.l.b16 %v1901
    %v1970 = vunpack.c.h.b16 %v1901
    %v1971 = vunpack.c.l.b16 %v1902
    %v1972 = vunpack.c.l.b16 %v1903
    %v1973 = vunpack.c.h.b16 %v1903
    %v1974 = vunpack.c.l.b16 %v1904
    %v1975 = vunpack.c.l.b16 %v1905
    %v1976 = vunpack.c.h.b16 %v1905
    %v1977 = vunpack.c.l.b16 %v1906
    %v1978 = vunpack.c.l.b16 %v1907
    %v1979 = vunpack.c.h.b16 %v1907
    %v1980 = vunpack.c.l.b16 %v1908
    %v1981 = vunpack.c.l.b16 %v1909
    %v1982 = vunpack.c.h.b16 %v1909
    %v1983 = vunpack.c.l.b16 %v1910
    %v1984 = vunpack.c.l.b16 %v1911
    %v1985 = vunpack.c.h.b16 %v1911
    %v1986 = vunpack.c.l.b16 %v1912
    %v1987 = vunpack.c.l.b16 %v1913
    %v1988 = vunpack.c.h.b16 %v1913
    %v1989 = vunpack.c.l.b16 %v1914
    %v1990 = vunpack.c.l.b16 %v1915
    %v1991 = vunpack.c.h.b16 %v1915
    %v1992 = vunpack.c.l.b16 %v1916
    %v1993 = vunpack.c.l.b16 %v1917
    %v1994 = vunpack.c.h.b16 %v1917
    %v1995 = vunpack.c.l.b16 %v1918
    %v1996 = vunpack.c.l.b16 %v1919
    %v1997 = vunpack.c.h.b16 %v1919
    %v1998 = vunpack.c.l.b16 %v1920
    %v1999 = vunpack.c.l.b16 %v1921
    %v2000 = vunpack.c.h.b16 %v1921
    %v2001 = vunpack.c.l.b16 %v1922
    %v2002 = vunpack.c.l.b16 %v1923
    %v2003 = vunpack.c.h.b16 %v1923
    %v2004 = vunpack.c.l.b16 %v1924
    %v2005 = vpack.c.b16 %v1960, %v1957
    %v2006 = vpack.c.b16 %v1961, %v1958
    %v2007 = vpack.c.b16 %v1962, %v1959
    %v2008 = vpack.c.b16 %v1966, %v1963
    %v2009 = vpack.c.b16 %v1967, %v1964
    %v2010 = vpack.c.b16 %v1968, %v1965
    %v2011 = vpack.c.b16 %v1972, %v1969
    %v2012 = vpack.c.b16 %v1973, %v1970
    %v2013 = vpack.c.b16 %v1974, %v1971
    %v2014 = vpack.c.b16 %v1978, %v1975
    %v2015 = vpack.c.b16 %v1979, %v1976
    %v2016 = vpack.c.b16 %v1980, %v1977
    %v2017 = vpack.c.b16 %v1984, %v1981
    %v2018 = vpack.c.b16 %v1985, %v1982
    %v2019 = vpack.c.b16 %v1986, %v1983
    %v2020 = vpack.c.b16 %v1990, %v1987
    %v2021 = vpack.c.b16 %v1991, %v1988
    %v2022 = vpack.c.b16 %v1992, %v1989
    %v2023 = vpack.c.b16 %v1996, %v1993
    %v2024 = vpack.c.b16 %v1997, %v1994
    %v2025 = vpack.c.b16 %v1998, %v1995
    %v2026 = vpack.c.b16 %v2002, %v1999
    %v2027 = vpack.c.b16 %v2003, %v2000
    %v2028 = vpack.c.b16 %v2004, %v2001
    %2053 = vmatprep.subr.bf16.mxu0 %v2027
    %2054 = vmatpush1.bf16.msra.mxu0 %v2026
    %2055 = vmatprep.subr.bf16.mxu0 %v2024
    %2056 = vmatpush1.bf16.msra.mxu0 %v2023
    %2057 = vmatprep.subr.bf16.mxu0 %v2021
    %2058 = vmatpush1.bf16.msra.mxu0 %v2020
    %2059 = vmatprep.subr.bf16.mxu0 %v2018
    %2060 = vmatpush1.bf16.msra.mxu0 %v2017
    %2061 = vmatprep.subr.bf16.mxu0 %v2015
    %2062 = vmatpush1.bf16.msra.mxu0 %v2014
    %2063 = vmatprep.subr.bf16.mxu0 %v2012
    %2064 = vmatpush1.bf16.msra.mxu0 %v2011
    %2065 = vmatprep.subr.bf16.mxu0 %v2009
    %2066 = vmatpush1.bf16.msra.mxu0 %v2008
    %2067 = vmatprep.subr.bf16.mxu0 %v2006
    %2068 = vmatpush1.bf16.msra.mxu0 %v2005
    %2069 = vmatprep.subr.bf16.mxu0 0
    %2070 = vmatpush2.bf16.msra.mxu0 0
    %2071 = vmatprep.subr.bf16.mxu0 0
    %2072 = vmatpush2.bf16.msra.mxu0 0
    %2073 = vmatprep.subr.bf16.mxu0 0
    %2074 = vmatpush2.bf16.msra.mxu0 0
    %2075 = vmatprep.subr.bf16.mxu0 0
    %2076 = vmatpush2.bf16.msra.mxu0 0
    %2077 = vmatprep.subr.bf16.mxu0 0
    %2078 = vmatpush2.bf16.msra.mxu0 0
    %2079 = vmatprep.subr.bf16.mxu0 0
    %2080 = vmatpush2.bf16.msra.mxu0 0
    %2081 = vmatprep.subr.bf16.mxu0 0
    %2082 = vmatpush2.bf16.msra.mxu0 0
    %2083 = vmatprep.subr.bf16.mxu0 0
    %2084 = vmatpush2.bf16.msra.mxu0 0
    %2085 = vmatprep.mubr.bf16.mxu0 0
    %2086 = vmatmul.mubr.bf16.gmra.mxu0 %v1892
    %v2087 = vpop.f32.mrf.mxu0
    %v2088 = vadd.f32 %v657, %v2087
    %v2089 = vpop.f32.mrf.mxu0
    %v2090 = vadd.f32 %v661, %v2089
    %v2091 = vpop.f32.mrf.mxu0
    %v2092 = vpop.f32.mrf.mxu0
    %2093 = vdwg.mxu0
    %2094 = vmatprep.subr.bf16.mxu0 0
    %2095 = vmatpush1.bf16.msra.mxu0 %v2028
    %2096 = vmatprep.subr.bf16.mxu0 0
    %2097 = vmatpush1.bf16.msra.mxu0 %v2025
    %2098 = vmatprep.subr.bf16.mxu0 0
    %2099 = vmatpush1.bf16.msra.mxu0 %v2022
    %2100 = vmatprep.subr.bf16.mxu0 0
    %2101 = vmatpush1.bf16.msra.mxu0 %v2019
    %2102 = vmatprep.subr.bf16.mxu0 0
    %2103 = vmatpush1.bf16.msra.mxu0 %v2016
    %2104 = vmatprep.subr.bf16.mxu0 0
    %2105 = vmatpush1.bf16.msra.mxu0 %v2013
    %2106 = vmatprep.subr.bf16.mxu0 0
    %2107 = vmatpush1.bf16.msra.mxu0 %v2010
    %2108 = vmatprep.subr.bf16.mxu0 0
    %2109 = vmatpush1.bf16.msra.mxu0 %v2007
    %2110 = vmatprep.subr.bf16.mxu0 0
    %2111 = vmatpush2.bf16.msra.mxu0 0
    %2112 = vmatprep.subr.bf16.mxu0 0
    %2113 = vmatpush2.bf16.msra.mxu0 0
    %2114 = vmatprep.subr.bf16.mxu0 0
    %2115 = vmatpush2.bf16.msra.mxu0 0
    %2116 = vmatprep.subr.bf16.mxu0 0
    %2117 = vmatpush2.bf16.msra.mxu0 0
    %2118 = vmatprep.subr.bf16.mxu0 0
    %2119 = vmatpush2.bf16.msra.mxu0 0
    %2120 = vmatprep.subr.bf16.mxu0 0
    %2121 = vmatpush2.bf16.msra.mxu0 0
    %2122 = vmatprep.subr.bf16.mxu0 0
    %2123 = vmatpush2.bf16.msra.mxu0 0
    %2124 = vmatprep.subr.bf16.mxu0 0
    %2125 = vmatpush2.bf16.msra.mxu0 0
    %2126 = vmatprep.mubr.bf16.mxu0 0
    %2127 = vmatmul.mubr.bf16.gmra.mxu0 %v1892
    %v2128 = vpop.f32.mrf.mxu0
    %v2129 = vadd.f32 %v665, %v2128
    %v2130 = vpop.f32.mrf.mxu0
    %v2131 = vpop.f32.mrf.mxu0
    %v2132 = vpop.f32.mrf.mxu0
    %2133 = vdwg.mxu0
    %v2134 = vadd.f32 %v1891, %v2088
    %v2135 = vxor.u32 %v2134, 2147483648
    %v2136 = vmul.f32 %v2135, 1.442695
    %v2137 = vpow.pop %v2136
    %v2138 = vadd.f32 %v2137, 1.0
    %v2139 = vrcp.pop %v2138
    %v2140 = vmul.f32 1.0, %v2139
    %v2142 = vrot.slane %v1891, 1
    %v2144 = vadd.f32 %v2142, %v2090
    %v2145 = vxor.u32 %v2144, 2147483648
    %v2146 = vmul.f32 %v2145, 1.442695
    %v2147 = vpow.pop %v2146
    %v2148 = vadd.f32 %v2147, 1.0
    %v2149 = vrcp.pop %v2148
    %v2150 = vmul.f32 1.0, %v2149
    %v2151 = vmul.f32 %v2140, %v2129
    %v2152 = vrot.slane %v1891, 2
    %v2154 = vadd.f32 %v2152, %v2151
    %v2155 = vtanh.pop %v2154
    %v2156 = vsub.f32 1.0, %v2150
    %v2157 = vmul.f32 %v2156, %v2155
    %v2158 = vmul.f32 %v2150, %v1889
    %v2159 = vadd.f32 %v2157, %v2158
    %p2160 = scmp.gt.s32.totalorder %s195, 5
    %s2161 = scalar_select %p2160, 1, 0
    %v2162 = vstv %s2161
    %vm2163 = vcmp.eq.s32.totalorder %v2162, 1
    %v2164 = vsel %vm2163, %v2159, 0.0
    %2165 = vst [vmem:[#allocation4 + $0x5] sm:$0x1] %v2164
    %v2166 = vsel %vm2163, %v2159, %v1889
    %s2167 = scalar_lea.vmem [#allocation3], 6
    %v2168 = vld [vmem:[%s2167] ss:$8 sm:$0x7]
    %v2169 = vpack.c.bf16 %v2166, %v2166
    %v2170 = vld [vmem:[#allocation14] sm:$0xff]
    %v2171 = vld [vmem:[#allocation14 + $0x8] sm:$0xf]
    %v2172 = vld [vmem:[#allocation14 + $0xc] sm:$0xff]
    %v2173 = vld [vmem:[#allocation14 + $0x14] sm:$0xf]
    %v2174 = vld [vmem:[#allocation14 + $0x18] sm:$0xff]
    %v2175 = vld [vmem:[#allocation14 + $0x20] sm:$0xf]
    %v2176 = vld [vmem:[#allocation14 + $0x24] sm:$0xff]
    %v2177 = vld [vmem:[#allocation14 + $0x2c] sm:$0xf]
    %v2178 = vld [vmem:[#allocation14 + $0x30] sm:$0xff]
    %v2179 = vld [vmem:[#allocation14 + $0x38] sm:$0xf]
    %v2180 = vld [vmem:[#allocation14 + $0x3c] sm:$0xff]
    %v2181 = vld [vmem:[#allocation14 + $0x44] sm:$0xf]
    %v2182 = vld [vmem:[#allocation14 + $0x48] sm:$0xff]
    %v2183 = vld [vmem:[#allocation14 + $0x50] sm:$0xf]
    %v2184 = vld [vmem:[#allocation14 + $0x54] sm:$0xff]
    %v2185 = vld [vmem:[#allocation14 + $0x5c] sm:$0xf]
    %v2186 = vld [vmem:[#allocation14 + $0x60] sm:$0xff]
    %v2187 = vld [vmem:[#allocation14 + $0x68] sm:$0xf]
    %v2188 = vld [vmem:[#allocation14 + $0x6c] sm:$0xff]
    %v2189 = vld [vmem:[#allocation14 + $0x74] sm:$0xf]
    %v2190 = vld [vmem:[#allocation14 + $0x78] sm:$0xff]
    %v2191 = vld [vmem:[#allocation14 + $0x80] sm:$0xf]
    %v2192 = vld [vmem:[#allocation14 + $0x84] sm:$0xff]
    %v2193 = vld [vmem:[#allocation14 + $0x8c] sm:$0xf]
    %v2194 = vld [vmem:[#allocation14 + $0x90] sm:$0xff]
    %v2195 = vld [vmem:[#allocation14 + $0x98] sm:$0xf]
    %v2196 = vld [vmem:[#allocation14 + $0x9c] sm:$0xff]
    %v2197 = vld [vmem:[#allocation14 + $0xa4] sm:$0xf]
    %v2198 = vld [vmem:[#allocation14 + $0xa8] sm:$0xff]
    %v2199 = vld [vmem:[#allocation14 + $0xb0] sm:$0xf]
    %v2200 = vld [vmem:[#allocation14 + $0xb4] sm:$0xff]
    %v2201 = vld [vmem:[#allocation14 + $0xbc] sm:$0xf]
    %v2234 = vunpack.c.l.b16 %v2170
    %v2235 = vunpack.c.h.b16 %v2170
    %v2236 = vunpack.c.l.b16 %v2171
    %v2237 = vunpack.c.l.b16 %v2172
    %v2238 = vunpack.c.h.b16 %v2172
    %v2239 = vunpack.c.l.b16 %v2173
    %v2240 = vunpack.c.l.b16 %v2174
    %v2241 = vunpack.c.h.b16 %v2174
    %v2242 = vunpack.c.l.b16 %v2175
    %v2243 = vunpack.c.l.b16 %v2176
    %v2244 = vunpack.c.h.b16 %v2176
    %v2245 = vunpack.c.l.b16 %v2177
    %v2246 = vunpack.c.l.b16 %v2178
    %v2247 = vunpack.c.h.b16 %v2178
    %v2248 = vunpack.c.l.b16 %v2179
    %v2249 = vunpack.c.l.b16 %v2180
    %v2250 = vunpack.c.h.b16 %v2180
    %v2251 = vunpack.c.l.b16 %v2181
    %v2252 = vunpack.c.l.b16 %v2182
    %v2253 = vunpack.c.h.b16 %v2182
    %v2254 = vunpack.c.l.b16 %v2183
    %v2255 = vunpack.c.l.b16 %v2184
    %v2256 = vunpack.c.h.b16 %v2184
    %v2257 = vunpack.c.l.b16 %v2185
    %v2258 = vunpack.c.l.b16 %v2186
    %v2259 = vunpack.c.h.b16 %v2186
    %v2260 = vunpack.c.l.b16 %v2187
    %v2261 = vunpack.c.l.b16 %v2188
    %v2262 = vunpack.c.h.b16 %v2188
    %v2263 = vunpack.c.l.b16 %v2189
    %v2264 = vunpack.c.l.b16 %v2190
    %v2265 = vunpack.c.h.b16 %v2190
    %v2266 = vunpack.c.l.b16 %v2191
    %v2267 = vunpack.c.l.b16 %v2192
    %v2268 = vunpack.c.h.b16 %v2192
    %v2269 = vunpack.c.l.b16 %v2193
    %v2270 = vunpack.c.l.b16 %v2194
    %v2271 = vunpack.c.h.b16 %v2194
    %v2272 = vunpack.c.l.b16 %v2195
    %v2273 = vunpack.c.l.b16 %v2196
    %v2274 = vunpack.c.h.b16 %v2196
    %v2275 = vunpack.c.l.b16 %v2197
    %v2276 = vunpack.c.l.b16 %v2198
    %v2277 = vunpack.c.h.b16 %v2198
    %v2278 = vunpack.c.l.b16 %v2199
    %v2279 = vunpack.c.l.b16 %v2200
    %v2280 = vunpack.c.h.b16 %v2200
    %v2281 = vunpack.c.l.b16 %v2201
    %v2282 = vpack.c.b16 %v2237, %v2234
    %v2283 = vpack.c.b16 %v2238, %v2235
    %v2284 = vpack.c.b16 %v2239, %v2236
    %v2285 = vpack.c.b16 %v2243, %v2240
    %v2286 = vpack.c.b16 %v2244, %v2241
    %v2287 = vpack.c.b16 %v2245, %v2242
    %v2288 = vpack.c.b16 %v2249, %v2246
    %v2289 = vpack.c.b16 %v2250, %v2247
    %v2290 = vpack.c.b16 %v2251, %v2248
    %v2291 = vpack.c.b16 %v2255, %v2252
    %v2292 = vpack.c.b16 %v2256, %v2253
    %v2293 = vpack.c.b16 %v2257, %v2254
    %v2294 = vpack.c.b16 %v2261, %v2258
    %v2295 = vpack.c.b16 %v2262, %v2259
    %v2296 = vpack.c.b16 %v2263, %v2260
    %v2297 = vpack.c.b16 %v2267, %v2264
    %v2298 = vpack.c.b16 %v2268, %v2265
    %v2299 = vpack.c.b16 %v2269, %v2266
    %v2300 = vpack.c.b16 %v2273, %v2270
    %v2301 = vpack.c.b16 %v2274, %v2271
    %v2302 = vpack.c.b16 %v2275, %v2272
    %v2303 = vpack.c.b16 %v2279, %v2276
    %v2304 = vpack.c.b16 %v2280, %v2277
    %v2305 = vpack.c.b16 %v2281, %v2278
    %2330 = vmatprep.subr.bf16.mxu0 %v2304
    %2331 = vmatpush1.bf16.msra.mxu0 %v2303
    %2332 = vmatprep.subr.bf16.mxu0 %v2301
    %2333 = vmatpush1.bf16.msra.mxu0 %v2300
    %2334 = vmatprep.subr.bf16.mxu0 %v2298
    %2335 = vmatpush1.bf16.msra.mxu0 %v2297
    %2336 = vmatprep.subr.bf16.mxu0 %v2295
    %2337 = vmatpush1.bf16.msra.mxu0 %v2294
    %2338 = vmatprep.subr.bf16.mxu0 %v2292
    %2339 = vmatpush1.bf16.msra.mxu0 %v2291
    %2340 = vmatprep.subr.bf16.mxu0 %v2289
    %2341 = vmatpush1.bf16.msra.mxu0 %v2288
    %2342 = vmatprep.subr.bf16.mxu0 %v2286
    %2343 = vmatpush1.bf16.msra.mxu0 %v2285
    %2344 = vmatprep.subr.bf16.mxu0 %v2283
    %2345 = vmatpush1.bf16.msra.mxu0 %v2282
    %2346 = vmatprep.subr.bf16.mxu0 0
    %2347 = vmatpush2.bf16.msra.mxu0 0
    %2348 = vmatprep.subr.bf16.mxu0 0
    %2349 = vmatpush2.bf16.msra.mxu0 0
    %2350 = vmatprep.subr.bf16.mxu0 0
    %2351 = vmatpush2.bf16.msra.mxu0 0
    %2352 = vmatprep.subr.bf16.mxu0 0
    %2353 = vmatpush2.bf16.msra.mxu0 0
    %2354 = vmatprep.subr.bf16.mxu0 0
    %2355 = vmatpush2.bf16.msra.mxu0 0
    %2356 = vmatprep.subr.bf16.mxu0 0
    %2357 = vmatpush2.bf16.msra.mxu0 0
    %2358 = vmatprep.subr.bf16.mxu0 0
    %2359 = vmatpush2.bf16.msra.mxu0 0
    %2360 = vmatprep.subr.bf16.mxu0 0
    %2361 = vmatpush2.bf16.msra.mxu0 0
    %2362 = vmatprep.mubr.bf16.mxu0 0
    %2363 = vmatmul.mubr.bf16.gmra.mxu0 %v2169
    %v2364 = vpop.f32.mrf.mxu0
    %v2365 = vadd.f32 %v657, %v2364
    %v2366 = vpop.f32.mrf.mxu0
    %v2367 = vadd.f32 %v661, %v2366
    %v2368 = vpop.f32.mrf.mxu0
    %v2369 = vpop.f32.mrf.mxu0
    %2370 = vdwg.mxu0
    %2371 = vmatprep.subr.bf16.mxu0 0
    %2372 = vmatpush1.bf16.msra.mxu0 %v2305
    %2373 = vmatprep.subr.bf16.mxu0 0
    %2374 = vmatpush1.bf16.msra.mxu0 %v2302
    %2375 = vmatprep.subr.bf16.mxu0 0
    %2376 = vmatpush1.bf16.msra.mxu0 %v2299
    %2377 = vmatprep.subr.bf16.mxu0 0
    %2378 = vmatpush1.bf16.msra.mxu0 %v2296
    %2379 = vmatprep.subr.bf16.mxu0 0
    %2380 = vmatpush1.bf16.msra.mxu0 %v2293
    %2381 = vmatprep.subr.bf16.mxu0 0
    %2382 = vmatpush1.bf16.msra.mxu0 %v2290
    %2383 = vmatprep.subr.bf16.mxu0 0
    %2384 = vmatpush1.bf16.msra.mxu0 %v2287
    %2385 = vmatprep.subr.bf16.mxu0 0
    %2386 = vmatpush1.bf16.msra.mxu0 %v2284
    %2387 = vmatprep.subr.bf16.mxu0 0
    %2388 = vmatpush2.bf16.msra.mxu0 0
    %2389 = vmatprep.subr.bf16.mxu0 0
    %2390 = vmatpush2.bf16.msra.mxu0 0
    %2391 = vmatprep.subr.bf16.mxu0 0
    %2392 = vmatpush2.bf16.msra.mxu0 0
    %2393 = vmatprep.subr.bf16.mxu0 0
    %2394 = vmatpush2.bf16.msra.mxu0 0
    %2395 = vmatprep.subr.bf16.mxu0 0
    %2396 = vmatpush2.bf16.msra.mxu0 0
    %2397 = vmatprep.subr.bf16.mxu0 0
    %2398 = vmatpush2.bf16.msra.mxu0 0
    %2399 = vmatprep.subr.bf16.mxu0 0
    %2400 = vmatpush2.bf16.msra.mxu0 0
    %2401 = vmatprep.subr.bf16.mxu0 0
    %2402 = vmatpush2.bf16.msra.mxu0 0
    %2403 = vmatprep.mubr.bf16.mxu0 0
    %2404 = vmatmul.mubr.bf16.gmra.mxu0 %v2169
    %v2405 = vpop.f32.mrf.mxu0
    %v2406 = vadd.f32 %v665, %v2405
    %v2407 = vpop.f32.mrf.mxu0
    %v2408 = vpop.f32.mrf.mxu0
    %v2409 = vpop.f32.mrf.mxu0
    %2410 = vdwg.mxu0
    %v2411 = vadd.f32 %v2168, %v2365
    %v2412 = vxor.u32 %v2411, 2147483648
    %v2413 = vmul.f32 %v2412, 1.442695
    %v2414 = vpow.pop %v2413
    %v2415 = vadd.f32 %v2414, 1.0
    %v2416 = vrcp.pop %v2415
    %v2417 = vmul.f32 1.0, %v2416
    %v2419 = vrot.slane %v2168, 1
    %v2421 = vadd.f32 %v2419, %v2367
    %v2422 = vxor.u32 %v2421, 2147483648
    %v2423 = vmul.f32 %v2422, 1.442695
    %v2424 = vpow.pop %v2423
    %v2425 = vadd.f32 %v2424, 1.0
    %v2426 = vrcp.pop %v2425
    %v2427 = vmul.f32 1.0, %v2426
    %v2428 = vmul.f32 %v2417, %v2406
    %v2429 = vrot.slane %v2168, 2
    %v2431 = vadd.f32 %v2429, %v2428
    %v2432 = vtanh.pop %v2431
    %v2433 = vsub.f32 1.0, %v2427
    %v2434 = vmul.f32 %v2433, %v2432
    %v2435 = vmul.f32 %v2427, %v2166
    %v2436 = vadd.f32 %v2434, %v2435
    %p2437 = scmp.gt.s32.totalorder %s195, 6
    %s2438 = scalar_select %p2437, 1, 0
    %v2439 = vstv %s2438
    %vm2440 = vcmp.eq.s32.totalorder %v2439, 1
    %v2441 = vsel %vm2440, %v2436, 0.0
    %2442 = vst [vmem:[#allocation4 + $0x6] sm:$0x1] %v2441
    %v2443 = vsel %vm2440, %v2436, %v2166
    %s2444 = scalar_lea.vmem [#allocation3], 7
    %v2445 = vld [vmem:[%s2444] ss:$8 sm:$0x7]
    %v2446 = vpack.c.bf16 %v2443, %v2443
    %v2447 = vld [vmem:[#allocation14] sm:$0xff]
    %v2448 = vld [vmem:[#allocation14 + $0x8] sm:$0xf]
    %v2449 = vld [vmem:[#allocation14 + $0xc] sm:$0xff]
    %v2450 = vld [vmem:[#allocation14 + $0x14] sm:$0xf]
    %v2451 = vld [vmem:[#allocation14 + $0x18] sm:$0xff]
    %v2452 = vld [vmem:[#allocation14 + $0x20] sm:$0xf]
    %v2453 = vld [vmem:[#allocation14 + $0x24] sm:$0xff]
    %v2454 = vld [vmem:[#allocation14 + $0x2c] sm:$0xf]
    %v2455 = vld [vmem:[#allocation14 + $0x30] sm:$0xff]
    %v2456 = vld [vmem:[#allocation14 + $0x38] sm:$0xf]
    %v2457 = vld [vmem:[#allocation14 + $0x3c] sm:$0xff]
    %v2458 = vld [vmem:[#allocation14 + $0x44] sm:$0xf]
    %v2459 = vld [vmem:[#allocation14 + $0x48] sm:$0xff]
    %v2460 = vld [vmem:[#allocation14 + $0x50] sm:$0xf]
    %v2461 = vld [vmem:[#allocation14 + $0x54] sm:$0xff]
    %v2462 = vld [vmem:[#allocation14 + $0x5c] sm:$0xf]
    %v2463 = vld [vmem:[#allocation14 + $0x60] sm:$0xff]
    %v2464 = vld [vmem:[#allocation14 + $0x68] sm:$0xf]
    %v2465 = vld [vmem:[#allocation14 + $0x6c] sm:$0xff]
    %v2466 = vld [vmem:[#allocation14 + $0x74] sm:$0xf]
    %v2467 = vld [vmem:[#allocation14 + $0x78] sm:$0xff]
    %v2468 = vld [vmem:[#allocation14 + $0x80] sm:$0xf]
    %v2469 = vld [vmem:[#allocation14 + $0x84] sm:$0xff]
    %v2470 = vld [vmem:[#allocation14 + $0x8c] sm:$0xf]
    %v2471 = vld [vmem:[#allocation14 + $0x90] sm:$0xff]
    %v2472 = vld [vmem:[#allocation14 + $0x98] sm:$0xf]
    %v2473 = vld [vmem:[#allocation14 + $0x9c] sm:$0xff]
    %v2474 = vld [vmem:[#allocation14 + $0xa4] sm:$0xf]
    %v2475 = vld [vmem:[#allocation14 + $0xa8] sm:$0xff]
    %v2476 = vld [vmem:[#allocation14 + $0xb0] sm:$0xf]
    %v2477 = vld [vmem:[#allocation14 + $0xb4] sm:$0xff]
    %v2478 = vld [vmem:[#allocation14 + $0xbc] sm:$0xf]
    %v2511 = vunpack.c.l.b16 %v2447
    %v2512 = vunpack.c.h.b16 %v2447
    %v2513 = vunpack.c.l.b16 %v2448
    %v2514 = vunpack.c.l.b16 %v2449
    %v2515 = vunpack.c.h.b16 %v2449
    %v2516 = vunpack.c.l.b16 %v2450
    %v2517 = vunpack.c.l.b16 %v2451
    %v2518 = vunpack.c.h.b16 %v2451
    %v2519 = vunpack.c.l.b16 %v2452
    %v2520 = vunpack.c.l.b16 %v2453
    %v2521 = vunpack.c.h.b16 %v2453
    %v2522 = vunpack.c.l.b16 %v2454
    %v2523 = vunpack.c.l.b16 %v2455
    %v2524 = vunpack.c.h.b16 %v2455
    %v2525 = vunpack.c.l.b16 %v2456
    %v2526 = vunpack.c.l.b16 %v2457
    %v2527 = vunpack.c.h.b16 %v2457
    %v2528 = vunpack.c.l.b16 %v2458
    %v2529 = vunpack.c.l.b16 %v2459
    %v2530 = vunpack.c.h.b16 %v2459
    %v2531 = vunpack.c.l.b16 %v2460
    %v2532 = vunpack.c.l.b16 %v2461
    %v2533 = vunpack.c.h.b16 %v2461
    %v2534 = vunpack.c.l.b16 %v2462
    %v2535 = vunpack.c.l.b16 %v2463
    %v2536 = vunpack.c.h.b16 %v2463
    %v2537 = vunpack.c.l.b16 %v2464
    %v2538 = vunpack.c.l.b16 %v2465
    %v2539 = vunpack.c.h.b16 %v2465
    %v2540 = vunpack.c.l.b16 %v2466
    %v2541 = vunpack.c.l.b16 %v2467
    %v2542 = vunpack.c.h.b16 %v2467
    %v2543 = vunpack.c.l.b16 %v2468
    %v2544 = vunpack.c.l.b16 %v2469
    %v2545 = vunpack.c.h.b16 %v2469
    %v2546 = vunpack.c.l.b16 %v2470
    %v2547 = vunpack.c.l.b16 %v2471
    %v2548 = vunpack.c.h.b16 %v2471
    %v2549 = vunpack.c.l.b16 %v2472
    %v2550 = vunpack.c.l.b16 %v2473
    %v2551 = vunpack.c.h.b16 %v2473
    %v2552 = vunpack.c.l.b16 %v2474
    %v2553 = vunpack.c.l.b16 %v2475
    %v2554 = vunpack.c.h.b16 %v2475
    %v2555 = vunpack.c.l.b16 %v2476
    %v2556 = vunpack.c.l.b16 %v2477
    %v2557 = vunpack.c.h.b16 %v2477
    %v2558 = vunpack.c.l.b16 %v2478
    %v2559 = vpack.c.b16 %v2514, %v2511
    %v2560 = vpack.c.b16 %v2515, %v2512
    %v2561 = vpack.c.b16 %v2516, %v2513
    %v2562 = vpack.c.b16 %v2520, %v2517
    %v2563 = vpack.c.b16 %v2521, %v2518
    %v2564 = vpack.c.b16 %v2522, %v2519
    %v2565 = vpack.c.b16 %v2526, %v2523
    %v2566 = vpack.c.b16 %v2527, %v2524
    %v2567 = vpack.c.b16 %v2528, %v2525
    %v2568 = vpack.c.b16 %v2532, %v2529
    %v2569 = vpack.c.b16 %v2533, %v2530
    %v2570 = vpack.c.b16 %v2534, %v2531
    %v2571 = vpack.c.b16 %v2538, %v2535
    %v2572 = vpack.c.b16 %v2539, %v2536
    %v2573 = vpack.c.b16 %v2540, %v2537
    %v2574 = vpack.c.b16 %v2544, %v2541
    %v2575 = vpack.c.b16 %v2545, %v2542
    %v2576 = vpack.c.b16 %v2546, %v2543
    %v2577 = vpack.c.b16 %v2550, %v2547
    %v2578 = vpack.c.b16 %v2551, %v2548
    %v2579 = vpack.c.b16 %v2552, %v2549
    %v2580 = vpack.c.b16 %v2556, %v2553
    %v2581 = vpack.c.b16 %v2557, %v2554
    %v2582 = vpack.c.b16 %v2558, %v2555
    %2607 = vmatprep.subr.bf16.mxu0 %v2581
    %2608 = vmatpush1.bf16.msra.mxu0 %v2580
    %2609 = vmatprep.subr.bf16.mxu0 %v2578
    %2610 = vmatpush1.bf16.msra.mxu0 %v2577
    %2611 = vmatprep.subr.bf16.mxu0 %v2575
    %2612 = vmatpush1.bf16.msra.mxu0 %v2574
    %2613 = vmatprep.subr.bf16.mxu0 %v2572
    %2614 = vmatpush1.bf16.msra.mxu0 %v2571
    %2615 = vmatprep.subr.bf16.mxu0 %v2569
    %2616 = vmatpush1.bf16.msra.mxu0 %v2568
    %2617 = vmatprep.subr.bf16.mxu0 %v2566
    %2618 = vmatpush1.bf16.msra.mxu0 %v2565
    %2619 = vmatprep.subr.bf16.mxu0 %v2563
    %2620 = vmatpush1.bf16.msra.mxu0 %v2562
    %2621 = vmatprep.subr.bf16.mxu0 %v2560
    %2622 = vmatpush1.bf16.msra.mxu0 %v2559
    %2623 = vmatprep.subr.bf16.mxu0 0
    %2624 = vmatpush2.bf16.msra.mxu0 0
    %2625 = vmatprep.subr.bf16.mxu0 0
    %2626 = vmatpush2.bf16.msra.mxu0 0
    %2627 = vmatprep.subr.bf16.mxu0 0
    %2628 = vmatpush2.bf16.msra.mxu0 0
    %2629 = vmatprep.subr.bf16.mxu0 0
    %2630 = vmatpush2.bf16.msra.mxu0 0
    %2631 = vmatprep.subr.bf16.mxu0 0
    %2632 = vmatpush2.bf16.msra.mxu0 0
    %2633 = vmatprep.subr.bf16.mxu0 0
    %2634 = vmatpush2.bf16.msra.mxu0 0
    %2635 = vmatprep.subr.bf16.mxu0 0
    %2636 = vmatpush2.bf16.msra.mxu0 0
    %2637 = vmatprep.subr.bf16.mxu0 0
    %2638 = vmatpush2.bf16.msra.mxu0 0
    %2639 = vmatprep.mubr.bf16.mxu0 0
    %2640 = vmatmul.mubr.bf16.gmra.mxu0 %v2446
    %v2641 = vpop.f32.mrf.mxu0
    %v2642 = vadd.f32 %v657, %v2641
    %v2643 = vpop.f32.mrf.mxu0
    %v2644 = vadd.f32 %v661, %v2643
    %v2645 = vpop.f32.mrf.mxu0
    %v2646 = vpop.f32.mrf.mxu0
    %2647 = vdwg.mxu0
    %2648 = vmatprep.subr.bf16.mxu0 0
    %2649 = vmatpush1.bf16.msra.mxu0 %v2582
    %2650 = vmatprep.subr.bf16.mxu0 0
    %2651 = vmatpush1.bf16.msra.mxu0 %v2579
    %2652 = vmatprep.subr.bf16.mxu0 0
    %2653 = vmatpush1.bf16.msra.mxu0 %v2576
    %2654 = vmatprep.subr.bf16.mxu0 0
    %2655 = vmatpush1.bf16.msra.mxu0 %v2573
    %2656 = vmatprep.subr.bf16.mxu0 0
    %2657 = vmatpush1.bf16.msra.mxu0 %v2570
    %2658 = vmatprep.subr.bf16.mxu0 0
    %2659 = vmatpush1.bf16.msra.mxu0 %v2567
    %2660 = vmatprep.subr.bf16.mxu0 0
    %2661 = vmatpush1.bf16.msra.mxu0 %v2564
    %2662 = vmatprep.subr.bf16.mxu0 0
    %2663 = vmatpush1.bf16.msra.mxu0 %v2561
    %2664 = vmatprep.subr.bf16.mxu0 0
    %2665 = vmatpush2.bf16.msra.mxu0 0
    %2666 = vmatprep.subr.bf16.mxu0 0
    %2667 = vmatpush2.bf16.msra.mxu0 0
    %2668 = vmatprep.subr.bf16.mxu0 0
    %2669 = vmatpush2.bf16.msra.mxu0 0
    %2670 = vmatprep.subr.bf16.mxu0 0
    %2671 = vmatpush2.bf16.msra.mxu0 0
    %2672 = vmatprep.subr.bf16.mxu0 0
    %2673 = vmatpush2.bf16.msra.mxu0 0
    %2674 = vmatprep.subr.bf16.mxu0 0
    %2675 = vmatpush2.bf16.msra.mxu0 0
    %2676 = vmatprep.subr.bf16.mxu0 0
    %2677 = vmatpush2.bf16.msra.mxu0 0
    %2678 = vmatprep.subr.bf16.mxu0 0
    %2679 = vmatpush2.bf16.msra.mxu0 0
    %2680 = vmatprep.mubr.bf16.mxu0 0
    %2681 = vmatmul.mubr.bf16.gmra.mxu0 %v2446
    %v2682 = vpop.f32.mrf.mxu0
    %v2683 = vadd.f32 %v665, %v2682
    %v2684 = vpop.f32.mrf.mxu0
    %v2685 = vpop.f32.mrf.mxu0
    %v2686 = vpop.f32.mrf.mxu0
    %2687 = vdwg.mxu0
    %v2688 = vadd.f32 %v2445, %v2642
    %v2689 = vxor.u32 %v2688, 2147483648
    %v2690 = vmul.f32 %v2689, 1.442695
    %v2691 = vpow.pop %v2690
    %v2692 = vadd.f32 %v2691, 1.0
    %v2693 = vrcp.pop %v2692
    %v2694 = vmul.f32 1.0, %v2693
    %v2696 = vrot.slane %v2445, 1
    %v2698 = vadd.f32 %v2696, %v2644
    %v2699 = vxor.u32 %v2698, 2147483648
    %v2700 = vmul.f32 %v2699, 1.442695
    %v2701 = vpow.pop %v2700
    %v2702 = vadd.f32 %v2701, 1.0
    %v2703 = vrcp.pop %v2702
    %v2704 = vmul.f32 1.0, %v2703
    %v2705 = vmul.f32 %v2694, %v2683
    %v2706 = vrot.slane %v2445, 2
    %v2708 = vadd.f32 %v2706, %v2705
    %v2709 = vtanh.pop %v2708
    %v2710 = vsub.f32 1.0, %v2704
    %v2711 = vmul.f32 %v2710, %v2709
    %v2712 = vmul.f32 %v2704, %v2443
    %v2713 = vadd.f32 %v2711, %v2712
    %p2714 = scmp.gt.s32.totalorder %s195, 7
    %s2715 = scalar_select %p2714, 1, 0
    %v2716 = vstv %s2715
    %vm2717 = vcmp.eq.s32.totalorder %v2716, 1
    %v2718 = vsel %vm2717, %v2713, 0.0
    %2719 = vst [vmem:[#allocation4 + $0x7] sm:$0x1] %v2718
    %v2720 = vsel %vm2717, %v2713, %v2443
    %v2721 = vld [vmem:[#allocation4] sm:$0xff]
    %2722 = vxpose.xlu0.b32.start [1/16] %v2721, 128
    %2723 = vxpose.xlu0.b32.cont [2/16] 0.0, 128
    %2724 = vxpose.xlu0.b32.cont [3/16] 0.0, 128
    %2725 = vxpose.xlu0.b32.cont [4/16] 0.0, 128
    %2726 = vxpose.xlu0.b32.cont [5/16] 0.0, 128
    %2727 = vxpose.xlu0.b32.cont [6/16] 0.0, 128
    %2728 = vxpose.xlu0.b32.cont [7/16] 0.0, 128
    %2729 = vxpose.xlu0.b32.cont [8/16] 0.0, 128
    %2730 = vxpose.xlu0.b32.cont [9/16] 0.0, 128
    %2731 = vxpose.xlu0.b32.cont [10/16] 0.0, 128
    %2732 = vxpose.xlu0.b32.cont [11/16] 0.0, 128
    %2733 = vxpose.xlu0.b32.cont [12/16] 0.0, 128
    %2734 = vxpose.xlu0.b32.cont [13/16] 0.0, 128
    %2735 = vxpose.xlu0.b32.cont [14/16] 0.0, 128
    %2736 = vxpose.xlu0.b32.cont [15/16] 0.0, 128
    %2737 = vxpose.xlu0.b32.end [16/16] 0.0, 128
    %v2738 = vpop.trf.xlu0
    %v2739 = vpop.trf.xlu0
    %v2740 = vpop.trf.xlu0
    %v2741 = vpop.trf.xlu0
    %v2742 = vpop.trf.xlu0
    %v2743 = vpop.trf.xlu0
    %v2744 = vpop.trf.xlu0
    %v2745 = vpop.trf.xlu0
    %v2746 = vpop.trf.xlu0
    %v2747 = vpop.trf.xlu0
    %v2748 = vpop.trf.xlu0
    %v2749 = vpop.trf.xlu0
    %v2750 = vpop.trf.xlu0
    %v2751 = vpop.trf.xlu0
    %v2752 = vpop.trf.xlu0
    %v2753 = vpop.trf.xlu0
    %vm2754 = vcmask 64512
    %2755 = vst.msk [vmem:[#allocation5] sm:$0xff] %vm2754, %v2738
    %2756 = vst.msk [vmem:[#allocation5 + $0x8] sm:$0xff] %vm2754, %v2739
    %2757 = vst.msk [vmem:[#allocation5 + $0x10] sm:$0xff] %vm2754, %v2740
    %2758 = vst.msk [vmem:[#allocation5 + $0x18] sm:$0xff] %vm2754, %v2741
    %2759 = vst.msk [vmem:[#allocation5 + $0x20] sm:$0xff] %vm2754, %v2742
    %2760 = vst.msk [vmem:[#allocation5 + $0x28] sm:$0xff] %vm2754, %v2743
    %2761 = vst.msk [vmem:[#allocation5 + $0x30] sm:$0xff] %vm2754, %v2744
    %2762 = vst.msk [vmem:[#allocation5 + $0x38] sm:$0xff] %vm2754, %v2745
    %2763 = vst.msk [vmem:[#allocation5 + $0x40] sm:$0xff] %vm2754, %v2746
    %2764 = vst.msk [vmem:[#allocation5 + $0x48] sm:$0xff] %vm2754, %v2747
    %2765 = vst.msk [vmem:[#allocation5 + $0x50] sm:$0xff] %vm2754, %v2748
    %2766 = vst.msk [vmem:[#allocation5 + $0x58] sm:$0xff] %vm2754, %v2749
    %2767 = vst.msk [vmem:[#allocation5 + $0x60] sm:$0xff] %vm2754, %v2750
    %2768 = vst.msk [vmem:[#allocation5 + $0x68] sm:$0xff] %vm2754, %v2751
    %2769 = vst.msk [vmem:[#allocation5 + $0x70] sm:$0xff] %vm2754, %v2752
    %2770 = vst.msk [vmem:[#allocation5 + $0x78] sm:$0xff] %vm2754, %v2753
    %v2771 = vld [vmem:[%s10] sm:$0x7]
    %v2772 = vld [vmem:[%s11] sm:$0x7]
    %v2773 = vld [vmem:[%s14] sm:$0x1]
    %v2774 = vld [vmem:[%s16] sm:$0x1]
    %v2775 = vlaneseq
    %v2776 = vand.u32 %v2775, 127
    %v2777 = vstv %s195
    %vm2778 = vcmp.lt.s32.totalorder %v2776, %v2777
    %vm2779 = vcmp.lt.s32.totalorder %v2776, 32
    %v2780 = vld [vmem:[#allocation15 + $0x1] sm:$0x1]
    %v2781 = vpack.c.bf16 %v2780, %v2780
    %v2782 = vld [vmem:[#allocation17] sm:$0xff]
    %v2783 = vld [vmem:[#allocation17 + $0x8] sm:$0xf]
    %v2784 = vld [vmem:[#allocation17 + $0xc] sm:$0xff]
    %v2785 = vld [vmem:[#allocation17 + $0x14] sm:$0xf]
    %v2786 = vld [vmem:[#allocation17 + $0x18] sm:$0xff]
    %v2787 = vld [vmem:[#allocation17 + $0x20] sm:$0xf]
    %v2788 = vld [vmem:[#allocation17 + $0x24] sm:$0xff]
    %v2789 = vld [vmem:[#allocation17 + $0x2c] sm:$0xf]
    %v2790 = vld [vmem:[#allocation17 + $0x30] sm:$0xff]
    %v2791 = vld [vmem:[#allocation17 + $0x38] sm:$0xf]
    %v2792 = vld [vmem:[#allocation17 + $0x3c] sm:$0xff]
    %v2793 = vld [vmem:[#allocation17 + $0x44] sm:$0xf]
    %v2794 = vld [vmem:[#allocation17 + $0x48] sm:$0xff]
    %v2795 = vld [vmem:[#allocation17 + $0x50] sm:$0xf]
    %v2796 = vld [vmem:[#allocation17 + $0x54] sm:$0xff]
    %v2797 = vld [vmem:[#allocation17 + $0x5c] sm:$0xf]
    %v2798 = vld [vmem:[#allocation17 + $0x60] sm:$0xff]
    %v2799 = vld [vmem:[#allocation17 + $0x68] sm:$0xf]
    %v2800 = vld [vmem:[#allocation17 + $0x6c] sm:$0xff]
    %v2801 = vld [vmem:[#allocation17 + $0x74] sm:$0xf]
    %v2802 = vld [vmem:[#allocation17 + $0x78] sm:$0xff]
    %v2803 = vld [vmem:[#allocation17 + $0x80] sm:$0xf]
    %v2804 = vld [vmem:[#allocation17 + $0x84] sm:$0xff]
    %v2805 = vld [vmem:[#allocation17 + $0x8c] sm:$0xf]
    %v2806 = vld [vmem:[#allocation17 + $0x90] sm:$0xff]
    %v2807 = vld [vmem:[#allocation17 + $0x98] sm:$0xf]
    %v2808 = vld [vmem:[#allocation17 + $0x9c] sm:$0xff]
    %v2809 = vld [vmem:[#allocation17 + $0xa4] sm:$0xf]
    %v2810 = vld [vmem:[#allocation17 + $0xa8] sm:$0xff]
    %v2811 = vld [vmem:[#allocation17 + $0xb0] sm:$0xf]
    %v2812 = vld [vmem:[#allocation17 + $0xb4] sm:$0xff]
    %v2813 = vld [vmem:[#allocation17 + $0xbc] sm:$0xf]
    %v2846 = vunpack.c.l.b16 %v2782
    %v2847 = vunpack.c.h.b16 %v2782
    %v2848 = vunpack.c.l.b16 %v2783
    %v2849 = vunpack.c.l.b16 %v2784
    %v2850 = vunpack.c.h.b16 %v2784
    %v2851 = vunpack.c.l.b16 %v2785
    %v2852 = vunpack.c.l.b16 %v2786
    %v2853 = vunpack.c.h.b16 %v2786
    %v2854 = vunpack.c.l.b16 %v2787
    %v2855 = vunpack.c.l.b16 %v2788
    %v2856 = vunpack.c.h.b16 %v2788
    %v2857 = vunpack.c.l.b16 %v2789
    %v2858 = vunpack.c.l.b16 %v2790
    %v2859 = vunpack.c.h.b16 %v2790
    %v2860 = vunpack.c.l.b16 %v2791
    %v2861 = vunpack.c.l.b16 %v2792
    %v2862 = vunpack.c.h.b16 %v2792
    %v2863 = vunpack.c.l.b16 %v2793
    %v2864 = vunpack.c.l.b16 %v2794
    %v2865 = vunpack.c.h.b16 %v2794
    %v2866 = vunpack.c.l.b16 %v2795
    %v2867 = vunpack.c.l.b16 %v2796
    %v2868 = vunpack.c.h.b16 %v2796
    %v2869 = vunpack.c.l.b16 %v2797
    %v2870 = vunpack.c.l.b16 %v2798
    %v2871 = vunpack.c.h.b16 %v2798
    %v2872 = vunpack.c.l.b16 %v2799
    %v2873 = vunpack.c.l.b16 %v2800
    %v2874 = vunpack.c.h.b16 %v2800
    %v2875 = vunpack.c.l.b16 %v2801
    %v2876 = vunpack.c.l.b16 %v2802
    %v2877 = vunpack.c.h.b16 %v2802
    %v2878 = vunpack.c.l.b16 %v2803
    %v2879 = vunpack.c.l.b16 %v2804
    %v2880 = vunpack.c.h.b16 %v2804
    %v2881 = vunpack.c.l.b16 %v2805
    %v2882 = vunpack.c.l.b16 %v2806
    %v2883 = vunpack.c.h.b16 %v2806
    %v2884 = vunpack.c.l.b16 %v2807
    %v2885 = vunpack.c.l.b16 %v2808
    %v2886 = vunpack.c.h.b16 %v2808
    %v2887 = vunpack.c.l.b16 %v2809
    %v2888 = vunpack.c.l.b16 %v2810
    %v2889 = vunpack.c.h.b16 %v2810
    %v2890 = vunpack.c.l.b16 %v2811
    %v2891 = vunpack.c.l.b16 %v2812
    %v2892 = vunpack.c.h.b16 %v2812
    %v2893 = vunpack.c.l.b16 %v2813
    %v2894 = vpack.c.b16 %v2849, %v2846
    %v2895 = vpack.c.b16 %v2850, %v2847
    %v2896 = vpack.c.b16 %v2851, %v2848
    %v2897 = vpack.c.b16 %v2855, %v2852
    %v2898 = vpack.c.b16 %v2856, %v2853
    %v2899 = vpack.c.b16 %v2857, %v2854
    %v2900 = vpack.c.b16 %v2861, %v2858
    %v2901 = vpack.c.b16 %v2862, %v2859
    %v2902 = vpack.c.b16 %v2863, %v2860
    %v2903 = vpack.c.b16 %v2867, %v2864
    %v2904 = vpack.c.b16 %v2868, %v2865
    %v2905 = vpack.c.b16 %v2869, %v2866
    %v2906 = vpack.c.b16 %v2873, %v2870
    %v2907 = vpack.c.b16 %v2874, %v2871
    %v2908 = vpack.c.b16 %v2875, %v2872
    %v2909 = vpack.c.b16 %v2879, %v2876
    %v2910 = vpack.c.b16 %v2880, %v2877
    %v2911 = vpack.c.b16 %v2881, %v2878
    %v2912 = vpack.c.b16 %v2885, %v2882
    %v2913 = vpack.c.b16 %v2886, %v2883
    %v2914 = vpack.c.b16 %v2887, %v2884
    %v2915 = vpack.c.b16 %v2891, %v2888
    %v2916 = vpack.c.b16 %v2892, %v2889
    %v2917 = vpack.c.b16 %v2893, %v2890
    %v2943 = vlaneseq
    %v2944 = vshrl.u32 %v2943, 7
    %v2945 = vsub.s32 0, %v2944
    %v2946 = vrot.slane %v2771, %v2945
    %v2947 = vlaneseq
    %v2948 = vshrl.u32 %v2947, 7
    %v2949 = vsub.s32 1, %v2948
    %v2950 = vrot.slane %v2771, %v2949
    %v2951 = vlaneseq
    %v2952 = vshrl.u32 %v2951, 7
    %v2953 = vsub.s32 2, %v2952
    %v2954 = vrot.slane %v2771, %v2953
    %2958 = vmatprep.subr.bf16.mxu0 %v2916
    %2959 = vmatpush1.bf16.msra.mxu0 %v2915
    %2960 = vmatprep.subr.bf16.mxu0 %v2913
    %2961 = vmatpush1.bf16.msra.mxu0 %v2912
    %2962 = vmatprep.subr.bf16.mxu0 %v2910
    %2963 = vmatpush1.bf16.msra.mxu0 %v2909
    %2964 = vmatprep.subr.bf16.mxu0 %v2907
    %2965 = vmatpush1.bf16.msra.mxu0 %v2906
    %2966 = vmatprep.subr.bf16.mxu0 %v2904
    %2967 = vmatpush1.bf16.msra.mxu0 %v2903
    %2968 = vmatprep.subr.bf16.mxu0 %v2901
    %2969 = vmatpush1.bf16.msra.mxu0 %v2900
    %2970 = vmatprep.subr.bf16.mxu0 %v2898
    %2971 = vmatpush1.bf16.msra.mxu0 %v2897
    %2972 = vmatprep.subr.bf16.mxu0 %v2895
    %2973 = vmatpush1.bf16.msra.mxu0 %v2894
    %2974 = vmatprep.subr.bf16.mxu0 0
    %2975 = vmatpush2.bf16.msra.mxu0 0
    %2976 = vmatprep.subr.bf16.mxu0 0
    %2977 = vmatpush2.bf16.msra.mxu0 0
    %2978 = vmatprep.subr.bf16.mxu0 0
    %2979 = vmatpush2.bf16.msra.mxu0 0
    %2980 = vmatprep.subr.bf16.mxu0 0
    %2981 = vmatpush2.bf16.msra.mxu0 0
    %2982 = vmatprep.subr.bf16.mxu0 0
    %2983 = vmatpush2.bf16.msra.mxu0 0
    %2984 = vmatprep.subr.bf16.mxu0 0
    %2985 = vmatpush2.bf16.msra.mxu0 0
    %2986 = vmatprep.subr.bf16.mxu0 0
    %2987 = vmatpush2.bf16.msra.mxu0 0
    %2988 = vmatprep.subr.bf16.mxu0 0
    %2989 = vmatpush2.bf16.msra.mxu0 0
    %2990 = vmatprep.mubr.bf16.mxu0 0
    %2991 = vmatmul.mubr.bf16.gmra.mxu0 %v2781
    %v2992 = vpop.f32.mrf.mxu0
    %v2993 = vadd.f32 %v2946, %v2992
    %v2994 = vpop.f32.mrf.mxu0
    %v2995 = vadd.f32 %v2950, %v2994
    %v2996 = vpop.f32.mrf.mxu0
    %v2997 = vpop.f32.mrf.mxu0
    %2998 = vdwg.mxu0
    %2999 = vmatprep.subr.bf16.mxu0 0
    %3000 = vmatpush1.bf16.msra.mxu0 %v2917
    %3001 = vmatprep.subr.bf16.mxu0 0
    %3002 = vmatpush1.bf16.msra.mxu0 %v2914
    %3003 = vmatprep.subr.bf16.mxu0 0
    %3004 = vmatpush1.bf16.msra.mxu0 %v2911
    %3005 = vmatprep.subr.bf16.mxu0 0
    %3006 = vmatpush1.bf16.msra.mxu0 %v2908
    %3007 = vmatprep.subr.bf16.mxu0 0
    %3008 = vmatpush1.bf16.msra.mxu0 %v2905
    %3009 = vmatprep.subr.bf16.mxu0 0
    %3010 = vmatpush1.bf16.msra.mxu0 %v2902
    %3011 = vmatprep.subr.bf16.mxu0 0
    %3012 = vmatpush1.bf16.msra.mxu0 %v2899
    %3013 = vmatprep.subr.bf16.mxu0 0
    %3014 = vmatpush1.bf16.msra.mxu0 %v2896
    %3015 = vmatprep.subr.bf16.mxu0 0
    %3016 = vmatpush2.bf16.msra.mxu0 0
    %3017 = vmatprep.subr.bf16.mxu0 0
    %3018 = vmatpush2.bf16.msra.mxu0 0
    %3019 = vmatprep.subr.bf16.mxu0 0
    %3020 = vmatpush2.bf16.msra.mxu0 0
    %3021 = vmatprep.subr.bf16.mxu0 0
    %3022 = vmatpush2.bf16.msra.mxu0 0
    %3023 = vmatprep.subr.bf16.mxu0 0
    %3024 = vmatpush2.bf16.msra.mxu0 0
    %3025 = vmatprep.subr.bf16.mxu0 0
    %3026 = vmatpush2.bf16.msra.mxu0 0
    %3027 = vmatprep.subr.bf16.mxu0 0
    %3028 = vmatpush2.bf16.msra.mxu0 0
    %3029 = vmatprep.subr.bf16.mxu0 0
    %3030 = vmatpush2.bf16.msra.mxu0 0
    %3031 = vmatprep.mubr.bf16.mxu0 0
    %3032 = vmatmul.mubr.bf16.gmra.mxu0 %v2781
    %v3033 = vpop.f32.mrf.mxu0
    %v3034 = vadd.f32 %v2954, %v3033
    %v3035 = vpop.f32.mrf.mxu0
    %v3036 = vpop.f32.mrf.mxu0
    %v3037 = vpop.f32.mrf.mxu0
    %3038 = vdwg.mxu0
    %v3039 = vpack.c.bf16 %v2720, %v2720
    %v3040 = vld [vmem:[#allocation18] sm:$0xff]
    %v3041 = vld [vmem:[#allocation18 + $0x8] sm:$0xf]
    %v3042 = vld [vmem:[#allocation18 + $0xc] sm:$0xff]
    %v3043 = vld [vmem:[#allocation18 + $0x14] sm:$0xf]
    %v3044 = vld [vmem:[#allocation18 + $0x18] sm:$0xff]
    %v3045 = vld [vmem:[#allocation18 + $0x20] sm:$0xf]
    %v3046 = vld [vmem:[#allocation18 + $0x24] sm:$0xff]
    %v3047 = vld [vmem:[#allocation18 + $0x2c] sm:$0xf]
    %v3048 = vld [vmem:[#allocation18 + $0x30] sm:$0xff]
    %v3049 = vld [vmem:[#allocation18 + $0x38] sm:$0xf]
    %v3050 = vld [vmem:[#allocation18 + $0x3c] sm:$0xff]
    %v3051 = vld [vmem:[#allocation18 + $0x44] sm:$0xf]
    %v3052 = vld [vmem:[#allocation18 + $0x48] sm:$0xff]
    %v3053 = vld [vmem:[#allocation18 + $0x50] sm:$0xf]
    %v3054 = vld [vmem:[#allocation18 + $0x54] sm:$0xff]
    %v3055 = vld [vmem:[#allocation18 + $0x5c] sm:$0xf]
    %v3056 = vld [vmem:[#allocation18 + $0x60] sm:$0xff]
    %v3057 = vld [vmem:[#allocation18 + $0x68] sm:$0xf]
    %v3058 = vld [vmem:[#allocation18 + $0x6c] sm:$0xff]
    %v3059 = vld [vmem:[#allocation18 + $0x74] sm:$0xf]
    %v3060 = vld [vmem:[#allocation18 + $0x78] sm:$0xff]
    %v3061 = vld [vmem:[#allocation18 + $0x80] sm:$0xf]
    %v3062 = vld [vmem:[#allocation18 + $0x84] sm:$0xff]
    %v3063 = vld [vmem:[#allocation18 + $0x8c] sm:$0xf]
    %v3064 = vld [vmem:[#allocation18 + $0x90] sm:$0xff]
    %v3065 = vld [vmem:[#allocation18 + $0x98] sm:$0xf]
    %v3066 = vld [vmem:[#allocation18 + $0x9c] sm:$0xff]
    %v3067 = vld [vmem:[#allocation18 + $0xa4] sm:$0xf]
    %v3068 = vld [vmem:[#allocation18 + $0xa8] sm:$0xff]
    %v3069 = vld [vmem:[#allocation18 + $0xb0] sm:$0xf]
    %v3070 = vld [vmem:[#allocation18 + $0xb4] sm:$0xff]
    %v3071 = vld [vmem:[#allocation18 + $0xbc] sm:$0xf]
    %v3104 = vunpack.c.l.b16 %v3040
    %v3105 = vunpack.c.h.b16 %v3040
    %v3106 = vunpack.c.l.b16 %v3041
    %v3107 = vunpack.c.l.b16 %v3042
    %v3108 = vunpack.c.h.b16 %v3042
    %v3109 = vunpack.c.l.b16 %v3043
    %v3110 = vunpack.c.l.b16 %v3044
    %v3111 = vunpack.c.h.b16 %v3044
    %v3112 = vunpack.c.l.b16 %v3045
    %v3113 = vunpack.c.l.b16 %v3046
    %v3114 = vunpack.c.h.b16 %v3046
    %v3115 = vunpack.c.l.b16 %v3047
    %v3116 = vunpack.c.l.b16 %v3048
    %v3117 = vunpack.c.h.b16 %v3048
    %v3118 = vunpack.c.l.b16 %v3049
    %v3119 = vunpack.c.l.b16 %v3050
    %v3120 = vunpack.c.h.b16 %v3050
    %v3121 = vunpack.c.l.b16 %v3051
    %v3122 = vunpack.c.l.b16 %v3052
    %v3123 = vunpack.c.h.b16 %v3052
    %v3124 = vunpack.c.l.b16 %v3053
    %v3125 = vunpack.c.l.b16 %v3054
    %v3126 = vunpack.c.h.b16 %v3054
    %v3127 = vunpack.c.l.b16 %v3055
    %v3128 = vunpack.c.l.b16 %v3056
    %v3129 = vunpack.c.h.b16 %v3056
    %v3130 = vunpack.c.l.b16 %v3057
    %v3131 = vunpack.c.l.b16 %v3058
    %v3132 = vunpack.c.h.b16 %v3058
    %v3133 = vunpack.c.l.b16 %v3059
    %v3134 = vunpack.c.l.b16 %v3060
    %v3135 = vunpack.c.h.b16 %v3060
    %v3136 = vunpack.c.l.b16 %v3061
    %v3137 = vunpack.c.l.b16 %v3062
    %v3138 = vunpack.c.h.b16 %v3062
    %v3139 = vunpack.c.l.b16 %v3063
    %v3140 = vunpack.c.l.b16 %v3064
    %v3141 = vunpack.c.h.b16 %v3064
    %v3142 = vunpack.c.l.b16 %v3065
    %v3143 = vunpack.c.l.b16 %v3066
    %v3144 = vunpack.c.h.b16 %v3066
    %v3145 = vunpack.c.l.b16 %v3067
    %v3146 = vunpack.c.l.b16 %v3068
    %v3147 = vunpack.c.h.b16 %v3068
    %v3148 = vunpack.c.l.b16 %v3069
    %v3149 = vunpack.c.l.b16 %v3070
    %v3150 = vunpack.c.h.b16 %v3070
    %v3151 = vunpack.c.l.b16 %v3071
    %v3152 = vpack.c.b16 %v3107, %v3104
    %v3153 = vpack.c.b16 %v3108, %v3105
    %v3154 = vpack.c.b16 %v3109, %v3106
    %v3155 = vpack.c.b16 %v3113, %v3110
    %v3156 = vpack.c.b16 %v3114, %v3111
    %v3157 = vpack.c.b16 %v3115, %v3112
    %v3158 = vpack.c.b16 %v3119, %v3116
    %v3159 = vpack.c.b16 %v3120, %v3117
    %v3160 = vpack.c.b16 %v3121, %v3118
    %v3161 = vpack.c.b16 %v3125, %v3122
    %v3162 = vpack.c.b16 %v3126, %v3123
    %v3163 = vpack.c.b16 %v3127, %v3124
    %v3164 = vpack.c.b16 %v3131, %v3128
    %v3165 = vpack.c.b16 %v3132, %v3129
    %v3166 = vpack.c.b16 %v3133, %v3130
    %v3167 = vpack.c.b16 %v3137, %v3134
    %v3168 = vpack.c.b16 %v3138, %v3135
    %v3169 = vpack.c.b16 %v3139, %v3136
    %v3170 = vpack.c.b16 %v3143, %v3140
    %v3171 = vpack.c.b16 %v3144, %v3141
    %v3172 = vpack.c.b16 %v3145, %v3142
    %v3173 = vpack.c.b16 %v3149, %v3146
    %v3174 = vpack.c.b16 %v3150, %v3147
    %v3175 = vpack.c.b16 %v3151, %v3148
    %v3201 = vlaneseq
    %v3202 = vshrl.u32 %v3201, 7
    %v3203 = vsub.s32 0, %v3202
    %v3204 = vrot.slane %v2772, %v3203
    %v3205 = vlaneseq
    %v3206 = vshrl.u32 %v3205, 7
    %v3207 = vsub.s32 1, %v3206
    %v3208 = vrot.slane %v2772, %v3207
    %v3209 = vlaneseq
    %v3210 = vshrl.u32 %v3209, 7
    %v3211 = vsub.s32 2, %v3210
    %v3212 = vrot.slane %v2772, %v3211
    %3216 = vmatprep.subr.bf16.mxu0 %v3174
    %3217 = vmatpush1.bf16.msra.mxu0 %v3173
    %3218 = vmatprep.subr.bf16.mxu0 %v3171
    %3219 = vmatpush1.bf16.msra.mxu0 %v3170
    %3220 = vmatprep.subr.bf16.mxu0 %v3168
    %3221 = vmatpush1.bf16.msra.mxu0 %v3167
    %3222 = vmatprep.subr.bf16.mxu0 %v3165
    %3223 = vmatpush1.bf16.msra.mxu0 %v3164
    %3224 = vmatprep.subr.bf16.mxu0 %v3162
    %3225 = vmatpush1.bf16.msra.mxu0 %v3161
    %3226 = vmatprep.subr.bf16.mxu0 %v3159
    %3227 = vmatpush1.bf16.msra.mxu0 %v3158
    %3228 = vmatprep.subr.bf16.mxu0 %v3156
    %3229 = vmatpush1.bf16.msra.mxu0 %v3155
    %3230 = vmatprep.subr.bf16.mxu0 %v3153
    %3231 = vmatpush1.bf16.msra.mxu0 %v3152
    %3232 = vmatprep.subr.bf16.mxu0 0
    %3233 = vmatpush2.bf16.msra.mxu0 0
    %3234 = vmatprep.subr.bf16.mxu0 0
    %3235 = vmatpush2.bf16.msra.mxu0 0
    %3236 = vmatprep.subr.bf16.mxu0 0
    %3237 = vmatpush2.bf16.msra.mxu0 0
    %3238 = vmatprep.subr.bf16.mxu0 0
    %3239 = vmatpush2.bf16.msra.mxu0 0
    %3240 = vmatprep.subr.bf16.mxu0 0
    %3241 = vmatpush2.bf16.msra.mxu0 0
    %3242 = vmatprep.subr.bf16.mxu0 0
    %3243 = vmatpush2.bf16.msra.mxu0 0
    %3244 = vmatprep.subr.bf16.mxu0 0
    %3245 = vmatpush2.bf16.msra.mxu0 0
    %3246 = vmatprep.subr.bf16.mxu0 0
    %3247 = vmatpush2.bf16.msra.mxu0 0
    %3248 = vmatprep.mubr.bf16.mxu0 0
    %3249 = vmatmul.mubr.bf16.gmra.mxu0 %v3039
    %v3250 = vpop.f32.mrf.mxu0
    %v3251 = vadd.f32 %v3204, %v3250
    %v3252 = vpop.f32.mrf.mxu0
    %v3253 = vadd.f32 %v3208, %v3252
    %v3254 = vpop.f32.mrf.mxu0
    %v3255 = vpop.f32.mrf.mxu0
    %3256 = vdwg.mxu0
    %3257 = vmatprep.subr.bf16.mxu0 0
    %3258 = vmatpush1.bf16.msra.mxu0 %v3175
    %3259 = vmatprep.subr.bf16.mxu0 0
    %3260 = vmatpush1.bf16.msra.mxu0 %v3172
    %3261 = vmatprep.subr.bf16.mxu0 0
    %3262 = vmatpush1.bf16.msra.mxu0 %v3169
    %3263 = vmatprep.subr.bf16.mxu0 0
    %3264 = vmatpush1.bf16.msra.mxu0 %v3166
    %3265 = vmatprep.subr.bf16.mxu0 0
    %3266 = vmatpush1.bf16.msra.mxu0 %v3163
    %3267 = vmatprep.subr.bf16.mxu0 0
    %3268 = vmatpush1.bf16.msra.mxu0 %v3160
    %3269 = vmatprep.subr.bf16.mxu0 0
    %3270 = vmatpush1.bf16.msra.mxu0 %v3157
    %3271 = vmatprep.subr.bf16.mxu0 0
    %3272 = vmatpush1.bf16.msra.mxu0 %v3154
    %3273 = vmatprep.subr.bf16.mxu0 0
    %3274 = vmatpush2.bf16.msra.mxu0 0
    %3275 = vmatprep.subr.bf16.mxu0 0
    %3276 = vmatpush2.bf16.msra.mxu0 0
    %3277 = vmatprep.subr.bf16.mxu0 0
    %3278 = vmatpush2.bf16.msra.mxu0 0
    %3279 = vmatprep.subr.bf16.mxu0 0
    %3280 = vmatpush2.bf16.msra.mxu0 0
    %3281 = vmatprep.subr.bf16.mxu0 0
    %3282 = vmatpush2.bf16.msra.mxu0 0
    %3283 = vmatprep.subr.bf16.mxu0 0
    %3284 = vmatpush2.bf16.msra.mxu0 0
    %3285 = vmatprep.subr.bf16.mxu0 0
    %3286 = vmatpush2.bf16.msra.mxu0 0
    %3287 = vmatprep.subr.bf16.mxu0 0
    %3288 = vmatpush2.bf16.msra.mxu0 0
    %3289 = vmatprep.mubr.bf16.mxu0 0
    %3290 = vmatmul.mubr.bf16.gmra.mxu0 %v3039
    %v3291 = vpop.f32.mrf.mxu0
    %v3292 = vadd.f32 %v3212, %v3291
    %v3293 = vpop.f32.mrf.mxu0
    %v3294 = vpop.f32.mrf.mxu0
    %v3295 = vpop.f32.mrf.mxu0
    %3296 = vdwg.mxu0
    %v3297 = vadd.f32 %v2993, %v3251
    %v3298 = vxor.u32 %v3297, 2147483648
    %v3299 = vmul.f32 %v3298, 1.442695
    %v3300 = vpow.pop %v3299
    %v3301 = vadd.f32 %v3300, 1.0
    %v3302 = vrcp.pop %v3301
    %v3303 = vmul.f32 1.0, %v3302
    %v3304 = vadd.f32 %v2995, %v3253
    %v3305 = vxor.u32 %v3304, 2147483648
    %v3306 = vmul.f32 %v3305, 1.442695
    %v3307 = vpow.pop %v3306
    %v3308 = vadd.f32 %v3307, 1.0
    %v3309 = vrcp.pop %v3308
    %v3310 = vmul.f32 1.0, %v3309
    %v3311 = vmul.f32 %v3303, %v3292
    %v3312 = vadd.f32 %v3034, %v3311
    %v3313 = vtanh.pop %v3312
    %v3314 = vsub.f32 1.0, %v3310
    %v3315 = vmul.f32 %v3314, %v3313
    %v3316 = vmul.f32 %v3310, %v2720
    %v3317 = vadd.f32 %v3315, %v3316
    %v3318 = vld [vmem:[#allocation5] sm:$0xff]
    %v3319 = vld [vmem:[#allocation5 + $0x8] sm:$0xff]
    %v3320 = vld [vmem:[#allocation5 + $0x10] sm:$0xff]
    %v3321 = vld [vmem:[#allocation5 + $0x18] sm:$0xff]
    %v3322 = vld [vmem:[#allocation5 + $0x20] sm:$0xff]
    %v3323 = vld [vmem:[#allocation5 + $0x28] sm:$0xff]
    %v3324 = vld [vmem:[#allocation5 + $0x30] sm:$0xff]
    %v3325 = vld [vmem:[#allocation5 + $0x38] sm:$0xff]
    %v3326 = vld [vmem:[#allocation5 + $0x40] sm:$0xff]
    %v3327 = vld [vmem:[#allocation5 + $0x48] sm:$0xff]
    %v3328 = vld [vmem:[#allocation5 + $0x50] sm:$0xff]
    %v3329 = vld [vmem:[#allocation5 + $0x58] sm:$0xff]
    %v3330 = vld [vmem:[#allocation5 + $0x60] sm:$0xff]
    %v3331 = vld [vmem:[#allocation5 + $0x68] sm:$0xff]
    %v3332 = vld [vmem:[#allocation5 + $0x70] sm:$0xff]
    %v3333 = vld [vmem:[#allocation5 + $0x78] sm:$0xff]
    %3334 = vmatprep.subr.mxu0 0.0
    %3335 = vmatpush1.msra.mxu0 %v3333
    %3336 = vmatprep.subr.mxu0 0.0
    %3337 = vmatpush1.msra.mxu0 %v3332
    %3338 = vmatprep.subr.mxu0 0.0
    %3339 = vmatpush1.msra.mxu0 %v3331
    %3340 = vmatprep.subr.mxu0 0.0
    %3341 = vmatpush1.msra.mxu0 %v3330
    %3342 = vmatprep.subr.mxu0 0.0
    %3343 = vmatpush1.msra.mxu0 %v3329
    %3344 = vmatprep.subr.mxu0 0.0
    %3345 = vmatpush1.msra.mxu0 %v3328
    %3346 = vmatprep.subr.mxu0 0.0
    %3347 = vmatpush1.msra.mxu0 %v3327
    %3348 = vmatprep.subr.mxu0 0.0
    %3349 = vmatpush1.msra.mxu0 %v3326
    %3350 = vmatprep.subr.mxu0 0.0
    %3351 = vmatpush1.msra.mxu0 %v3325
    %3352 = vmatprep.subr.mxu0 0.0
    %3353 = vmatpush1.msra.mxu0 %v3324
    %3354 = vmatprep.subr.mxu0 0.0
    %3355 = vmatpush1.msra.mxu0 %v3323
    %3356 = vmatprep.subr.mxu0 0.0
    %3357 = vmatpush1.msra.mxu0 %v3322
    %3358 = vmatprep.subr.mxu0 0.0
    %3359 = vmatpush1.msra.mxu0 %v3321
    %3360 = vmatprep.subr.mxu0 0.0
    %3361 = vmatpush1.msra.mxu0 %v3320
    %3362 = vmatprep.subr.mxu0 0.0
    %3363 = vmatpush1.msra.mxu0 %v3319
    %3364 = vmatprep.subr.mxu0 0.0
    %3365 = vmatpush1.msra.mxu0 %v3318
    %3366 = vmatprep.subr.mxu0 0.0
    %3367 = vmatpush2.msra.mxu0 0.0
    %3368 = vmatprep.subr.mxu0 0.0
    %3369 = vmatpush2.msra.mxu0 0.0
    %3370 = vmatprep.subr.mxu0 0.0
    %3371 = vmatpush2.msra.mxu0 0.0
    %3372 = vmatprep.subr.mxu0 0.0
    %3373 = vmatpush2.msra.mxu0 0.0
    %3374 = vmatprep.subr.mxu0 0.0
    %3375 = vmatpush2.msra.mxu0 0.0
    %3376 = vmatprep.subr.mxu0 0.0
    %3377 = vmatpush2.msra.mxu0 0.0
    %3378 = vmatprep.subr.mxu0 0.0
    %3379 = vmatpush2.msra.mxu0 0.0
    %3380 = vmatprep.subr.mxu0 0.0
    %3381 = vmatpush2.msra.mxu0 0.0
    %3382 = vmatprep.subr.mxu0 0.0
    %3383 = vmatpush2.msra.mxu0 0.0
    %3384 = vmatprep.subr.mxu0 0.0
    %3385 = vmatpush2.msra.mxu0 0.0
    %3386 = vmatprep.subr.mxu0 0.0
    %3387 = vmatpush2.msra.mxu0 0.0
    %3388 = vmatprep.subr.mxu0 0.0
    %3389 = vmatpush2.msra.mxu0 0.0
    %3390 = vmatprep.subr.mxu0 0.0
    %3391 = vmatpush2.msra.mxu0 0.0
    %3392 = vmatprep.subr.mxu0 0.0
    %3393 = vmatpush2.msra.mxu0 0.0
    %3394 = vmatprep.subr.mxu0 0.0
    %3395 = vmatpush2.msra.mxu0 0.0
    %3396 = vmatprep.subr.mxu0 0.0
    %3397 = vmatpush2.msra.mxu0 0.0
    %3398 = vmatprep.mubr.f32.mxu0 0.0
    %3399 = vmatmul.mubr.f32.gmra.mxu0 %v3317
    %v3400 = vpop.f32.mrf.mxu0
    %v3401 = vadd.f32 0.0, %v3400
    %v3402 = vpop.f32.mrf.mxu0
    %3403 = vdwg.mxu0
    %v3404 = vsel %vm2778, %v3401, -1e+30
    %vm3405 = vcmask 57344
    %v3406 = vsel %vm3405, %v3404, -inf
    %3407 = vmax.xlane.f32.xlu0 %v3406
    %v3408 = vpop.xlane.xlu0 %3407
    %v3409 = vsub.f32 %v3404, %v3408
    %v3410 = vmul.f32 %v3409, 1.442695
    %v3411 = vpow.pop %v3410
    %v3412 = vsel %vm3405, %v3411, 0.0
    %3413 = vadd.xlane.f32.xlu0 %v3412
    %v3414 = vpop.xlane.xlu0 %3413
    %v3415 = vrcp.pop %v3414
    %v3416 = vmul.f32 %v3411, %v3415
    %v3417 = vld [vmem:[#allocation4] sm:$0xff]
    %v3419 = vsel %vm2754, %v3416, 0
    %3421 = vmatprep.subr.mxu0 0.0
    %3422 = vmatpush1.msra.mxu0 0.0
    %3423 = vmatprep.subr.mxu0 0.0
    %3424 = vmatpush1.msra.mxu0 0.0
    %3425 = vmatprep.subr.mxu0 0.0
    %3426 = vmatpush1.msra.mxu0 0.0
    %3427 = vmatprep.subr.mxu0 0.0
    %3428 = vmatpush1.msra.mxu0 0.0
    %3429 = vmatprep.subr.mxu0 0.0
    %3430 = vmatpush1.msra.mxu0 0.0
    %3431 = vmatprep.subr.mxu0 0.0
    %3432 = vmatpush1.msra.mxu0 0.0
    %3433 = vmatprep.subr.mxu0 0.0
    %3434 = vmatpush1.msra.mxu0 0.0
    %3435 = vmatprep.subr.mxu0 0.0
    %3436 = vmatpush1.msra.mxu0 0.0
    %3437 = vmatprep.subr.mxu0 0.0
    %3438 = vmatpush1.msra.mxu0 0.0
    %3439 = vmatprep.subr.mxu0 0.0
    %3440 = vmatpush1.msra.mxu0 0.0
    %3441 = vmatprep.subr.mxu0 0.0
    %3442 = vmatpush1.msra.mxu0 0.0
    %3443 = vmatprep.subr.mxu0 0.0
    %3444 = vmatpush1.msra.mxu0 0.0
    %3445 = vmatprep.subr.mxu0 0.0
    %3446 = vmatpush1.msra.mxu0 0.0
    %3447 = vmatprep.subr.mxu0 0.0
    %3448 = vmatpush1.msra.mxu0 0.0
    %3449 = vmatprep.subr.mxu0 0.0
    %3450 = vmatpush1.msra.mxu0 0.0
    %3451 = vmatprep.subr.mxu0 0.0
    %3452 = vmatpush1.msra.mxu0 %v3417
    %3453 = vmatprep.subr.mxu0 0.0
    %3454 = vmatpush2.msra.mxu0 0.0
    %3455 = vmatprep.subr.mxu0 0.0
    %3456 = vmatpush2.msra.mxu0 0.0
    %3457 = vmatprep.subr.mxu0 0.0
    %3458 = vmatpush2.msra.mxu0 0.0
    %3459 = vmatprep.subr.mxu0 0.0
    %3460 = vmatpush2.msra.mxu0 0.0
    %3461 = vmatprep.subr.mxu0 0.0
    %3462 = vmatpush2.msra.mxu0 0.0
    %3463 = vmatprep.subr.mxu0 0.0
    %3464 = vmatpush2.msra.mxu0 0.0
    %3465 = vmatprep.subr.mxu0 0.0
    %3466 = vmatpush2.msra.mxu0 0.0
    %3467 = vmatprep.subr.mxu0 0.0
    %3468 = vmatpush2.msra.mxu0 0.0
    %3469 = vmatprep.subr.mxu0 0.0
    %3470 = vmatpush2.msra.mxu0 0.0
    %3471 = vmatprep.subr.mxu0 0.0
    %3472 = vmatpush2.msra.mxu0 0.0
    %3473 = vmatprep.subr.mxu0 0.0
    %3474 = vmatpush2.msra.mxu0 0.0
    %3475 = vmatprep.subr.mxu0 0.0
    %3476 = vmatpush2.msra.mxu0 0.0
    %3477 = vmatprep.subr.mxu0 0.0
    %3478 = vmatpush2.msra.mxu0 0.0
    %3479 = vmatprep.subr.mxu0 0.0
    %3480 = vmatpush2.msra.mxu0 0.0
    %3481 = vmatprep.subr.mxu0 0.0
    %3482 = vmatpush2.msra.mxu0 0.0
    %3483 = vmatprep.subr.mxu0 0.0
    %3484 = vmatpush2.msra.mxu0 0.0
    %3485 = vmatprep.mubr.f32.mxu0 0.0
    %3486 = vmatmul.mubr.f32.gmra.mxu0 %v3419
    %v3487 = vpop.f32.mrf.mxu0
    %v3488 = vadd.f32 0.0, %v3487
    %v3489 = vpop.f32.mrf.mxu0
    %3490 = vdwg.mxu0
    %v3491 = vpack.c.bf16 %v3317, %v3317
    %v3492 = vld [vmem:[#allocation20] sm:$0xf]
    %v3493 = vld [vmem:[#allocation20 + $0x4] sm:$0xf]
    %v3494 = vld [vmem:[#allocation20 + $0x8] sm:$0xf]
    %v3495 = vld [vmem:[#allocation20 + $0xc] sm:$0xf]
    %v3496 = vld [vmem:[#allocation20 + $0x10] sm:$0xf]
    %v3497 = vld [vmem:[#allocation20 + $0x14] sm:$0xf]
    %v3498 = vld [vmem:[#allocation20 + $0x18] sm:$0xf]
    %v3499 = vld [vmem:[#allocation20 + $0x1c] sm:$0xf]
    %v3500 = vld [vmem:[#allocation20 + $0x20] sm:$0xf]
    %v3501 = vld [vmem:[#allocation20 + $0x24] sm:$0xf]
    %v3502 = vld [vmem:[#allocation20 + $0x28] sm:$0xf]
    %v3503 = vld [vmem:[#allocation20 + $0x2c] sm:$0xf]
    %v3504 = vld [vmem:[#allocation20 + $0x30] sm:$0xf]
    %v3505 = vld [vmem:[#allocation20 + $0x34] sm:$0xf]
    %v3506 = vld [vmem:[#allocation20 + $0x38] sm:$0xf]
    %v3507 = vld [vmem:[#allocation20 + $0x3c] sm:$0xf]
    %v3508 = vpack.c.bf16 %v3488, %v3488
    %v3509 = vld [vmem:[#allocation21] sm:$0xf]
    %v3510 = vld [vmem:[#allocation21 + $0x4] sm:$0xf]
    %v3511 = vld [vmem:[#allocation21 + $0x8] sm:$0xf]
    %v3512 = vld [vmem:[#allocation21 + $0xc] sm:$0xf]
    %v3513 = vld [vmem:[#allocation21 + $0x10] sm:$0xf]
    %v3514 = vld [vmem:[#allocation21 + $0x14] sm:$0xf]
    %v3515 = vld [vmem:[#allocation21 + $0x18] sm:$0xf]
    %v3516 = vld [vmem:[#allocation21 + $0x1c] sm:$0xf]
    %v3517 = vld [vmem:[#allocation21 + $0x20] sm:$0xf]
    %v3518 = vld [vmem:[#allocation21 + $0x24] sm:$0xf]
    %v3519 = vld [vmem:[#allocation21 + $0x28] sm:$0xf]
    %v3520 = vld [vmem:[#allocation21 + $0x2c] sm:$0xf]
    %v3521 = vld [vmem:[#allocation21 + $0x30] sm:$0xf]
    %v3522 = vld [vmem:[#allocation21 + $0x34] sm:$0xf]
    %v3523 = vld [vmem:[#allocation21 + $0x38] sm:$0xf]
    %v3524 = vld [vmem:[#allocation21 + $0x3c] sm:$0xf]
    %v3541 = vunpack.c.l.b16 %v3509
    %v3542 = vunpack.c.l.b16 %v3510
    %v3543 = vunpack.c.l.b16 %v3511
    %v3544 = vunpack.c.l.b16 %v3512
    %v3545 = vunpack.c.l.b16 %v3513
    %v3546 = vunpack.c.l.b16 %v3514
    %v3547 = vunpack.c.l.b16 %v3515
    %v3548 = vunpack.c.l.b16 %v3516
    %v3549 = vunpack.c.l.b16 %v3517
    %v3550 = vunpack.c.l.b16 %v3518
    %v3551 = vunpack.c.l.b16 %v3519
    %v3552 = vunpack.c.l.b16 %v3520
    %v3553 = vunpack.c.l.b16 %v3521
    %v3554 = vunpack.c.l.b16 %v3522
    %v3555 = vunpack.c.l.b16 %v3523
    %v3556 = vunpack.c.l.b16 %v3524
    %v3557 = vpack.c.b16 %v3542, %v3541
    %v3558 = vpack.c.b16 %v3544, %v3543
    %v3559 = vpack.c.b16 %v3546, %v3545
    %v3560 = vpack.c.b16 %v3548, %v3547
    %v3561 = vpack.c.b16 %v3550, %v3549
    %v3562 = vpack.c.b16 %v3552, %v3551
    %v3563 = vpack.c.b16 %v3554, %v3553
    %v3564 = vpack.c.b16 %v3556, %v3555
    %3573 = vmatprep.subr.bf16.mxu0 0
    %3574 = vmatpush1.bf16.msra.mxu0 %v3564
    %3575 = vmatprep.subr.bf16.mxu0 0
    %3576 = vmatpush1.bf16.msra.mxu0 %v3563
    %3577 = vmatprep.subr.bf16.mxu0 0
    %3578 = vmatpush1.bf16.msra.mxu0 %v3562
    %3579 = vmatprep.subr.bf16.mxu0 0
    %3580 = vmatpush1.bf16.msra.mxu0 %v3561
    %3581 = vmatprep.subr.bf16.mxu0 0
    %3582 = vmatpush1.bf16.msra.mxu0 %v3560
    %3583 = vmatprep.subr.bf16.mxu0 0
    %3584 = vmatpush1.bf16.msra.mxu0 %v3559
    %3585 = vmatprep.subr.bf16.mxu0 0
    %3586 = vmatpush1.bf16.msra.mxu0 %v3558
    %3587 = vmatprep.subr.bf16.mxu0 0
    %3588 = vmatpush1.bf16.msra.mxu0 %v3557
    %3589 = vmatprep.subr.bf16.mxu0 0
    %3590 = vmatpush2.bf16.msra.mxu0 0
    %3591 = vmatprep.subr.bf16.mxu0 0
    %3592 = vmatpush2.bf16.msra.mxu0 0
    %3593 = vmatprep.subr.bf16.mxu0 0
    %3594 = vmatpush2.bf16.msra.mxu0 0
    %3595 = vmatprep.subr.bf16.mxu0 0
    %3596 = vmatpush2.bf16.msra.mxu0 0
    %3597 = vmatprep.subr.bf16.mxu0 0
    %3598 = vmatpush2.bf16.msra.mxu0 0
    %3599 = vmatprep.subr.bf16.mxu0 0
    %3600 = vmatpush2.bf16.msra.mxu0 0
    %3601 = vmatprep.subr.bf16.mxu0 0
    %3602 = vmatpush2.bf16.msra.mxu0 0
    %3603 = vmatprep.subr.bf16.mxu0 0
    %3604 = vmatpush2.bf16.msra.mxu0 0
    %3605 = vmatprep.mubr.bf16.mxu0 0
    %3606 = vmatmul.mubr.bf16.gmra.mxu0 %v3508
    %v3607 = vpop.f32.mrf.mxu0
    %v3608 = vadd.f32 0.0, %v3607
    %v3609 = vpop.f32.mrf.mxu0
    %v3610 = vpop.f32.mrf.mxu0
    %v3611 = vpop.f32.mrf.mxu0
    %3612 = vdwg.mxu0
    %v3629 = vunpack.c.l.b16 %v3492
    %v3630 = vunpack.c.l.b16 %v3493
    %v3631 = vunpack.c.l.b16 %v3494
    %v3632 = vunpack.c.l.b16 %v3495
    %v3633 = vunpack.c.l.b16 %v3496
    %v3634 = vunpack.c.l.b16 %v3497
    %v3635 = vunpack.c.l.b16 %v3498
    %v3636 = vunpack.c.l.b16 %v3499
    %v3637 = vunpack.c.l.b16 %v3500
    %v3638 = vunpack.c.l.b16 %v3501
    %v3639 = vunpack.c.l.b16 %v3502
    %v3640 = vunpack.c.l.b16 %v3503
    %v3641 = vunpack.c.l.b16 %v3504
    %v3642 = vunpack.c.l.b16 %v3505
    %v3643 = vunpack.c.l.b16 %v3506
    %v3644 = vunpack.c.l.b16 %v3507
    %v3645 = vpack.c.b16 %v3630, %v3629
    %v3646 = vpack.c.b16 %v3632, %v3631
    %v3647 = vpack.c.b16 %v3634, %v3633
    %v3648 = vpack.c.b16 %v3636, %v3635
    %v3649 = vpack.c.b16 %v3638, %v3637
    %v3650 = vpack.c.b16 %v3640, %v3639
    %v3651 = vpack.c.b16 %v3642, %v3641
    %v3652 = vpack.c.b16 %v3644, %v3643
    %3661 = vmatprep.subr.bf16.mxu0 0
    %3662 = vmatpush1.bf16.msra.mxu0 %v3652
    %3663 = vmatprep.subr.bf16.mxu0 0
    %3664 = vmatpush1.bf16.msra.mxu0 %v3651
    %3665 = vmatprep.subr.bf16.mxu0 0
    %3666 = vmatpush1.bf16.msra.mxu0 %v3650
    %3667 = vmatprep.subr.bf16.mxu0 0
    %3668 = vmatpush1.bf16.msra.mxu0 %v3649
    %3669 = vmatprep.subr.bf16.mxu0 0
    %3670 = vmatpush1.bf16.msra.mxu0 %v3648
    %3671 = vmatprep.subr.bf16.mxu0 0
    %3672 = vmatpush1.bf16.msra.mxu0 %v3647
    %3673 = vmatprep.subr.bf16.mxu0 0
    %3674 = vmatpush1.bf16.msra.mxu0 %v3646
    %3675 = vmatprep.subr.bf16.mxu0 0
    %3676 = vmatpush1.bf16.msra.mxu0 %v3645
    %3677 = vmatprep.subr.bf16.mxu0 0
    %3678 = vmatpush2.bf16.msra.mxu0 0
    %3679 = vmatprep.subr.bf16.mxu0 0
    %3680 = vmatpush2.bf16.msra.mxu0 0
    %3681 = vmatprep.subr.bf16.mxu0 0
    %3682 = vmatpush2.bf16.msra.mxu0 0
    %3683 = vmatprep.subr.bf16.mxu0 0
    %3684 = vmatpush2.bf16.msra.mxu0 0
    %3685 = vmatprep.subr.bf16.mxu0 0
    %3686 = vmatpush2.bf16.msra.mxu0 0
    %3687 = vmatprep.subr.bf16.mxu0 0
    %3688 = vmatpush2.bf16.msra.mxu0 0
    %3689 = vmatprep.subr.bf16.mxu0 0
    %3690 = vmatpush2.bf16.msra.mxu0 0
    %3691 = vmatprep.subr.bf16.mxu0 0
    %3692 = vmatpush2.bf16.msra.mxu0 0
    %3693 = vmatprep.mubr.bf16.mxu0 0
    %3694 = vmatmul.mubr.bf16.gmra.mxu0 %v3491
    %v3695 = vpop.f32.mrf.mxu0
    %v3696 = vadd.f32 %v3608, %v3695
    %v3697 = vpop.f32.mrf.mxu0
    %v3698 = vpop.f32.mrf.mxu0
    %v3699 = vpop.f32.mrf.mxu0
    %3700 = vdwg.mxu0
    %v3701 = vadd.f32 %v3696, %v2773
    %v3702 = vtanh.pop %v3701
    %v3703 = vpack.c.bf16 %v3702, %v3702
    %v3704 = vld [vmem:[#allocation23] sm:$0xf]
    %v3705 = vld [vmem:[#allocation23 + $0x4] sm:$0xf]
    %v3706 = vld [vmem:[#allocation23 + $0x8] sm:$0xf]
    %v3707 = vld [vmem:[#allocation23 + $0xc] sm:$0xf]
    %v3708 = vld [vmem:[#allocation23 + $0x10] sm:$0xf]
    %v3709 = vld [vmem:[#allocation23 + $0x14] sm:$0xf]
    %v3710 = vld [vmem:[#allocation23 + $0x18] sm:$0xf]
    %v3711 = vld [vmem:[#allocation23 + $0x1c] sm:$0xf]
    %v3712 = vld [vmem:[#allocation23 + $0x20] sm:$0xf]
    %v3713 = vld [vmem:[#allocation23 + $0x24] sm:$0xf]
    %v3714 = vld [vmem:[#allocation23 + $0x28] sm:$0xf]
    %v3715 = vld [vmem:[#allocation23 + $0x2c] sm:$0xf]
    %v3716 = vld [vmem:[#allocation23 + $0x30] sm:$0xf]
    %v3717 = vld [vmem:[#allocation23 + $0x34] sm:$0xf]
    %v3718 = vld [vmem:[#allocation23 + $0x38] sm:$0xf]
    %v3719 = vld [vmem:[#allocation23 + $0x3c] sm:$0xf]
    %v3736 = vunpack.c.l.b16 %v3704
    %v3737 = vunpack.c.l.b16 %v3705
    %v3738 = vunpack.c.l.b16 %v3706
    %v3739 = vunpack.c.l.b16 %v3707
    %v3740 = vunpack.c.l.b16 %v3708
    %v3741 = vunpack.c.l.b16 %v3709
    %v3742 = vunpack.c.l.b16 %v3710
    %v3743 = vunpack.c.l.b16 %v3711
    %v3744 = vunpack.c.l.b16 %v3712
    %v3745 = vunpack.c.l.b16 %v3713
    %v3746 = vunpack.c.l.b16 %v3714
    %v3747 = vunpack.c.l.b16 %v3715
    %v3748 = vunpack.c.l.b16 %v3716
    %v3749 = vunpack.c.l.b16 %v3717
    %v3750 = vunpack.c.l.b16 %v3718
    %v3751 = vunpack.c.l.b16 %v3719
    %v3752 = vpack.c.b16 %v3737, %v3736
    %v3753 = vpack.c.b16 %v3739, %v3738
    %v3754 = vpack.c.b16 %v3741, %v3740
    %v3755 = vpack.c.b16 %v3743, %v3742
    %v3756 = vpack.c.b16 %v3745, %v3744
    %v3757 = vpack.c.b16 %v3747, %v3746
    %v3758 = vpack.c.b16 %v3749, %v3748
    %v3759 = vpack.c.b16 %v3751, %v3750
    %3768 = vmatprep.subr.bf16.mxu0 0
    %3769 = vmatpush1.bf16.msra.mxu0 %v3759
    %3770 = vmatprep.subr.bf16.mxu0 0
    %3771 = vmatpush1.bf16.msra.mxu0 %v3758
    %3772 = vmatprep.subr.bf16.mxu0 0
    %3773 = vmatpush1.bf16.msra.mxu0 %v3757
    %3774 = vmatprep.subr.bf16.mxu0 0
    %3775 = vmatpush1.bf16.msra.mxu0 %v3756
    %3776 = vmatprep.subr.bf16.mxu0 0
    %3777 = vmatpush1.bf16.msra.mxu0 %v3755
    %3778 = vmatprep.subr.bf16.mxu0 0
    %3779 = vmatpush1.bf16.msra.mxu0 %v3754
    %3780 = vmatprep.subr.bf16.mxu0 0
    %3781 = vmatpush1.bf16.msra.mxu0 %v3753
    %3782 = vmatprep.subr.bf16.mxu0 0
    %3783 = vmatpush1.bf16.msra.mxu0 %v3752
    %3784 = vmatprep.subr.bf16.mxu0 0
    %3785 = vmatpush2.bf16.msra.mxu0 0
    %3786 = vmatprep.subr.bf16.mxu0 0
    %3787 = vmatpush2.bf16.msra.mxu0 0
    %3788 = vmatprep.subr.bf16.mxu0 0
    %3789 = vmatpush2.bf16.msra.mxu0 0
    %3790 = vmatprep.subr.bf16.mxu0 0
    %3791 = vmatpush2.bf16.msra.mxu0 0
    %3792 = vmatprep.subr.bf16.mxu0 0
    %3793 = vmatpush2.bf16.msra.mxu0 0
    %3794 = vmatprep.subr.bf16.mxu0 0
    %3795 = vmatpush2.bf16.msra.mxu0 0
    %3796 = vmatprep.subr.bf16.mxu0 0
    %3797 = vmatpush2.bf16.msra.mxu0 0
    %3798 = vmatprep.subr.bf16.mxu0 0
    %3799 = vmatpush2.bf16.msra.mxu0 0
    %3800 = vmatprep.mubr.bf16.mxu0 0
    %3801 = vmatmul.mubr.bf16.gmra.mxu0 %v3703
    %v3802 = vpop.f32.mrf.mxu0
    %v3803 = vadd.f32 %v2774, %v3802
    %v3804 = vpop.f32.mrf.mxu0
    %v3805 = vpop.f32.mrf.mxu0
    %v3806 = vpop.f32.mrf.mxu0
    %3807 = vdwg.mxu0
    %v3808 = vsel %vm2779, %v3803, -1e+30
    %vm3809 = vcmask 1040384
    %v3810 = vsel %vm3809, %v3808, -inf
    %3811 = vmax.xlane.f32.xlu0 %v3810
    %v3812 = vpop.xlane.xlu0 %3811
    %v3813 = vsub.f32 %v3808, %v3812
    %v3814 = vmul.f32 %v3813, 1.442695
    %v3815 = vpow.pop %v3814
    %v3816 = vsel %vm3809, %v3815, 0.0
    %3817 = vadd.xlane.f32.xlu0 %v3816
    %v3818 = vpop.xlane.xlu0 %3817
    %v3819 = vrcp.pop %v3818
    %vm3820 = vcmp.eq.f32.partialorder %v3808, %v3812
    %v3821 = vsel %vm3820, %v2776, 128
    %v3822 = vsel %vm3809, %v3821, 2147483647
    %v3823 = vand.u32 %v3822, 65535
    %v3824 = vshra.s32 %v3822, 16
    %v3825 = vcvt.s32.f32 %v3823
    %v3826 = vcvt.s32.f32 %v3824
    %3827 = vmin.xlane.f32.xlu0 %v3826
    %v3828 = vpop.xlane.xlu0 %3827
    %vm3829 = vcmp.eq.f32.partialorder %v3826, %v3828
    %v3830 = vsel %vm3829, %v3825, inf
    %3831 = vmin.xlane.f32.xlu0 %v3830
    %v3832 = vpop.xlane.xlu0 %3831
    %v3833 = vcvt.f32.s32 %v3832
    %v3834 = vcvt.f32.s32 %v3828
    %v3835 = vshll.u32 %v3834, 16
    %v3836 = vadd.s32 %v3835, %v3833
    %v3837 = vrot.slane %v3836, 4
    %vm3838 = vcmp.lt.s32.totalorder %v3836, %v3837
    %v3839 = vsel %vm3838, %v3836, %v3837
    %v3840 = vrot.slane %v3839, 2
    %vm3841 = vcmp.lt.s32.totalorder %v3839, %v3840
    %v3842 = vsel %vm3841, %v3839, %v3840
    %v3843 = vrot.slane %v3842, 1
    %vm3844 = vcmp.lt.s32.totalorder %v3842, %v3843
    %v3845 = vsel %vm3844, %v3842, %v3843
    %s3846 = vtos %v3845
    %vm3847 = vcmp.eq.s32.totalorder %v2776, 0
    %v3848 = vstv %s3846
    %v3849 = vsel %vm3847, %v3848, 0
    %v3850 = vsel %vm3847, %v3819, 0.0
    %s3851 = scalar_lea.vmem [#allocation15], %s3846
    %v3852 = vld [vmem:[%s3851] sm:$0x1]
    %v3853 = vpack.c.bf16 %v3852, %v3852
    %3854 = vmatprep.subr.bf16.mxu0 %v2916
    %3855 = vmatpush1.bf16.msra.mxu0 %v2915
    %3856 = vmatprep.subr.bf16.mxu0 %v2913
    %3857 = vmatpush1.bf16.msra.mxu0 %v2912
    %3858 = vmatprep.subr.bf16.mxu0 %v2910
    %3859 = vmatpush1.bf16.msra.mxu0 %v2909
    %3860 = vmatprep.subr.bf16.mxu0 %v2907
    %3861 = vmatpush1.bf16.msra.mxu0 %v2906
    %3862 = vmatprep.subr.bf16.mxu0 %v2904
    %3863 = vmatpush1.bf16.msra.mxu0 %v2903
    %3864 = vmatprep.subr.bf16.mxu0 %v2901
    %3865 = vmatpush1.bf16.msra.mxu0 %v2900
    %3866 = vmatprep.subr.bf16.mxu0 %v2898
    %3867 = vmatpush1.bf16.msra.mxu0 %v2897
    %3868 = vmatprep.subr.bf16.mxu0 %v2895
    %3869 = vmatpush1.bf16.msra.mxu0 %v2894
    %3870 = vmatprep.subr.bf16.mxu0 0
    %3871 = vmatpush2.bf16.msra.mxu0 0
    %3872 = vmatprep.subr.bf16.mxu0 0
    %3873 = vmatpush2.bf16.msra.mxu0 0
    %3874 = vmatprep.subr.bf16.mxu0 0
    %3875 = vmatpush2.bf16.msra.mxu0 0
    %3876 = vmatprep.subr.bf16.mxu0 0
    %3877 = vmatpush2.bf16.msra.mxu0 0
    %3878 = vmatprep.subr.bf16.mxu0 0
    %3879 = vmatpush2.bf16.msra.mxu0 0
    %3880 = vmatprep.subr.bf16.mxu0 0
    %3881 = vmatpush2.bf16.msra.mxu0 0
    %3882 = vmatprep.subr.bf16.mxu0 0
    %3883 = vmatpush2.bf16.msra.mxu0 0
    %3884 = vmatprep.subr.bf16.mxu0 0
    %3885 = vmatpush2.bf16.msra.mxu0 0
    %3886 = vmatprep.mubr.bf16.mxu0 0
    %3887 = vmatmul.mubr.bf16.gmra.mxu0 %v3853
    %v3888 = vpop.f32.mrf.mxu0
    %v3889 = vadd.f32 %v2946, %v3888
    %v3890 = vpop.f32.mrf.mxu0
    %v3891 = vadd.f32 %v2950, %v3890
    %v3892 = vpop.f32.mrf.mxu0
    %v3893 = vpop.f32.mrf.mxu0
    %3894 = vdwg.mxu0
    %3895 = vmatprep.subr.bf16.mxu0 0
    %3896 = vmatpush1.bf16.msra.mxu0 %v2917
    %3897 = vmatprep.subr.bf16.mxu0 0
    %3898 = vmatpush1.bf16.msra.mxu0 %v2914
    %3899 = vmatprep.subr.bf16.mxu0 0
    %3900 = vmatpush1.bf16.msra.mxu0 %v2911
    %3901 = vmatprep.subr.bf16.mxu0 0
    %3902 = vmatpush1.bf16.msra.mxu0 %v2908
    %3903 = vmatprep.subr.bf16.mxu0 0
    %3904 = vmatpush1.bf16.msra.mxu0 %v2905
    %3905 = vmatprep.subr.bf16.mxu0 0
    %3906 = vmatpush1.bf16.msra.mxu0 %v2902
    %3907 = vmatprep.subr.bf16.mxu0 0
    %3908 = vmatpush1.bf16.msra.mxu0 %v2899
    %3909 = vmatprep.subr.bf16.mxu0 0
    %3910 = vmatpush1.bf16.msra.mxu0 %v2896
    %3911 = vmatprep.subr.bf16.mxu0 0
    %3912 = vmatpush2.bf16.msra.mxu0 0
    %3913 = vmatprep.subr.bf16.mxu0 0
    %3914 = vmatpush2.bf16.msra.mxu0 0
    %3915 = vmatprep.subr.bf16.mxu0 0
    %3916 = vmatpush2.bf16.msra.mxu0 0
    %3917 = vmatprep.subr.bf16.mxu0 0
    %3918 = vmatpush2.bf16.msra.mxu0 0
    %3919 = vmatprep.subr.bf16.mxu0 0
    %3920 = vmatpush2.bf16.msra.mxu0 0
    %3921 = vmatprep.subr.bf16.mxu0 0
    %3922 = vmatpush2.bf16.msra.mxu0 0
    %3923 = vmatprep.subr.bf16.mxu0 0
    %3924 = vmatpush2.bf16.msra.mxu0 0
    %3925 = vmatprep.subr.bf16.mxu0 0
    %3926 = vmatpush2.bf16.msra.mxu0 0
    %3927 = vmatprep.mubr.bf16.mxu0 0
    %3928 = vmatmul.mubr.bf16.gmra.mxu0 %v3853
    %v3929 = vpop.f32.mrf.mxu0
    %v3930 = vadd.f32 %v2954, %v3929
    %v3931 = vpop.f32.mrf.mxu0
    %v3932 = vpop.f32.mrf.mxu0
    %v3933 = vpop.f32.mrf.mxu0
    %3934 = vdwg.mxu0
    %3935 = vmatprep.subr.bf16.mxu0 %v3174
    %3936 = vmatpush1.bf16.msra.mxu0 %v3173
    %3937 = vmatprep.subr.bf16.mxu0 %v3171
    %3938 = vmatpush1.bf16.msra.mxu0 %v3170
    %3939 = vmatprep.subr.bf16.mxu0 %v3168
    %3940 = vmatpush1.bf16.msra.mxu0 %v3167
    %3941 = vmatprep.subr.bf16.mxu0 %v3165
    %3942 = vmatpush1.bf16.msra.mxu0 %v3164
    %3943 = vmatprep.subr.bf16.mxu0 %v3162
    %3944 = vmatpush1.bf16.msra.mxu0 %v3161
    %3945 = vmatprep.subr.bf16.mxu0 %v3159
    %3946 = vmatpush1.bf16.msra.mxu0 %v3158
    %3947 = vmatprep.subr.bf16.mxu0 %v3156
    %3948 = vmatpush1.bf16.msra.mxu0 %v3155
    %3949 = vmatprep.subr.bf16.mxu0 %v3153
    %3950 = vmatpush1.bf16.msra.mxu0 %v3152
    %3951 = vmatprep.subr.bf16.mxu0 0
    %3952 = vmatpush2.bf16.msra.mxu0 0
    %3953 = vmatprep.subr.bf16.mxu0 0
    %3954 = vmatpush2.bf16.msra.mxu0 0
    %3955 = vmatprep.subr.bf16.mxu0 0
    %3956 = vmatpush2.bf16.msra.mxu0 0
    %3957 = vmatprep.subr.bf16.mxu0 0
    %3958 = vmatpush2.bf16.msra.mxu0 0
    %3959 = vmatprep.subr.bf16.mxu0 0
    %3960 = vmatpush2.bf16.msra.mxu0 0
    %3961 = vmatprep.subr.bf16.mxu0 0
    %3962 = vmatpush2.bf16.msra.mxu0 0
    %3963 = vmatprep.subr.bf16.mxu0 0
    %3964 = vmatpush2.bf16.msra.mxu0 0
    %3965 = vmatprep.subr.bf16.mxu0 0
    %3966 = vmatpush2.bf16.msra.mxu0 0
    %3967 = vmatprep.mubr.bf16.mxu0 0
    %3968 = vmatmul.mubr.bf16.gmra.mxu0 %v3491
    %v3969 = vpop.f32.mrf.mxu0
    %v3970 = vadd.f32 %v3204, %v3969
    %v3971 = vpop.f32.mrf.mxu0
    %v3972 = vadd.f32 %v3208, %v3971
    %v3973 = vpop.f32.mrf.mxu0
    %v3974 = vpop.f32.mrf.mxu0
    %3975 = vdwg.mxu0
    %3976 = vmatprep.subr.bf16.mxu0 0
    %3977 = vmatpush1.bf16.msra.mxu0 %v3175
    %3978 = vmatprep.subr.bf16.mxu0 0
    %3979 = vmatpush1.bf16.msra.mxu0 %v3172
    %3980 = vmatprep.subr.bf16.mxu0 0
    %3981 = vmatpush1.bf16.msra.mxu0 %v3169
    %3982 = vmatprep.subr.bf16.mxu0 0
    %3983 = vmatpush1.bf16.msra.mxu0 %v3166
    %3984 = vmatprep.subr.bf16.mxu0 0
    %3985 = vmatpush1.bf16.msra.mxu0 %v3163
    %3986 = vmatprep.subr.bf16.mxu0 0
    %3987 = vmatpush1.bf16.msra.mxu0 %v3160
    %3988 = vmatprep.subr.bf16.mxu0 0
    %3989 = vmatpush1.bf16.msra.mxu0 %v3157
    %3990 = vmatprep.subr.bf16.mxu0 0
    %3991 = vmatpush1.bf16.msra.mxu0 %v3154
    %3992 = vmatprep.subr.bf16.mxu0 0
    %3993 = vmatpush2.bf16.msra.mxu0 0
    %3994 = vmatprep.subr.bf16.mxu0 0
    %3995 = vmatpush2.bf16.msra.mxu0 0
    %3996 = vmatprep.subr.bf16.mxu0 0
    %3997 = vmatpush2.bf16.msra.mxu0 0
    %3998 = vmatprep.subr.bf16.mxu0 0
    %3999 = vmatpush2.bf16.msra.mxu0 0
    %4000 = vmatprep.subr.bf16.mxu0 0
    %4001 = vmatpush2.bf16.msra.mxu0 0
    %4002 = vmatprep.subr.bf16.mxu0 0
    %4003 = vmatpush2.bf16.msra.mxu0 0
    %4004 = vmatprep.subr.bf16.mxu0 0
    %4005 = vmatpush2.bf16.msra.mxu0 0
    %4006 = vmatprep.subr.bf16.mxu0 0
    %4007 = vmatpush2.bf16.msra.mxu0 0
    %4008 = vmatprep.mubr.bf16.mxu0 0
    %4009 = vmatmul.mubr.bf16.gmra.mxu0 %v3491
    %v4010 = vpop.f32.mrf.mxu0
    %v4011 = vadd.f32 %v3212, %v4010
    %v4012 = vpop.f32.mrf.mxu0
    %v4013 = vpop.f32.mrf.mxu0
    %v4014 = vpop.f32.mrf.mxu0
    %4015 = vdwg.mxu0
    %v4016 = vadd.f32 %v3889, %v3970
    %v4017 = vxor.u32 %v4016, 2147483648
    %v4018 = vmul.f32 %v4017, 1.442695
    %v4019 = vpow.pop %v4018
    %v4020 = vadd.f32 %v4019, 1.0
    %v4021 = vrcp.pop %v4020
    %v4022 = vmul.f32 1.0, %v4021
    %v4023 = vadd.f32 %v3891, %v3972
    %v4024 = vxor.u32 %v4023, 2147483648
    %v4025 = vmul.f32 %v4024, 1.442695
    %v4026 = vpow.pop %v4025
    %v4027 = vadd.f32 %v4026, 1.0
    %v4028 = vrcp.pop %v4027
    %v4029 = vmul.f32 1.0, %v4028
    %v4030 = vmul.f32 %v4022, %v4011
    %v4031 = vadd.f32 %v3930, %v4030
    %v4032 = vtanh.pop %v4031
    %v4033 = vsub.f32 1.0, %v4029
    %v4034 = vmul.f32 %v4033, %v4032
    %v4035 = vmul.f32 %v4029, %v3317
    %v4036 = vadd.f32 %v4034, %v4035
    %4037 = vmatprep.subr.mxu0 0.0
    %4038 = vmatpush1.msra.mxu0 %v3333
    %4039 = vmatprep.subr.mxu0 0.0
    %4040 = vmatpush1.msra.mxu0 %v3332
    %4041 = vmatprep.subr.mxu0 0.0
    %4042 = vmatpush1.msra.mxu0 %v3331
    %4043 = vmatprep.subr.mxu0 0.0
    %4044 = vmatpush1.msra.mxu0 %v3330
    %4045 = vmatprep.subr.mxu0 0.0
    %4046 = vmatpush1.msra.mxu0 %v3329
    %4047 = vmatprep.subr.mxu0 0.0
    %4048 = vmatpush1.msra.mxu0 %v3328
    %4049 = vmatprep.subr.mxu0 0.0
    %4050 = vmatpush1.msra.mxu0 %v3327
    %4051 = vmatprep.subr.mxu0 0.0
    %4052 = vmatpush1.msra.mxu0 %v3326
    %4053 = vmatprep.subr.mxu0 0.0
    %4054 = vmatpush1.msra.mxu0 %v3325
    %4055 = vmatprep.subr.mxu0 0.0
    %4056 = vmatpush1.msra.mxu0 %v3324
    %4057 = vmatprep.subr.mxu0 0.0
    %4058 = vmatpush1.msra.mxu0 %v3323
    %4059 = vmatprep.subr.mxu0 0.0
    %4060 = vmatpush1.msra.mxu0 %v3322
    %4061 = vmatprep.subr.mxu0 0.0
    %4062 = vmatpush1.msra.mxu0 %v3321
    %4063 = vmatprep.subr.mxu0 0.0
    %4064 = vmatpush1.msra.mxu0 %v3320
    %4065 = vmatprep.subr.mxu0 0.0
    %4066 = vmatpush1.msra.mxu0 %v3319
    %4067 = vmatprep.subr.mxu0 0.0
    %4068 = vmatpush1.msra.mxu0 %v3318
    %4069 = vmatprep.subr.mxu0 0.0
    %4070 = vmatpush2.msra.mxu0 0.0
    %4071 = vmatprep.subr.mxu0 0.0
    %4072 = vmatpush2.msra.mxu0 0.0
    %4073 = vmatprep.subr.mxu0 0.0
    %4074 = vmatpush2.msra.mxu0 0.0
    %4075 = vmatprep.subr.mxu0 0.0
    %4076 = vmatpush2.msra.mxu0 0.0
    %4077 = vmatprep.subr.mxu0 0.0
    %4078 = vmatpush2.msra.mxu0 0.0
    %4079 = vmatprep.subr.mxu0 0.0
    %4080 = vmatpush2.msra.mxu0 0.0
    %4081 = vmatprep.subr.mxu0 0.0
    %4082 = vmatpush2.msra.mxu0 0.0
    %4083 = vmatprep.subr.mxu0 0.0
    %4084 = vmatpush2.msra.mxu0 0.0
    %4085 = vmatprep.subr.mxu0 0.0
    %4086 = vmatpush2.msra.mxu0 0.0
    %4087 = vmatprep.subr.mxu0 0.0
    %4088 = vmatpush2.msra.mxu0 0.0
    %4089 = vmatprep.subr.mxu0 0.0
    %4090 = vmatpush2.msra.mxu0 0.0
    %4091 = vmatprep.subr.mxu0 0.0
    %4092 = vmatpush2.msra.mxu0 0.0
    %4093 = vmatprep.subr.mxu0 0.0
    %4094 = vmatpush2.msra.mxu0 0.0
    %4095 = vmatprep.subr.mxu0 0.0
    %4096 = vmatpush2.msra.mxu0 0.0
    %4097 = vmatprep.subr.mxu0 0.0
    %4098 = vmatpush2.msra.mxu0 0.0
    %4099 = vmatprep.subr.mxu0 0.0
    %4100 = vmatpush2.msra.mxu0 0.0
    %4101 = vmatprep.mubr.f32.mxu0 0.0
    %4102 = vmatmul.mubr.f32.gmra.mxu0 %v4036
    %v4103 = vpop.f32.mrf.mxu0
    %v4104 = vadd.f32 0.0, %v4103
    %v4105 = vpop.f32.mrf.mxu0
    %4106 = vdwg.mxu0
    %v4107 = vsel %vm2778, %v4104, -1e+30
    %v4108 = vsel %vm3405, %v4107, -inf
    %4109 = vmax.xlane.f32.xlu0 %v4108
    %v4110 = vpop.xlane.xlu0 %4109
    %v4111 = vsub.f32 %v4107, %v4110
    %v4112 = vmul.f32 %v4111, 1.442695
    %v4113 = vpow.pop %v4112
    %v4114 = vsel %vm3405, %v4113, 0.0
    %4115 = vadd.xlane.f32.xlu0 %v4114
    %v4116 = vpop.xlane.xlu0 %4115
    %v4117 = vrcp.pop %v4116
    %v4118 = vmul.f32 %v4113, %v4117
    %v4120 = vsel %vm2754, %v4118, 0
    %4122 = vmatprep.subr.mxu0 0.0
    %4123 = vmatpush1.msra.mxu0 0.0
    %4124 = vmatprep.subr.mxu0 0.0
    %4125 = vmatpush1.msra.mxu0 0.0
    %4126 = vmatprep.subr.mxu0 0.0
    %4127 = vmatpush1.msra.mxu0 0.0
    %4128 = vmatprep.subr.mxu0 0.0
    %4129 = vmatpush1.msra.mxu0 0.0
    %4130 = vmatprep.subr.mxu0 0.0
    %4131 = vmatpush1.msra.mxu0 0.0
    %4132 = vmatprep.subr.mxu0 0.0
    %4133 = vmatpush1.msra.mxu0 0.0
    %4134 = vmatprep.subr.mxu0 0.0
    %4135 = vmatpush1.msra.mxu0 0.0
    %4136 = vmatprep.subr.mxu0 0.0
    %4137 = vmatpush1.msra.mxu0 0.0
    %4138 = vmatprep.subr.mxu0 0.0
    %4139 = vmatpush1.msra.mxu0 0.0
    %4140 = vmatprep.subr.mxu0 0.0
    %4141 = vmatpush1.msra.mxu0 0.0
    %4142 = vmatprep.subr.mxu0 0.0
    %4143 = vmatpush1.msra.mxu0 0.0
    %4144 = vmatprep.subr.mxu0 0.0
    %4145 = vmatpush1.msra.mxu0 0.0
    %4146 = vmatprep.subr.mxu0 0.0
    %4147 = vmatpush1.msra.mxu0 0.0
    %4148 = vmatprep.subr.mxu0 0.0
    %4149 = vmatpush1.msra.mxu0 0.0
    %4150 = vmatprep.subr.mxu0 0.0
    %4151 = vmatpush1.msra.mxu0 0.0
    %4152 = vmatprep.subr.mxu0 0.0
    %4153 = vmatpush1.msra.mxu0 %v3417
    %4154 = vmatprep.subr.mxu0 0.0
    %4155 = vmatpush2.msra.mxu0 0.0
    %4156 = vmatprep.subr.mxu0 0.0
    %4157 = vmatpush2.msra.mxu0 0.0
    %4158 = vmatprep.subr.mxu0 0.0
    %4159 = vmatpush2.msra.mxu0 0.0
    %4160 = vmatprep.subr.mxu0 0.0
    %4161 = vmatpush2.msra.mxu0 0.0
    %4162 = vmatprep.subr.mxu0 0.0
    %4163 = vmatpush2.msra.mxu0 0.0
    %4164 = vmatprep.subr.mxu0 0.0
    %4165 = vmatpush2.msra.mxu0 0.0
    %4166 = vmatprep.subr.mxu0 0.0
    %4167 = vmatpush2.msra.mxu0 0.0
    %4168 = vmatprep.subr.mxu0 0.0
    %4169 = vmatpush2.msra.mxu0 0.0
    %4170 = vmatprep.subr.mxu0 0.0
    %4171 = vmatpush2.msra.mxu0 0.0
    %4172 = vmatprep.subr.mxu0 0.0
    %4173 = vmatpush2.msra.mxu0 0.0
    %4174 = vmatprep.subr.mxu0 0.0
    %4175 = vmatpush2.msra.mxu0 0.0
    %4176 = vmatprep.subr.mxu0 0.0
    %4177 = vmatpush2.msra.mxu0 0.0
    %4178 = vmatprep.subr.mxu0 0.0
    %4179 = vmatpush2.msra.mxu0 0.0
    %4180 = vmatprep.subr.mxu0 0.0
    %4181 = vmatpush2.msra.mxu0 0.0
    %4182 = vmatprep.subr.mxu0 0.0
    %4183 = vmatpush2.msra.mxu0 0.0
    %4184 = vmatprep.subr.mxu0 0.0
    %4185 = vmatpush2.msra.mxu0 0.0
    %4186 = vmatprep.mubr.f32.mxu0 0.0
    %4187 = vmatmul.mubr.f32.gmra.mxu0 %v4120
    %v4188 = vpop.f32.mrf.mxu0
    %v4189 = vadd.f32 0.0, %v4188
    %v4190 = vpop.f32.mrf.mxu0
    %4191 = vdwg.mxu0
    %v4192 = vpack.c.bf16 %v4036, %v4036
    %v4193 = vpack.c.bf16 %v4189, %v4189
    %4194 = vmatprep.subr.bf16.mxu0 0
    %4195 = vmatpush1.bf16.msra.mxu0 %v3564
    %4196 = vmatprep.subr.bf16.mxu0 0
    %4197 = vmatpush1.bf16.msra.mxu0 %v3563
    %4198 = vmatprep.subr.bf16.mxu0 0
    %4199 = vmatpush1.bf16.msra.mxu0 %v3562
    %4200 = vmatprep.subr.bf16.mxu0 0
    %4201 = vmatpush1.bf16.msra.mxu0 %v3561
    %4202 = vmatprep.subr.bf16.mxu0 0
    %4203 = vmatpush1.bf16.msra.mxu0 %v3560
    %4204 = vmatprep.subr.bf16.mxu0 0
    %4205 = vmatpush1.bf16.msra.mxu0 %v3559
    %4206 = vmatprep.subr.bf16.mxu0 0
    %4207 = vmatpush1.bf16.msra.mxu0 %v3558
    %4208 = vmatprep.subr.bf16.mxu0 0
    %4209 = vmatpush1.bf16.msra.mxu0 %v3557
    %4210 = vmatprep.subr.bf16.mxu0 0
    %4211 = vmatpush2.bf16.msra.mxu0 0
    %4212 = vmatprep.subr.bf16.mxu0 0
    %4213 = vmatpush2.bf16.msra.mxu0 0
    %4214 = vmatprep.subr.bf16.mxu0 0
    %4215 = vmatpush2.bf16.msra.mxu0 0
    %4216 = vmatprep.subr.bf16.mxu0 0
    %4217 = vmatpush2.bf16.msra.mxu0 0
    %4218 = vmatprep.subr.bf16.mxu0 0
    %4219 = vmatpush2.bf16.msra.mxu0 0
    %4220 = vmatprep.subr.bf16.mxu0 0
    %4221 = vmatpush2.bf16.msra.mxu0 0
    %4222 = vmatprep.subr.bf16.mxu0 0
    %4223 = vmatpush2.bf16.msra.mxu0 0
    %4224 = vmatprep.subr.bf16.mxu0 0
    %4225 = vmatpush2.bf16.msra.mxu0 0
    %4226 = vmatprep.mubr.bf16.mxu0 0
    %4227 = vmatmul.mubr.bf16.gmra.mxu0 %v4193
    %v4228 = vpop.f32.mrf.mxu0
    %v4229 = vadd.f32 0.0, %v4228
    %v4230 = vpop.f32.mrf.mxu0
    %v4231 = vpop.f32.mrf.mxu0
    %v4232 = vpop.f32.mrf.mxu0
    %4233 = vdwg.mxu0
    %4234 = vmatprep.subr.bf16.mxu0 0
    %4235 = vmatpush1.bf16.msra.mxu0 %v3652
    %4236 = vmatprep.subr.bf16.mxu0 0
    %4237 = vmatpush1.bf16.msra.mxu0 %v3651
    %4238 = vmatprep.subr.bf16.mxu0 0
    %4239 = vmatpush1.bf16.msra.mxu0 %v3650
    %4240 = vmatprep.subr.bf16.mxu0 0
    %4241 = vmatpush1.bf16.msra.mxu0 %v3649
    %4242 = vmatprep.subr.bf16.mxu0 0
    %4243 = vmatpush1.bf16.msra.mxu0 %v3648
    %4244 = vmatprep.subr.bf16.mxu0 0
    %4245 = vmatpush1.bf16.msra.mxu0 %v3647
    %4246 = vmatprep.subr.bf16.mxu0 0
    %4247 = vmatpush1.bf16.msra.mxu0 %v3646
    %4248 = vmatprep.subr.bf16.mxu0 0
    %4249 = vmatpush1.bf16.msra.mxu0 %v3645
    %4250 = vmatprep.subr.bf16.mxu0 0
    %4251 = vmatpush2.bf16.msra.mxu0 0
    %4252 = vmatprep.subr.bf16.mxu0 0
    %4253 = vmatpush2.bf16.msra.mxu0 0
    %4254 = vmatprep.subr.bf16.mxu0 0
    %4255 = vmatpush2.bf16.msra.mxu0 0
    %4256 = vmatprep.subr.bf16.mxu0 0
    %4257 = vmatpush2.bf16.msra.mxu0 0
    %4258 = vmatprep.subr.bf16.mxu0 0
    %4259 = vmatpush2.bf16.msra.mxu0 0
    %4260 = vmatprep.subr.bf16.mxu0 0
    %4261 = vmatpush2.bf16.msra.mxu0 0
    %4262 = vmatprep.subr.bf16.mxu0 0
    %4263 = vmatpush2.bf16.msra.mxu0 0
    %4264 = vmatprep.subr.bf16.mxu0 0
    %4265 = vmatpush2.bf16.msra.mxu0 0
    %4266 = vmatprep.mubr.bf16.mxu0 0
    %4267 = vmatmul.mubr.bf16.gmra.mxu0 %v4192
    %v4268 = vpop.f32.mrf.mxu0
    %v4269 = vadd.f32 %v4229, %v4268
    %v4270 = vpop.f32.mrf.mxu0
    %v4271 = vpop.f32.mrf.mxu0
    %v4272 = vpop.f32.mrf.mxu0
    %4273 = vdwg.mxu0
    %v4274 = vadd.f32 %v4269, %v2773
    %v4275 = vtanh.pop %v4274
    %v4276 = vpack.c.bf16 %v4275, %v4275
    %4277 = vmatprep.subr.bf16.mxu0 0
    %4278 = vmatpush1.bf16.msra.mxu0 %v3759
    %4279 = vmatprep.subr.bf16.mxu0 0
    %4280 = vmatpush1.bf16.msra.mxu0 %v3758
    %4281 = vmatprep.subr.bf16.mxu0 0
    %4282 = vmatpush1.bf16.msra.mxu0 %v3757
    %4283 = vmatprep.subr.bf16.mxu0 0
    %4284 = vmatpush1.bf16.msra.mxu0 %v3756
    %4285 = vmatprep.subr.bf16.mxu0 0
    %4286 = vmatpush1.bf16.msra.mxu0 %v3755
    %4287 = vmatprep.subr.bf16.mxu0 0
    %4288 = vmatpush1.bf16.msra.mxu0 %v3754
    %4289 = vmatprep.subr.bf16.mxu0 0
    %4290 = vmatpush1.bf16.msra.mxu0 %v3753
    %4291 = vmatprep.subr.bf16.mxu0 0
    %4292 = vmatpush1.bf16.msra.mxu0 %v3752
    %4293 = vmatprep.subr.bf16.mxu0 0
    %4294 = vmatpush2.bf16.msra.mxu0 0
    %4295 = vmatprep.subr.bf16.mxu0 0
    %4296 = vmatpush2.bf16.msra.mxu0 0
    %4297 = vmatprep.subr.bf16.mxu0 0
    %4298 = vmatpush2.bf16.msra.mxu0 0
    %4299 = vmatprep.subr.bf16.mxu0 0
    %4300 = vmatpush2.bf16.msra.mxu0 0
    %4301 = vmatprep.subr.bf16.mxu0 0
    %4302 = vmatpush2.bf16.msra.mxu0 0
    %4303 = vmatprep.subr.bf16.mxu0 0
    %4304 = vmatpush2.bf16.msra.mxu0 0
    %4305 = vmatprep.subr.bf16.mxu0 0
    %4306 = vmatpush2.bf16.msra.mxu0 0
    %4307 = vmatprep.subr.bf16.mxu0 0
    %4308 = vmatpush2.bf16.msra.mxu0 0
    %4309 = vmatprep.mubr.bf16.mxu0 0
    %4310 = vmatmul.mubr.bf16.gmra.mxu0 %v4276
    %v4311 = vpop.f32.mrf.mxu0
    %v4312 = vadd.f32 %v2774, %v4311
    %v4313 = vpop.f32.mrf.mxu0
    %v4314 = vpop.f32.mrf.mxu0
    %v4315 = vpop.f32.mrf.mxu0
    %4316 = vdwg.mxu0
    %v4317 = vsel %vm2779, %v4312, -1e+30
    %v4318 = vsel %vm3809, %v4317, -inf
    %4319 = vmax.xlane.f32.xlu0 %v4318
    %v4320 = vpop.xlane.xlu0 %4319
    %v4321 = vsub.f32 %v4317, %v4320
    %v4322 = vmul.f32 %v4321, 1.442695
    %v4323 = vpow.pop %v4322
    %v4324 = vsel %vm3809, %v4323, 0.0
    %4325 = vadd.xlane.f32.xlu0 %v4324
    %v4326 = vpop.xlane.xlu0 %4325
    %v4327 = vrcp.pop %v4326
    %vm4328 = vcmp.eq.f32.partialorder %v4317, %v4320
    %v4329 = vsel %vm4328, %v2776, 128
    %v4330 = vsel %vm3809, %v4329, 2147483647
    %v4331 = vand.u32 %v4330, 65535
    %v4332 = vshra.s32 %v4330, 16
    %v4333 = vcvt.s32.f32 %v4331
    %v4334 = vcvt.s32.f32 %v4332
    %4335 = vmin.xlane.f32.xlu0 %v4334
    %v4336 = vpop.xlane.xlu0 %4335
    %vm4337 = vcmp.eq.f32.partialorder %v4334, %v4336
    %v4338 = vsel %vm4337, %v4333, inf
    %4339 = vmin.xlane.f32.xlu0 %v4338
    %v4340 = vpop.xlane.xlu0 %4339
    %v4341 = vcvt.f32.s32 %v4340
    %v4342 = vcvt.f32.s32 %v4336
    %v4343 = vshll.u32 %v4342, 16
    %v4344 = vadd.s32 %v4343, %v4341
    %v4345 = vrot.slane %v4344, 4
    %vm4346 = vcmp.lt.s32.totalorder %v4344, %v4345
    %v4347 = vsel %vm4346, %v4344, %v4345
    %v4348 = vrot.slane %v4347, 2
    %vm4349 = vcmp.lt.s32.totalorder %v4347, %v4348
    %v4350 = vsel %vm4349, %v4347, %v4348
    %v4351 = vrot.slane %v4350, 1
    %vm4352 = vcmp.lt.s32.totalorder %v4350, %v4351
    %v4353 = vsel %vm4352, %v4350, %v4351
    %s4354 = vtos %v4353
    %vm4355 = vcmp.eq.s32.totalorder %v2776, 1
    %v4356 = vstv %s4354
    %v4357 = vsel %vm4355, %v4356, %v3849
    %v4358 = vsel %vm4355, %v4327, %v3850
    %s4359 = scalar_lea.vmem [#allocation15], %s4354
    %v4360 = vld [vmem:[%s4359] sm:$0x1]
    %v4361 = vpack.c.bf16 %v4360, %v4360
    %4362 = vmatprep.subr.bf16.mxu0 %v2916
    %4363 = vmatpush1.bf16.msra.mxu0 %v2915
    %4364 = vmatprep.subr.bf16.mxu0 %v2913
    %4365 = vmatpush1.bf16.msra.mxu0 %v2912
    %4366 = vmatprep.subr.bf16.mxu0 %v2910
    %4367 = vmatpush1.bf16.msra.mxu0 %v2909
    %4368 = vmatprep.subr.bf16.mxu0 %v2907
    %4369 = vmatpush1.bf16.msra.mxu0 %v2906
    %4370 = vmatprep.subr.bf16.mxu0 %v2904
    %4371 = vmatpush1.bf16.msra.mxu0 %v2903
    %4372 = vmatprep.subr.bf16.mxu0 %v2901
    %4373 = vmatpush1.bf16.msra.mxu0 %v2900
    %4374 = vmatprep.subr.bf16.mxu0 %v2898
    %4375 = vmatpush1.bf16.msra.mxu0 %v2897
    %4376 = vmatprep.subr.bf16.mxu0 %v2895
    %4377 = vmatpush1.bf16.msra.mxu0 %v2894
    %4378 = vmatprep.subr.bf16.mxu0 0
    %4379 = vmatpush2.bf16.msra.mxu0 0
    %4380 = vmatprep.subr.bf16.mxu0 0
    %4381 = vmatpush2.bf16.msra.mxu0 0
    %4382 = vmatprep.subr.bf16.mxu0 0
    %4383 = vmatpush2.bf16.msra.mxu0 0
    %4384 = vmatprep.subr.bf16.mxu0 0
    %4385 = vmatpush2.bf16.msra.mxu0 0
    %4386 = vmatprep.subr.bf16.mxu0 0
    %4387 = vmatpush2.bf16.msra.mxu0 0
    %4388 = vmatprep.subr.bf16.mxu0 0
    %4389 = vmatpush2.bf16.msra.mxu0 0
    %4390 = vmatprep.subr.bf16.mxu0 0
    %4391 = vmatpush2.bf16.msra.mxu0 0
    %4392 = vmatprep.subr.bf16.mxu0 0
    %4393 = vmatpush2.bf16.msra.mxu0 0
    %4394 = vmatprep.mubr.bf16.mxu0 0
    %4395 = vmatmul.mubr.bf16.gmra.mxu0 %v4361
    %v4396 = vpop.f32.mrf.mxu0
    %v4397 = vadd.f32 %v2946, %v4396
    %v4398 = vpop.f32.mrf.mxu0
    %v4399 = vadd.f32 %v2950, %v4398
    %v4400 = vpop.f32.mrf.mxu0
    %v4401 = vpop.f32.mrf.mxu0
    %4402 = vdwg.mxu0
    %4403 = vmatprep.subr.bf16.mxu0 0
    %4404 = vmatpush1.bf16.msra.mxu0 %v2917
    %4405 = vmatprep.subr.bf16.mxu0 0
    %4406 = vmatpush1.bf16.msra.mxu0 %v2914
    %4407 = vmatprep.subr.bf16.mxu0 0
    %4408 = vmatpush1.bf16.msra.mxu0 %v2911
    %4409 = vmatprep.subr.bf16.mxu0 0
    %4410 = vmatpush1.bf16.msra.mxu0 %v2908
    %4411 = vmatprep.subr.bf16.mxu0 0
    %4412 = vmatpush1.bf16.msra.mxu0 %v2905
    %4413 = vmatprep.subr.bf16.mxu0 0
    %4414 = vmatpush1.bf16.msra.mxu0 %v2902
    %4415 = vmatprep.subr.bf16.mxu0 0
    %4416 = vmatpush1.bf16.msra.mxu0 %v2899
    %4417 = vmatprep.subr.bf16.mxu0 0
    %4418 = vmatpush1.bf16.msra.mxu0 %v2896
    %4419 = vmatprep.subr.bf16.mxu0 0
    %4420 = vmatpush2.bf16.msra.mxu0 0
    %4421 = vmatprep.subr.bf16.mxu0 0
    %4422 = vmatpush2.bf16.msra.mxu0 0
    %4423 = vmatprep.subr.bf16.mxu0 0
    %4424 = vmatpush2.bf16.msra.mxu0 0
    %4425 = vmatprep.subr.bf16.mxu0 0
    %4426 = vmatpush2.bf16.msra.mxu0 0
    %4427 = vmatprep.subr.bf16.mxu0 0
    %4428 = vmatpush2.bf16.msra.mxu0 0
    %4429 = vmatprep.subr.bf16.mxu0 0
    %4430 = vmatpush2.bf16.msra.mxu0 0
    %4431 = vmatprep.subr.bf16.mxu0 0
    %4432 = vmatpush2.bf16.msra.mxu0 0
    %4433 = vmatprep.subr.bf16.mxu0 0
    %4434 = vmatpush2.bf16.msra.mxu0 0
    %4435 = vmatprep.mubr.bf16.mxu0 0
    %4436 = vmatmul.mubr.bf16.gmra.mxu0 %v4361
    %v4437 = vpop.f32.mrf.mxu0
    %v4438 = vadd.f32 %v2954, %v4437
    %v4439 = vpop.f32.mrf.mxu0
    %v4440 = vpop.f32.mrf.mxu0
    %v4441 = vpop.f32.mrf.mxu0
    %4442 = vdwg.mxu0
    %4443 = vmatprep.subr.bf16.mxu0 %v3174
    %4444 = vmatpush1.bf16.msra.mxu0 %v3173
    %4445 = vmatprep.subr.bf16.mxu0 %v3171
    %4446 = vmatpush1.bf16.msra.mxu0 %v3170
    %4447 = vmatprep.subr.bf16.mxu0 %v3168
    %4448 = vmatpush1.bf16.msra.mxu0 %v3167
    %4449 = vmatprep.subr.bf16.mxu0 %v3165
    %4450 = vmatpush1.bf16.msra.mxu0 %v3164
    %4451 = vmatprep.subr.bf16.mxu0 %v3162
    %4452 = vmatpush1.bf16.msra.mxu0 %v3161
    %4453 = vmatprep.subr.bf16.mxu0 %v3159
    %4454 = vmatpush1.bf16.msra.mxu0 %v3158
    %4455 = vmatprep.subr.bf16.mxu0 %v3156
    %4456 = vmatpush1.bf16.msra.mxu0 %v3155
    %4457 = vmatprep.subr.bf16.mxu0 %v3153
    %4458 = vmatpush1.bf16.msra.mxu0 %v3152
    %4459 = vmatprep.subr.bf16.mxu0 0
    %4460 = vmatpush2.bf16.msra.mxu0 0
    %4461 = vmatprep.subr.bf16.mxu0 0
    %4462 = vmatpush2.bf16.msra.mxu0 0
    %4463 = vmatprep.subr.bf16.mxu0 0
    %4464 = vmatpush2.bf16.msra.mxu0 0
    %4465 = vmatprep.subr.bf16.mxu0 0
    %4466 = vmatpush2.bf16.msra.mxu0 0
    %4467 = vmatprep.subr.bf16.mxu0 0
    %4468 = vmatpush2.bf16.msra.mxu0 0
    %4469 = vmatprep.subr.bf16.mxu0 0
    %4470 = vmatpush2.bf16.msra.mxu0 0
    %4471 = vmatprep.subr.bf16.mxu0 0
    %4472 = vmatpush2.bf16.msra.mxu0 0
    %4473 = vmatprep.subr.bf16.mxu0 0
    %4474 = vmatpush2.bf16.msra.mxu0 0
    %4475 = vmatprep.mubr.bf16.mxu0 0
    %4476 = vmatmul.mubr.bf16.gmra.mxu0 %v4192
    %v4477 = vpop.f32.mrf.mxu0
    %v4478 = vadd.f32 %v3204, %v4477
    %v4479 = vpop.f32.mrf.mxu0
    %v4480 = vadd.f32 %v3208, %v4479
    %v4481 = vpop.f32.mrf.mxu0
    %v4482 = vpop.f32.mrf.mxu0
    %4483 = vdwg.mxu0
    %4484 = vmatprep.subr.bf16.mxu0 0
    %4485 = vmatpush1.bf16.msra.mxu0 %v3175
    %4486 = vmatprep.subr.bf16.mxu0 0
    %4487 = vmatpush1.bf16.msra.mxu0 %v3172
    %4488 = vmatprep.subr.bf16.mxu0 0
    %4489 = vmatpush1.bf16.msra.mxu0 %v3169
    %4490 = vmatprep.subr.bf16.mxu0 0
    %4491 = vmatpush1.bf16.msra.mxu0 %v3166
    %4492 = vmatprep.subr.bf16.mxu0 0
    %4493 = vmatpush1.bf16.msra.mxu0 %v3163
    %4494 = vmatprep.subr.bf16.mxu0 0
    %4495 = vmatpush1.bf16.msra.mxu0 %v3160
    %4496 = vmatprep.subr.bf16.mxu0 0
    %4497 = vmatpush1.bf16.msra.mxu0 %v3157
    %4498 = vmatprep.subr.bf16.mxu0 0
    %4499 = vmatpush1.bf16.msra.mxu0 %v3154
    %4500 = vmatprep.subr.bf16.mxu0 0
    %4501 = vmatpush2.bf16.msra.mxu0 0
    %4502 = vmatprep.subr.bf16.mxu0 0
    %4503 = vmatpush2.bf16.msra.mxu0 0
    %4504 = vmatprep.subr.bf16.mxu0 0
    %4505 = vmatpush2.bf16.msra.mxu0 0
    %4506 = vmatprep.subr.bf16.mxu0 0
    %4507 = vmatpush2.bf16.msra.mxu0 0
    %4508 = vmatprep.subr.bf16.mxu0 0
    %4509 = vmatpush2.bf16.msra.mxu0 0
    %4510 = vmatprep.subr.bf16.mxu0 0
    %4511 = vmatpush2.bf16.msra.mxu0 0
    %4512 = vmatprep.subr.bf16.mxu0 0
    %4513 = vmatpush2.bf16.msra.mxu0 0
    %4514 = vmatprep.subr.bf16.mxu0 0
    %4515 = vmatpush2.bf16.msra.mxu0 0
    %4516 = vmatprep.mubr.bf16.mxu0 0
    %4517 = vmatmul.mubr.bf16.gmra.mxu0 %v4192
    %v4518 = vpop.f32.mrf.mxu0
    %v4519 = vadd.f32 %v3212, %v4518
    %v4520 = vpop.f32.mrf.mxu0
    %v4521 = vpop.f32.mrf.mxu0
    %v4522 = vpop.f32.mrf.mxu0
    %4523 = vdwg.mxu0
    %v4524 = vadd.f32 %v4397, %v4478
    %v4525 = vxor.u32 %v4524, 2147483648
    %v4526 = vmul.f32 %v4525, 1.442695
    %v4527 = vpow.pop %v4526
    %v4528 = vadd.f32 %v4527, 1.0
    %v4529 = vrcp.pop %v4528
    %v4530 = vmul.f32 1.0, %v4529
    %v4531 = vadd.f32 %v4399, %v4480
    %v4532 = vxor.u32 %v4531, 2147483648
    %v4533 = vmul.f32 %v4532, 1.442695
    %v4534 = vpow.pop %v4533
    %v4535 = vadd.f32 %v4534, 1.0
    %v4536 = vrcp.pop %v4535
    %v4537 = vmul.f32 1.0, %v4536
    %v4538 = vmul.f32 %v4530, %v4519
    %v4539 = vadd.f32 %v4438, %v4538
    %v4540 = vtanh.pop %v4539
    %v4541 = vsub.f32 1.0, %v4537
    %v4542 = vmul.f32 %v4541, %v4540
    %v4543 = vmul.f32 %v4537, %v4036
    %v4544 = vadd.f32 %v4542, %v4543
    %4545 = vmatprep.subr.mxu0 0.0
    %4546 = vmatpush1.msra.mxu0 %v3333
    %4547 = vmatprep.subr.mxu0 0.0
    %4548 = vmatpush1.msra.mxu0 %v3332
    %4549 = vmatprep.subr.mxu0 0.0
    %4550 = vmatpush1.msra.mxu0 %v3331
    %4551 = vmatprep.subr.mxu0 0.0
    %4552 = vmatpush1.msra.mxu0 %v3330
    %4553 = vmatprep.subr.mxu0 0.0
    %4554 = vmatpush1.msra.mxu0 %v3329
    %4555 = vmatprep.subr.mxu0 0.0
    %4556 = vmatpush1.msra.mxu0 %v3328
    %4557 = vmatprep.subr.mxu0 0.0
    %4558 = vmatpush1.msra.mxu0 %v3327
    %4559 = vmatprep.subr.mxu0 0.0
    %4560 = vmatpush1.msra.mxu0 %v3326
    %4561 = vmatprep.subr.mxu0 0.0
    %4562 = vmatpush1.msra.mxu0 %v3325
    %4563 = vmatprep.subr.mxu0 0.0
    %4564 = vmatpush1.msra.mxu0 %v3324
    %4565 = vmatprep.subr.mxu0 0.0
    %4566 = vmatpush1.msra.mxu0 %v3323
    %4567 = vmatprep.subr.mxu0 0.0
    %4568 = vmatpush1.msra.mxu0 %v3322
    %4569 = vmatprep.subr.mxu0 0.0
    %4570 = vmatpush1.msra.mxu0 %v3321
    %4571 = vmatprep.subr.mxu0 0.0
    %4572 = vmatpush1.msra.mxu0 %v3320
    %4573 = vmatprep.subr.mxu0 0.0
    %4574 = vmatpush1.msra.mxu0 %v3319
    %4575 = vmatprep.subr.mxu0 0.0
    %4576 = vmatpush1.msra.mxu0 %v3318
    %4577 = vmatprep.subr.mxu0 0.0
    %4578 = vmatpush2.msra.mxu0 0.0
    %4579 = vmatprep.subr.mxu0 0.0
    %4580 = vmatpush2.msra.mxu0 0.0
    %4581 = vmatprep.subr.mxu0 0.0
    %4582 = vmatpush2.msra.mxu0 0.0
    %4583 = vmatprep.subr.mxu0 0.0
    %4584 = vmatpush2.msra.mxu0 0.0
    %4585 = vmatprep.subr.mxu0 0.0
    %4586 = vmatpush2.msra.mxu0 0.0
    %4587 = vmatprep.subr.mxu0 0.0
    %4588 = vmatpush2.msra.mxu0 0.0
    %4589 = vmatprep.subr.mxu0 0.0
    %4590 = vmatpush2.msra.mxu0 0.0
    %4591 = vmatprep.subr.mxu0 0.0
    %4592 = vmatpush2.msra.mxu0 0.0
    %4593 = vmatprep.subr.mxu0 0.0
    %4594 = vmatpush2.msra.mxu0 0.0
    %4595 = vmatprep.subr.mxu0 0.0
    %4596 = vmatpush2.msra.mxu0 0.0
    %4597 = vmatprep.subr.mxu0 0.0
    %4598 = vmatpush2.msra.mxu0 0.0
    %4599 = vmatprep.subr.mxu0 0.0
    %4600 = vmatpush2.msra.mxu0 0.0
    %4601 = vmatprep.subr.mxu0 0.0
    %4602 = vmatpush2.msra.mxu0 0.0
    %4603 = vmatprep.subr.mxu0 0.0
    %4604 = vmatpush2.msra.mxu0 0.0
    %4605 = vmatprep.subr.mxu0 0.0
    %4606 = vmatpush2.msra.mxu0 0.0
    %4607 = vmatprep.subr.mxu0 0.0
    %4608 = vmatpush2.msra.mxu0 0.0
    %4609 = vmatprep.mubr.f32.mxu0 0.0
    %4610 = vmatmul.mubr.f32.gmra.mxu0 %v4544
    %v4611 = vpop.f32.mrf.mxu0
    %v4612 = vadd.f32 0.0, %v4611
    %v4613 = vpop.f32.mrf.mxu0
    %4614 = vdwg.mxu0
    %v4615 = vsel %vm2778, %v4612, -1e+30
    %v4616 = vsel %vm3405, %v4615, -inf
    %4617 = vmax.xlane.f32.xlu0 %v4616
    %v4618 = vpop.xlane.xlu0 %4617
    %v4619 = vsub.f32 %v4615, %v4618
    %v4620 = vmul.f32 %v4619, 1.442695
    %v4621 = vpow.pop %v4620
    %v4622 = vsel %vm3405, %v4621, 0.0
    %4623 = vadd.xlane.f32.xlu0 %v4622
    %v4624 = vpop.xlane.xlu0 %4623
    %v4625 = vrcp.pop %v4624
    %v4626 = vmul.f32 %v4621, %v4625
    %v4628 = vsel %vm2754, %v4626, 0
    %4630 = vmatprep.subr.mxu0 0.0
    %4631 = vmatpush1.msra.mxu0 0.0
    %4632 = vmatprep.subr.mxu0 0.0
    %4633 = vmatpush1.msra.mxu0 0.0
    %4634 = vmatprep.subr.mxu0 0.0
    %4635 = vmatpush1.msra.mxu0 0.0
    %4636 = vmatprep.subr.mxu0 0.0
    %4637 = vmatpush1.msra.mxu0 0.0
    %4638 = vmatprep.subr.mxu0 0.0
    %4639 = vmatpush1.msra.mxu0 0.0
    %4640 = vmatprep.subr.mxu0 0.0
    %4641 = vmatpush1.msra.mxu0 0.0
    %4642 = vmatprep.subr.mxu0 0.0
    %4643 = vmatpush1.msra.mxu0 0.0
    %4644 = vmatprep.subr.mxu0 0.0
    %4645 = vmatpush1.msra.mxu0 0.0
    %4646 = vmatprep.subr.mxu0 0.0
    %4647 = vmatpush1.msra.mxu0 0.0
    %4648 = vmatprep.subr.mxu0 0.0
    %4649 = vmatpush1.msra.mxu0 0.0
    %4650 = vmatprep.subr.mxu0 0.0
    %4651 = vmatpush1.msra.mxu0 0.0
    %4652 = vmatprep.subr.mxu0 0.0
    %4653 = vmatpush1.msra.mxu0 0.0
    %4654 = vmatprep.subr.mxu0 0.0
    %4655 = vmatpush1.msra.mxu0 0.0
    %4656 = vmatprep.subr.mxu0 0.0
    %4657 = vmatpush1.msra.mxu0 0.0
    %4658 = vmatprep.subr.mxu0 0.0
    %4659 = vmatpush1.msra.mxu0 0.0
    %4660 = vmatprep.subr.mxu0 0.0
    %4661 = vmatpush1.msra.mxu0 %v3417
    %4662 = vmatprep.subr.mxu0 0.0
    %4663 = vmatpush2.msra.mxu0 0.0
    %4664 = vmatprep.subr.mxu0 0.0
    %4665 = vmatpush2.msra.mxu0 0.0
    %4666 = vmatprep.subr.mxu0 0.0
    %4667 = vmatpush2.msra.mxu0 0.0
    %4668 = vmatprep.subr.mxu0 0.0
    %4669 = vmatpush2.msra.mxu0 0.0
    %4670 = vmatprep.subr.mxu0 0.0
    %4671 = vmatpush2.msra.mxu0 0.0
    %4672 = vmatprep.subr.mxu0 0.0
    %4673 = vmatpush2.msra.mxu0 0.0
    %4674 = vmatprep.subr.mxu0 0.0
    %4675 = vmatpush2.msra.mxu0 0.0
    %4676 = vmatprep.subr.mxu0 0.0
    %4677 = vmatpush2.msra.mxu0 0.0
    %4678 = vmatprep.subr.mxu0 0.0
    %4679 = vmatpush2.msra.mxu0 0.0
    %4680 = vmatprep.subr.mxu0 0.0
    %4681 = vmatpush2.msra.mxu0 0.0
    %4682 = vmatprep.subr.mxu0 0.0
    %4683 = vmatpush2.msra.mxu0 0.0
    %4684 = vmatprep.subr.mxu0 0.0
    %4685 = vmatpush2.msra.mxu0 0.0
    %4686 = vmatprep.subr.mxu0 0.0
    %4687 = vmatpush2.msra.mxu0 0.0
    %4688 = vmatprep.subr.mxu0 0.0
    %4689 = vmatpush2.msra.mxu0 0.0
    %4690 = vmatprep.subr.mxu0 0.0
    %4691 = vmatpush2.msra.mxu0 0.0
    %4692 = vmatprep.subr.mxu0 0.0
    %4693 = vmatpush2.msra.mxu0 0.0
    %4694 = vmatprep.mubr.f32.mxu0 0.0
    %4695 = vmatmul.mubr.f32.gmra.mxu0 %v4628
    %v4696 = vpop.f32.mrf.mxu0
    %v4697 = vadd.f32 0.0, %v4696
    %v4698 = vpop.f32.mrf.mxu0
    %4699 = vdwg.mxu0
    %v4700 = vpack.c.bf16 %v4544, %v4544
    %v4701 = vpack.c.bf16 %v4697, %v4697
    %4702 = vmatprep.subr.bf16.mxu0 0
    %4703 = vmatpush1.bf16.msra.mxu0 %v3564
    %4704 = vmatprep.subr.bf16.mxu0 0
    %4705 = vmatpush1.bf16.msra.mxu0 %v3563
    %4706 = vmatprep.subr.bf16.mxu0 0
    %4707 = vmatpush1.bf16.msra.mxu0 %v3562
    %4708 = vmatprep.subr.bf16.mxu0 0
    %4709 = vmatpush1.bf16.msra.mxu0 %v3561
    %4710 = vmatprep.subr.bf16.mxu0 0
    %4711 = vmatpush1.bf16.msra.mxu0 %v3560
    %4712 = vmatprep.subr.bf16.mxu0 0
    %4713 = vmatpush1.bf16.msra.mxu0 %v3559
    %4714 = vmatprep.subr.bf16.mxu0 0
    %4715 = vmatpush1.bf16.msra.mxu0 %v3558
    %4716 = vmatprep.subr.bf16.mxu0 0
    %4717 = vmatpush1.bf16.msra.mxu0 %v3557
    %4718 = vmatprep.subr.bf16.mxu0 0
    %4719 = vmatpush2.bf16.msra.mxu0 0
    %4720 = vmatprep.subr.bf16.mxu0 0
    %4721 = vmatpush2.bf16.msra.mxu0 0
    %4722 = vmatprep.subr.bf16.mxu0 0
    %4723 = vmatpush2.bf16.msra.mxu0 0
    %4724 = vmatprep.subr.bf16.mxu0 0
    %4725 = vmatpush2.bf16.msra.mxu0 0
    %4726 = vmatprep.subr.bf16.mxu0 0
    %4727 = vmatpush2.bf16.msra.mxu0 0
    %4728 = vmatprep.subr.bf16.mxu0 0
    %4729 = vmatpush2.bf16.msra.mxu0 0
    %4730 = vmatprep.subr.bf16.mxu0 0
    %4731 = vmatpush2.bf16.msra.mxu0 0
    %4732 = vmatprep.subr.bf16.mxu0 0
    %4733 = vmatpush2.bf16.msra.mxu0 0
    %4734 = vmatprep.mubr.bf16.mxu0 0
    %4735 = vmatmul.mubr.bf16.gmra.mxu0 %v4701
    %v4736 = vpop.f32.mrf.mxu0
    %v4737 = vadd.f32 0.0, %v4736
    %v4738 = vpop.f32.mrf.mxu0
    %v4739 = vpop.f32.mrf.mxu0
    %v4740 = vpop.f32.mrf.mxu0
    %4741 = vdwg.mxu0
    %4742 = vmatprep.subr.bf16.mxu0 0
    %4743 = vmatpush1.bf16.msra.mxu0 %v3652
    %4744 = vmatprep.subr.bf16.mxu0 0
    %4745 = vmatpush1.bf16.msra.mxu0 %v3651
    %4746 = vmatprep.subr.bf16.mxu0 0
    %4747 = vmatpush1.bf16.msra.mxu0 %v3650
    %4748 = vmatprep.subr.bf16.mxu0 0
    %4749 = vmatpush1.bf16.msra.mxu0 %v3649
    %4750 = vmatprep.subr.bf16.mxu0 0
    %4751 = vmatpush1.bf16.msra.mxu0 %v3648
    %4752 = vmatprep.subr.bf16.mxu0 0
    %4753 = vmatpush1.bf16.msra.mxu0 %v3647
    %4754 = vmatprep.subr.bf16.mxu0 0
    %4755 = vmatpush1.bf16.msra.mxu0 %v3646
    %4756 = vmatprep.subr.bf16.mxu0 0
    %4757 = vmatpush1.bf16.msra.mxu0 %v3645
    %4758 = vmatprep.subr.bf16.mxu0 0
    %4759 = vmatpush2.bf16.msra.mxu0 0
    %4760 = vmatprep.subr.bf16.mxu0 0
    %4761 = vmatpush2.bf16.msra.mxu0 0
    %4762 = vmatprep.subr.bf16.mxu0 0
    %4763 = vmatpush2.bf16.msra.mxu0 0
    %4764 = vmatprep.subr.bf16.mxu0 0
    %4765 = vmatpush2.bf16.msra.mxu0 0
    %4766 = vmatprep.subr.bf16.mxu0 0
    %4767 = vmatpush2.bf16.msra.mxu0 0
    %4768 = vmatprep.subr.bf16.mxu0 0
    %4769 = vmatpush2.bf16.msra.mxu0 0
    %4770 = vmatprep.subr.bf16.mxu0 0
    %4771 = vmatpush2.bf16.msra.mxu0 0
    %4772 = vmatprep.subr.bf16.mxu0 0
    %4773 = vmatpush2.bf16.msra.mxu0 0
    %4774 = vmatprep.mubr.bf16.mxu0 0
    %4775 = vmatmul.mubr.bf16.gmra.mxu0 %v4700
    %v4776 = vpop.f32.mrf.mxu0
    %v4777 = vadd.f32 %v4737, %v4776
    %v4778 = vpop.f32.mrf.mxu0
    %v4779 = vpop.f32.mrf.mxu0
    %v4780 = vpop.f32.mrf.mxu0
    %4781 = vdwg.mxu0
    %v4782 = vadd.f32 %v4777, %v2773
    %v4783 = vtanh.pop %v4782
    %v4784 = vpack.c.bf16 %v4783, %v4783
    %4785 = vmatprep.subr.bf16.mxu0 0
    %4786 = vmatpush1.bf16.msra.mxu0 %v3759
    %4787 = vmatprep.subr.bf16.mxu0 0
    %4788 = vmatpush1.bf16.msra.mxu0 %v3758
    %4789 = vmatprep.subr.bf16.mxu0 0
    %4790 = vmatpush1.bf16.msra.mxu0 %v3757
    %4791 = vmatprep.subr.bf16.mxu0 0
    %4792 = vmatpush1.bf16.msra.mxu0 %v3756
    %4793 = vmatprep.subr.bf16.mxu0 0
    %4794 = vmatpush1.bf16.msra.mxu0 %v3755
    %4795 = vmatprep.subr.bf16.mxu0 0
    %4796 = vmatpush1.bf16.msra.mxu0 %v3754
    %4797 = vmatprep.subr.bf16.mxu0 0
    %4798 = vmatpush1.bf16.msra.mxu0 %v3753
    %4799 = vmatprep.subr.bf16.mxu0 0
    %4800 = vmatpush1.bf16.msra.mxu0 %v3752
    %4801 = vmatprep.subr.bf16.mxu0 0
    %4802 = vmatpush2.bf16.msra.mxu0 0
    %4803 = vmatprep.subr.bf16.mxu0 0
    %4804 = vmatpush2.bf16.msra.mxu0 0
    %4805 = vmatprep.subr.bf16.mxu0 0
    %4806 = vmatpush2.bf16.msra.mxu0 0
    %4807 = vmatprep.subr.bf16.mxu0 0
    %4808 = vmatpush2.bf16.msra.mxu0 0
    %4809 = vmatprep.subr.bf16.mxu0 0
    %4810 = vmatpush2.bf16.msra.mxu0 0
    %4811 = vmatprep.subr.bf16.mxu0 0
    %4812 = vmatpush2.bf16.msra.mxu0 0
    %4813 = vmatprep.subr.bf16.mxu0 0
    %4814 = vmatpush2.bf16.msra.mxu0 0
    %4815 = vmatprep.subr.bf16.mxu0 0
    %4816 = vmatpush2.bf16.msra.mxu0 0
    %4817 = vmatprep.mubr.bf16.mxu0 0
    %4818 = vmatmul.mubr.bf16.gmra.mxu0 %v4784
    %v4819 = vpop.f32.mrf.mxu0
    %v4820 = vadd.f32 %v2774, %v4819
    %v4821 = vpop.f32.mrf.mxu0
    %v4822 = vpop.f32.mrf.mxu0
    %v4823 = vpop.f32.mrf.mxu0
    %4824 = vdwg.mxu0
    %v4825 = vsel %vm2779, %v4820, -1e+30
    %v4826 = vsel %vm3809, %v4825, -inf
    %4827 = vmax.xlane.f32.xlu0 %v4826
    %v4828 = vpop.xlane.xlu0 %4827
    %v4829 = vsub.f32 %v4825, %v4828
    %v4830 = vmul.f32 %v4829, 1.442695
    %v4831 = vpow.pop %v4830
    %v4832 = vsel %vm3809, %v4831, 0.0
    %4833 = vadd.xlane.f32.xlu0 %v4832
    %v4834 = vpop.xlane.xlu0 %4833
    %v4835 = vrcp.pop %v4834
    %vm4836 = vcmp.eq.f32.partialorder %v4825, %v4828
    %v4837 = vsel %vm4836, %v2776, 128
    %v4838 = vsel %vm3809, %v4837, 2147483647
    %v4839 = vand.u32 %v4838, 65535
    %v4840 = vshra.s32 %v4838, 16
    %v4841 = vcvt.s32.f32 %v4839
    %v4842 = vcvt.s32.f32 %v4840
    %4843 = vmin.xlane.f32.xlu0 %v4842
    %v4844 = vpop.xlane.xlu0 %4843
    %vm4845 = vcmp.eq.f32.partialorder %v4842, %v4844
    %v4846 = vsel %vm4845, %v4841, inf
    %4847 = vmin.xlane.f32.xlu0 %v4846
    %v4848 = vpop.xlane.xlu0 %4847
    %v4849 = vcvt.f32.s32 %v4848
    %v4850 = vcvt.f32.s32 %v4844
    %v4851 = vshll.u32 %v4850, 16
    %v4852 = vadd.s32 %v4851, %v4849
    %v4853 = vrot.slane %v4852, 4
    %vm4854 = vcmp.lt.s32.totalorder %v4852, %v4853
    %v4855 = vsel %vm4854, %v4852, %v4853
    %v4856 = vrot.slane %v4855, 2
    %vm4857 = vcmp.lt.s32.totalorder %v4855, %v4856
    %v4858 = vsel %vm4857, %v4855, %v4856
    %v4859 = vrot.slane %v4858, 1
    %vm4860 = vcmp.lt.s32.totalorder %v4858, %v4859
    %v4861 = vsel %vm4860, %v4858, %v4859
    %s4862 = vtos %v4861
    %vm4863 = vcmp.eq.s32.totalorder %v2776, 2
    %v4864 = vstv %s4862
    %v4865 = vsel %vm4863, %v4864, %v4357
    %v4866 = vsel %vm4863, %v4835, %v4358
    %s4867 = scalar_lea.vmem [#allocation15], %s4862
    %v4868 = vld [vmem:[%s4867] sm:$0x1]
    %v4869 = vpack.c.bf16 %v4868, %v4868
    %4870 = vmatprep.subr.bf16.mxu0 %v2916
    %4871 = vmatpush1.bf16.msra.mxu0 %v2915
    %4872 = vmatprep.subr.bf16.mxu0 %v2913
    %4873 = vmatpush1.bf16.msra.mxu0 %v2912
    %4874 = vmatprep.subr.bf16.mxu0 %v2910
    %4875 = vmatpush1.bf16.msra.mxu0 %v2909
    %4876 = vmatprep.subr.bf16.mxu0 %v2907
    %4877 = vmatpush1.bf16.msra.mxu0 %v2906
    %4878 = vmatprep.subr.bf16.mxu0 %v2904
    %4879 = vmatpush1.bf16.msra.mxu0 %v2903
    %4880 = vmatprep.subr.bf16.mxu0 %v2901
    %4881 = vmatpush1.bf16.msra.mxu0 %v2900
    %4882 = vmatprep.subr.bf16.mxu0 %v2898
    %4883 = vmatpush1.bf16.msra.mxu0 %v2897
    %4884 = vmatprep.subr.bf16.mxu0 %v2895
    %4885 = vmatpush1.bf16.msra.mxu0 %v2894
    %4886 = vmatprep.subr.bf16.mxu0 0
    %4887 = vmatpush2.bf16.msra.mxu0 0
    %4888 = vmatprep.subr.bf16.mxu0 0
    %4889 = vmatpush2.bf16.msra.mxu0 0
    %4890 = vmatprep.subr.bf16.mxu0 0
    %4891 = vmatpush2.bf16.msra.mxu0 0
    %4892 = vmatprep.subr.bf16.mxu0 0
    %4893 = vmatpush2.bf16.msra.mxu0 0
    %4894 = vmatprep.subr.bf16.mxu0 0
    %4895 = vmatpush2.bf16.msra.mxu0 0
    %4896 = vmatprep.subr.bf16.mxu0 0
    %4897 = vmatpush2.bf16.msra.mxu0 0
    %4898 = vmatprep.subr.bf16.mxu0 0
    %4899 = vmatpush2.bf16.msra.mxu0 0
    %4900 = vmatprep.subr.bf16.mxu0 0
    %4901 = vmatpush2.bf16.msra.mxu0 0
    %4902 = vmatprep.mubr.bf16.mxu0 0
    %4903 = vmatmul.mubr.bf16.gmra.mxu0 %v4869
    %v4904 = vpop.f32.mrf.mxu0
    %v4905 = vadd.f32 %v2946, %v4904
    %v4906 = vpop.f32.mrf.mxu0
    %v4907 = vadd.f32 %v2950, %v4906
    %v4908 = vpop.f32.mrf.mxu0
    %v4909 = vpop.f32.mrf.mxu0
    %4910 = vdwg.mxu0
    %4911 = vmatprep.subr.bf16.mxu0 0
    %4912 = vmatpush1.bf16.msra.mxu0 %v2917
    %4913 = vmatprep.subr.bf16.mxu0 0
    %4914 = vmatpush1.bf16.msra.mxu0 %v2914
    %4915 = vmatprep.subr.bf16.mxu0 0
    %4916 = vmatpush1.bf16.msra.mxu0 %v2911
    %4917 = vmatprep.subr.bf16.mxu0 0
    %4918 = vmatpush1.bf16.msra.mxu0 %v2908
    %4919 = vmatprep.subr.bf16.mxu0 0
    %4920 = vmatpush1.bf16.msra.mxu0 %v2905
    %4921 = vmatprep.subr.bf16.mxu0 0
    %4922 = vmatpush1.bf16.msra.mxu0 %v2902
    %4923 = vmatprep.subr.bf16.mxu0 0
    %4924 = vmatpush1.bf16.msra.mxu0 %v2899
    %4925 = vmatprep.subr.bf16.mxu0 0
    %4926 = vmatpush1.bf16.msra.mxu0 %v2896
    %4927 = vmatprep.subr.bf16.mxu0 0
    %4928 = vmatpush2.bf16.msra.mxu0 0
    %4929 = vmatprep.subr.bf16.mxu0 0
    %4930 = vmatpush2.bf16.msra.mxu0 0
    %4931 = vmatprep.subr.bf16.mxu0 0
    %4932 = vmatpush2.bf16.msra.mxu0 0
    %4933 = vmatprep.subr.bf16.mxu0 0
    %4934 = vmatpush2.bf16.msra.mxu0 0
    %4935 = vmatprep.subr.bf16.mxu0 0
    %4936 = vmatpush2.bf16.msra.mxu0 0
    %4937 = vmatprep.subr.bf16.mxu0 0
    %4938 = vmatpush2.bf16.msra.mxu0 0
    %4939 = vmatprep.subr.bf16.mxu0 0
    %4940 = vmatpush2.bf16.msra.mxu0 0
    %4941 = vmatprep.subr.bf16.mxu0 0
    %4942 = vmatpush2.bf16.msra.mxu0 0
    %4943 = vmatprep.mubr.bf16.mxu0 0
    %4944 = vmatmul.mubr.bf16.gmra.mxu0 %v4869
    %v4945 = vpop.f32.mrf.mxu0
    %v4946 = vadd.f32 %v2954, %v4945
    %v4947 = vpop.f32.mrf.mxu0
    %v4948 = vpop.f32.mrf.mxu0
    %v4949 = vpop.f32.mrf.mxu0
    %4950 = vdwg.mxu0
    %4951 = vmatprep.subr.bf16.mxu0 %v3174
    %4952 = vmatpush1.bf16.msra.mxu0 %v3173
    %4953 = vmatprep.subr.bf16.mxu0 %v3171
    %4954 = vmatpush1.bf16.msra.mxu0 %v3170
    %4955 = vmatprep.subr.bf16.mxu0 %v3168
    %4956 = vmatpush1.bf16.msra.mxu0 %v3167
    %4957 = vmatprep.subr.bf16.mxu0 %v3165
    %4958 = vmatpush1.bf16.msra.mxu0 %v3164
    %4959 = vmatprep.subr.bf16.mxu0 %v3162
    %4960 = vmatpush1.bf16.msra.mxu0 %v3161
    %4961 = vmatprep.subr.bf16.mxu0 %v3159
    %4962 = vmatpush1.bf16.msra.mxu0 %v3158
    %4963 = vmatprep.subr.bf16.mxu0 %v3156
    %4964 = vmatpush1.bf16.msra.mxu0 %v3155
    %4965 = vmatprep.subr.bf16.mxu0 %v3153
    %4966 = vmatpush1.bf16.msra.mxu0 %v3152
    %4967 = vmatprep.subr.bf16.mxu0 0
    %4968 = vmatpush2.bf16.msra.mxu0 0
    %4969 = vmatprep.subr.bf16.mxu0 0
    %4970 = vmatpush2.bf16.msra.mxu0 0
    %4971 = vmatprep.subr.bf16.mxu0 0
    %4972 = vmatpush2.bf16.msra.mxu0 0
    %4973 = vmatprep.subr.bf16.mxu0 0
    %4974 = vmatpush2.bf16.msra.mxu0 0
    %4975 = vmatprep.subr.bf16.mxu0 0
    %4976 = vmatpush2.bf16.msra.mxu0 0
    %4977 = vmatprep.subr.bf16.mxu0 0
    %4978 = vmatpush2.bf16.msra.mxu0 0
    %4979 = vmatprep.subr.bf16.mxu0 0
    %4980 = vmatpush2.bf16.msra.mxu0 0
    %4981 = vmatprep.subr.bf16.mxu0 0
    %4982 = vmatpush2.bf16.msra.mxu0 0
    %4983 = vmatprep.mubr.bf16.mxu0 0
    %4984 = vmatmul.mubr.bf16.gmra.mxu0 %v4700
    %v4985 = vpop.f32.mrf.mxu0
    %v4986 = vadd.f32 %v3204, %v4985
    %v4987 = vpop.f32.mrf.mxu0
    %v4988 = vadd.f32 %v3208, %v4987
    %v4989 = vpop.f32.mrf.mxu0
    %v4990 = vpop.f32.mrf.mxu0
    %4991 = vdwg.mxu0
    %4992 = vmatprep.subr.bf16.mxu0 0
    %4993 = vmatpush1.bf16.msra.mxu0 %v3175
    %4994 = vmatprep.subr.bf16.mxu0 0
    %4995 = vmatpush1.bf16.msra.mxu0 %v3172
    %4996 = vmatprep.subr.bf16.mxu0 0
    %4997 = vmatpush1.bf16.msra.mxu0 %v3169
    %4998 = vmatprep.subr.bf16.mxu0 0
    %4999 = vmatpush1.bf16.msra.mxu0 %v3166
    %5000 = vmatprep.subr.bf16.mxu0 0
    %5001 = vmatpush1.bf16.msra.mxu0 %v3163
    %5002 = vmatprep.subr.bf16.mxu0 0
    %5003 = vmatpush1.bf16.msra.mxu0 %v3160
    %5004 = vmatprep.subr.bf16.mxu0 0
    %5005 = vmatpush1.bf16.msra.mxu0 %v3157
    %5006 = vmatprep.subr.bf16.mxu0 0
    %5007 = vmatpush1.bf16.msra.mxu0 %v3154
    %5008 = vmatprep.subr.bf16.mxu0 0
    %5009 = vmatpush2.bf16.msra.mxu0 0
    %5010 = vmatprep.subr.bf16.mxu0 0
    %5011 = vmatpush2.bf16.msra.mxu0 0
    %5012 = vmatprep.subr.bf16.mxu0 0
    %5013 = vmatpush2.bf16.msra.mxu0 0
    %5014 = vmatprep.subr.bf16.mxu0 0
    %5015 = vmatpush2.bf16.msra.mxu0 0
    %5016 = vmatprep.subr.bf16.mxu0 0
    %5017 = vmatpush2.bf16.msra.mxu0 0
    %5018 = vmatprep.subr.bf16.mxu0 0
    %5019 = vmatpush2.bf16.msra.mxu0 0
    %5020 = vmatprep.subr.bf16.mxu0 0
    %5021 = vmatpush2.bf16.msra.mxu0 0
    %5022 = vmatprep.subr.bf16.mxu0 0
    %5023 = vmatpush2.bf16.msra.mxu0 0
    %5024 = vmatprep.mubr.bf16.mxu0 0
    %5025 = vmatmul.mubr.bf16.gmra.mxu0 %v4700
    %v5026 = vpop.f32.mrf.mxu0
    %v5027 = vadd.f32 %v3212, %v5026
    %v5028 = vpop.f32.mrf.mxu0
    %v5029 = vpop.f32.mrf.mxu0
    %v5030 = vpop.f32.mrf.mxu0
    %5031 = vdwg.mxu0
    %v5032 = vadd.f32 %v4905, %v4986
    %v5033 = vxor.u32 %v5032, 2147483648
    %v5034 = vmul.f32 %v5033, 1.442695
    %v5035 = vpow.pop %v5034
    %v5036 = vadd.f32 %v5035, 1.0
    %v5037 = vrcp.pop %v5036
    %v5038 = vmul.f32 1.0, %v5037
    %v5039 = vadd.f32 %v4907, %v4988
    %v5040 = vxor.u32 %v5039, 2147483648
    %v5041 = vmul.f32 %v5040, 1.442695
    %v5042 = vpow.pop %v5041
    %v5043 = vadd.f32 %v5042, 1.0
    %v5044 = vrcp.pop %v5043
    %v5045 = vmul.f32 1.0, %v5044
    %v5046 = vmul.f32 %v5038, %v5027
    %v5047 = vadd.f32 %v4946, %v5046
    %v5048 = vtanh.pop %v5047
    %v5049 = vsub.f32 1.0, %v5045
    %v5050 = vmul.f32 %v5049, %v5048
    %v5051 = vmul.f32 %v5045, %v4544
    %v5052 = vadd.f32 %v5050, %v5051
    %5053 = vmatprep.subr.mxu0 0.0
    %5054 = vmatpush1.msra.mxu0 %v3333
    %5055 = vmatprep.subr.mxu0 0.0
    %5056 = vmatpush1.msra.mxu0 %v3332
    %5057 = vmatprep.subr.mxu0 0.0
    %5058 = vmatpush1.msra.mxu0 %v3331
    %5059 = vmatprep.subr.mxu0 0.0
    %5060 = vmatpush1.msra.mxu0 %v3330
    %5061 = vmatprep.subr.mxu0 0.0
    %5062 = vmatpush1.msra.mxu0 %v3329
    %5063 = vmatprep.subr.mxu0 0.0
    %5064 = vmatpush1.msra.mxu0 %v3328
    %5065 = vmatprep.subr.mxu0 0.0
    %5066 = vmatpush1.msra.mxu0 %v3327
    %5067 = vmatprep.subr.mxu0 0.0
    %5068 = vmatpush1.msra.mxu0 %v3326
    %5069 = vmatprep.subr.mxu0 0.0
    %5070 = vmatpush1.msra.mxu0 %v3325
    %5071 = vmatprep.subr.mxu0 0.0
    %5072 = vmatpush1.msra.mxu0 %v3324
    %5073 = vmatprep.subr.mxu0 0.0
    %5074 = vmatpush1.msra.mxu0 %v3323
    %5075 = vmatprep.subr.mxu0 0.0
    %5076 = vmatpush1.msra.mxu0 %v3322
    %5077 = vmatprep.subr.mxu0 0.0
    %5078 = vmatpush1.msra.mxu0 %v3321
    %5079 = vmatprep.subr.mxu0 0.0
    %5080 = vmatpush1.msra.mxu0 %v3320
    %5081 = vmatprep.subr.mxu0 0.0
    %5082 = vmatpush1.msra.mxu0 %v3319
    %5083 = vmatprep.subr.mxu0 0.0
    %5084 = vmatpush1.msra.mxu0 %v3318
    %5085 = vmatprep.subr.mxu0 0.0
    %5086 = vmatpush2.msra.mxu0 0.0
    %5087 = vmatprep.subr.mxu0 0.0
    %5088 = vmatpush2.msra.mxu0 0.0
    %5089 = vmatprep.subr.mxu0 0.0
    %5090 = vmatpush2.msra.mxu0 0.0
    %5091 = vmatprep.subr.mxu0 0.0
    %5092 = vmatpush2.msra.mxu0 0.0
    %5093 = vmatprep.subr.mxu0 0.0
    %5094 = vmatpush2.msra.mxu0 0.0
    %5095 = vmatprep.subr.mxu0 0.0
    %5096 = vmatpush2.msra.mxu0 0.0
    %5097 = vmatprep.subr.mxu0 0.0
    %5098 = vmatpush2.msra.mxu0 0.0
    %5099 = vmatprep.subr.mxu0 0.0
    %5100 = vmatpush2.msra.mxu0 0.0
    %5101 = vmatprep.subr.mxu0 0.0
    %5102 = vmatpush2.msra.mxu0 0.0
    %5103 = vmatprep.subr.mxu0 0.0
    %5104 = vmatpush2.msra.mxu0 0.0
    %5105 = vmatprep.subr.mxu0 0.0
    %5106 = vmatpush2.msra.mxu0 0.0
    %5107 = vmatprep.subr.mxu0 0.0
    %5108 = vmatpush2.msra.mxu0 0.0
    %5109 = vmatprep.subr.mxu0 0.0
    %5110 = vmatpush2.msra.mxu0 0.0
    %5111 = vmatprep.subr.mxu0 0.0
    %5112 = vmatpush2.msra.mxu0 0.0
    %5113 = vmatprep.subr.mxu0 0.0
    %5114 = vmatpush2.msra.mxu0 0.0
    %5115 = vmatprep.subr.mxu0 0.0
    %5116 = vmatpush2.msra.mxu0 0.0
    %5117 = vmatprep.mubr.f32.mxu0 0.0
    %5118 = vmatmul.mubr.f32.gmra.mxu0 %v5052
    %v5119 = vpop.f32.mrf.mxu0
    %v5120 = vadd.f32 0.0, %v5119
    %v5121 = vpop.f32.mrf.mxu0
    %5122 = vdwg.mxu0
    %v5123 = vsel %vm2778, %v5120, -1e+30
    %v5124 = vsel %vm3405, %v5123, -inf
    %5125 = vmax.xlane.f32.xlu0 %v5124
    %v5126 = vpop.xlane.xlu0 %5125
    %v5127 = vsub.f32 %v5123, %v5126
    %v5128 = vmul.f32 %v5127, 1.442695
    %v5129 = vpow.pop %v5128
    %v5130 = vsel %vm3405, %v5129, 0.0
    %5131 = vadd.xlane.f32.xlu0 %v5130
    %v5132 = vpop.xlane.xlu0 %5131
    %v5133 = vrcp.pop %v5132
    %v5134 = vmul.f32 %v5129, %v5133
    %v5136 = vsel %vm2754, %v5134, 0
    %5138 = vmatprep.subr.mxu0 0.0
    %5139 = vmatpush1.msra.mxu0 0.0
    %5140 = vmatprep.subr.mxu0 0.0
    %5141 = vmatpush1.msra.mxu0 0.0
    %5142 = vmatprep.subr.mxu0 0.0
    %5143 = vmatpush1.msra.mxu0 0.0
    %5144 = vmatprep.subr.mxu0 0.0
    %5145 = vmatpush1.msra.mxu0 0.0
    %5146 = vmatprep.subr.mxu0 0.0
    %5147 = vmatpush1.msra.mxu0 0.0
    %5148 = vmatprep.subr.mxu0 0.0
    %5149 = vmatpush1.msra.mxu0 0.0
    %5150 = vmatprep.subr.mxu0 0.0
    %5151 = vmatpush1.msra.mxu0 0.0
    %5152 = vmatprep.subr.mxu0 0.0
    %5153 = vmatpush1.msra.mxu0 0.0
    %5154 = vmatprep.subr.mxu0 0.0
    %5155 = vmatpush1.msra.mxu0 0.0
    %5156 = vmatprep.subr.mxu0 0.0
    %5157 = vmatpush1.msra.mxu0 0.0
    %5158 = vmatprep.subr.mxu0 0.0
    %5159 = vmatpush1.msra.mxu0 0.0
    %5160 = vmatprep.subr.mxu0 0.0
    %5161 = vmatpush1.msra.mxu0 0.0
    %5162 = vmatprep.subr.mxu0 0.0
    %5163 = vmatpush1.msra.mxu0 0.0
    %5164 = vmatprep.subr.mxu0 0.0
    %5165 = vmatpush1.msra.mxu0 0.0
    %5166 = vmatprep.subr.mxu0 0.0
    %5167 = vmatpush1.msra.mxu0 0.0
    %5168 = vmatprep.subr.mxu0 0.0
    %5169 = vmatpush1.msra.mxu0 %v3417
    %5170 = vmatprep.subr.mxu0 0.0
    %5171 = vmatpush2.msra.mxu0 0.0
    %5172 = vmatprep.subr.mxu0 0.0
    %5173 = vmatpush2.msra.mxu0 0.0
    %5174 = vmatprep.subr.mxu0 0.0
    %5175 = vmatpush2.msra.mxu0 0.0
    %5176 = vmatprep.subr.mxu0 0.0
    %5177 = vmatpush2.msra.mxu0 0.0
    %5178 = vmatprep.subr.mxu0 0.0
    %5179 = vmatpush2.msra.mxu0 0.0
    %5180 = vmatprep.subr.mxu0 0.0
    %5181 = vmatpush2.msra.mxu0 0.0
    %5182 = vmatprep.subr.mxu0 0.0
    %5183 = vmatpush2.msra.mxu0 0.0
    %5184 = vmatprep.subr.mxu0 0.0
    %5185 = vmatpush2.msra.mxu0 0.0
    %5186 = vmatprep.subr.mxu0 0.0
    %5187 = vmatpush2.msra.mxu0 0.0
    %5188 = vmatprep.subr.mxu0 0.0
    %5189 = vmatpush2.msra.mxu0 0.0
    %5190 = vmatprep.subr.mxu0 0.0
    %5191 = vmatpush2.msra.mxu0 0.0
    %5192 = vmatprep.subr.mxu0 0.0
    %5193 = vmatpush2.msra.mxu0 0.0
    %5194 = vmatprep.subr.mxu0 0.0
    %5195 = vmatpush2.msra.mxu0 0.0
    %5196 = vmatprep.subr.mxu0 0.0
    %5197 = vmatpush2.msra.mxu0 0.0
    %5198 = vmatprep.subr.mxu0 0.0
    %5199 = vmatpush2.msra.mxu0 0.0
    %5200 = vmatprep.subr.mxu0 0.0
    %5201 = vmatpush2.msra.mxu0 0.0
    %5202 = vmatprep.mubr.f32.mxu0 0.0
    %5203 = vmatmul.mubr.f32.gmra.mxu0 %v5136
    %v5204 = vpop.f32.mrf.mxu0
    %v5205 = vadd.f32 0.0, %v5204
    %v5206 = vpop.f32.mrf.mxu0
    %5207 = vdwg.mxu0
    %v5208 = vpack.c.bf16 %v5052, %v5052
    %v5209 = vpack.c.bf16 %v5205, %v5205
    %5210 = vmatprep.subr.bf16.mxu0 0
    %5211 = vmatpush1.bf16.msra.mxu0 %v3564
    %5212 = vmatprep.subr.bf16.mxu0 0
    %5213 = vmatpush1.bf16.msra.mxu0 %v3563
    %5214 = vmatprep.subr.bf16.mxu0 0
    %5215 = vmatpush1.bf16.msra.mxu0 %v3562
    %5216 = vmatprep.subr.bf16.mxu0 0
    %5217 = vmatpush1.bf16.msra.mxu0 %v3561
    %5218 = vmatprep.subr.bf16.mxu0 0
    %5219 = vmatpush1.bf16.msra.mxu0 %v3560
    %5220 = vmatprep.subr.bf16.mxu0 0
    %5221 = vmatpush1.bf16.msra.mxu0 %v3559
    %5222 = vmatprep.subr.bf16.mxu0 0
    %5223 = vmatpush1.bf16.msra.mxu0 %v3558
    %5224 = vmatprep.subr.bf16.mxu0 0
    %5225 = vmatpush1.bf16.msra.mxu0 %v3557
    %5226 = vmatprep.subr.bf16.mxu0 0
    %5227 = vmatpush2.bf16.msra.mxu0 0
    %5228 = vmatprep.subr.bf16.mxu0 0
    %5229 = vmatpush2.bf16.msra.mxu0 0
    %5230 = vmatprep.subr.bf16.mxu0 0
    %5231 = vmatpush2.bf16.msra.mxu0 0
    %5232 = vmatprep.subr.bf16.mxu0 0
    %5233 = vmatpush2.bf16.msra.mxu0 0
    %5234 = vmatprep.subr.bf16.mxu0 0
    %5235 = vmatpush2.bf16.msra.mxu0 0
    %5236 = vmatprep.subr.bf16.mxu0 0
    %5237 = vmatpush2.bf16.msra.mxu0 0
    %5238 = vmatprep.subr.bf16.mxu0 0
    %5239 = vmatpush2.bf16.msra.mxu0 0
    %5240 = vmatprep.subr.bf16.mxu0 0
    %5241 = vmatpush2.bf16.msra.mxu0 0
    %5242 = vmatprep.mubr.bf16.mxu0 0
    %5243 = vmatmul.mubr.bf16.gmra.mxu0 %v5209
    %v5244 = vpop.f32.mrf.mxu0
    %v5245 = vadd.f32 0.0, %v5244
    %v5246 = vpop.f32.mrf.mxu0
    %v5247 = vpop.f32.mrf.mxu0
    %v5248 = vpop.f32.mrf.mxu0
    %5249 = vdwg.mxu0
    %5250 = vmatprep.subr.bf16.mxu0 0
    %5251 = vmatpush1.bf16.msra.mxu0 %v3652
    %5252 = vmatprep.subr.bf16.mxu0 0
    %5253 = vmatpush1.bf16.msra.mxu0 %v3651
    %5254 = vmatprep.subr.bf16.mxu0 0
    %5255 = vmatpush1.bf16.msra.mxu0 %v3650
    %5256 = vmatprep.subr.bf16.mxu0 0
    %5257 = vmatpush1.bf16.msra.mxu0 %v3649
    %5258 = vmatprep.subr.bf16.mxu0 0
    %5259 = vmatpush1.bf16.msra.mxu0 %v3648
    %5260 = vmatprep.subr.bf16.mxu0 0
    %5261 = vmatpush1.bf16.msra.mxu0 %v3647
    %5262 = vmatprep.subr.bf16.mxu0 0
    %5263 = vmatpush1.bf16.msra.mxu0 %v3646
    %5264 = vmatprep.subr.bf16.mxu0 0
    %5265 = vmatpush1.bf16.msra.mxu0 %v3645
    %5266 = vmatprep.subr.bf16.mxu0 0
    %5267 = vmatpush2.bf16.msra.mxu0 0
    %5268 = vmatprep.subr.bf16.mxu0 0
    %5269 = vmatpush2.bf16.msra.mxu0 0
    %5270 = vmatprep.subr.bf16.mxu0 0
    %5271 = vmatpush2.bf16.msra.mxu0 0
    %5272 = vmatprep.subr.bf16.mxu0 0
    %5273 = vmatpush2.bf16.msra.mxu0 0
    %5274 = vmatprep.subr.bf16.mxu0 0
    %5275 = vmatpush2.bf16.msra.mxu0 0
    %5276 = vmatprep.subr.bf16.mxu0 0
    %5277 = vmatpush2.bf16.msra.mxu0 0
    %5278 = vmatprep.subr.bf16.mxu0 0
    %5279 = vmatpush2.bf16.msra.mxu0 0
    %5280 = vmatprep.subr.bf16.mxu0 0
    %5281 = vmatpush2.bf16.msra.mxu0 0
    %5282 = vmatprep.mubr.bf16.mxu0 0
    %5283 = vmatmul.mubr.bf16.gmra.mxu0 %v5208
    %v5284 = vpop.f32.mrf.mxu0
    %v5285 = vadd.f32 %v5245, %v5284
    %v5286 = vpop.f32.mrf.mxu0
    %v5287 = vpop.f32.mrf.mxu0
    %v5288 = vpop.f32.mrf.mxu0
    %5289 = vdwg.mxu0
    %v5290 = vadd.f32 %v5285, %v2773
    %v5291 = vtanh.pop %v5290
    %v5292 = vpack.c.bf16 %v5291, %v5291
    %5293 = vmatprep.subr.bf16.mxu0 0
    %5294 = vmatpush1.bf16.msra.mxu0 %v3759
    %5295 = vmatprep.subr.bf16.mxu0 0
    %5296 = vmatpush1.bf16.msra.mxu0 %v3758
    %5297 = vmatprep.subr.bf16.mxu0 0
    %5298 = vmatpush1.bf16.msra.mxu0 %v3757
    %5299 = vmatprep.subr.bf16.mxu0 0
    %5300 = vmatpush1.bf16.msra.mxu0 %v3756
    %5301 = vmatprep.subr.bf16.mxu0 0
    %5302 = vmatpush1.bf16.msra.mxu0 %v3755
    %5303 = vmatprep.subr.bf16.mxu0 0
    %5304 = vmatpush1.bf16.msra.mxu0 %v3754
    %5305 = vmatprep.subr.bf16.mxu0 0
    %5306 = vmatpush1.bf16.msra.mxu0 %v3753
    %5307 = vmatprep.subr.bf16.mxu0 0
    %5308 = vmatpush1.bf16.msra.mxu0 %v3752
    %5309 = vmatprep.subr.bf16.mxu0 0
    %5310 = vmatpush2.bf16.msra.mxu0 0
    %5311 = vmatprep.subr.bf16.mxu0 0
    %5312 = vmatpush2.bf16.msra.mxu0 0
    %5313 = vmatprep.subr.bf16.mxu0 0
    %5314 = vmatpush2.bf16.msra.mxu0 0
    %5315 = vmatprep.subr.bf16.mxu0 0
    %5316 = vmatpush2.bf16.msra.mxu0 0
    %5317 = vmatprep.subr.bf16.mxu0 0
    %5318 = vmatpush2.bf16.msra.mxu0 0
    %5319 = vmatprep.subr.bf16.mxu0 0
    %5320 = vmatpush2.bf16.msra.mxu0 0
    %5321 = vmatprep.subr.bf16.mxu0 0
    %5322 = vmatpush2.bf16.msra.mxu0 0
    %5323 = vmatprep.subr.bf16.mxu0 0
    %5324 = vmatpush2.bf16.msra.mxu0 0
    %5325 = vmatprep.mubr.bf16.mxu0 0
    %5326 = vmatmul.mubr.bf16.gmra.mxu0 %v5292
    %v5327 = vpop.f32.mrf.mxu0
    %v5328 = vadd.f32 %v2774, %v5327
    %v5329 = vpop.f32.mrf.mxu0
    %v5330 = vpop.f32.mrf.mxu0
    %v5331 = vpop.f32.mrf.mxu0
    %5332 = vdwg.mxu0
    %v5333 = vsel %vm2779, %v5328, -1e+30
    %v5334 = vsel %vm3809, %v5333, -inf
    %5335 = vmax.xlane.f32.xlu0 %v5334
    %v5336 = vpop.xlane.xlu0 %5335
    %v5337 = vsub.f32 %v5333, %v5336
    %v5338 = vmul.f32 %v5337, 1.442695
    %v5339 = vpow.pop %v5338
    %v5340 = vsel %vm3809, %v5339, 0.0
    %5341 = vadd.xlane.f32.xlu0 %v5340
    %v5342 = vpop.xlane.xlu0 %5341
    %v5343 = vrcp.pop %v5342
    %vm5344 = vcmp.eq.f32.partialorder %v5333, %v5336
    %v5345 = vsel %vm5344, %v2776, 128
    %v5346 = vsel %vm3809, %v5345, 2147483647
    %v5347 = vand.u32 %v5346, 65535
    %v5348 = vshra.s32 %v5346, 16
    %v5349 = vcvt.s32.f32 %v5347
    %v5350 = vcvt.s32.f32 %v5348
    %5351 = vmin.xlane.f32.xlu0 %v5350
    %v5352 = vpop.xlane.xlu0 %5351
    %vm5353 = vcmp.eq.f32.partialorder %v5350, %v5352
    %v5354 = vsel %vm5353, %v5349, inf
    %5355 = vmin.xlane.f32.xlu0 %v5354
    %v5356 = vpop.xlane.xlu0 %5355
    %v5357 = vcvt.f32.s32 %v5356
    %v5358 = vcvt.f32.s32 %v5352
    %v5359 = vshll.u32 %v5358, 16
    %v5360 = vadd.s32 %v5359, %v5357
    %v5361 = vrot.slane %v5360, 4
    %vm5362 = vcmp.lt.s32.totalorder %v5360, %v5361
    %v5363 = vsel %vm5362, %v5360, %v5361
    %v5364 = vrot.slane %v5363, 2
    %vm5365 = vcmp.lt.s32.totalorder %v5363, %v5364
    %v5366 = vsel %vm5365, %v5363, %v5364
    %v5367 = vrot.slane %v5366, 1
    %vm5368 = vcmp.lt.s32.totalorder %v5366, %v5367
    %v5369 = vsel %vm5368, %v5366, %v5367
    %s5370 = vtos %v5369
    %vm5371 = vcmp.eq.s32.totalorder %v2776, 3
    %v5372 = vstv %s5370
    %v5373 = vsel %vm5371, %v5372, %v4865
    %v5374 = vsel %vm5371, %v5343, %v4866
    %s5375 = scalar_lea.vmem [#allocation15], %s5370
    %v5376 = vld [vmem:[%s5375] sm:$0x1]
    %v5377 = vpack.c.bf16 %v5376, %v5376
    %5378 = vmatprep.subr.bf16.mxu0 %v2916
    %5379 = vmatpush1.bf16.msra.mxu0 %v2915
    %5380 = vmatprep.subr.bf16.mxu0 %v2913
    %5381 = vmatpush1.bf16.msra.mxu0 %v2912
    %5382 = vmatprep.subr.bf16.mxu0 %v2910
    %5383 = vmatpush1.bf16.msra.mxu0 %v2909
    %5384 = vmatprep.subr.bf16.mxu0 %v2907
    %5385 = vmatpush1.bf16.msra.mxu0 %v2906
    %5386 = vmatprep.subr.bf16.mxu0 %v2904
    %5387 = vmatpush1.bf16.msra.mxu0 %v2903
    %5388 = vmatprep.subr.bf16.mxu0 %v2901
    %5389 = vmatpush1.bf16.msra.mxu0 %v2900
    %5390 = vmatprep.subr.bf16.mxu0 %v2898
    %5391 = vmatpush1.bf16.msra.mxu0 %v2897
    %5392 = vmatprep.subr.bf16.mxu0 %v2895
    %5393 = vmatpush1.bf16.msra.mxu0 %v2894
    %5394 = vmatprep.subr.bf16.mxu0 0
    %5395 = vmatpush2.bf16.msra.mxu0 0
    %5396 = vmatprep.subr.bf16.mxu0 0
    %5397 = vmatpush2.bf16.msra.mxu0 0
    %5398 = vmatprep.subr.bf16.mxu0 0
    %5399 = vmatpush2.bf16.msra.mxu0 0
    %5400 = vmatprep.subr.bf16.mxu0 0
    %5401 = vmatpush2.bf16.msra.mxu0 0
    %5402 = vmatprep.subr.bf16.mxu0 0
    %5403 = vmatpush2.bf16.msra.mxu0 0
    %5404 = vmatprep.subr.bf16.mxu0 0
    %5405 = vmatpush2.bf16.msra.mxu0 0
    %5406 = vmatprep.subr.bf16.mxu0 0
    %5407 = vmatpush2.bf16.msra.mxu0 0
    %5408 = vmatprep.subr.bf16.mxu0 0
    %5409 = vmatpush2.bf16.msra.mxu0 0
    %5410 = vmatprep.mubr.bf16.mxu0 0
    %5411 = vmatmul.mubr.bf16.gmra.mxu0 %v5377
    %v5412 = vpop.f32.mrf.mxu0
    %v5413 = vadd.f32 %v2946, %v5412
    %v5414 = vpop.f32.mrf.mxu0
    %v5415 = vadd.f32 %v2950, %v5414
    %v5416 = vpop.f32.mrf.mxu0
    %v5417 = vpop.f32.mrf.mxu0
    %5418 = vdwg.mxu0
    %5419 = vmatprep.subr.bf16.mxu0 0
    %5420 = vmatpush1.bf16.msra.mxu0 %v2917
    %5421 = vmatprep.subr.bf16.mxu0 0
    %5422 = vmatpush1.bf16.msra.mxu0 %v2914
    %5423 = vmatprep.subr.bf16.mxu0 0
    %5424 = vmatpush1.bf16.msra.mxu0 %v2911
    %5425 = vmatprep.subr.bf16.mxu0 0
    %5426 = vmatpush1.bf16.msra.mxu0 %v2908
    %5427 = vmatprep.subr.bf16.mxu0 0
    %5428 = vmatpush1.bf16.msra.mxu0 %v2905
    %5429 = vmatprep.subr.bf16.mxu0 0
    %5430 = vmatpush1.bf16.msra.mxu0 %v2902
    %5431 = vmatprep.subr.bf16.mxu0 0
    %5432 = vmatpush1.bf16.msra.mxu0 %v2899
    %5433 = vmatprep.subr.bf16.mxu0 0
    %5434 = vmatpush1.bf16.msra.mxu0 %v2896
    %5435 = vmatprep.subr.bf16.mxu0 0
    %5436 = vmatpush2.bf16.msra.mxu0 0
    %5437 = vmatprep.subr.bf16.mxu0 0
    %5438 = vmatpush2.bf16.msra.mxu0 0
    %5439 = vmatprep.subr.bf16.mxu0 0
    %5440 = vmatpush2.bf16.msra.mxu0 0
    %5441 = vmatprep.subr.bf16.mxu0 0
    %5442 = vmatpush2.bf16.msra.mxu0 0
    %5443 = vmatprep.subr.bf16.mxu0 0
    %5444 = vmatpush2.bf16.msra.mxu0 0
    %5445 = vmatprep.subr.bf16.mxu0 0
    %5446 = vmatpush2.bf16.msra.mxu0 0
    %5447 = vmatprep.subr.bf16.mxu0 0
    %5448 = vmatpush2.bf16.msra.mxu0 0
    %5449 = vmatprep.subr.bf16.mxu0 0
    %5450 = vmatpush2.bf16.msra.mxu0 0
    %5451 = vmatprep.mubr.bf16.mxu0 0
    %5452 = vmatmul.mubr.bf16.gmra.mxu0 %v5377
    %v5453 = vpop.f32.mrf.mxu0
    %v5454 = vadd.f32 %v2954, %v5453
    %v5455 = vpop.f32.mrf.mxu0
    %v5456 = vpop.f32.mrf.mxu0
    %v5457 = vpop.f32.mrf.mxu0
    %5458 = vdwg.mxu0
    %5459 = vmatprep.subr.bf16.mxu0 %v3174
    %5460 = vmatpush1.bf16.msra.mxu0 %v3173
    %5461 = vmatprep.subr.bf16.mxu0 %v3171
    %5462 = vmatpush1.bf16.msra.mxu0 %v3170
    %5463 = vmatprep.subr.bf16.mxu0 %v3168
    %5464 = vmatpush1.bf16.msra.mxu0 %v3167
    %5465 = vmatprep.subr.bf16.mxu0 %v3165
    %5466 = vmatpush1.bf16.msra.mxu0 %v3164
    %5467 = vmatprep.subr.bf16.mxu0 %v3162
    %5468 = vmatpush1.bf16.msra.mxu0 %v3161
    %5469 = vmatprep.subr.bf16.mxu0 %v3159
    %5470 = vmatpush1.bf16.msra.mxu0 %v3158
    %5471 = vmatprep.subr.bf16.mxu0 %v3156
    %5472 = vmatpush1.bf16.msra.mxu0 %v3155
    %5473 = vmatprep.subr.bf16.mxu0 %v3153
    %5474 = vmatpush1.bf16.msra.mxu0 %v3152
    %5475 = vmatprep.subr.bf16.mxu0 0
    %5476 = vmatpush2.bf16.msra.mxu0 0
    %5477 = vmatprep.subr.bf16.mxu0 0
    %5478 = vmatpush2.bf16.msra.mxu0 0
    %5479 = vmatprep.subr.bf16.mxu0 0
    %5480 = vmatpush2.bf16.msra.mxu0 0
    %5481 = vmatprep.subr.bf16.mxu0 0
    %5482 = vmatpush2.bf16.msra.mxu0 0
    %5483 = vmatprep.subr.bf16.mxu0 0
    %5484 = vmatpush2.bf16.msra.mxu0 0
    %5485 = vmatprep.subr.bf16.mxu0 0
    %5486 = vmatpush2.bf16.msra.mxu0 0
    %5487 = vmatprep.subr.bf16.mxu0 0
    %5488 = vmatpush2.bf16.msra.mxu0 0
    %5489 = vmatprep.subr.bf16.mxu0 0
    %5490 = vmatpush2.bf16.msra.mxu0 0
    %5491 = vmatprep.mubr.bf16.mxu0 0
    %5492 = vmatmul.mubr.bf16.gmra.mxu0 %v5208
    %v5493 = vpop.f32.mrf.mxu0
    %v5494 = vadd.f32 %v3204, %v5493
    %v5495 = vpop.f32.mrf.mxu0
    %v5496 = vadd.f32 %v3208, %v5495
    %v5497 = vpop.f32.mrf.mxu0
    %v5498 = vpop.f32.mrf.mxu0
    %5499 = vdwg.mxu0
    %5500 = vmatprep.subr.bf16.mxu0 0
    %5501 = vmatpush1.bf16.msra.mxu0 %v3175
    %5502 = vmatprep.subr.bf16.mxu0 0
    %5503 = vmatpush1.bf16.msra.mxu0 %v3172
    %5504 = vmatprep.subr.bf16.mxu0 0
    %5505 = vmatpush1.bf16.msra.mxu0 %v3169
    %5506 = vmatprep.subr.bf16.mxu0 0
    %5507 = vmatpush1.bf16.msra.mxu0 %v3166
    %5508 = vmatprep.subr.bf16.mxu0 0
    %5509 = vmatpush1.bf16.msra.mxu0 %v3163
    %5510 = vmatprep.subr.bf16.mxu0 0
    %5511 = vmatpush1.bf16.msra.mxu0 %v3160
    %5512 = vmatprep.subr.bf16.mxu0 0
    %5513 = vmatpush1.bf16.msra.mxu0 %v3157
    %5514 = vmatprep.subr.bf16.mxu0 0
    %5515 = vmatpush1.bf16.msra.mxu0 %v3154
    %5516 = vmatprep.subr.bf16.mxu0 0
    %5517 = vmatpush2.bf16.msra.mxu0 0
    %5518 = vmatprep.subr.bf16.mxu0 0
    %5519 = vmatpush2.bf16.msra.mxu0 0
    %5520 = vmatprep.subr.bf16.mxu0 0
    %5521 = vmatpush2.bf16.msra.mxu0 0
    %5522 = vmatprep.subr.bf16.mxu0 0
    %5523 = vmatpush2.bf16.msra.mxu0 0
    %5524 = vmatprep.subr.bf16.mxu0 0
    %5525 = vmatpush2.bf16.msra.mxu0 0
    %5526 = vmatprep.subr.bf16.mxu0 0
    %5527 = vmatpush2.bf16.msra.mxu0 0
    %5528 = vmatprep.subr.bf16.mxu0 0
    %5529 = vmatpush2.bf16.msra.mxu0 0
    %5530 = vmatprep.subr.bf16.mxu0 0
    %5531 = vmatpush2.bf16.msra.mxu0 0
    %5532 = vmatprep.mubr.bf16.mxu0 0
    %5533 = vmatmul.mubr.bf16.gmra.mxu0 %v5208
    %v5534 = vpop.f32.mrf.mxu0
    %v5535 = vadd.f32 %v3212, %v5534
    %v5536 = vpop.f32.mrf.mxu0
    %v5537 = vpop.f32.mrf.mxu0
    %v5538 = vpop.f32.mrf.mxu0
    %5539 = vdwg.mxu0
    %v5540 = vadd.f32 %v5413, %v5494
    %v5541 = vxor.u32 %v5540, 2147483648
    %v5542 = vmul.f32 %v5541, 1.442695
    %v5543 = vpow.pop %v5542
    %v5544 = vadd.f32 %v5543, 1.0
    %v5545 = vrcp.pop %v5544
    %v5546 = vmul.f32 1.0, %v5545
    %v5547 = vadd.f32 %v5415, %v5496
    %v5548 = vxor.u32 %v5547, 2147483648
    %v5549 = vmul.f32 %v5548, 1.442695
    %v5550 = vpow.pop %v5549
    %v5551 = vadd.f32 %v5550, 1.0
    %v5552 = vrcp.pop %v5551
    %v5553 = vmul.f32 1.0, %v5552
    %v5554 = vmul.f32 %v5546, %v5535
    %v5555 = vadd.f32 %v5454, %v5554
    %v5556 = vtanh.pop %v5555
    %v5557 = vsub.f32 1.0, %v5553
    %v5558 = vmul.f32 %v5557, %v5556
    %v5559 = vmul.f32 %v5553, %v5052
    %v5560 = vadd.f32 %v5558, %v5559
    %5561 = vmatprep.subr.mxu0 0.0
    %5562 = vmatpush1.msra.mxu0 %v3333
    %5563 = vmatprep.subr.mxu0 0.0
    %5564 = vmatpush1.msra.mxu0 %v3332
    %5565 = vmatprep.subr.mxu0 0.0
    %5566 = vmatpush1.msra.mxu0 %v3331
    %5567 = vmatprep.subr.mxu0 0.0
    %5568 = vmatpush1.msra.mxu0 %v3330
    %5569 = vmatprep.subr.mxu0 0.0
    %5570 = vmatpush1.msra.mxu0 %v3329
    %5571 = vmatprep.subr.mxu0 0.0
    %5572 = vmatpush1.msra.mxu0 %v3328
    %5573 = vmatprep.subr.mxu0 0.0
    %5574 = vmatpush1.msra.mxu0 %v3327
    %5575 = vmatprep.subr.mxu0 0.0
    %5576 = vmatpush1.msra.mxu0 %v3326
    %5577 = vmatprep.subr.mxu0 0.0
    %5578 = vmatpush1.msra.mxu0 %v3325
    %5579 = vmatprep.subr.mxu0 0.0
    %5580 = vmatpush1.msra.mxu0 %v3324
    %5581 = vmatprep.subr.mxu0 0.0
    %5582 = vmatpush1.msra.mxu0 %v3323
    %5583 = vmatprep.subr.mxu0 0.0
    %5584 = vmatpush1.msra.mxu0 %v3322
    %5585 = vmatprep.subr.mxu0 0.0
    %5586 = vmatpush1.msra.mxu0 %v3321
    %5587 = vmatprep.subr.mxu0 0.0
    %5588 = vmatpush1.msra.mxu0 %v3320
    %5589 = vmatprep.subr.mxu0 0.0
    %5590 = vmatpush1.msra.mxu0 %v3319
    %5591 = vmatprep.subr.mxu0 0.0
    %5592 = vmatpush1.msra.mxu0 %v3318
    %5593 = vmatprep.subr.mxu0 0.0
    %5594 = vmatpush2.msra.mxu0 0.0
    %5595 = vmatprep.subr.mxu0 0.0
    %5596 = vmatpush2.msra.mxu0 0.0
    %5597 = vmatprep.subr.mxu0 0.0
    %5598 = vmatpush2.msra.mxu0 0.0
    %5599 = vmatprep.subr.mxu0 0.0
    %5600 = vmatpush2.msra.mxu0 0.0
    %5601 = vmatprep.subr.mxu0 0.0
    %5602 = vmatpush2.msra.mxu0 0.0
    %5603 = vmatprep.subr.mxu0 0.0
    %5604 = vmatpush2.msra.mxu0 0.0
    %5605 = vmatprep.subr.mxu0 0.0
    %5606 = vmatpush2.msra.mxu0 0.0
    %5607 = vmatprep.subr.mxu0 0.0
    %5608 = vmatpush2.msra.mxu0 0.0
    %5609 = vmatprep.subr.mxu0 0.0
    %5610 = vmatpush2.msra.mxu0 0.0
    %5611 = vmatprep.subr.mxu0 0.0
    %5612 = vmatpush2.msra.mxu0 0.0
    %5613 = vmatprep.subr.mxu0 0.0
    %5614 = vmatpush2.msra.mxu0 0.0
    %5615 = vmatprep.subr.mxu0 0.0
    %5616 = vmatpush2.msra.mxu0 0.0
    %5617 = vmatprep.subr.mxu0 0.0
    %5618 = vmatpush2.msra.mxu0 0.0
    %5619 = vmatprep.subr.mxu0 0.0
    %5620 = vmatpush2.msra.mxu0 0.0
    %5621 = vmatprep.subr.mxu0 0.0
    %5622 = vmatpush2.msra.mxu0 0.0
    %5623 = vmatprep.subr.mxu0 0.0
    %5624 = vmatpush2.msra.mxu0 0.0
    %5625 = vmatprep.mubr.f32.mxu0 0.0
    %5626 = vmatmul.mubr.f32.gmra.mxu0 %v5560
    %v5627 = vpop.f32.mrf.mxu0
    %v5628 = vadd.f32 0.0, %v5627
    %v5629 = vpop.f32.mrf.mxu0
    %5630 = vdwg.mxu0
    %v5631 = vsel %vm2778, %v5628, -1e+30
    %v5632 = vsel %vm3405, %v5631, -inf
    %5633 = vmax.xlane.f32.xlu0 %v5632
    %v5634 = vpop.xlane.xlu0 %5633
    %v5635 = vsub.f32 %v5631, %v5634
    %v5636 = vmul.f32 %v5635, 1.442695
    %v5637 = vpow.pop %v5636
    %v5638 = vsel %vm3405, %v5637, 0.0
    %5639 = vadd.xlane.f32.xlu0 %v5638
    %v5640 = vpop.xlane.xlu0 %5639
    %v5641 = vrcp.pop %v5640
    %v5642 = vmul.f32 %v5637, %v5641
    %v5644 = vsel %vm2754, %v5642, 0
    %5646 = vmatprep.subr.mxu0 0.0
    %5647 = vmatpush1.msra.mxu0 0.0
    %5648 = vmatprep.subr.mxu0 0.0
    %5649 = vmatpush1.msra.mxu0 0.0
    %5650 = vmatprep.subr.mxu0 0.0
    %5651 = vmatpush1.msra.mxu0 0.0
    %5652 = vmatprep.subr.mxu0 0.0
    %5653 = vmatpush1.msra.mxu0 0.0
    %5654 = vmatprep.subr.mxu0 0.0
    %5655 = vmatpush1.msra.mxu0 0.0
    %5656 = vmatprep.subr.mxu0 0.0
    %5657 = vmatpush1.msra.mxu0 0.0
    %5658 = vmatprep.subr.mxu0 0.0
    %5659 = vmatpush1.msra.mxu0 0.0
    %5660 = vmatprep.subr.mxu0 0.0
    %5661 = vmatpush1.msra.mxu0 0.0
    %5662 = vmatprep.subr.mxu0 0.0
    %5663 = vmatpush1.msra.mxu0 0.0
    %5664 = vmatprep.subr.mxu0 0.0
    %5665 = vmatpush1.msra.mxu0 0.0
    %5666 = vmatprep.subr.mxu0 0.0
    %5667 = vmatpush1.msra.mxu0 0.0
    %5668 = vmatprep.subr.mxu0 0.0
    %5669 = vmatpush1.msra.mxu0 0.0
    %5670 = vmatprep.subr.mxu0 0.0
    %5671 = vmatpush1.msra.mxu0 0.0
    %5672 = vmatprep.subr.mxu0 0.0
    %5673 = vmatpush1.msra.mxu0 0.0
    %5674 = vmatprep.subr.mxu0 0.0
    %5675 = vmatpush1.msra.mxu0 0.0
    %5676 = vmatprep.subr.mxu0 0.0
    %5677 = vmatpush1.msra.mxu0 %v3417
    %5678 = vmatprep.subr.mxu0 0.0
    %5679 = vmatpush2.msra.mxu0 0.0
    %5680 = vmatprep.subr.mxu0 0.0
    %5681 = vmatpush2.msra.mxu0 0.0
    %5682 = vmatprep.subr.mxu0 0.0
    %5683 = vmatpush2.msra.mxu0 0.0
    %5684 = vmatprep.subr.mxu0 0.0
    %5685 = vmatpush2.msra.mxu0 0.0
    %5686 = vmatprep.subr.mxu0 0.0
    %5687 = vmatpush2.msra.mxu0 0.0
    %5688 = vmatprep.subr.mxu0 0.0
    %5689 = vmatpush2.msra.mxu0 0.0
    %5690 = vmatprep.subr.mxu0 0.0
    %5691 = vmatpush2.msra.mxu0 0.0
    %5692 = vmatprep.subr.mxu0 0.0
    %5693 = vmatpush2.msra.mxu0 0.0
    %5694 = vmatprep.subr.mxu0 0.0
    %5695 = vmatpush2.msra.mxu0 0.0
    %5696 = vmatprep.subr.mxu0 0.0
    %5697 = vmatpush2.msra.mxu0 0.0
    %5698 = vmatprep.subr.mxu0 0.0
    %5699 = vmatpush2.msra.mxu0 0.0
    %5700 = vmatprep.subr.mxu0 0.0
    %5701 = vmatpush2.msra.mxu0 0.0
    %5702 = vmatprep.subr.mxu0 0.0
    %5703 = vmatpush2.msra.mxu0 0.0
    %5704 = vmatprep.subr.mxu0 0.0
    %5705 = vmatpush2.msra.mxu0 0.0
    %5706 = vmatprep.subr.mxu0 0.0
    %5707 = vmatpush2.msra.mxu0 0.0
    %5708 = vmatprep.subr.mxu0 0.0
    %5709 = vmatpush2.msra.mxu0 0.0
    %5710 = vmatprep.mubr.f32.mxu0 0.0
    %5711 = vmatmul.mubr.f32.gmra.mxu0 %v5644
    %v5712 = vpop.f32.mrf.mxu0
    %v5713 = vadd.f32 0.0, %v5712
    %v5714 = vpop.f32.mrf.mxu0
    %5715 = vdwg.mxu0
    %v5716 = vpack.c.bf16 %v5560, %v5560
    %v5717 = vpack.c.bf16 %v5713, %v5713
    %5718 = vmatprep.subr.bf16.mxu0 0
    %5719 = vmatpush1.bf16.msra.mxu0 %v3564
    %5720 = vmatprep.subr.bf16.mxu0 0
    %5721 = vmatpush1.bf16.msra.mxu0 %v3563
    %5722 = vmatprep.subr.bf16.mxu0 0
    %5723 = vmatpush1.bf16.msra.mxu0 %v3562
    %5724 = vmatprep.subr.bf16.mxu0 0
    %5725 = vmatpush1.bf16.msra.mxu0 %v3561
    %5726 = vmatprep.subr.bf16.mxu0 0
    %5727 = vmatpush1.bf16.msra.mxu0 %v3560
    %5728 = vmatprep.subr.bf16.mxu0 0
    %5729 = vmatpush1.bf16.msra.mxu0 %v3559
    %5730 = vmatprep.subr.bf16.mxu0 0
    %5731 = vmatpush1.bf16.msra.mxu0 %v3558
    %5732 = vmatprep.subr.bf16.mxu0 0
    %5733 = vmatpush1.bf16.msra.mxu0 %v3557
    %5734 = vmatprep.subr.bf16.mxu0 0
    %5735 = vmatpush2.bf16.msra.mxu0 0
    %5736 = vmatprep.subr.bf16.mxu0 0
    %5737 = vmatpush2.bf16.msra.mxu0 0
    %5738 = vmatprep.subr.bf16.mxu0 0
    %5739 = vmatpush2.bf16.msra.mxu0 0
    %5740 = vmatprep.subr.bf16.mxu0 0
    %5741 = vmatpush2.bf16.msra.mxu0 0
    %5742 = vmatprep.subr.bf16.mxu0 0
    %5743 = vmatpush2.bf16.msra.mxu0 0
    %5744 = vmatprep.subr.bf16.mxu0 0
    %5745 = vmatpush2.bf16.msra.mxu0 0
    %5746 = vmatprep.subr.bf16.mxu0 0
    %5747 = vmatpush2.bf16.msra.mxu0 0
    %5748 = vmatprep.subr.bf16.mxu0 0
    %5749 = vmatpush2.bf16.msra.mxu0 0
    %5750 = vmatprep.mubr.bf16.mxu0 0
    %5751 = vmatmul.mubr.bf16.gmra.mxu0 %v5717
    %v5752 = vpop.f32.mrf.mxu0
    %v5753 = vadd.f32 0.0, %v5752
    %v5754 = vpop.f32.mrf.mxu0
    %v5755 = vpop.f32.mrf.mxu0
    %v5756 = vpop.f32.mrf.mxu0
    %5757 = vdwg.mxu0
    %5758 = vmatprep.subr.bf16.mxu0 0
    %5759 = vmatpush1.bf16.msra.mxu0 %v3652
    %5760 = vmatprep.subr.bf16.mxu0 0
    %5761 = vmatpush1.bf16.msra.mxu0 %v3651
    %5762 = vmatprep.subr.bf16.mxu0 0
    %5763 = vmatpush1.bf16.msra.mxu0 %v3650
    %5764 = vmatprep.subr.bf16.mxu0 0
    %5765 = vmatpush1.bf16.msra.mxu0 %v3649
    %5766 = vmatprep.subr.bf16.mxu0 0
    %5767 = vmatpush1.bf16.msra.mxu0 %v3648
    %5768 = vmatprep.subr.bf16.mxu0 0
    %5769 = vmatpush1.bf16.msra.mxu0 %v3647
    %5770 = vmatprep.subr.bf16.mxu0 0
    %5771 = vmatpush1.bf16.msra.mxu0 %v3646
    %5772 = vmatprep.subr.bf16.mxu0 0
    %5773 = vmatpush1.bf16.msra.mxu0 %v3645
    %5774 = vmatprep.subr.bf16.mxu0 0
    %5775 = vmatpush2.bf16.msra.mxu0 0
    %5776 = vmatprep.subr.bf16.mxu0 0
    %5777 = vmatpush2.bf16.msra.mxu0 0
    %5778 = vmatprep.subr.bf16.mxu0 0
    %5779 = vmatpush2.bf16.msra.mxu0 0
    %5780 = vmatprep.subr.bf16.mxu0 0
    %5781 = vmatpush2.bf16.msra.mxu0 0
    %5782 = vmatprep.subr.bf16.mxu0 0
    %5783 = vmatpush2.bf16.msra.mxu0 0
    %5784 = vmatprep.subr.bf16.mxu0 0
    %5785 = vmatpush2.bf16.msra.mxu0 0
    %5786 = vmatprep.subr.bf16.mxu0 0
    %5787 = vmatpush2.bf16.msra.mxu0 0
    %5788 = vmatprep.subr.bf16.mxu0 0
    %5789 = vmatpush2.bf16.msra.mxu0 0
    %5790 = vmatprep.mubr.bf16.mxu0 0
    %5791 = vmatmul.mubr.bf16.gmra.mxu0 %v5716
    %v5792 = vpop.f32.mrf.mxu0
    %v5793 = vadd.f32 %v5753, %v5792
    %v5794 = vpop.f32.mrf.mxu0
    %v5795 = vpop.f32.mrf.mxu0
    %v5796 = vpop.f32.mrf.mxu0
    %5797 = vdwg.mxu0
    %v5798 = vadd.f32 %v5793, %v2773
    %v5799 = vtanh.pop %v5798
    %v5800 = vpack.c.bf16 %v5799, %v5799
    %5801 = vmatprep.subr.bf16.mxu0 0
    %5802 = vmatpush1.bf16.msra.mxu0 %v3759
    %5803 = vmatprep.subr.bf16.mxu0 0
    %5804 = vmatpush1.bf16.msra.mxu0 %v3758
    %5805 = vmatprep.subr.bf16.mxu0 0
    %5806 = vmatpush1.bf16.msra.mxu0 %v3757
    %5807 = vmatprep.subr.bf16.mxu0 0
    %5808 = vmatpush1.bf16.msra.mxu0 %v3756
    %5809 = vmatprep.subr.bf16.mxu0 0
    %5810 = vmatpush1.bf16.msra.mxu0 %v3755
    %5811 = vmatprep.subr.bf16.mxu0 0
    %5812 = vmatpush1.bf16.msra.mxu0 %v3754
    %5813 = vmatprep.subr.bf16.mxu0 0
    %5814 = vmatpush1.bf16.msra.mxu0 %v3753
    %5815 = vmatprep.subr.bf16.mxu0 0
    %5816 = vmatpush1.bf16.msra.mxu0 %v3752
    %5817 = vmatprep.subr.bf16.mxu0 0
    %5818 = vmatpush2.bf16.msra.mxu0 0
    %5819 = vmatprep.subr.bf16.mxu0 0
    %5820 = vmatpush2.bf16.msra.mxu0 0
    %5821 = vmatprep.subr.bf16.mxu0 0
    %5822 = vmatpush2.bf16.msra.mxu0 0
    %5823 = vmatprep.subr.bf16.mxu0 0
    %5824 = vmatpush2.bf16.msra.mxu0 0
    %5825 = vmatprep.subr.bf16.mxu0 0
    %5826 = vmatpush2.bf16.msra.mxu0 0
    %5827 = vmatprep.subr.bf16.mxu0 0
    %5828 = vmatpush2.bf16.msra.mxu0 0
    %5829 = vmatprep.subr.bf16.mxu0 0
    %5830 = vmatpush2.bf16.msra.mxu0 0
    %5831 = vmatprep.subr.bf16.mxu0 0
    %5832 = vmatpush2.bf16.msra.mxu0 0
    %5833 = vmatprep.mubr.bf16.mxu0 0
    %5834 = vmatmul.mubr.bf16.gmra.mxu0 %v5800
    %v5835 = vpop.f32.mrf.mxu0
    %v5836 = vadd.f32 %v2774, %v5835
    %v5837 = vpop.f32.mrf.mxu0
    %v5838 = vpop.f32.mrf.mxu0
    %v5839 = vpop.f32.mrf.mxu0
    %5840 = vdwg.mxu0
    %v5841 = vsel %vm2779, %v5836, -1e+30
    %v5842 = vsel %vm3809, %v5841, -inf
    %5843 = vmax.xlane.f32.xlu0 %v5842
    %v5844 = vpop.xlane.xlu0 %5843
    %v5845 = vsub.f32 %v5841, %v5844
    %v5846 = vmul.f32 %v5845, 1.442695
    %v5847 = vpow.pop %v5846
    %v5848 = vsel %vm3809, %v5847, 0.0
    %5849 = vadd.xlane.f32.xlu0 %v5848
    %v5850 = vpop.xlane.xlu0 %5849
    %v5851 = vrcp.pop %v5850
    %vm5852 = vcmp.eq.f32.partialorder %v5841, %v5844
    %v5853 = vsel %vm5852, %v2776, 128
    %v5854 = vsel %vm3809, %v5853, 2147483647
    %v5855 = vand.u32 %v5854, 65535
    %v5856 = vshra.s32 %v5854, 16
    %v5857 = vcvt.s32.f32 %v5855
    %v5858 = vcvt.s32.f32 %v5856
    %5859 = vmin.xlane.f32.xlu0 %v5858
    %v5860 = vpop.xlane.xlu0 %5859
    %vm5861 = vcmp.eq.f32.partialorder %v5858, %v5860
    %v5862 = vsel %vm5861, %v5857, inf
    %5863 = vmin.xlane.f32.xlu0 %v5862
    %v5864 = vpop.xlane.xlu0 %5863
    %v5865 = vcvt.f32.s32 %v5864
    %v5866 = vcvt.f32.s32 %v5860
    %v5867 = vshll.u32 %v5866, 16
    %v5868 = vadd.s32 %v5867, %v5865
    %v5869 = vrot.slane %v5868, 4
    %vm5870 = vcmp.lt.s32.totalorder %v5868, %v5869
    %v5871 = vsel %vm5870, %v5868, %v5869
    %v5872 = vrot.slane %v5871, 2
    %vm5873 = vcmp.lt.s32.totalorder %v5871, %v5872
    %v5874 = vsel %vm5873, %v5871, %v5872
    %v5875 = vrot.slane %v5874, 1
    %vm5876 = vcmp.lt.s32.totalorder %v5874, %v5875
    %v5877 = vsel %vm5876, %v5874, %v5875
    %s5878 = vtos %v5877
    %vm5879 = vcmp.eq.s32.totalorder %v2776, 4
    %v5880 = vstv %s5878
    %v5881 = vsel %vm5879, %v5880, %v5373
    %v5882 = vsel %vm5879, %v5851, %v5374
    %s5883 = scalar_lea.vmem [#allocation15], %s5878
    %v5884 = vld [vmem:[%s5883] sm:$0x1]
    %v5885 = vpack.c.bf16 %v5884, %v5884
    %5886 = vmatprep.subr.bf16.mxu0 %v2916
    %5887 = vmatpush1.bf16.msra.mxu0 %v2915
    %5888 = vmatprep.subr.bf16.mxu0 %v2913
    %5889 = vmatpush1.bf16.msra.mxu0 %v2912
    %5890 = vmatprep.subr.bf16.mxu0 %v2910
    %5891 = vmatpush1.bf16.msra.mxu0 %v2909
    %5892 = vmatprep.subr.bf16.mxu0 %v2907
    %5893 = vmatpush1.bf16.msra.mxu0 %v2906
    %5894 = vmatprep.subr.bf16.mxu0 %v2904
    %5895 = vmatpush1.bf16.msra.mxu0 %v2903
    %5896 = vmatprep.subr.bf16.mxu0 %v2901
    %5897 = vmatpush1.bf16.msra.mxu0 %v2900
    %5898 = vmatprep.subr.bf16.mxu0 %v2898
    %5899 = vmatpush1.bf16.msra.mxu0 %v2897
    %5900 = vmatprep.subr.bf16.mxu0 %v2895
    %5901 = vmatpush1.bf16.msra.mxu0 %v2894
    %5902 = vmatprep.subr.bf16.mxu0 0
    %5903 = vmatpush2.bf16.msra.mxu0 0
    %5904 = vmatprep.subr.bf16.mxu0 0
    %5905 = vmatpush2.bf16.msra.mxu0 0
    %5906 = vmatprep.subr.bf16.mxu0 0
    %5907 = vmatpush2.bf16.msra.mxu0 0
    %5908 = vmatprep.subr.bf16.mxu0 0
    %5909 = vmatpush2.bf16.msra.mxu0 0
    %5910 = vmatprep.subr.bf16.mxu0 0
    %5911 = vmatpush2.bf16.msra.mxu0 0
    %5912 = vmatprep.subr.bf16.mxu0 0
    %5913 = vmatpush2.bf16.msra.mxu0 0
    %5914 = vmatprep.subr.bf16.mxu0 0
    %5915 = vmatpush2.bf16.msra.mxu0 0
    %5916 = vmatprep.subr.bf16.mxu0 0
    %5917 = vmatpush2.bf16.msra.mxu0 0
    %5918 = vmatprep.mubr.bf16.mxu0 0
    %5919 = vmatmul.mubr.bf16.gmra.mxu0 %v5885
    %v5920 = vpop.f32.mrf.mxu0
    %v5921 = vadd.f32 %v2946, %v5920
    %v5922 = vpop.f32.mrf.mxu0
    %v5923 = vadd.f32 %v2950, %v5922
    %v5924 = vpop.f32.mrf.mxu0
    %v5925 = vpop.f32.mrf.mxu0
    %5926 = vdwg.mxu0
    %5927 = vmatprep.subr.bf16.mxu0 0
    %5928 = vmatpush1.bf16.msra.mxu0 %v2917
    %5929 = vmatprep.subr.bf16.mxu0 0
    %5930 = vmatpush1.bf16.msra.mxu0 %v2914
    %5931 = vmatprep.subr.bf16.mxu0 0
    %5932 = vmatpush1.bf16.msra.mxu0 %v2911
    %5933 = vmatprep.subr.bf16.mxu0 0
    %5934 = vmatpush1.bf16.msra.mxu0 %v2908
    %5935 = vmatprep.subr.bf16.mxu0 0
    %5936 = vmatpush1.bf16.msra.mxu0 %v2905
    %5937 = vmatprep.subr.bf16.mxu0 0
    %5938 = vmatpush1.bf16.msra.mxu0 %v2902
    %5939 = vmatprep.subr.bf16.mxu0 0
    %5940 = vmatpush1.bf16.msra.mxu0 %v2899
    %5941 = vmatprep.subr.bf16.mxu0 0
    %5942 = vmatpush1.bf16.msra.mxu0 %v2896
    %5943 = vmatprep.subr.bf16.mxu0 0
    %5944 = vmatpush2.bf16.msra.mxu0 0
    %5945 = vmatprep.subr.bf16.mxu0 0
    %5946 = vmatpush2.bf16.msra.mxu0 0
    %5947 = vmatprep.subr.bf16.mxu0 0
    %5948 = vmatpush2.bf16.msra.mxu0 0
    %5949 = vmatprep.subr.bf16.mxu0 0
    %5950 = vmatpush2.bf16.msra.mxu0 0
    %5951 = vmatprep.subr.bf16.mxu0 0
    %5952 = vmatpush2.bf16.msra.mxu0 0
    %5953 = vmatprep.subr.bf16.mxu0 0
    %5954 = vmatpush2.bf16.msra.mxu0 0
    %5955 = vmatprep.subr.bf16.mxu0 0
    %5956 = vmatpush2.bf16.msra.mxu0 0
    %5957 = vmatprep.subr.bf16.mxu0 0
    %5958 = vmatpush2.bf16.msra.mxu0 0
    %5959 = vmatprep.mubr.bf16.mxu0 0
    %5960 = vmatmul.mubr.bf16.gmra.mxu0 %v5885
    %v5961 = vpop.f32.mrf.mxu0
    %v5962 = vadd.f32 %v2954, %v5961
    %v5963 = vpop.f32.mrf.mxu0
    %v5964 = vpop.f32.mrf.mxu0
    %v5965 = vpop.f32.mrf.mxu0
    %5966 = vdwg.mxu0
    %5967 = vmatprep.subr.bf16.mxu0 %v3174
    %5968 = vmatpush1.bf16.msra.mxu0 %v3173
    %5969 = vmatprep.subr.bf16.mxu0 %v3171
    %5970 = vmatpush1.bf16.msra.mxu0 %v3170
    %5971 = vmatprep.subr.bf16.mxu0 %v3168
    %5972 = vmatpush1.bf16.msra.mxu0 %v3167
    %5973 = vmatprep.subr.bf16.mxu0 %v3165
    %5974 = vmatpush1.bf16.msra.mxu0 %v3164
    %5975 = vmatprep.subr.bf16.mxu0 %v3162
    %5976 = vmatpush1.bf16.msra.mxu0 %v3161
    %5977 = vmatprep.subr.bf16.mxu0 %v3159
    %5978 = vmatpush1.bf16.msra.mxu0 %v3158
    %5979 = vmatprep.subr.bf16.mxu0 %v3156
    %5980 = vmatpush1.bf16.msra.mxu0 %v3155
    %5981 = vmatprep.subr.bf16.mxu0 %v3153
    %5982 = vmatpush1.bf16.msra.mxu0 %v3152
    %5983 = vmatprep.subr.bf16.mxu0 0
    %5984 = vmatpush2.bf16.msra.mxu0 0
    %5985 = vmatprep.subr.bf16.mxu0 0
    %5986 = vmatpush2.bf16.msra.mxu0 0
    %5987 = vmatprep.subr.bf16.mxu0 0
    %5988 = vmatpush2.bf16.msra.mxu0 0
    %5989 = vmatprep.subr.bf16.mxu0 0
    %5990 = vmatpush2.bf16.msra.mxu0 0
    %5991 = vmatprep.subr.bf16.mxu0 0
    %5992 = vmatpush2.bf16.msra.mxu0 0
    %5993 = vmatprep.subr.bf16.mxu0 0
    %5994 = vmatpush2.bf16.msra.mxu0 0
    %5995 = vmatprep.subr.bf16.mxu0 0
    %5996 = vmatpush2.bf16.msra.mxu0 0
    %5997 = vmatprep.subr.bf16.mxu0 0
    %5998 = vmatpush2.bf16.msra.mxu0 0
    %5999 = vmatprep.mubr.bf16.mxu0 0
    %6000 = vmatmul.mubr.bf16.gmra.mxu0 %v5716
    %v6001 = vpop.f32.mrf.mxu0
    %v6002 = vadd.f32 %v3204, %v6001
    %v6003 = vpop.f32.mrf.mxu0
    %v6004 = vadd.f32 %v3208, %v6003
    %v6005 = vpop.f32.mrf.mxu0
    %v6006 = vpop.f32.mrf.mxu0
    %6007 = vdwg.mxu0
    %6008 = vmatprep.subr.bf16.mxu0 0
    %6009 = vmatpush1.bf16.msra.mxu0 %v3175
    %6010 = vmatprep.subr.bf16.mxu0 0
    %6011 = vmatpush1.bf16.msra.mxu0 %v3172
    %6012 = vmatprep.subr.bf16.mxu0 0
    %6013 = vmatpush1.bf16.msra.mxu0 %v3169
    %6014 = vmatprep.subr.bf16.mxu0 0
    %6015 = vmatpush1.bf16.msra.mxu0 %v3166
    %6016 = vmatprep.subr.bf16.mxu0 0
    %6017 = vmatpush1.bf16.msra.mxu0 %v3163
    %6018 = vmatprep.subr.bf16.mxu0 0
    %6019 = vmatpush1.bf16.msra.mxu0 %v3160
    %6020 = vmatprep.subr.bf16.mxu0 0
    %6021 = vmatpush1.bf16.msra.mxu0 %v3157
    %6022 = vmatprep.subr.bf16.mxu0 0
    %6023 = vmatpush1.bf16.msra.mxu0 %v3154
    %6024 = vmatprep.subr.bf16.mxu0 0
    %6025 = vmatpush2.bf16.msra.mxu0 0
    %6026 = vmatprep.subr.bf16.mxu0 0
    %6027 = vmatpush2.bf16.msra.mxu0 0
    %6028 = vmatprep.subr.bf16.mxu0 0
    %6029 = vmatpush2.bf16.msra.mxu0 0
    %6030 = vmatprep.subr.bf16.mxu0 0
    %6031 = vmatpush2.bf16.msra.mxu0 0
    %6032 = vmatprep.subr.bf16.mxu0 0
    %6033 = vmatpush2.bf16.msra.mxu0 0
    %6034 = vmatprep.subr.bf16.mxu0 0
    %6035 = vmatpush2.bf16.msra.mxu0 0
    %6036 = vmatprep.subr.bf16.mxu0 0
    %6037 = vmatpush2.bf16.msra.mxu0 0
    %6038 = vmatprep.subr.bf16.mxu0 0
    %6039 = vmatpush2.bf16.msra.mxu0 0
    %6040 = vmatprep.mubr.bf16.mxu0 0
    %6041 = vmatmul.mubr.bf16.gmra.mxu0 %v5716
    %v6042 = vpop.f32.mrf.mxu0
    %v6043 = vadd.f32 %v3212, %v6042
    %v6044 = vpop.f32.mrf.mxu0
    %v6045 = vpop.f32.mrf.mxu0
    %v6046 = vpop.f32.mrf.mxu0
    %6047 = vdwg.mxu0
    %v6048 = vadd.f32 %v5921, %v6002
    %v6049 = vxor.u32 %v6048, 2147483648
    %v6050 = vmul.f32 %v6049, 1.442695
    %v6051 = vpow.pop %v6050
    %v6052 = vadd.f32 %v6051, 1.0
    %v6053 = vrcp.pop %v6052
    %v6054 = vmul.f32 1.0, %v6053
    %v6055 = vadd.f32 %v5923, %v6004
    %v6056 = vxor.u32 %v6055, 2147483648
    %v6057 = vmul.f32 %v6056, 1.442695
    %v6058 = vpow.pop %v6057
    %v6059 = vadd.f32 %v6058, 1.0
    %v6060 = vrcp.pop %v6059
    %v6061 = vmul.f32 1.0, %v6060
    %v6062 = vmul.f32 %v6054, %v6043
    %v6063 = vadd.f32 %v5962, %v6062
    %v6064 = vtanh.pop %v6063
    %v6065 = vsub.f32 1.0, %v6061
    %v6066 = vmul.f32 %v6065, %v6064
    %v6067 = vmul.f32 %v6061, %v5560
    %v6068 = vadd.f32 %v6066, %v6067
    %6069 = vmatprep.subr.mxu0 0.0
    %6070 = vmatpush1.msra.mxu0 %v3333
    %6071 = vmatprep.subr.mxu0 0.0
    %6072 = vmatpush1.msra.mxu0 %v3332
    %6073 = vmatprep.subr.mxu0 0.0
    %6074 = vmatpush1.msra.mxu0 %v3331
    %6075 = vmatprep.subr.mxu0 0.0
    %6076 = vmatpush1.msra.mxu0 %v3330
    %6077 = vmatprep.subr.mxu0 0.0
    %6078 = vmatpush1.msra.mxu0 %v3329
    %6079 = vmatprep.subr.mxu0 0.0
    %6080 = vmatpush1.msra.mxu0 %v3328
    %6081 = vmatprep.subr.mxu0 0.0
    %6082 = vmatpush1.msra.mxu0 %v3327
    %6083 = vmatprep.subr.mxu0 0.0
    %6084 = vmatpush1.msra.mxu0 %v3326
    %6085 = vmatprep.subr.mxu0 0.0
    %6086 = vmatpush1.msra.mxu0 %v3325
    %6087 = vmatprep.subr.mxu0 0.0
    %6088 = vmatpush1.msra.mxu0 %v3324
    %6089 = vmatprep.subr.mxu0 0.0
    %6090 = vmatpush1.msra.mxu0 %v3323
    %6091 = vmatprep.subr.mxu0 0.0
    %6092 = vmatpush1.msra.mxu0 %v3322
    %6093 = vmatprep.subr.mxu0 0.0
    %6094 = vmatpush1.msra.mxu0 %v3321
    %6095 = vmatprep.subr.mxu0 0.0
    %6096 = vmatpush1.msra.mxu0 %v3320
    %6097 = vmatprep.subr.mxu0 0.0
    %6098 = vmatpush1.msra.mxu0 %v3319
    %6099 = vmatprep.subr.mxu0 0.0
    %6100 = vmatpush1.msra.mxu0 %v3318
    %6101 = vmatprep.subr.mxu0 0.0
    %6102 = vmatpush2.msra.mxu0 0.0
    %6103 = vmatprep.subr.mxu0 0.0
    %6104 = vmatpush2.msra.mxu0 0.0
    %6105 = vmatprep.subr.mxu0 0.0
    %6106 = vmatpush2.msra.mxu0 0.0
    %6107 = vmatprep.subr.mxu0 0.0
    %6108 = vmatpush2.msra.mxu0 0.0
    %6109 = vmatprep.subr.mxu0 0.0
    %6110 = vmatpush2.msra.mxu0 0.0
    %6111 = vmatprep.subr.mxu0 0.0
    %6112 = vmatpush2.msra.mxu0 0.0
    %6113 = vmatprep.subr.mxu0 0.0
    %6114 = vmatpush2.msra.mxu0 0.0
    %6115 = vmatprep.subr.mxu0 0.0
    %6116 = vmatpush2.msra.mxu0 0.0
    %6117 = vmatprep.subr.mxu0 0.0
    %6118 = vmatpush2.msra.mxu0 0.0
    %6119 = vmatprep.subr.mxu0 0.0
    %6120 = vmatpush2.msra.mxu0 0.0
    %6121 = vmatprep.subr.mxu0 0.0
    %6122 = vmatpush2.msra.mxu0 0.0
    %6123 = vmatprep.subr.mxu0 0.0
    %6124 = vmatpush2.msra.mxu0 0.0
    %6125 = vmatprep.subr.mxu0 0.0
    %6126 = vmatpush2.msra.mxu0 0.0
    %6127 = vmatprep.subr.mxu0 0.0
    %6128 = vmatpush2.msra.mxu0 0.0
    %6129 = vmatprep.subr.mxu0 0.0
    %6130 = vmatpush2.msra.mxu0 0.0
    %6131 = vmatprep.subr.mxu0 0.0
    %6132 = vmatpush2.msra.mxu0 0.0
    %6133 = vmatprep.mubr.f32.mxu0 0.0
    %6134 = vmatmul.mubr.f32.gmra.mxu0 %v6068
    %v6135 = vpop.f32.mrf.mxu0
    %v6136 = vadd.f32 0.0, %v6135
    %v6137 = vpop.f32.mrf.mxu0
    %6138 = vdwg.mxu0
    %v6139 = vsel %vm2778, %v6136, -1e+30
    %v6140 = vsel %vm3405, %v6139, -inf
    %6141 = vmax.xlane.f32.xlu0 %v6140
    %v6142 = vpop.xlane.xlu0 %6141
    %v6143 = vsub.f32 %v6139, %v6142
    %v6144 = vmul.f32 %v6143, 1.442695
    %v6145 = vpow.pop %v6144
    %v6146 = vsel %vm3405, %v6145, 0.0
    %6147 = vadd.xlane.f32.xlu0 %v6146
    %v6148 = vpop.xlane.xlu0 %6147
    %v6149 = vrcp.pop %v6148
    %v6150 = vmul.f32 %v6145, %v6149
    %v6152 = vsel %vm2754, %v6150, 0
    %6154 = vmatprep.subr.mxu0 0.0
    %6155 = vmatpush1.msra.mxu0 0.0
    %6156 = vmatprep.subr.mxu0 0.0
    %6157 = vmatpush1.msra.mxu0 0.0
    %6158 = vmatprep.subr.mxu0 0.0
    %6159 = vmatpush1.msra.mxu0 0.0
    %6160 = vmatprep.subr.mxu0 0.0
    %6161 = vmatpush1.msra.mxu0 0.0
    %6162 = vmatprep.subr.mxu0 0.0
    %6163 = vmatpush1.msra.mxu0 0.0
    %6164 = vmatprep.subr.mxu0 0.0
    %6165 = vmatpush1.msra.mxu0 0.0
    %6166 = vmatprep.subr.mxu0 0.0
    %6167 = vmatpush1.msra.mxu0 0.0
    %6168 = vmatprep.subr.mxu0 0.0
    %6169 = vmatpush1.msra.mxu0 0.0
    %6170 = vmatprep.subr.mxu0 0.0
    %6171 = vmatpush1.msra.mxu0 0.0
    %6172 = vmatprep.subr.mxu0 0.0
    %6173 = vmatpush1.msra.mxu0 0.0
    %6174 = vmatprep.subr.mxu0 0.0
    %6175 = vmatpush1.msra.mxu0 0.0
    %6176 = vmatprep.subr.mxu0 0.0
    %6177 = vmatpush1.msra.mxu0 0.0
    %6178 = vmatprep.subr.mxu0 0.0
    %6179 = vmatpush1.msra.mxu0 0.0
    %6180 = vmatprep.subr.mxu0 0.0
    %6181 = vmatpush1.msra.mxu0 0.0
    %6182 = vmatprep.subr.mxu0 0.0
    %6183 = vmatpush1.msra.mxu0 0.0
    %6184 = vmatprep.subr.mxu0 0.0
    %6185 = vmatpush1.msra.mxu0 %v3417
    %6186 = vmatprep.subr.mxu0 0.0
    %6187 = vmatpush2.msra.mxu0 0.0
    %6188 = vmatprep.subr.mxu0 0.0
    %6189 = vmatpush2.msra.mxu0 0.0
    %6190 = vmatprep.subr.mxu0 0.0
    %6191 = vmatpush2.msra.mxu0 0.0
    %6192 = vmatprep.subr.mxu0 0.0
    %6193 = vmatpush2.msra.mxu0 0.0
    %6194 = vmatprep.subr.mxu0 0.0
    %6195 = vmatpush2.msra.mxu0 0.0
    %6196 = vmatprep.subr.mxu0 0.0
    %6197 = vmatpush2.msra.mxu0 0.0
    %6198 = vmatprep.subr.mxu0 0.0
    %6199 = vmatpush2.msra.mxu0 0.0
    %6200 = vmatprep.subr.mxu0 0.0
    %6201 = vmatpush2.msra.mxu0 0.0
    %6202 = vmatprep.subr.mxu0 0.0
    %6203 = vmatpush2.msra.mxu0 0.0
    %6204 = vmatprep.subr.mxu0 0.0
    %6205 = vmatpush2.msra.mxu0 0.0
    %6206 = vmatprep.subr.mxu0 0.0
    %6207 = vmatpush2.msra.mxu0 0.0
    %6208 = vmatprep.subr.mxu0 0.0
    %6209 = vmatpush2.msra.mxu0 0.0
    %6210 = vmatprep.subr.mxu0 0.0
    %6211 = vmatpush2.msra.mxu0 0.0
    %6212 = vmatprep.subr.mxu0 0.0
    %6213 = vmatpush2.msra.mxu0 0.0
    %6214 = vmatprep.subr.mxu0 0.0
    %6215 = vmatpush2.msra.mxu0 0.0
    %6216 = vmatprep.subr.mxu0 0.0
    %6217 = vmatpush2.msra.mxu0 0.0
    %6218 = vmatprep.mubr.f32.mxu0 0.0
    %6219 = vmatmul.mubr.f32.gmra.mxu0 %v6152
    %v6220 = vpop.f32.mrf.mxu0
    %v6221 = vadd.f32 0.0, %v6220
    %v6222 = vpop.f32.mrf.mxu0
    %6223 = vdwg.mxu0
    %v6224 = vpack.c.bf16 %v6068, %v6068
    %v6225 = vpack.c.bf16 %v6221, %v6221
    %6226 = vmatprep.subr.bf16.mxu0 0
    %6227 = vmatpush1.bf16.msra.mxu0 %v3564
    %6228 = vmatprep.subr.bf16.mxu0 0
    %6229 = vmatpush1.bf16.msra.mxu0 %v3563
    %6230 = vmatprep.subr.bf16.mxu0 0
    %6231 = vmatpush1.bf16.msra.mxu0 %v3562
    %6232 = vmatprep.subr.bf16.mxu0 0
    %6233 = vmatpush1.bf16.msra.mxu0 %v3561
    %6234 = vmatprep.subr.bf16.mxu0 0
    %6235 = vmatpush1.bf16.msra.mxu0 %v3560
    %6236 = vmatprep.subr.bf16.mxu0 0
    %6237 = vmatpush1.bf16.msra.mxu0 %v3559
    %6238 = vmatprep.subr.bf16.mxu0 0
    %6239 = vmatpush1.bf16.msra.mxu0 %v3558
    %6240 = vmatprep.subr.bf16.mxu0 0
    %6241 = vmatpush1.bf16.msra.mxu0 %v3557
    %6242 = vmatprep.subr.bf16.mxu0 0
    %6243 = vmatpush2.bf16.msra.mxu0 0
    %6244 = vmatprep.subr.bf16.mxu0 0
    %6245 = vmatpush2.bf16.msra.mxu0 0
    %6246 = vmatprep.subr.bf16.mxu0 0
    %6247 = vmatpush2.bf16.msra.mxu0 0
    %6248 = vmatprep.subr.bf16.mxu0 0
    %6249 = vmatpush2.bf16.msra.mxu0 0
    %6250 = vmatprep.subr.bf16.mxu0 0
    %6251 = vmatpush2.bf16.msra.mxu0 0
    %6252 = vmatprep.subr.bf16.mxu0 0
    %6253 = vmatpush2.bf16.msra.mxu0 0
    %6254 = vmatprep.subr.bf16.mxu0 0
    %6255 = vmatpush2.bf16.msra.mxu0 0
    %6256 = vmatprep.subr.bf16.mxu0 0
    %6257 = vmatpush2.bf16.msra.mxu0 0
    %6258 = vmatprep.mubr.bf16.mxu0 0
    %6259 = vmatmul.mubr.bf16.gmra.mxu0 %v6225
    %v6260 = vpop.f32.mrf.mxu0
    %v6261 = vadd.f32 0.0, %v6260
    %v6262 = vpop.f32.mrf.mxu0
    %v6263 = vpop.f32.mrf.mxu0
    %v6264 = vpop.f32.mrf.mxu0
    %6265 = vdwg.mxu0
    %6266 = vmatprep.subr.bf16.mxu0 0
    %6267 = vmatpush1.bf16.msra.mxu0 %v3652
    %6268 = vmatprep.subr.bf16.mxu0 0
    %6269 = vmatpush1.bf16.msra.mxu0 %v3651
    %6270 = vmatprep.subr.bf16.mxu0 0
    %6271 = vmatpush1.bf16.msra.mxu0 %v3650
    %6272 = vmatprep.subr.bf16.mxu0 0
    %6273 = vmatpush1.bf16.msra.mxu0 %v3649
    %6274 = vmatprep.subr.bf16.mxu0 0
    %6275 = vmatpush1.bf16.msra.mxu0 %v3648
    %6276 = vmatprep.subr.bf16.mxu0 0
    %6277 = vmatpush1.bf16.msra.mxu0 %v3647
    %6278 = vmatprep.subr.bf16.mxu0 0
    %6279 = vmatpush1.bf16.msra.mxu0 %v3646
    %6280 = vmatprep.subr.bf16.mxu0 0
    %6281 = vmatpush1.bf16.msra.mxu0 %v3645
    %6282 = vmatprep.subr.bf16.mxu0 0
    %6283 = vmatpush2.bf16.msra.mxu0 0
    %6284 = vmatprep.subr.bf16.mxu0 0
    %6285 = vmatpush2.bf16.msra.mxu0 0
    %6286 = vmatprep.subr.bf16.mxu0 0
    %6287 = vmatpush2.bf16.msra.mxu0 0
    %6288 = vmatprep.subr.bf16.mxu0 0
    %6289 = vmatpush2.bf16.msra.mxu0 0
    %6290 = vmatprep.subr.bf16.mxu0 0
    %6291 = vmatpush2.bf16.msra.mxu0 0
    %6292 = vmatprep.subr.bf16.mxu0 0
    %6293 = vmatpush2.bf16.msra.mxu0 0
    %6294 = vmatprep.subr.bf16.mxu0 0
    %6295 = vmatpush2.bf16.msra.mxu0 0
    %6296 = vmatprep.subr.bf16.mxu0 0
    %6297 = vmatpush2.bf16.msra.mxu0 0
    %6298 = vmatprep.mubr.bf16.mxu0 0
    %6299 = vmatmul.mubr.bf16.gmra.mxu0 %v6224
    %v6300 = vpop.f32.mrf.mxu0
    %v6301 = vadd.f32 %v6261, %v6300
    %v6302 = vpop.f32.mrf.mxu0
    %v6303 = vpop.f32.mrf.mxu0
    %v6304 = vpop.f32.mrf.mxu0
    %6305 = vdwg.mxu0
    %v6306 = vadd.f32 %v6301, %v2773
    %v6307 = vtanh.pop %v6306
    %v6308 = vpack.c.bf16 %v6307, %v6307
    %6309 = vmatprep.subr.bf16.mxu0 0
    %6310 = vmatpush1.bf16.msra.mxu0 %v3759
    %6311 = vmatprep.subr.bf16.mxu0 0
    %6312 = vmatpush1.bf16.msra.mxu0 %v3758
    %6313 = vmatprep.subr.bf16.mxu0 0
    %6314 = vmatpush1.bf16.msra.mxu0 %v3757
    %6315 = vmatprep.subr.bf16.mxu0 0
    %6316 = vmatpush1.bf16.msra.mxu0 %v3756
    %6317 = vmatprep.subr.bf16.mxu0 0
    %6318 = vmatpush1.bf16.msra.mxu0 %v3755
    %6319 = vmatprep.subr.bf16.mxu0 0
    %6320 = vmatpush1.bf16.msra.mxu0 %v3754
    %6321 = vmatprep.subr.bf16.mxu0 0
    %6322 = vmatpush1.bf16.msra.mxu0 %v3753
    %6323 = vmatprep.subr.bf16.mxu0 0
    %6324 = vmatpush1.bf16.msra.mxu0 %v3752
    %6325 = vmatprep.subr.bf16.mxu0 0
    %6326 = vmatpush2.bf16.msra.mxu0 0
    %6327 = vmatprep.subr.bf16.mxu0 0
    %6328 = vmatpush2.bf16.msra.mxu0 0
    %6329 = vmatprep.subr.bf16.mxu0 0
    %6330 = vmatpush2.bf16.msra.mxu0 0
    %6331 = vmatprep.subr.bf16.mxu0 0
    %6332 = vmatpush2.bf16.msra.mxu0 0
    %6333 = vmatprep.subr.bf16.mxu0 0
    %6334 = vmatpush2.bf16.msra.mxu0 0
    %6335 = vmatprep.subr.bf16.mxu0 0
    %6336 = vmatpush2.bf16.msra.mxu0 0
    %6337 = vmatprep.subr.bf16.mxu0 0
    %6338 = vmatpush2.bf16.msra.mxu0 0
    %6339 = vmatprep.subr.bf16.mxu0 0
    %6340 = vmatpush2.bf16.msra.mxu0 0
    %6341 = vmatprep.mubr.bf16.mxu0 0
    %6342 = vmatmul.mubr.bf16.gmra.mxu0 %v6308
    %v6343 = vpop.f32.mrf.mxu0
    %v6344 = vadd.f32 %v2774, %v6343
    %v6345 = vpop.f32.mrf.mxu0
    %v6346 = vpop.f32.mrf.mxu0
    %v6347 = vpop.f32.mrf.mxu0
    %6348 = vdwg.mxu0
    %v6349 = vsel %vm2779, %v6344, -1e+30
    %v6350 = vsel %vm3809, %v6349, -inf
    %6351 = vmax.xlane.f32.xlu0 %v6350
    %v6352 = vpop.xlane.xlu0 %6351
    %v6353 = vsub.f32 %v6349, %v6352
    %v6354 = vmul.f32 %v6353, 1.442695
    %v6355 = vpow.pop %v6354
    %v6356 = vsel %vm3809, %v6355, 0.0
    %6357 = vadd.xlane.f32.xlu0 %v6356
    %v6358 = vpop.xlane.xlu0 %6357
    %v6359 = vrcp.pop %v6358
    %vm6360 = vcmp.eq.f32.partialorder %v6349, %v6352
    %v6361 = vsel %vm6360, %v2776, 128
    %v6362 = vsel %vm3809, %v6361, 2147483647
    %v6363 = vand.u32 %v6362, 65535
    %v6364 = vshra.s32 %v6362, 16
    %v6365 = vcvt.s32.f32 %v6363
    %v6366 = vcvt.s32.f32 %v6364
    %6367 = vmin.xlane.f32.xlu0 %v6366
    %v6368 = vpop.xlane.xlu0 %6367
    %vm6369 = vcmp.eq.f32.partialorder %v6366, %v6368
    %v6370 = vsel %vm6369, %v6365, inf
    %6371 = vmin.xlane.f32.xlu0 %v6370
    %v6372 = vpop.xlane.xlu0 %6371
    %v6373 = vcvt.f32.s32 %v6372
    %v6374 = vcvt.f32.s32 %v6368
    %v6375 = vshll.u32 %v6374, 16
    %v6376 = vadd.s32 %v6375, %v6373
    %v6377 = vrot.slane %v6376, 4
    %vm6378 = vcmp.lt.s32.totalorder %v6376, %v6377
    %v6379 = vsel %vm6378, %v6376, %v6377
    %v6380 = vrot.slane %v6379, 2
    %vm6381 = vcmp.lt.s32.totalorder %v6379, %v6380
    %v6382 = vsel %vm6381, %v6379, %v6380
    %v6383 = vrot.slane %v6382, 1
    %vm6384 = vcmp.lt.s32.totalorder %v6382, %v6383
    %v6385 = vsel %vm6384, %v6382, %v6383
    %s6386 = vtos %v6385
    %vm6387 = vcmp.eq.s32.totalorder %v2776, 5
    %v6388 = vstv %s6386
    %v6389 = vsel %vm6387, %v6388, %v5881
    %v6390 = vsel %vm6387, %v6359, %v5882
    %s6391 = scalar_lea.vmem [#allocation15], %s6386
    %v6392 = vld [vmem:[%s6391] sm:$0x1]
    %v6393 = vpack.c.bf16 %v6392, %v6392
    %6394 = vmatprep.subr.bf16.mxu0 %v2916
    %6395 = vmatpush1.bf16.msra.mxu0 %v2915
    %6396 = vmatprep.subr.bf16.mxu0 %v2913
    %6397 = vmatpush1.bf16.msra.mxu0 %v2912
    %6398 = vmatprep.subr.bf16.mxu0 %v2910
    %6399 = vmatpush1.bf16.msra.mxu0 %v2909
    %6400 = vmatprep.subr.bf16.mxu0 %v2907
    %6401 = vmatpush1.bf16.msra.mxu0 %v2906
    %6402 = vmatprep.subr.bf16.mxu0 %v2904
    %6403 = vmatpush1.bf16.msra.mxu0 %v2903
    %6404 = vmatprep.subr.bf16.mxu0 %v2901
    %6405 = vmatpush1.bf16.msra.mxu0 %v2900
    %6406 = vmatprep.subr.bf16.mxu0 %v2898
    %6407 = vmatpush1.bf16.msra.mxu0 %v2897
    %6408 = vmatprep.subr.bf16.mxu0 %v2895
    %6409 = vmatpush1.bf16.msra.mxu0 %v2894
    %6410 = vmatprep.subr.bf16.mxu0 0
    %6411 = vmatpush2.bf16.msra.mxu0 0
    %6412 = vmatprep.subr.bf16.mxu0 0
    %6413 = vmatpush2.bf16.msra.mxu0 0
    %6414 = vmatprep.subr.bf16.mxu0 0
    %6415 = vmatpush2.bf16.msra.mxu0 0
    %6416 = vmatprep.subr.bf16.mxu0 0
    %6417 = vmatpush2.bf16.msra.mxu0 0
    %6418 = vmatprep.subr.bf16.mxu0 0
    %6419 = vmatpush2.bf16.msra.mxu0 0
    %6420 = vmatprep.subr.bf16.mxu0 0
    %6421 = vmatpush2.bf16.msra.mxu0 0
    %6422 = vmatprep.subr.bf16.mxu0 0
    %6423 = vmatpush2.bf16.msra.mxu0 0
    %6424 = vmatprep.subr.bf16.mxu0 0
    %6425 = vmatpush2.bf16.msra.mxu0 0
    %6426 = vmatprep.mubr.bf16.mxu0 0
    %6427 = vmatmul.mubr.bf16.gmra.mxu0 %v6393
    %v6428 = vpop.f32.mrf.mxu0
    %v6429 = vadd.f32 %v2946, %v6428
    %v6430 = vpop.f32.mrf.mxu0
    %v6431 = vadd.f32 %v2950, %v6430
    %v6432 = vpop.f32.mrf.mxu0
    %v6433 = vpop.f32.mrf.mxu0
    %6434 = vdwg.mxu0
    %6435 = vmatprep.subr.bf16.mxu0 0
    %6436 = vmatpush1.bf16.msra.mxu0 %v2917
    %6437 = vmatprep.subr.bf16.mxu0 0
    %6438 = vmatpush1.bf16.msra.mxu0 %v2914
    %6439 = vmatprep.subr.bf16.mxu0 0
    %6440 = vmatpush1.bf16.msra.mxu0 %v2911
    %6441 = vmatprep.subr.bf16.mxu0 0
    %6442 = vmatpush1.bf16.msra.mxu0 %v2908
    %6443 = vmatprep.subr.bf16.mxu0 0
    %6444 = vmatpush1.bf16.msra.mxu0 %v2905
    %6445 = vmatprep.subr.bf16.mxu0 0
    %6446 = vmatpush1.bf16.msra.mxu0 %v2902
    %6447 = vmatprep.subr.bf16.mxu0 0
    %6448 = vmatpush1.bf16.msra.mxu0 %v2899
    %6449 = vmatprep.subr.bf16.mxu0 0
    %6450 = vmatpush1.bf16.msra.mxu0 %v2896
    %6451 = vmatprep.subr.bf16.mxu0 0
    %6452 = vmatpush2.bf16.msra.mxu0 0
    %6453 = vmatprep.subr.bf16.mxu0 0
    %6454 = vmatpush2.bf16.msra.mxu0 0
    %6455 = vmatprep.subr.bf16.mxu0 0
    %6456 = vmatpush2.bf16.msra.mxu0 0
    %6457 = vmatprep.subr.bf16.mxu0 0
    %6458 = vmatpush2.bf16.msra.mxu0 0
    %6459 = vmatprep.subr.bf16.mxu0 0
    %6460 = vmatpush2.bf16.msra.mxu0 0
    %6461 = vmatprep.subr.bf16.mxu0 0
    %6462 = vmatpush2.bf16.msra.mxu0 0
    %6463 = vmatprep.subr.bf16.mxu0 0
    %6464 = vmatpush2.bf16.msra.mxu0 0
    %6465 = vmatprep.subr.bf16.mxu0 0
    %6466 = vmatpush2.bf16.msra.mxu0 0
    %6467 = vmatprep.mubr.bf16.mxu0 0
    %6468 = vmatmul.mubr.bf16.gmra.mxu0 %v6393
    %v6469 = vpop.f32.mrf.mxu0
    %v6470 = vadd.f32 %v2954, %v6469
    %v6471 = vpop.f32.mrf.mxu0
    %v6472 = vpop.f32.mrf.mxu0
    %v6473 = vpop.f32.mrf.mxu0
    %6474 = vdwg.mxu0
    %6475 = vmatprep.subr.bf16.mxu0 %v3174
    %6476 = vmatpush1.bf16.msra.mxu0 %v3173
    %6477 = vmatprep.subr.bf16.mxu0 %v3171
    %6478 = vmatpush1.bf16.msra.mxu0 %v3170
    %6479 = vmatprep.subr.bf16.mxu0 %v3168
    %6480 = vmatpush1.bf16.msra.mxu0 %v3167
    %6481 = vmatprep.subr.bf16.mxu0 %v3165
    %6482 = vmatpush1.bf16.msra.mxu0 %v3164
    %6483 = vmatprep.subr.bf16.mxu0 %v3162
    %6484 = vmatpush1.bf16.msra.mxu0 %v3161
    %6485 = vmatprep.subr.bf16.mxu0 %v3159
    %6486 = vmatpush1.bf16.msra.mxu0 %v3158
    %6487 = vmatprep.subr.bf16.mxu0 %v3156
    %6488 = vmatpush1.bf16.msra.mxu0 %v3155
    %6489 = vmatprep.subr.bf16.mxu0 %v3153
    %6490 = vmatpush1.bf16.msra.mxu0 %v3152
    %6491 = vmatprep.subr.bf16.mxu0 0
    %6492 = vmatpush2.bf16.msra.mxu0 0
    %6493 = vmatprep.subr.bf16.mxu0 0
    %6494 = vmatpush2.bf16.msra.mxu0 0
    %6495 = vmatprep.subr.bf16.mxu0 0
    %6496 = vmatpush2.bf16.msra.mxu0 0
    %6497 = vmatprep.subr.bf16.mxu0 0
    %6498 = vmatpush2.bf16.msra.mxu0 0
    %6499 = vmatprep.subr.bf16.mxu0 0
    %6500 = vmatpush2.bf16.msra.mxu0 0
    %6501 = vmatprep.subr.bf16.mxu0 0
    %6502 = vmatpush2.bf16.msra.mxu0 0
    %6503 = vmatprep.subr.bf16.mxu0 0
    %6504 = vmatpush2.bf16.msra.mxu0 0
    %6505 = vmatprep.subr.bf16.mxu0 0
    %6506 = vmatpush2.bf16.msra.mxu0 0
    %6507 = vmatprep.mubr.bf16.mxu0 0
    %6508 = vmatmul.mubr.bf16.gmra.mxu0 %v6224
    %v6509 = vpop.f32.mrf.mxu0
    %v6510 = vadd.f32 %v3204, %v6509
    %v6511 = vpop.f32.mrf.mxu0
    %v6512 = vadd.f32 %v3208, %v6511
    %v6513 = vpop.f32.mrf.mxu0
    %v6514 = vpop.f32.mrf.mxu0
    %6515 = vdwg.mxu0
    %6516 = vmatprep.subr.bf16.mxu0 0
    %6517 = vmatpush1.bf16.msra.mxu0 %v3175
    %6518 = vmatprep.subr.bf16.mxu0 0
    %6519 = vmatpush1.bf16.msra.mxu0 %v3172
    %6520 = vmatprep.subr.bf16.mxu0 0
    %6521 = vmatpush1.bf16.msra.mxu0 %v3169
    %6522 = vmatprep.subr.bf16.mxu0 0
    %6523 = vmatpush1.bf16.msra.mxu0 %v3166
    %6524 = vmatprep.subr.bf16.mxu0 0
    %6525 = vmatpush1.bf16.msra.mxu0 %v3163
    %6526 = vmatprep.subr.bf16.mxu0 0
    %6527 = vmatpush1.bf16.msra.mxu0 %v3160
    %6528 = vmatprep.subr.bf16.mxu0 0
    %6529 = vmatpush1.bf16.msra.mxu0 %v3157
    %6530 = vmatprep.subr.bf16.mxu0 0
    %6531 = vmatpush1.bf16.msra.mxu0 %v3154
    %6532 = vmatprep.subr.bf16.mxu0 0
    %6533 = vmatpush2.bf16.msra.mxu0 0
    %6534 = vmatprep.subr.bf16.mxu0 0
    %6535 = vmatpush2.bf16.msra.mxu0 0
    %6536 = vmatprep.subr.bf16.mxu0 0
    %6537 = vmatpush2.bf16.msra.mxu0 0
    %6538 = vmatprep.subr.bf16.mxu0 0
    %6539 = vmatpush2.bf16.msra.mxu0 0
    %6540 = vmatprep.subr.bf16.mxu0 0
    %6541 = vmatpush2.bf16.msra.mxu0 0
    %6542 = vmatprep.subr.bf16.mxu0 0
    %6543 = vmatpush2.bf16.msra.mxu0 0
    %6544 = vmatprep.subr.bf16.mxu0 0
    %6545 = vmatpush2.bf16.msra.mxu0 0
    %6546 = vmatprep.subr.bf16.mxu0 0
    %6547 = vmatpush2.bf16.msra.mxu0 0
    %6548 = vmatprep.mubr.bf16.mxu0 0
    %6549 = vmatmul.mubr.bf16.gmra.mxu0 %v6224
    %v6550 = vpop.f32.mrf.mxu0
    %v6551 = vadd.f32 %v3212, %v6550
    %v6552 = vpop.f32.mrf.mxu0
    %v6553 = vpop.f32.mrf.mxu0
    %v6554 = vpop.f32.mrf.mxu0
    %6555 = vdwg.mxu0
    %v6556 = vadd.f32 %v6429, %v6510
    %v6557 = vxor.u32 %v6556, 2147483648
    %v6558 = vmul.f32 %v6557, 1.442695
    %v6559 = vpow.pop %v6558
    %v6560 = vadd.f32 %v6559, 1.0
    %v6561 = vrcp.pop %v6560
    %v6562 = vmul.f32 1.0, %v6561
    %v6563 = vadd.f32 %v6431, %v6512
    %v6564 = vxor.u32 %v6563, 2147483648
    %v6565 = vmul.f32 %v6564, 1.442695
    %v6566 = vpow.pop %v6565
    %v6567 = vadd.f32 %v6566, 1.0
    %v6568 = vrcp.pop %v6567
    %v6569 = vmul.f32 1.0, %v6568
    %v6570 = vmul.f32 %v6562, %v6551
    %v6571 = vadd.f32 %v6470, %v6570
    %v6572 = vtanh.pop %v6571
    %v6573 = vsub.f32 1.0, %v6569
    %v6574 = vmul.f32 %v6573, %v6572
    %v6575 = vmul.f32 %v6569, %v6068
    %v6576 = vadd.f32 %v6574, %v6575
    %6577 = vmatprep.subr.mxu0 0.0
    %6578 = vmatpush1.msra.mxu0 %v3333
    %6579 = vmatprep.subr.mxu0 0.0
    %6580 = vmatpush1.msra.mxu0 %v3332
    %6581 = vmatprep.subr.mxu0 0.0
    %6582 = vmatpush1.msra.mxu0 %v3331
    %6583 = vmatprep.subr.mxu0 0.0
    %6584 = vmatpush1.msra.mxu0 %v3330
    %6585 = vmatprep.subr.mxu0 0.0
    %6586 = vmatpush1.msra.mxu0 %v3329
    %6587 = vmatprep.subr.mxu0 0.0
    %6588 = vmatpush1.msra.mxu0 %v3328
    %6589 = vmatprep.subr.mxu0 0.0
    %6590 = vmatpush1.msra.mxu0 %v3327
    %6591 = vmatprep.subr.mxu0 0.0
    %6592 = vmatpush1.msra.mxu0 %v3326
    %6593 = vmatprep.subr.mxu0 0.0
    %6594 = vmatpush1.msra.mxu0 %v3325
    %6595 = vmatprep.subr.mxu0 0.0
    %6596 = vmatpush1.msra.mxu0 %v3324
    %6597 = vmatprep.subr.mxu0 0.0
    %6598 = vmatpush1.msra.mxu0 %v3323
    %6599 = vmatprep.subr.mxu0 0.0
    %6600 = vmatpush1.msra.mxu0 %v3322
    %6601 = vmatprep.subr.mxu0 0.0
    %6602 = vmatpush1.msra.mxu0 %v3321
    %6603 = vmatprep.subr.mxu0 0.0
    %6604 = vmatpush1.msra.mxu0 %v3320
    %6605 = vmatprep.subr.mxu0 0.0
    %6606 = vmatpush1.msra.mxu0 %v3319
    %6607 = vmatprep.subr.mxu0 0.0
    %6608 = vmatpush1.msra.mxu0 %v3318
    %6609 = vmatprep.subr.mxu0 0.0
    %6610 = vmatpush2.msra.mxu0 0.0
    %6611 = vmatprep.subr.mxu0 0.0
    %6612 = vmatpush2.msra.mxu0 0.0
    %6613 = vmatprep.subr.mxu0 0.0
    %6614 = vmatpush2.msra.mxu0 0.0
    %6615 = vmatprep.subr.mxu0 0.0
    %6616 = vmatpush2.msra.mxu0 0.0
    %6617 = vmatprep.subr.mxu0 0.0
    %6618 = vmatpush2.msra.mxu0 0.0
    %6619 = vmatprep.subr.mxu0 0.0
    %6620 = vmatpush2.msra.mxu0 0.0
    %6621 = vmatprep.subr.mxu0 0.0
    %6622 = vmatpush2.msra.mxu0 0.0
    %6623 = vmatprep.subr.mxu0 0.0
    %6624 = vmatpush2.msra.mxu0 0.0
    %6625 = vmatprep.subr.mxu0 0.0
    %6626 = vmatpush2.msra.mxu0 0.0
    %6627 = vmatprep.subr.mxu0 0.0
    %6628 = vmatpush2.msra.mxu0 0.0
    %6629 = vmatprep.subr.mxu0 0.0
    %6630 = vmatpush2.msra.mxu0 0.0
    %6631 = vmatprep.subr.mxu0 0.0
    %6632 = vmatpush2.msra.mxu0 0.0
    %6633 = vmatprep.subr.mxu0 0.0
    %6634 = vmatpush2.msra.mxu0 0.0
    %6635 = vmatprep.subr.mxu0 0.0
    %6636 = vmatpush2.msra.mxu0 0.0
    %6637 = vmatprep.subr.mxu0 0.0
    %6638 = vmatpush2.msra.mxu0 0.0
    %6639 = vmatprep.subr.mxu0 0.0
    %6640 = vmatpush2.msra.mxu0 0.0
    %6641 = vmatprep.mubr.f32.mxu0 0.0
    %6642 = vmatmul.mubr.f32.gmra.mxu0 %v6576
    %v6643 = vpop.f32.mrf.mxu0
    %v6644 = vadd.f32 0.0, %v6643
    %v6645 = vpop.f32.mrf.mxu0
    %6646 = vdwg.mxu0
    %v6647 = vsel %vm2778, %v6644, -1e+30
    %v6648 = vsel %vm3405, %v6647, -inf
    %6649 = vmax.xlane.f32.xlu0 %v6648
    %v6650 = vpop.xlane.xlu0 %6649
    %v6651 = vsub.f32 %v6647, %v6650
    %v6652 = vmul.f32 %v6651, 1.442695
    %v6653 = vpow.pop %v6652
    %v6654 = vsel %vm3405, %v6653, 0.0
    %6655 = vadd.xlane.f32.xlu0 %v6654
    %v6656 = vpop.xlane.xlu0 %6655
    %v6657 = vrcp.pop %v6656
    %v6658 = vmul.f32 %v6653, %v6657
    %v6660 = vsel %vm2754, %v6658, 0
    %6662 = vmatprep.subr.mxu0 0.0
    %6663 = vmatpush1.msra.mxu0 0.0
    %6664 = vmatprep.subr.mxu0 0.0
    %6665 = vmatpush1.msra.mxu0 0.0
    %6666 = vmatprep.subr.mxu0 0.0
    %6667 = vmatpush1.msra.mxu0 0.0
    %6668 = vmatprep.subr.mxu0 0.0
    %6669 = vmatpush1.msra.mxu0 0.0
    %6670 = vmatprep.subr.mxu0 0.0
    %6671 = vmatpush1.msra.mxu0 0.0
    %6672 = vmatprep.subr.mxu0 0.0
    %6673 = vmatpush1.msra.mxu0 0.0
    %6674 = vmatprep.subr.mxu0 0.0
    %6675 = vmatpush1.msra.mxu0 0.0
    %6676 = vmatprep.subr.mxu0 0.0
    %6677 = vmatpush1.msra.mxu0 0.0
    %6678 = vmatprep.subr.mxu0 0.0
    %6679 = vmatpush1.msra.mxu0 0.0
    %6680 = vmatprep.subr.mxu0 0.0
    %6681 = vmatpush1.msra.mxu0 0.0
    %6682 = vmatprep.subr.mxu0 0.0
    %6683 = vmatpush1.msra.mxu0 0.0
    %6684 = vmatprep.subr.mxu0 0.0
    %6685 = vmatpush1.msra.mxu0 0.0
    %6686 = vmatprep.subr.mxu0 0.0
    %6687 = vmatpush1.msra.mxu0 0.0
    %6688 = vmatprep.subr.mxu0 0.0
    %6689 = vmatpush1.msra.mxu0 0.0
    %6690 = vmatprep.subr.mxu0 0.0
    %6691 = vmatpush1.msra.mxu0 0.0
    %6692 = vmatprep.subr.mxu0 0.0
    %6693 = vmatpush1.msra.mxu0 %v3417
    %6694 = vmatprep.subr.mxu0 0.0
    %6695 = vmatpush2.msra.mxu0 0.0
    %6696 = vmatprep.subr.mxu0 0.0
    %6697 = vmatpush2.msra.mxu0 0.0
    %6698 = vmatprep.subr.mxu0 0.0
    %6699 = vmatpush2.msra.mxu0 0.0
    %6700 = vmatprep.subr.mxu0 0.0
    %6701 = vmatpush2.msra.mxu0 0.0
    %6702 = vmatprep.subr.mxu0 0.0
    %6703 = vmatpush2.msra.mxu0 0.0
    %6704 = vmatprep.subr.mxu0 0.0
    %6705 = vmatpush2.msra.mxu0 0.0
    %6706 = vmatprep.subr.mxu0 0.0
    %6707 = vmatpush2.msra.mxu0 0.0
    %6708 = vmatprep.subr.mxu0 0.0
    %6709 = vmatpush2.msra.mxu0 0.0
    %6710 = vmatprep.subr.mxu0 0.0
    %6711 = vmatpush2.msra.mxu0 0.0
    %6712 = vmatprep.subr.mxu0 0.0
    %6713 = vmatpush2.msra.mxu0 0.0
    %6714 = vmatprep.subr.mxu0 0.0
    %6715 = vmatpush2.msra.mxu0 0.0
    %6716 = vmatprep.subr.mxu0 0.0
    %6717 = vmatpush2.msra.mxu0 0.0
    %6718 = vmatprep.subr.mxu0 0.0
    %6719 = vmatpush2.msra.mxu0 0.0
    %6720 = vmatprep.subr.mxu0 0.0
    %6721 = vmatpush2.msra.mxu0 0.0
    %6722 = vmatprep.subr.mxu0 0.0
    %6723 = vmatpush2.msra.mxu0 0.0
    %6724 = vmatprep.subr.mxu0 0.0
    %6725 = vmatpush2.msra.mxu0 0.0
    %6726 = vmatprep.mubr.f32.mxu0 0.0
    %6727 = vmatmul.mubr.f32.gmra.mxu0 %v6660
    %v6728 = vpop.f32.mrf.mxu0
    %v6729 = vadd.f32 0.0, %v6728
    %v6730 = vpop.f32.mrf.mxu0
    %6731 = vdwg.mxu0
    %v6732 = vpack.c.bf16 %v6576, %v6576
    %v6733 = vpack.c.bf16 %v6729, %v6729
    %6734 = vmatprep.subr.bf16.mxu0 0
    %6735 = vmatpush1.bf16.msra.mxu0 %v3564
    %6736 = vmatprep.subr.bf16.mxu0 0
    %6737 = vmatpush1.bf16.msra.mxu0 %v3563
    %6738 = vmatprep.subr.bf16.mxu0 0
    %6739 = vmatpush1.bf16.msra.mxu0 %v3562
    %6740 = vmatprep.subr.bf16.mxu0 0
    %6741 = vmatpush1.bf16.msra.mxu0 %v3561
    %6742 = vmatprep.subr.bf16.mxu0 0
    %6743 = vmatpush1.bf16.msra.mxu0 %v3560
    %6744 = vmatprep.subr.bf16.mxu0 0
    %6745 = vmatpush1.bf16.msra.mxu0 %v3559
    %6746 = vmatprep.subr.bf16.mxu0 0
    %6747 = vmatpush1.bf16.msra.mxu0 %v3558
    %6748 = vmatprep.subr.bf16.mxu0 0
    %6749 = vmatpush1.bf16.msra.mxu0 %v3557
    %6750 = vmatprep.subr.bf16.mxu0 0
    %6751 = vmatpush2.bf16.msra.mxu0 0
    %6752 = vmatprep.subr.bf16.mxu0 0
    %6753 = vmatpush2.bf16.msra.mxu0 0
    %6754 = vmatprep.subr.bf16.mxu0 0
    %6755 = vmatpush2.bf16.msra.mxu0 0
    %6756 = vmatprep.subr.bf16.mxu0 0
    %6757 = vmatpush2.bf16.msra.mxu0 0
    %6758 = vmatprep.subr.bf16.mxu0 0
    %6759 = vmatpush2.bf16.msra.mxu0 0
    %6760 = vmatprep.subr.bf16.mxu0 0
    %6761 = vmatpush2.bf16.msra.mxu0 0
    %6762 = vmatprep.subr.bf16.mxu0 0
    %6763 = vmatpush2.bf16.msra.mxu0 0
    %6764 = vmatprep.subr.bf16.mxu0 0
    %6765 = vmatpush2.bf16.msra.mxu0 0
    %6766 = vmatprep.mubr.bf16.mxu0 0
    %6767 = vmatmul.mubr.bf16.gmra.mxu0 %v6733
    %v6768 = vpop.f32.mrf.mxu0
    %v6769 = vadd.f32 0.0, %v6768
    %v6770 = vpop.f32.mrf.mxu0
    %v6771 = vpop.f32.mrf.mxu0
    %v6772 = vpop.f32.mrf.mxu0
    %6773 = vdwg.mxu0
    %6774 = vmatprep.subr.bf16.mxu0 0
    %6775 = vmatpush1.bf16.msra.mxu0 %v3652
    %6776 = vmatprep.subr.bf16.mxu0 0
    %6777 = vmatpush1.bf16.msra.mxu0 %v3651
    %6778 = vmatprep.subr.bf16.mxu0 0
    %6779 = vmatpush1.bf16.msra.mxu0 %v3650
    %6780 = vmatprep.subr.bf16.mxu0 0
    %6781 = vmatpush1.bf16.msra.mxu0 %v3649
    %6782 = vmatprep.subr.bf16.mxu0 0
    %6783 = vmatpush1.bf16.msra.mxu0 %v3648
    %6784 = vmatprep.subr.bf16.mxu0 0
    %6785 = vmatpush1.bf16.msra.mxu0 %v3647
    %6786 = vmatprep.subr.bf16.mxu0 0
    %6787 = vmatpush1.bf16.msra.mxu0 %v3646
    %6788 = vmatprep.subr.bf16.mxu0 0
    %6789 = vmatpush1.bf16.msra.mxu0 %v3645
    %6790 = vmatprep.subr.bf16.mxu0 0
    %6791 = vmatpush2.bf16.msra.mxu0 0
    %6792 = vmatprep.subr.bf16.mxu0 0
    %6793 = vmatpush2.bf16.msra.mxu0 0
    %6794 = vmatprep.subr.bf16.mxu0 0
    %6795 = vmatpush2.bf16.msra.mxu0 0
    %6796 = vmatprep.subr.bf16.mxu0 0
    %6797 = vmatpush2.bf16.msra.mxu0 0
    %6798 = vmatprep.subr.bf16.mxu0 0
    %6799 = vmatpush2.bf16.msra.mxu0 0
    %6800 = vmatprep.subr.bf16.mxu0 0
    %6801 = vmatpush2.bf16.msra.mxu0 0
    %6802 = vmatprep.subr.bf16.mxu0 0
    %6803 = vmatpush2.bf16.msra.mxu0 0
    %6804 = vmatprep.subr.bf16.mxu0 0
    %6805 = vmatpush2.bf16.msra.mxu0 0
    %6806 = vmatprep.mubr.bf16.mxu0 0
    %6807 = vmatmul.mubr.bf16.gmra.mxu0 %v6732
    %v6808 = vpop.f32.mrf.mxu0
    %v6809 = vadd.f32 %v6769, %v6808
    %v6810 = vpop.f32.mrf.mxu0
    %v6811 = vpop.f32.mrf.mxu0
    %v6812 = vpop.f32.mrf.mxu0
    %6813 = vdwg.mxu0
    %v6814 = vadd.f32 %v6809, %v2773
    %v6815 = vtanh.pop %v6814
    %v6816 = vpack.c.bf16 %v6815, %v6815
    %6817 = vmatprep.subr.bf16.mxu0 0
    %6818 = vmatpush1.bf16.msra.mxu0 %v3759
    %6819 = vmatprep.subr.bf16.mxu0 0
    %6820 = vmatpush1.bf16.msra.mxu0 %v3758
    %6821 = vmatprep.subr.bf16.mxu0 0
    %6822 = vmatpush1.bf16.msra.mxu0 %v3757
    %6823 = vmatprep.subr.bf16.mxu0 0
    %6824 = vmatpush1.bf16.msra.mxu0 %v3756
    %6825 = vmatprep.subr.bf16.mxu0 0
    %6826 = vmatpush1.bf16.msra.mxu0 %v3755
    %6827 = vmatprep.subr.bf16.mxu0 0
    %6828 = vmatpush1.bf16.msra.mxu0 %v3754
    %6829 = vmatprep.subr.bf16.mxu0 0
    %6830 = vmatpush1.bf16.msra.mxu0 %v3753
    %6831 = vmatprep.subr.bf16.mxu0 0
    %6832 = vmatpush1.bf16.msra.mxu0 %v3752
    %6833 = vmatprep.subr.bf16.mxu0 0
    %6834 = vmatpush2.bf16.msra.mxu0 0
    %6835 = vmatprep.subr.bf16.mxu0 0
    %6836 = vmatpush2.bf16.msra.mxu0 0
    %6837 = vmatprep.subr.bf16.mxu0 0
    %6838 = vmatpush2.bf16.msra.mxu0 0
    %6839 = vmatprep.subr.bf16.mxu0 0
    %6840 = vmatpush2.bf16.msra.mxu0 0
    %6841 = vmatprep.subr.bf16.mxu0 0
    %6842 = vmatpush2.bf16.msra.mxu0 0
    %6843 = vmatprep.subr.bf16.mxu0 0
    %6844 = vmatpush2.bf16.msra.mxu0 0
    %6845 = vmatprep.subr.bf16.mxu0 0
    %6846 = vmatpush2.bf16.msra.mxu0 0
    %6847 = vmatprep.subr.bf16.mxu0 0
    %6848 = vmatpush2.bf16.msra.mxu0 0
    %6849 = vmatprep.mubr.bf16.mxu0 0
    %6850 = vmatmul.mubr.bf16.gmra.mxu0 %v6816
    %v6851 = vpop.f32.mrf.mxu0
    %v6852 = vadd.f32 %v2774, %v6851
    %v6853 = vpop.f32.mrf.mxu0
    %v6854 = vpop.f32.mrf.mxu0
    %v6855 = vpop.f32.mrf.mxu0
    %6856 = vdwg.mxu0
    %v6857 = vsel %vm2779, %v6852, -1e+30
    %v6858 = vsel %vm3809, %v6857, -inf
    %6859 = vmax.xlane.f32.xlu0 %v6858
    %v6860 = vpop.xlane.xlu0 %6859
    %v6861 = vsub.f32 %v6857, %v6860
    %v6862 = vmul.f32 %v6861, 1.442695
    %v6863 = vpow.pop %v6862
    %v6864 = vsel %vm3809, %v6863, 0.0
    %6865 = vadd.xlane.f32.xlu0 %v6864
    %v6866 = vpop.xlane.xlu0 %6865
    %v6867 = vrcp.pop %v6866
    %vm6868 = vcmp.eq.f32.partialorder %v6857, %v6860
    %v6869 = vsel %vm6868, %v2776, 128
    %v6870 = vsel %vm3809, %v6869, 2147483647
    %v6871 = vand.u32 %v6870, 65535
    %v6872 = vshra.s32 %v6870, 16
    %v6873 = vcvt.s32.f32 %v6871
    %v6874 = vcvt.s32.f32 %v6872
    %6875 = vmin.xlane.f32.xlu0 %v6874
    %v6876 = vpop.xlane.xlu0 %6875
    %vm6877 = vcmp.eq.f32.partialorder %v6874, %v6876
    %v6878 = vsel %vm6877, %v6873, inf
    %6879 = vmin.xlane.f32.xlu0 %v6878
    %v6880 = vpop.xlane.xlu0 %6879
    %v6881 = vcvt.f32.s32 %v6880
    %v6882 = vcvt.f32.s32 %v6876
    %v6883 = vshll.u32 %v6882, 16
    %v6884 = vadd.s32 %v6883, %v6881
    %v6885 = vrot.slane %v6884, 4
    %vm6886 = vcmp.lt.s32.totalorder %v6884, %v6885
    %v6887 = vsel %vm6886, %v6884, %v6885
    %v6888 = vrot.slane %v6887, 2
    %vm6889 = vcmp.lt.s32.totalorder %v6887, %v6888
    %v6890 = vsel %vm6889, %v6887, %v6888
    %v6891 = vrot.slane %v6890, 1
    %vm6892 = vcmp.lt.s32.totalorder %v6890, %v6891
    %v6893 = vsel %vm6892, %v6890, %v6891
    %s6894 = vtos %v6893
    %vm6895 = vcmp.eq.s32.totalorder %v2776, 6
    %v6896 = vstv %s6894
    %v6897 = vsel %vm6895, %v6896, %v6389
    %v6898 = vsel %vm6895, %v6867, %v6390
    %s6899 = scalar_lea.vmem [#allocation15], %s6894
    %v6900 = vld [vmem:[%s6899] sm:$0x1]
    %v6901 = vpack.c.bf16 %v6900, %v6900
    %6902 = vmatprep.subr.bf16.mxu0 %v2916
    %6903 = vmatpush1.bf16.msra.mxu0 %v2915
    %6904 = vmatprep.subr.bf16.mxu0 %v2913
    %6905 = vmatpush1.bf16.msra.mxu0 %v2912
    %6906 = vmatprep.subr.bf16.mxu0 %v2910
    %6907 = vmatpush1.bf16.msra.mxu0 %v2909
    %6908 = vmatprep.subr.bf16.mxu0 %v2907
    %6909 = vmatpush1.bf16.msra.mxu0 %v2906
    %6910 = vmatprep.subr.bf16.mxu0 %v2904
    %6911 = vmatpush1.bf16.msra.mxu0 %v2903
    %6912 = vmatprep.subr.bf16.mxu0 %v2901
    %6913 = vmatpush1.bf16.msra.mxu0 %v2900
    %6914 = vmatprep.subr.bf16.mxu0 %v2898
    %6915 = vmatpush1.bf16.msra.mxu0 %v2897
    %6916 = vmatprep.subr.bf16.mxu0 %v2895
    %6917 = vmatpush1.bf16.msra.mxu0 %v2894
    %6918 = vmatprep.subr.bf16.mxu0 0
    %6919 = vmatpush2.bf16.msra.mxu0 0
    %6920 = vmatprep.subr.bf16.mxu0 0
    %6921 = vmatpush2.bf16.msra.mxu0 0
    %6922 = vmatprep.subr.bf16.mxu0 0
    %6923 = vmatpush2.bf16.msra.mxu0 0
    %6924 = vmatprep.subr.bf16.mxu0 0
    %6925 = vmatpush2.bf16.msra.mxu0 0
    %6926 = vmatprep.subr.bf16.mxu0 0
    %6927 = vmatpush2.bf16.msra.mxu0 0
    %6928 = vmatprep.subr.bf16.mxu0 0
    %6929 = vmatpush2.bf16.msra.mxu0 0
    %6930 = vmatprep.subr.bf16.mxu0 0
    %6931 = vmatpush2.bf16.msra.mxu0 0
    %6932 = vmatprep.subr.bf16.mxu0 0
    %6933 = vmatpush2.bf16.msra.mxu0 0
    %6934 = vmatprep.mubr.bf16.mxu0 0
    %6935 = vmatmul.mubr.bf16.gmra.mxu0 %v6901
    %v6936 = vpop.f32.mrf.mxu0
    %v6937 = vadd.f32 %v2946, %v6936
    %v6938 = vpop.f32.mrf.mxu0
    %v6939 = vadd.f32 %v2950, %v6938
    %v6940 = vpop.f32.mrf.mxu0
    %v6941 = vpop.f32.mrf.mxu0
    %6942 = vdwg.mxu0
    %6943 = vmatprep.subr.bf16.mxu0 0
    %6944 = vmatpush1.bf16.msra.mxu0 %v2917
    %6945 = vmatprep.subr.bf16.mxu0 0
    %6946 = vmatpush1.bf16.msra.mxu0 %v2914
    %6947 = vmatprep.subr.bf16.mxu0 0
    %6948 = vmatpush1.bf16.msra.mxu0 %v2911
    %6949 = vmatprep.subr.bf16.mxu0 0
    %6950 = vmatpush1.bf16.msra.mxu0 %v2908
    %6951 = vmatprep.subr.bf16.mxu0 0
    %6952 = vmatpush1.bf16.msra.mxu0 %v2905
    %6953 = vmatprep.subr.bf16.mxu0 0
    %6954 = vmatpush1.bf16.msra.mxu0 %v2902
    %6955 = vmatprep.subr.bf16.mxu0 0
    %6956 = vmatpush1.bf16.msra.mxu0 %v2899
    %6957 = vmatprep.subr.bf16.mxu0 0
    %6958 = vmatpush1.bf16.msra.mxu0 %v2896
    %6959 = vmatprep.subr.bf16.mxu0 0
    %6960 = vmatpush2.bf16.msra.mxu0 0
    %6961 = vmatprep.subr.bf16.mxu0 0
    %6962 = vmatpush2.bf16.msra.mxu0 0
    %6963 = vmatprep.subr.bf16.mxu0 0
    %6964 = vmatpush2.bf16.msra.mxu0 0
    %6965 = vmatprep.subr.bf16.mxu0 0
    %6966 = vmatpush2.bf16.msra.mxu0 0
    %6967 = vmatprep.subr.bf16.mxu0 0
    %6968 = vmatpush2.bf16.msra.mxu0 0
    %6969 = vmatprep.subr.bf16.mxu0 0
    %6970 = vmatpush2.bf16.msra.mxu0 0
    %6971 = vmatprep.subr.bf16.mxu0 0
    %6972 = vmatpush2.bf16.msra.mxu0 0
    %6973 = vmatprep.subr.bf16.mxu0 0
    %6974 = vmatpush2.bf16.msra.mxu0 0
    %6975 = vmatprep.mubr.bf16.mxu0 0
    %6976 = vmatmul.mubr.bf16.gmra.mxu0 %v6901
    %v6977 = vpop.f32.mrf.mxu0
    %v6978 = vadd.f32 %v2954, %v6977
    %v6979 = vpop.f32.mrf.mxu0
    %v6980 = vpop.f32.mrf.mxu0
    %v6981 = vpop.f32.mrf.mxu0
    %6982 = vdwg.mxu0
    %6983 = vmatprep.subr.bf16.mxu0 %v3174
    %6984 = vmatpush1.bf16.msra.mxu0 %v3173
    %6985 = vmatprep.subr.bf16.mxu0 %v3171
    %6986 = vmatpush1.bf16.msra.mxu0 %v3170
    %6987 = vmatprep.subr.bf16.mxu0 %v3168
    %6988 = vmatpush1.bf16.msra.mxu0 %v3167
    %6989 = vmatprep.subr.bf16.mxu0 %v3165
    %6990 = vmatpush1.bf16.msra.mxu0 %v3164
    %6991 = vmatprep.subr.bf16.mxu0 %v3162
    %6992 = vmatpush1.bf16.msra.mxu0 %v3161
    %6993 = vmatprep.subr.bf16.mxu0 %v3159
    %6994 = vmatpush1.bf16.msra.mxu0 %v3158
    %6995 = vmatprep.subr.bf16.mxu0 %v3156
    %6996 = vmatpush1.bf16.msra.mxu0 %v3155
    %6997 = vmatprep.subr.bf16.mxu0 %v3153
    %6998 = vmatpush1.bf16.msra.mxu0 %v3152
    %6999 = vmatprep.subr.bf16.mxu0 0
    %7000 = vmatpush2.bf16.msra.mxu0 0
    %7001 = vmatprep.subr.bf16.mxu0 0
    %7002 = vmatpush2.bf16.msra.mxu0 0
    %7003 = vmatprep.subr.bf16.mxu0 0
    %7004 = vmatpush2.bf16.msra.mxu0 0
    %7005 = vmatprep.subr.bf16.mxu0 0
    %7006 = vmatpush2.bf16.msra.mxu0 0
    %7007 = vmatprep.subr.bf16.mxu0 0
    %7008 = vmatpush2.bf16.msra.mxu0 0
    %7009 = vmatprep.subr.bf16.mxu0 0
    %7010 = vmatpush2.bf16.msra.mxu0 0
    %7011 = vmatprep.subr.bf16.mxu0 0
    %7012 = vmatpush2.bf16.msra.mxu0 0
    %7013 = vmatprep.subr.bf16.mxu0 0
    %7014 = vmatpush2.bf16.msra.mxu0 0
    %7015 = vmatprep.mubr.bf16.mxu0 0
    %7016 = vmatmul.mubr.bf16.gmra.mxu0 %v6732
    %v7017 = vpop.f32.mrf.mxu0
    %v7018 = vadd.f32 %v3204, %v7017
    %v7019 = vpop.f32.mrf.mxu0
    %v7020 = vadd.f32 %v3208, %v7019
    %v7021 = vpop.f32.mrf.mxu0
    %v7022 = vpop.f32.mrf.mxu0
    %7023 = vdwg.mxu0
    %7024 = vmatprep.subr.bf16.mxu0 0
    %7025 = vmatpush1.bf16.msra.mxu0 %v3175
    %7026 = vmatprep.subr.bf16.mxu0 0
    %7027 = vmatpush1.bf16.msra.mxu0 %v3172
    %7028 = vmatprep.subr.bf16.mxu0 0
    %7029 = vmatpush1.bf16.msra.mxu0 %v3169
    %7030 = vmatprep.subr.bf16.mxu0 0
    %7031 = vmatpush1.bf16.msra.mxu0 %v3166
    %7032 = vmatprep.subr.bf16.mxu0 0
    %7033 = vmatpush1.bf16.msra.mxu0 %v3163
    %7034 = vmatprep.subr.bf16.mxu0 0
    %7035 = vmatpush1.bf16.msra.mxu0 %v3160
    %7036 = vmatprep.subr.bf16.mxu0 0
    %7037 = vmatpush1.bf16.msra.mxu0 %v3157
    %7038 = vmatprep.subr.bf16.mxu0 0
    %7039 = vmatpush1.bf16.msra.mxu0 %v3154
    %7040 = vmatprep.subr.bf16.mxu0 0
    %7041 = vmatpush2.bf16.msra.mxu0 0
    %7042 = vmatprep.subr.bf16.mxu0 0
    %7043 = vmatpush2.bf16.msra.mxu0 0
    %7044 = vmatprep.subr.bf16.mxu0 0
    %7045 = vmatpush2.bf16.msra.mxu0 0
    %7046 = vmatprep.subr.bf16.mxu0 0
    %7047 = vmatpush2.bf16.msra.mxu0 0
    %7048 = vmatprep.subr.bf16.mxu0 0
    %7049 = vmatpush2.bf16.msra.mxu0 0
    %7050 = vmatprep.subr.bf16.mxu0 0
    %7051 = vmatpush2.bf16.msra.mxu0 0
    %7052 = vmatprep.subr.bf16.mxu0 0
    %7053 = vmatpush2.bf16.msra.mxu0 0
    %7054 = vmatprep.subr.bf16.mxu0 0
    %7055 = vmatpush2.bf16.msra.mxu0 0
    %7056 = vmatprep.mubr.bf16.mxu0 0
    %7057 = vmatmul.mubr.bf16.gmra.mxu0 %v6732
    %v7058 = vpop.f32.mrf.mxu0
    %v7059 = vadd.f32 %v3212, %v7058
    %v7060 = vpop.f32.mrf.mxu0
    %v7061 = vpop.f32.mrf.mxu0
    %v7062 = vpop.f32.mrf.mxu0
    %7063 = vdwg.mxu0
    %v7064 = vadd.f32 %v6937, %v7018
    %v7065 = vxor.u32 %v7064, 2147483648
    %v7066 = vmul.f32 %v7065, 1.442695
    %v7067 = vpow.pop %v7066
    %v7068 = vadd.f32 %v7067, 1.0
    %v7069 = vrcp.pop %v7068
    %v7070 = vmul.f32 1.0, %v7069
    %v7071 = vadd.f32 %v6939, %v7020
    %v7072 = vxor.u32 %v7071, 2147483648
    %v7073 = vmul.f32 %v7072, 1.442695
    %v7074 = vpow.pop %v7073
    %v7075 = vadd.f32 %v7074, 1.0
    %v7076 = vrcp.pop %v7075
    %v7077 = vmul.f32 1.0, %v7076
    %v7078 = vmul.f32 %v7070, %v7059
    %v7079 = vadd.f32 %v6978, %v7078
    %v7080 = vtanh.pop %v7079
    %v7081 = vsub.f32 1.0, %v7077
    %v7082 = vmul.f32 %v7081, %v7080
    %v7083 = vmul.f32 %v7077, %v6576
    %v7084 = vadd.f32 %v7082, %v7083
    %7085 = vmatprep.subr.mxu0 0.0
    %7086 = vmatpush1.msra.mxu0 %v3333
    %7087 = vmatprep.subr.mxu0 0.0
    %7088 = vmatpush1.msra.mxu0 %v3332
    %7089 = vmatprep.subr.mxu0 0.0
    %7090 = vmatpush1.msra.mxu0 %v3331
    %7091 = vmatprep.subr.mxu0 0.0
    %7092 = vmatpush1.msra.mxu0 %v3330
    %7093 = vmatprep.subr.mxu0 0.0
    %7094 = vmatpush1.msra.mxu0 %v3329
    %7095 = vmatprep.subr.mxu0 0.0
    %7096 = vmatpush1.msra.mxu0 %v3328
    %7097 = vmatprep.subr.mxu0 0.0
    %7098 = vmatpush1.msra.mxu0 %v3327
    %7099 = vmatprep.subr.mxu0 0.0
    %7100 = vmatpush1.msra.mxu0 %v3326
    %7101 = vmatprep.subr.mxu0 0.0
    %7102 = vmatpush1.msra.mxu0 %v3325
    %7103 = vmatprep.subr.mxu0 0.0
    %7104 = vmatpush1.msra.mxu0 %v3324
    %7105 = vmatprep.subr.mxu0 0.0
    %7106 = vmatpush1.msra.mxu0 %v3323
    %7107 = vmatprep.subr.mxu0 0.0
    %7108 = vmatpush1.msra.mxu0 %v3322
    %7109 = vmatprep.subr.mxu0 0.0
    %7110 = vmatpush1.msra.mxu0 %v3321
    %7111 = vmatprep.subr.mxu0 0.0
    %7112 = vmatpush1.msra.mxu0 %v3320
    %7113 = vmatprep.subr.mxu0 0.0
    %7114 = vmatpush1.msra.mxu0 %v3319
    %7115 = vmatprep.subr.mxu0 0.0
    %7116 = vmatpush1.msra.mxu0 %v3318
    %7117 = vmatprep.subr.mxu0 0.0
    %7118 = vmatpush2.msra.mxu0 0.0
    %7119 = vmatprep.subr.mxu0 0.0
    %7120 = vmatpush2.msra.mxu0 0.0
    %7121 = vmatprep.subr.mxu0 0.0
    %7122 = vmatpush2.msra.mxu0 0.0
    %7123 = vmatprep.subr.mxu0 0.0
    %7124 = vmatpush2.msra.mxu0 0.0
    %7125 = vmatprep.subr.mxu0 0.0
    %7126 = vmatpush2.msra.mxu0 0.0
    %7127 = vmatprep.subr.mxu0 0.0
    %7128 = vmatpush2.msra.mxu0 0.0
    %7129 = vmatprep.subr.mxu0 0.0
    %7130 = vmatpush2.msra.mxu0 0.0
    %7131 = vmatprep.subr.mxu0 0.0
    %7132 = vmatpush2.msra.mxu0 0.0
    %7133 = vmatprep.subr.mxu0 0.0
    %7134 = vmatpush2.msra.mxu0 0.0
    %7135 = vmatprep.subr.mxu0 0.0
    %7136 = vmatpush2.msra.mxu0 0.0
    %7137 = vmatprep.subr.mxu0 0.0
    %7138 = vmatpush2.msra.mxu0 0.0
    %7139 = vmatprep.subr.mxu0 0.0
    %7140 = vmatpush2.msra.mxu0 0.0
    %7141 = vmatprep.subr.mxu0 0.0
    %7142 = vmatpush2.msra.mxu0 0.0
    %7143 = vmatprep.subr.mxu0 0.0
    %7144 = vmatpush2.msra.mxu0 0.0
    %7145 = vmatprep.subr.mxu0 0.0
    %7146 = vmatpush2.msra.mxu0 0.0
    %7147 = vmatprep.subr.mxu0 0.0
    %7148 = vmatpush2.msra.mxu0 0.0
    %7149 = vmatprep.mubr.f32.mxu0 0.0
    %7150 = vmatmul.mubr.f32.gmra.mxu0 %v7084
    %v7151 = vpop.f32.mrf.mxu0
    %v7152 = vadd.f32 0.0, %v7151
    %v7153 = vpop.f32.mrf.mxu0
    %7154 = vdwg.mxu0
    %v7155 = vsel %vm2778, %v7152, -1e+30
    %v7156 = vsel %vm3405, %v7155, -inf
    %7157 = vmax.xlane.f32.xlu0 %v7156
    %v7158 = vpop.xlane.xlu0 %7157
    %v7159 = vsub.f32 %v7155, %v7158
    %v7160 = vmul.f32 %v7159, 1.442695
    %v7161 = vpow.pop %v7160
    %v7162 = vsel %vm3405, %v7161, 0.0
    %7163 = vadd.xlane.f32.xlu0 %v7162
    %v7164 = vpop.xlane.xlu0 %7163
    %v7165 = vrcp.pop %v7164
    %v7166 = vmul.f32 %v7161, %v7165
    %v7168 = vsel %vm2754, %v7166, 0
    %7170 = vmatprep.subr.mxu0 0.0
    %7171 = vmatpush1.msra.mxu0 0.0
    %7172 = vmatprep.subr.mxu0 0.0
    %7173 = vmatpush1.msra.mxu0 0.0
    %7174 = vmatprep.subr.mxu0 0.0
    %7175 = vmatpush1.msra.mxu0 0.0
    %7176 = vmatprep.subr.mxu0 0.0
    %7177 = vmatpush1.msra.mxu0 0.0
    %7178 = vmatprep.subr.mxu0 0.0
    %7179 = vmatpush1.msra.mxu0 0.0
    %7180 = vmatprep.subr.mxu0 0.0
    %7181 = vmatpush1.msra.mxu0 0.0
    %7182 = vmatprep.subr.mxu0 0.0
    %7183 = vmatpush1.msra.mxu0 0.0
    %7184 = vmatprep.subr.mxu0 0.0
    %7185 = vmatpush1.msra.mxu0 0.0
    %7186 = vmatprep.subr.mxu0 0.0
    %7187 = vmatpush1.msra.mxu0 0.0
    %7188 = vmatprep.subr.mxu0 0.0
    %7189 = vmatpush1.msra.mxu0 0.0
    %7190 = vmatprep.subr.mxu0 0.0
    %7191 = vmatpush1.msra.mxu0 0.0
    %7192 = vmatprep.subr.mxu0 0.0
    %7193 = vmatpush1.msra.mxu0 0.0
    %7194 = vmatprep.subr.mxu0 0.0
    %7195 = vmatpush1.msra.mxu0 0.0
    %7196 = vmatprep.subr.mxu0 0.0
    %7197 = vmatpush1.msra.mxu0 0.0
    %7198 = vmatprep.subr.mxu0 0.0
    %7199 = vmatpush1.msra.mxu0 0.0
    %7200 = vmatprep.subr.mxu0 0.0
    %7201 = vmatpush1.msra.mxu0 %v3417
    %7202 = vmatprep.subr.mxu0 0.0
    %7203 = vmatpush2.msra.mxu0 0.0
    %7204 = vmatprep.subr.mxu0 0.0
    %7205 = vmatpush2.msra.mxu0 0.0
    %7206 = vmatprep.subr.mxu0 0.0
    %7207 = vmatpush2.msra.mxu0 0.0
    %7208 = vmatprep.subr.mxu0 0.0
    %7209 = vmatpush2.msra.mxu0 0.0
    %7210 = vmatprep.subr.mxu0 0.0
    %7211 = vmatpush2.msra.mxu0 0.0
    %7212 = vmatprep.subr.mxu0 0.0
    %7213 = vmatpush2.msra.mxu0 0.0
    %7214 = vmatprep.subr.mxu0 0.0
    %7215 = vmatpush2.msra.mxu0 0.0
    %7216 = vmatprep.subr.mxu0 0.0
    %7217 = vmatpush2.msra.mxu0 0.0
    %7218 = vmatprep.subr.mxu0 0.0
    %7219 = vmatpush2.msra.mxu0 0.0
    %7220 = vmatprep.subr.mxu0 0.0
    %7221 = vmatpush2.msra.mxu0 0.0
    %7222 = vmatprep.subr.mxu0 0.0
    %7223 = vmatpush2.msra.mxu0 0.0
    %7224 = vmatprep.subr.mxu0 0.0
    %7225 = vmatpush2.msra.mxu0 0.0
    %7226 = vmatprep.subr.mxu0 0.0
    %7227 = vmatpush2.msra.mxu0 0.0
    %7228 = vmatprep.subr.mxu0 0.0
    %7229 = vmatpush2.msra.mxu0 0.0
    %7230 = vmatprep.subr.mxu0 0.0
    %7231 = vmatpush2.msra.mxu0 0.0
    %7232 = vmatprep.subr.mxu0 0.0
    %7233 = vmatpush2.msra.mxu0 0.0
    %7234 = vmatprep.mubr.f32.mxu0 0.0
    %7235 = vmatmul.mubr.f32.gmra.mxu0 %v7168
    %v7236 = vpop.f32.mrf.mxu0
    %v7237 = vadd.f32 0.0, %v7236
    %v7238 = vpop.f32.mrf.mxu0
    %7239 = vdwg.mxu0
    %v7240 = vpack.c.bf16 %v7084, %v7084
    %v7241 = vpack.c.bf16 %v7237, %v7237
    %7242 = vmatprep.subr.bf16.mxu0 0
    %7243 = vmatpush1.bf16.msra.mxu0 %v3564
    %7244 = vmatprep.subr.bf16.mxu0 0
    %7245 = vmatpush1.bf16.msra.mxu0 %v3563
    %7246 = vmatprep.subr.bf16.mxu0 0
    %7247 = vmatpush1.bf16.msra.mxu0 %v3562
    %7248 = vmatprep.subr.bf16.mxu0 0
    %7249 = vmatpush1.bf16.msra.mxu0 %v3561
    %7250 = vmatprep.subr.bf16.mxu0 0
    %7251 = vmatpush1.bf16.msra.mxu0 %v3560
    %7252 = vmatprep.subr.bf16.mxu0 0
    %7253 = vmatpush1.bf16.msra.mxu0 %v3559
    %7254 = vmatprep.subr.bf16.mxu0 0
    %7255 = vmatpush1.bf16.msra.mxu0 %v3558
    %7256 = vmatprep.subr.bf16.mxu0 0
    %7257 = vmatpush1.bf16.msra.mxu0 %v3557
    %7258 = vmatprep.subr.bf16.mxu0 0
    %7259 = vmatpush2.bf16.msra.mxu0 0
    %7260 = vmatprep.subr.bf16.mxu0 0
    %7261 = vmatpush2.bf16.msra.mxu0 0
    %7262 = vmatprep.subr.bf16.mxu0 0
    %7263 = vmatpush2.bf16.msra.mxu0 0
    %7264 = vmatprep.subr.bf16.mxu0 0
    %7265 = vmatpush2.bf16.msra.mxu0 0
    %7266 = vmatprep.subr.bf16.mxu0 0
    %7267 = vmatpush2.bf16.msra.mxu0 0
    %7268 = vmatprep.subr.bf16.mxu0 0
    %7269 = vmatpush2.bf16.msra.mxu0 0
    %7270 = vmatprep.subr.bf16.mxu0 0
    %7271 = vmatpush2.bf16.msra.mxu0 0
    %7272 = vmatprep.subr.bf16.mxu0 0
    %7273 = vmatpush2.bf16.msra.mxu0 0
    %7274 = vmatprep.mubr.bf16.mxu0 0
    %7275 = vmatmul.mubr.bf16.gmra.mxu0 %v7241
    %v7276 = vpop.f32.mrf.mxu0
    %v7277 = vadd.f32 0.0, %v7276
    %v7278 = vpop.f32.mrf.mxu0
    %v7279 = vpop.f32.mrf.mxu0
    %v7280 = vpop.f32.mrf.mxu0
    %7281 = vdwg.mxu0
    %7282 = vmatprep.subr.bf16.mxu0 0
    %7283 = vmatpush1.bf16.msra.mxu0 %v3652
    %7284 = vmatprep.subr.bf16.mxu0 0
    %7285 = vmatpush1.bf16.msra.mxu0 %v3651
    %7286 = vmatprep.subr.bf16.mxu0 0
    %7287 = vmatpush1.bf16.msra.mxu0 %v3650
    %7288 = vmatprep.subr.bf16.mxu0 0
    %7289 = vmatpush1.bf16.msra.mxu0 %v3649
    %7290 = vmatprep.subr.bf16.mxu0 0
    %7291 = vmatpush1.bf16.msra.mxu0 %v3648
    %7292 = vmatprep.subr.bf16.mxu0 0
    %7293 = vmatpush1.bf16.msra.mxu0 %v3647
    %7294 = vmatprep.subr.bf16.mxu0 0
    %7295 = vmatpush1.bf16.msra.mxu0 %v3646
    %7296 = vmatprep.subr.bf16.mxu0 0
    %7297 = vmatpush1.bf16.msra.mxu0 %v3645
    %7298 = vmatprep.subr.bf16.mxu0 0
    %7299 = vmatpush2.bf16.msra.mxu0 0
    %7300 = vmatprep.subr.bf16.mxu0 0
    %7301 = vmatpush2.bf16.msra.mxu0 0
    %7302 = vmatprep.subr.bf16.mxu0 0
    %7303 = vmatpush2.bf16.msra.mxu0 0
    %7304 = vmatprep.subr.bf16.mxu0 0
    %7305 = vmatpush2.bf16.msra.mxu0 0
    %7306 = vmatprep.subr.bf16.mxu0 0
    %7307 = vmatpush2.bf16.msra.mxu0 0
    %7308 = vmatprep.subr.bf16.mxu0 0
    %7309 = vmatpush2.bf16.msra.mxu0 0
    %7310 = vmatprep.subr.bf16.mxu0 0
    %7311 = vmatpush2.bf16.msra.mxu0 0
    %7312 = vmatprep.subr.bf16.mxu0 0
    %7313 = vmatpush2.bf16.msra.mxu0 0
    %7314 = vmatprep.mubr.bf16.mxu0 0
    %7315 = vmatmul.mubr.bf16.gmra.mxu0 %v7240
    %v7316 = vpop.f32.mrf.mxu0
    %v7317 = vadd.f32 %v7277, %v7316
    %v7318 = vpop.f32.mrf.mxu0
    %v7319 = vpop.f32.mrf.mxu0
    %v7320 = vpop.f32.mrf.mxu0
    %7321 = vdwg.mxu0
    %v7322 = vadd.f32 %v7317, %v2773
    %v7323 = vtanh.pop %v7322
    %v7324 = vpack.c.bf16 %v7323, %v7323
    %7325 = vmatprep.subr.bf16.mxu0 0
    %7326 = vmatpush1.bf16.msra.mxu0 %v3759
    %7327 = vmatprep.subr.bf16.mxu0 0
    %7328 = vmatpush1.bf16.msra.mxu0 %v3758
    %7329 = vmatprep.subr.bf16.mxu0 0
    %7330 = vmatpush1.bf16.msra.mxu0 %v3757
    %7331 = vmatprep.subr.bf16.mxu0 0
    %7332 = vmatpush1.bf16.msra.mxu0 %v3756
    %7333 = vmatprep.subr.bf16.mxu0 0
    %7334 = vmatpush1.bf16.msra.mxu0 %v3755
    %7335 = vmatprep.subr.bf16.mxu0 0
    %7336 = vmatpush1.bf16.msra.mxu0 %v3754
    %7337 = vmatprep.subr.bf16.mxu0 0
    %7338 = vmatpush1.bf16.msra.mxu0 %v3753
    %7339 = vmatprep.subr.bf16.mxu0 0
    %7340 = vmatpush1.bf16.msra.mxu0 %v3752
    %7341 = vmatprep.subr.bf16.mxu0 0
    %7342 = vmatpush2.bf16.msra.mxu0 0
    %7343 = vmatprep.subr.bf16.mxu0 0
    %7344 = vmatpush2.bf16.msra.mxu0 0
    %7345 = vmatprep.subr.bf16.mxu0 0
    %7346 = vmatpush2.bf16.msra.mxu0 0
    %7347 = vmatprep.subr.bf16.mxu0 0
    %7348 = vmatpush2.bf16.msra.mxu0 0
    %7349 = vmatprep.subr.bf16.mxu0 0
    %7350 = vmatpush2.bf16.msra.mxu0 0
    %7351 = vmatprep.subr.bf16.mxu0 0
    %7352 = vmatpush2.bf16.msra.mxu0 0
    %7353 = vmatprep.subr.bf16.mxu0 0
    %7354 = vmatpush2.bf16.msra.mxu0 0
    %7355 = vmatprep.subr.bf16.mxu0 0
    %7356 = vmatpush2.bf16.msra.mxu0 0
    %7357 = vmatprep.mubr.bf16.mxu0 0
    %7358 = vmatmul.mubr.bf16.gmra.mxu0 %v7324
    %v7359 = vpop.f32.mrf.mxu0
    %v7360 = vadd.f32 %v2774, %v7359
    %v7361 = vpop.f32.mrf.mxu0
    %v7362 = vpop.f32.mrf.mxu0
    %v7363 = vpop.f32.mrf.mxu0
    %7364 = vdwg.mxu0
    %v7365 = vsel %vm2779, %v7360, -1e+30
    %v7366 = vsel %vm3809, %v7365, -inf
    %7367 = vmax.xlane.f32.xlu0 %v7366
    %v7368 = vpop.xlane.xlu0 %7367
    %v7369 = vsub.f32 %v7365, %v7368
    %v7370 = vmul.f32 %v7369, 1.442695
    %v7371 = vpow.pop %v7370
    %v7372 = vsel %vm3809, %v7371, 0.0
    %7373 = vadd.xlane.f32.xlu0 %v7372
    %v7374 = vpop.xlane.xlu0 %7373
    %v7375 = vrcp.pop %v7374
    %vm7376 = vcmp.eq.f32.partialorder %v7365, %v7368
    %v7377 = vsel %vm7376, %v2776, 128
    %v7378 = vsel %vm3809, %v7377, 2147483647
    %v7379 = vand.u32 %v7378, 65535
    %v7380 = vshra.s32 %v7378, 16
    %v7381 = vcvt.s32.f32 %v7379
    %v7382 = vcvt.s32.f32 %v7380
    %7383 = vmin.xlane.f32.xlu0 %v7382
    %v7384 = vpop.xlane.xlu0 %7383
    %vm7385 = vcmp.eq.f32.partialorder %v7382, %v7384
    %v7386 = vsel %vm7385, %v7381, inf
    %7387 = vmin.xlane.f32.xlu0 %v7386
    %v7388 = vpop.xlane.xlu0 %7387
    %v7389 = vcvt.f32.s32 %v7388
    %v7390 = vcvt.f32.s32 %v7384
    %v7391 = vshll.u32 %v7390, 16
    %v7392 = vadd.s32 %v7391, %v7389
    %v7393 = vrot.slane %v7392, 4
    %vm7394 = vcmp.lt.s32.totalorder %v7392, %v7393
    %v7395 = vsel %vm7394, %v7392, %v7393
    %v7396 = vrot.slane %v7395, 2
    %vm7397 = vcmp.lt.s32.totalorder %v7395, %v7396
    %v7398 = vsel %vm7397, %v7395, %v7396
    %v7399 = vrot.slane %v7398, 1
    %vm7400 = vcmp.lt.s32.totalorder %v7398, %v7399
    %v7401 = vsel %vm7400, %v7398, %v7399
    %s7402 = vtos %v7401
    %vm7403 = vcmp.eq.s32.totalorder %v2776, 7
    %v7404 = vstv %s7402
    %v7405 = vsel %vm7403, %v7404, %v6897
    %v7406 = vsel %vm7403, %v7375, %v6898
    %7407 = vst.msk [vmem:[#allocation24] sm:$0x1] %vm3405, %v7405
    %7408 = vst.msk [vmem:[#allocation25] sm:$0x1] %vm3405, %v7406
    // Predicated region
    $region110: #{tpu_custom_call.1} parent=1 // pred_check
      _
    $region111: #{tpu_custom_call.1} parent=1 // pred_check_branch
      %7410 = sbr.rel (0) target = $region113
    $region112: #{tpu_custom_call.1} parent=1 // pred_region
      %s7412 = ssub.s32 16, 16
      %7413 = vsyncadd [#allocation9], %s7412
      %s7415 = sshll.u32 [#allocation24], 4
      %s7416 = int_to_ptr.vmem [resolvable:$true] %s7415
      %7418 = dma.vmem_to_hbm [thread:$0]  %s7416, 16, %s17, [#allocation9]
    $region113: #{tpu_custom_call.1} parent=1 // pred_fallthru
      _
    // Predicated region
    $region114: #{tpu_custom_call.1} parent=1 // pred_check
      _
    $region115: #{tpu_custom_call.1} parent=1 // pred_check_branch
      %7420 = sbr.rel (0) target = $region117
    $region116: #{tpu_custom_call.1} parent=1 // pred_region
      %s7422 = ssub.s32 16, 16
      %7423 = vsyncadd [#allocation26], %s7422
      %s7425 = sshll.u32 [#allocation25], 4
      %s7426 = int_to_ptr.vmem [resolvable:$true] %s7425
      %7428 = dma.vmem_to_hbm [thread:$0]  %s7426, 16, %s18, [#allocation26]
    $region117: #{tpu_custom_call.1} parent=1 // pred_fallthru
      _
    // Predicated region
    $region118: #{tpu_custom_call.1} parent=1 // pred_check
      _
    $region119: #{tpu_custom_call.1} parent=1 // pred_check_branch
      %7430 = sbr.rel (0) target = $region121
    $region120: #{tpu_custom_call.1} parent=1 // pred_region
      %7431 = dma.done [#allocation9], 16
    $region121: #{tpu_custom_call.1} parent=1 // pred_fallthru
      _
    // Predicated region
    $region122: #{tpu_custom_call.1} parent=1 // pred_check
      _
    $region123: #{tpu_custom_call.1} parent=1 // pred_check_branch
      %7433 = sbr.rel (0) target = $region125
    $region124: #{tpu_custom_call.1} parent=1 // pred_region
      %7434 = dma.done [#allocation26], 16
    $region125: #{tpu_custom_call.1} parent=1 // pred_fallthru
      _
    %7435 = vsyncpa [#allocation8], 1
    %7436 = vsyncpa [#allocation13], 1
    %7437 = vsyncpa [#allocation16], 1
    %7438 = vsyncpa [#allocation19], 1
    %7439 = vsyncpa [#allocation22], 1
    %7440 = vsyncpa [#allocation9], 1
    %7441 = vsyncpa [#allocation26], 1
    %7442 = vsyncpa [#allocation10], 1

</llo_original>
